<compile_context>
chip_gen: v6e
topology: v6e:2x2x1
jax: 0.10.0
libtpu: 0.0.40
codegen_flags: <defaults>
</compile_context>

<pallas_src>
import functools

import numpy as np
import jax
import jax.numpy as jnp
from jax.experimental import pallas as pl
from jax.experimental.pallas import tpu as pltpu
from jax.scipy.linalg import block_diag

F32 = jnp.float32


def _round_up(v, m):
    return (v + m - 1) // m * m


# ----------------------------------------------------------------------------
# Pallas kernel: one grid block = Tb (batch, timestep) slices, fully batched.
# ----------------------------------------------------------------------------
def _make_step_kernel(Tb, Np, Ep, Fd, compute_dtype):
    Fp = Fd + 1  # constant-1 column folds the first-layer biases

    def cd(a):
        return a.astype(compute_dtype)

    def kernel(x_ref, rte_ref,
               g_ref, rt_ref,
               w1a_ref, w1b_ref, w2_ref, b2_ref, w3_ref, b3_ref, s_ref,
               wo1x_ref, wo1m_ref, wo2_ref, bo2_ref, wo3_ref, bo3_ref,
               wo4_ref, bo4_ref,
               out_ref,
               recv_scr, send_scr, agg_scr):
        # ---- structured per-slice edge gather (no O(Tb^2) kron matrices) ----
        # G = [rel_rec; rel_send] stacked -> one small matmul per slice; split
        # with a free, aligned sublane slice.  Slice starts are static
        # multiples of Np / Ep (themselves multiples of the sublane packing).
        g = g_ref[...]                                        # [2*Ep, Np]
        for t in range(Tb):                                   # static unroll
            xs = cd(x_ref[t * Np:(t + 1) * Np, :])            # [Np, Fp]
            gs = jnp.dot(g, xs, preferred_element_type=F32)   # [2*Ep, Fp]
            recv_scr[t * Ep:(t + 1) * Ep, :] = gs[:Ep, :]
            send_scr[t * Ep:(t + 1) * Ep, :] = gs[Ep:, :]

        recv = recv_scr[...]                                  # [Tb*Ep, Fp]
        send = send_scr[...]

        # ---- fused Ka-edge-type 3-layer message MLP (b1 folded into w1a) ----
        h = jnp.maximum(
            jnp.dot(cd(recv), w1a_ref[...], preferred_element_type=F32)
            + jnp.dot(cd(send), w1b_ref[...], preferred_element_type=F32),
            0.0)                                              # [Tb*Ep, Ka*H]
        h = jnp.maximum(
            jnp.dot(cd(h), w2_ref[...], preferred_element_type=F32)
            + b2_ref[...], 0.0)                               # [Tb*Ep, Ka*H]
        m = jnp.maximum(
            jnp.dot(cd(h), w3_ref[...], preferred_element_type=F32)
            + b3_ref[...], 0.0)                               # [Tb*Ep, Ka*M]

        # scale by rel_type once on the lane-dense layout (f32 VALU), then fold
        # the Ka edge types with a stacked-identity matmul (MXU, no lane shifts)
        wide = m * rte_ref[...]                               # [Tb*Ep, Ka*M]
        msgs = jnp.dot(cd(wide), s_ref[...],
                       preferred_element_type=F32)            # [Tb*Ep, M]

        # ---- per-slice edge -> node aggregation with the native [Np, Ep] ----
        rt = rt_ref[...]                                      # rel_rec^T (padded)
        for t in range(Tb):
            agg_scr[t * Np:(t + 1) * Np, :] = jnp.dot(
                rt, cd(msgs[t * Ep:(t + 1) * Ep, :]),
                preferred_element_type=F32)                   # [Np, M]

        # ---- 4-layer output MLP on cat([x, agg]) + residual (f32 x) ----
        x = x_ref[...]                                        # [Tb*Np, Fp]  f32
        agg = agg_scr[...]                                    # [Tb*Np, M]   f32
        h = jnp.maximum(
            jnp.dot(cd(x), wo1x_ref[...], preferred_element_type=F32)
            + jnp.dot(cd(agg), wo1m_ref[...], preferred_element_type=F32),
            0.0)
        h = jnp.maximum(
            jnp.dot(cd(h), wo2_ref[...], preferred_element_type=F32)
            + bo2_ref[...], 0.0)
        h = jnp.maximum(
            jnp.dot(cd(h), wo3_ref[...], preferred_element_type=F32)
            + bo3_ref[...], 0.0)
        pred = (jnp.dot(cd(h), wo4_ref[...], preferred_element_type=F32)
                + bo4_ref[...])                               # [Tb*Np, Fd]

        # residual uses the untouched f32 x (never the compute_dtype cast)
        out_ref[...] = x[:, :Fd] + pred
        # TODO(synk): for a store-bound real workload, pad wo4/bo4 to 128 output
        # lanes (slice in the wrapper) so the final store is an unmasked vst.

    return kernel


# ----------------------------------------------------------------------------
# Step factory: hoists ALL x-independent operand prep out of the step loop.
# ----------------------------------------------------------------------------
def make_pallas_step(rel_rec, rel_send, rel_type_e, params, active_edge_types,
                     compute_dtype=F32):
    """Returns step(x): [B,T,N,Fd] -> [B,T,N,Fd]."""
    B, T, E, _K = rel_type_e.shape
    N = rel_rec.shape[1]
    Fd = params['wo4'].shape[-1]
    H = params['w2'].shape[-1]
    M = params['w3'].shape[-1]
    nh = params['wo2'].shape[-1]
    BT = B * T

    active = list(active_edge_types)
    if len(active) == 0:
        # all edge types skipped -> messages are identically zero; keep one
        # zero-weighted type so the fused kernel path is unchanged.
        active = [0]
        rt_sel = jnp.zeros((B, T, E, 1), F32)
    else:
        rt_sel = jnp.take(rel_type_e, jnp.asarray(active), axis=-1)  # [B,T,E,Ka]
    Ka = len(active)

    itemsize = jnp.dtype(compute_dtype).itemsize
    row_align = max(8, 32 // itemsize)   # (8,128) f32 / (16,128) bf16 packing
    Np = _round_up(N, row_align)
    Ep = _round_up(E, row_align)
    Fp = Fd + 1

    # ----- grid: single full-extent block unless each half has enough rows ----
    # v5e / v6e have one TensorCore, so a 2-point grid is a serial loop; on v7x
    # the split only pays off once per-block work amortizes the per-step cost.
    # TODO(synk): wire in pltpu.get_tpu_info() to enable the 2-block split only
    # on multi-TensorCore parts.
    n_blocks = 1
    if BT % 2 == 0:
        tb_half = BT // 2
        if ((tb_half * Np) % row_align == 0 and (tb_half * Ep) % row_align == 0
                and tb_half * Ep >= 256):
            n_blocks = 2
    Tb = BT // n_blocks
    rows_n = Tb * Np
    rows_e = Tb * Ep

    # ----- hoisted operand preparation (once per forward, not per step) -------
    cdt = lambda a: a.astype(compute_dtype)

    rel_rec_p = jnp.zeros((Ep, Np), F32).at[:E, :N].set(rel_rec.astype(F32))
    rel_send_p = jnp.zeros((Ep, Np), F32).at[:E, :N].set(rel_send.astype(F32))
    g_mat = cdt(jnp.concatenate([rel_rec_p, rel_send_p], axis=0))     # [2Ep, Np]
    rt_mat = cdt(rel_rec_p.T)                                         # [Np, Ep]

    w1a = jnp.concatenate([params['w1'][k, :Fd, :] for k in active], axis=-1)
    w1b = jnp.concatenate([params['w1'][k, Fd:, :] for k in active], axis=-1)
    b1c = jnp.concatenate([params['b1'][k] for k in active], axis=-1)  # [1, Ka*H]
    w1a_aug = cdt(jnp.concatenate([w1a, b1c], axis=0))                 # [Fp, Ka*H]
    w1b_aug = cdt(jnp.concatenate([w1b, jnp.zeros((1, Ka * H), F32)], axis=0))
    w2bd = cdt(block_diag(*[params['w2'][k] for k in active]))         # [Ka*H, Ka*H]
    b2c = jnp.concatenate([params['b2'][k] for k in active], axis=-1).astype(F32)
    w3bd = cdt(block_diag(*[params['w3'][k] for k in active]))         # [Ka*H, Ka*M]
    b3c = jnp.concatenate([params['b3'][k] for k in active], axis=-1).astype(F32)
    s_fold = cdt(jnp.concatenate([jnp.eye(M, dtype=F32)] * Ka, axis=0))  # [Ka*M, M]

    wo1x_aug = cdt(jnp.concatenate([params['wo1'][:Fd, :], params['bo1']],
                                   axis=0))                            # [Fp, nh]
    wo1m = cdt(params['wo1'][Fd:, :])                                  # [M, nh]

    resident = (g_mat, rt_mat,
                w1a_aug, w1b_aug, w2bd, b2c, w3bd, b3c, s_fold,
                wo1x_aug, wo1m,
                cdt(params['wo2']), params['bo2'].astype(F32),
                cdt(params['wo3']), params['bo3'].astype(F32),
                cdt(params['wo4']), params['bo4'].astype(F32))

    # rel_type pre-expanded ONCE to a lane-dense [BT*Ep, Ka*M] scaling slab
    # (zero on padded edges -> padded edges contribute nothing).
    rte = jnp.zeros((B, T, Ep, Ka), F32).at[:, :, :E, :].set(rt_sel.astype(F32))
    rte = jnp.repeat(rte, M, axis=-1).reshape(BT * Ep, Ka * M)

    kernel = _make_step_kernel(Tb, Np, Ep, Fd, compute_dtype)

    # NOTE: resident weight / relation operands use constant index maps; at
    # demo size double-buffering them costs nothing.
    # TODO(synk): at scale on v7x (64 MiB VMEM), pass
    # pipeline_mode=pl.Buffered(1) on the resident BlockSpecs to single-buffer.
    in_specs = ([pl.BlockSpec((rows_n, Fp), lambda i: (i, 0)),
                 pl.BlockSpec((rows_e, Ka * M), lambda i: (i, 0))]
                + [pl.BlockSpec(a.shape, lambda i: (0, 0)) for a in resident])

    macs = (BT * 2 * Ep * Np * Fp                   # gather
            + BT * Ep * (2 * Fp * Ka * H            # message layer 1 (2 matmuls)
                         + Ka * H * Ka * H          # layer 2
                         + Ka * H * Ka * M          # layer 3
                         + Ka * M * M)              # edge-type fold
            + BT * Np * Ep * M                      # edge -> node aggregation
            + BT * Np * (Fp * nh + M * nh           # out layer 1
                         + 2 * nh * nh              # out layers 2, 3
                         + nh * Fd))                # out layer 4
    bytes_accessed = int(sum(int(np.prod(a.shape)) * a.dtype.itemsize
                             for a in resident)
                         + BT * Np * Fp * 4 + BT * Ep * Ka * M * 4
                         + BT * Np * Fd * 4)

    call = pl.pallas_call(
        kernel,
        out_shape=jax.ShapeDtypeStruct((BT * Np, Fd), F32),
        grid=(n_blocks,),
        in_specs=in_specs,
        out_specs=pl.BlockSpec((rows_n, Fd), lambda i: (i, 0)),
        scratch_shapes=[pltpu.VMEM((rows_e, Fp), F32),   # recv slab
                        pltpu.VMEM((rows_e, Fp), F32),   # send slab
                        pltpu.VMEM((rows_n, M), F32)],   # aggregated messages
        compiler_params=pltpu.CompilerParams(
            dimension_semantics=(("parallel",) if n_blocks > 1
                                 else ("arbitrary",))),
        cost_estimate=pl.CostEstimate(flops=2 * macs, transcendentals=0,
                                      bytes_accessed=bytes_accessed),
    )

    def step(x):
        # append the constant-1 column (bias fold) and zero-pad node rows
        xp = jnp.concatenate([x.astype(F32),
                              jnp.ones(x.shape[:-1] + (1,), F32)], axis=-1)
        xp = jnp.pad(xp, ((0, 0), (0, 0), (0, Np - N), (0, 0)))
        out = call(xp.reshape(BT * Np, Fp), rte, *resident)
        return out.reshape(B, T, Np, Fd)[:, :, :N, :]

    return step


# ----------------------------------------------------------------------------
# Pure-JAX reference step factory (used to verify the kernel).
# ----------------------------------------------------------------------------
def make_ref_step(rel_rec, rel_send, rel_type_e, params, active_edge_types):
    hp = jax.lax.Precision.HIGHEST

    def step(x):
        recv = jnp.einsum('en,btnf->btef', rel_rec, x, precision=hp)
        send = jnp.einsum('en,btnf->btef', rel_send, x, precision=hp)
        pre = jnp.concatenate([recv, send], axis=-1)
        msg_out = params['w3'].shape[-1]
        all_msgs = jnp.zeros(pre.shape[:-1] + (msg_out,), F32)
        for k in active_edge_types:
            h = jax.nn.relu(jnp.einsum('btef,fh->bteh', pre, params['w1'][k],
                                       precision=hp) + params['b1'][k, 0])
            h = jax.nn.relu(jnp.einsum('bteh,hg->bteg', h, params['w2'][k],
                                       precision=hp) + params['b2'][k, 0])
            m = jax.nn.relu(jnp.einsum('bteg,gm->btem', h, params['w3'][k],
                                       precision=hp) + params['b3'][k, 0])
            all_msgs = all_msgs + m * rel_type_e[..., k:k + 1]
        agg = jnp.einsum('en,btem->btnm', rel_rec, all_msgs, precision=hp)
        aug = jnp.concatenate([x, agg], axis=-1)
        h = jax.nn.relu(jnp.einsum('btnf,fh->btnh', aug, params['wo1'],
                                   precision=hp) + params['bo1'][0])
        h = jax.nn.relu(jnp.einsum('btnh,hg->btng', h, params['wo2'],
                                   precision=hp) + params['bo2'][0])
        h = jax.nn.relu(jnp.einsum('btng,gk->btnk', h, params['wo3'],
                                   precision=hp) + params['bo3'][0])
        pred = jnp.einsum('btnk,kf->btnf', h, params['wo4'],
                          precision=hp) + params['bo4'][0]
        return x + pred

    return step


# ----------------------------------------------------------------------------
# Full module forward (glue in plain JAX, hot path via the step factory).
# ----------------------------------------------------------------------------
def softplus_beta(x, beta):
    # matches torch.nn.functional.softplus(x, beta) semantics (threshold=20)
    z = beta * x
    return jnp.where(z > 20.0, x, jnp.log1p(jnp.exp(jnp.minimum(z, 20.0))) / beta)


def mlp_decoder_forward(inputs, rel_type, rel_rec, rel_send, sigma,
                        sigmavariable, anisotropic, beta, params,
                        edge_types, edge_types_list, step_factory,
                        skip_first=False, pred_steps=1):
    non_null = list(range(edge_types))
    if skip_first:
        edge = 0
        for k in edge_types_list:
            non_null.remove(edge)
            edge += k
    active = tuple(non_null)

    if sigmavariable:
        x = jnp.concatenate([inputs, sigma], axis=3)
    else:
        x = inputs
    x = jnp.transpose(x, (0, 2, 1, 3)).astype(F32)      # [B, T, N, F]
    B, T, N, F = x.shape
    E, K = rel_type.shape[1], rel_type.shape[2]
    rel_type_e = jnp.broadcast_to(rel_type[:, None, :, :], (B, T, E, K))

    assert pred_steps <= T
    last = x[:, ::pred_steps]
    curr_rel = rel_type_e[:, ::pred_steps]

    # operand preparation is hoisted here: done once, reused for every step
    step = step_factory(rel_rec, rel_send, curr_rel, params, active)

    preds = []
    for _ in range(pred_steps):
        last = step(last)
        preds.append(last)

    Tp = preds[0].shape[1]
    output = jnp.zeros((B, Tp * pred_steps, N, F), F32)
    for i, p in enumerate(preds):
        output = output.at[:, i::pred_steps].set(p)

    if sigmavariable:
        future = output[:, 1:]
        current = output[:, :-1]
        acc = future[..., 2:4] - current[..., 2:4]
        vel = future[..., 0:2] - current[..., 0:2]
        acc = jnp.concatenate([jnp.zeros((B, 1, N, 2), F32), acc], axis=1)
        vel = jnp.concatenate([jnp.zeros((B, 1, N, 2), F32), vel], axis=1)
        pred_all = output[:, :T - 1]
        accel = acc[:, :T - 1]
        velocity = vel[:, :T - 1]
        sigma_1 = jnp.swapaxes(pred_all[..., 4:], 1, 2)
        sigma_1 = softplus_beta(sigma_1, beta)
        pred_all = pred_all[..., 0:4]
    else:
        pred_all = output[:, :T - 1]
        sigma_1 = sigma
        accel = jnp.ones((1, 1, 1), F32)
        velocity = jnp.ones((1, 1, 1), F32)

    return (jnp.swapaxes(pred_all, 1, 2), sigma_1,
            jnp.swapaxes(accel, 1, 2), jnp.swapaxes(velocity, 1, 2))


# ----------------------------------------------------------------------------
# Deterministic parameter init (PyTorch nn.Linear default: U(-1/sqrt(in), ..))
# ----------------------------------------------------------------------------
def init_params(key, n_in, edge_types, msg_hid, msg_out, n_hid):
    def lin(k, fan_in, fan_out):
        k1, k2 = jax.random.split(k)
        bound = 1.0 / np.sqrt(fan_in)
        w = jax.random.uniform(k1, (fan_in, fan_out), F32, -bound, bound)
        b = jax.random.uniform(k2, (fan_out,), F32, -bound, bound)
        return w, b

    keys = jax.random.split(key, 8)
    w1s, b1s, w2s, b2s, w3s, b3s = [], [], [], [], [], []
    for i in range(edge_types):
        w, b = lin(jax.random.fold_in(keys[0], i), 2 * n_in, msg_hid)
        w1s.append(w); b1s.append(b[None])
        w, b = lin(jax.random.fold_in(keys[1], i), msg_hid, msg_hid)
        w2s.append(w); b2s.append(b[None])
        w, b = lin(jax.random.fold_in(keys[2], i), msg_hid, msg_out)
        w3s.append(w); b3s.append(b[None])

    wo1, bo1 = lin(keys[3], n_in + msg_out, n_hid)
    wo2, bo2 = lin(keys[4], n_hid, n_hid)
    wo3, bo3 = lin(keys[5], n_hid, n_hid)
    wo4, bo4 = lin(keys[6], n_hid, n_in)

    return dict(
        w1=jnp.stack(w1s), b1=jnp.stack(b1s),     # [K, 2F, H], [K, 1, H]
        w2=jnp.stack(w2s), b2=jnp.stack(b2s),
        w3=jnp.stack(w3s), b3=jnp.stack(b3s),
        wo1=wo1, bo1=bo1[None], wo2=wo2, bo2=bo2[None],
        wo3=wo3, bo3=bo3[None], wo4=wo4, bo4=bo4[None],
    )


# ----------------------------------------------------------------------------
if __name__ == "__main__":
    # Small shapes consistent with the module:
    B, N_atoms, T = 2, 5, 8
    D_state, D_sigma = 4, 2                  # positions/velocities + sigma dims
    n_in_node = D_state + D_sigma            # F after cat(inputs, sigma)
    msg_hid = msg_out = n_hid = 32
    edge_types = 2
    edge_types_list = [2]
    E = N_atoms * (N_atoms - 1)
    beta = 1.0
    pred_steps = 1

    key = jax.random.PRNGKey(0)
    k_in, k_sig, k_rel, k_par = jax.random.split(key, 4)

    inputs = jax.random.normal(k_in, (B, N_atoms, T, D_state), F32)
    sigma = jax.random.normal(k_sig, (B, N_atoms, T, D_sigma), F32)
    rel_type = jax.nn.softmax(
        jax.random.normal(k_rel, (B, E, edge_types), F32), axis=-1)

    # fully-connected (no self-loop) one-hot relation matrices
    send_idx, recv_idx = [], []
    for i in range(N_atoms):
        for j in range(N_atoms):
            if i != j:
                send_idx.append(i)
                recv_idx.append(j)
    rel_rec = jax.nn.one_hot(jnp.array(recv_idx), N_atoms, dtype=F32)   # [E, N]
    rel_send = jax.nn.one_hot(jnp.array(send_idx), N_atoms, dtype=F32)  # [E, N]

    params = init_params(k_par, n_in_node, edge_types, msg_hid, msg_out, n_hid)

    def run_forward(step_factory, inputs_, sigma_, rel_type_):
        return mlp_decoder_forward(
            inputs_, rel_type_, rel_rec, rel_send, sigma_,
            True, True, beta, params, edge_types, edge_types_list,
            step_factory, skip_first=False, pred_steps=pred_steps)

    # compute_dtype=jnp.bfloat16 is the recommended setting on v6e/v7x (matmul
    # operands only; x / residual / VALU stay f32 and padding becomes 16-row
    # aligned); the demo keeps f32 so results match the f32 reference.
    pallas_fn = jax.jit(functools.partial(
        run_forward, functools.partial(make_pallas_step, compute_dtype=F32)))
    ref_fn = jax.jit(functools.partial(run_forward, make_ref_step))

    out_pallas = jax.block_until_ready(pallas_fn(inputs, sigma, rel_type))
    out_ref = jax.block_until_ready(ref_fn(inputs, sigma, rel_type))

    names = ["pred_all", "sigma_1", "accel", "velocity"]
    for name, a, b in zip(names, out_pallas, out_ref):
        np.testing.assert_allclose(np.asarray(a), np.asarray(b),
                                   rtol=2e-3, atol=2e-3, err_msg=name)

    # TODO(synk): dropout is identity here (do_prob=0.0 module default);
    # stochastic dropout would need pltpu.prng_* inside the kernel.
    print("KERNEL_OK")
</pallas_src>

<mosaic_0001>
module attributes {stable_mosaic.version = 11 : i64} {
  func.func @kernel(%arg0: i32, %arg1: memref<128x7xf32, #tpu.memory_space<vmem>>, %arg2: memref<384x64xf32, #tpu.memory_space<vmem>>, %arg3: memref<48x8xf32, #tpu.memory_space<vmem>>, %arg4: memref<8x24xf32, #tpu.memory_space<vmem>>, %arg5: memref<7x64xf32, #tpu.memory_space<vmem>>, %arg6: memref<7x64xf32, #tpu.memory_space<vmem>>, %arg7: memref<64x64xf32, #tpu.memory_space<vmem>>, %arg8: memref<1x64xf32, #tpu.memory_space<vmem>>, %arg9: memref<64x64xf32, #tpu.memory_space<vmem>>, %arg10: memref<1x64xf32, #tpu.memory_space<vmem>>, %arg11: memref<64x32xf32, #tpu.memory_space<vmem>>, %arg12: memref<7x32xf32, #tpu.memory_space<vmem>>, %arg13: memref<32x32xf32, #tpu.memory_space<vmem>>, %arg14: memref<32x32xf32, #tpu.memory_space<vmem>>, %arg15: memref<1x32xf32, #tpu.memory_space<vmem>>, %arg16: memref<32x32xf32, #tpu.memory_space<vmem>>, %arg17: memref<1x32xf32, #tpu.memory_space<vmem>>, %arg18: memref<32x6xf32, #tpu.memory_space<vmem>>, %arg19: memref<1x6xf32, #tpu.memory_space<vmem>>, %arg20: memref<128x6xf32, #tpu.memory_space<vmem>>, %arg21: memref<384x7xf32, #tpu.memory_space<vmem>>, %arg22: memref<384x7xf32, #tpu.memory_space<vmem>>, %arg23: memref<128x32xf32, #tpu.memory_space<vmem>>) attributes {dimension_semantics = [#tpu.dimension_semantics<arbitrary>], iteration_bounds = array<i64: 1>, scalar_prefetch = 0 : i64, scratch_operands = 3 : i64, tpu.core_type = #tpu.core_type<tc>, window_params = [{transform_indices = @transform_0, window_bounds = array<i64: 128, 7>}, {transform_indices = @transform_1, window_bounds = array<i64: 384, 64>}, {pipeline_mode = #tpu.pipeline_mode<synchronous>, transform_indices = @transform_2, window_bounds = array<i64: 48, 8>}, {pipeline_mode = #tpu.pipeline_mode<synchronous>, transform_indices = @transform_3, window_bounds = array<i64: 8, 24>}, {pipeline_mode = #tpu.pipeline_mode<synchronous>, transform_indices = @transform_4, window_bounds = array<i64: 7, 64>}, {pipeline_mode = #tpu.pipeline_mode<synchronous>, transform_indices = @transform_5, window_bounds = array<i64: 7, 64>}, {pipeline_mode = #tpu.pipeline_mode<synchronous>, transform_indices = @transform_6, window_bounds = array<i64: 64, 64>}, {pipeline_mode = #tpu.pipeline_mode<synchronous>, transform_indices = @transform_7, window_bounds = array<i64: 1, 64>}, {pipeline_mode = #tpu.pipeline_mode<synchronous>, transform_indices = @transform_8, window_bounds = array<i64: 64, 64>}, {pipeline_mode = #tpu.pipeline_mode<synchronous>, transform_indices = @transform_9, window_bounds = array<i64: 1, 64>}, {pipeline_mode = #tpu.pipeline_mode<synchronous>, transform_indices = @transform_10, window_bounds = array<i64: 64, 32>}, {pipeline_mode = #tpu.pipeline_mode<synchronous>, transform_indices = @transform_11, window_bounds = array<i64: 7, 32>}, {pipeline_mode = #tpu.pipeline_mode<synchronous>, transform_indices = @transform_12, window_bounds = array<i64: 32, 32>}, {pipeline_mode = #tpu.pipeline_mode<synchronous>, transform_indices = @transform_13, window_bounds = array<i64: 32, 32>}, {pipeline_mode = #tpu.pipeline_mode<synchronous>, transform_indices = @transform_14, window_bounds = array<i64: 1, 32>}, {pipeline_mode = #tpu.pipeline_mode<synchronous>, transform_indices = @transform_15, window_bounds = array<i64: 32, 32>}, {pipeline_mode = #tpu.pipeline_mode<synchronous>, transform_indices = @transform_16, window_bounds = array<i64: 1, 32>}, {pipeline_mode = #tpu.pipeline_mode<synchronous>, transform_indices = @transform_17, window_bounds = array<i64: 32, 6>}, {pipeline_mode = #tpu.pipeline_mode<synchronous>, transform_indices = @transform_18, window_bounds = array<i64: 1, 6>}, {transform_indices = @transform_19, window_bounds = array<i64: 128, 6>}]} {
    %c0 = arith.constant 0 : index
    %c0_0 = arith.constant 0 : index
    %0 = vector.load %arg3[%c0, %c0_0] : memref<48x8xf32, #tpu.memory_space<vmem>>, vector<48x8xf32>
    %c0_1 = arith.constant 0 : index
    %c0_2 = arith.constant 0 : index
    %1 = vector.load %arg1[%c0_1, %c0_2] : memref<128x7xf32, #tpu.memory_space<vmem>>, vector<8x7xf32>
    %cst = arith.constant dense<0.000000e+00> : vector<48x7xf32>
    %2 = tpu.matmul %0, %1, %cst {dimension_numbers = #tpu.dot_dimension_numbers<[1], [0], [0], [1], [0, 0, 1, 1], [], []>} : vector<48x8xf32>, vector<8x7xf32>, vector<48x7xf32> -> vector<48x7xf32>
    %3 = vector.extract_strided_slice %2 {offsets = [0, 0], sizes = [24, 7], strides = [1, 1]} : vector<48x7xf32> to vector<24x7xf32>
    %c0_3 = arith.constant 0 : index
    %c0_4 = arith.constant 0 : index
    %4 = vector.load %arg21[%c0_3, %c0_4] : memref<384x7xf32, #tpu.memory_space<vmem>>, vector<24x7xf32>
    tpu.vector_store %arg21[%c0_3, %c0_4], %3 {strides = array<i32>} : memref<384x7xf32, #tpu.memory_space<vmem>>, vector<24x7xf32>,
    %5 = vector.extract_strided_slice %2 {offsets = [24, 0], sizes = [24, 7], strides = [1, 1]} : vector<48x7xf32> to vector<24x7xf32>
    %c0_5 = arith.constant 0 : index
    %c0_6 = arith.constant 0 : index
    %6 = vector.load %arg22[%c0_5, %c0_6] : memref<384x7xf32, #tpu.memory_space<vmem>>, vector<24x7xf32>
    tpu.vector_store %arg22[%c0_5, %c0_6], %5 {strides = array<i32>} : memref<384x7xf32, #tpu.memory_space<vmem>>, vector<24x7xf32>,
    %c8 = arith.constant 8 : index
    %c0_7 = arith.constant 0 : index
    %7 = vector.load %arg1[%c8, %c0_7] : memref<128x7xf32, #tpu.memory_space<vmem>>, vector<8x7xf32>
    %cst_8 = arith.constant dense<0.000000e+00> : vector<48x7xf32>
    %8 = tpu.matmul %0, %7, %cst_8 {dimension_numbers = #tpu.dot_dimension_numbers<[1], [0], [0], [1], [0, 0, 1, 1], [], []>} : vector<48x8xf32>, vector<8x7xf32>, vector<48x7xf32> -> vector<48x7xf32>
    %9 = vector.extract_strided_slice %8 {offsets = [0, 0], sizes = [24, 7], strides = [1, 1]} : vector<48x7xf32> to vector<24x7xf32>
    %c24 = arith.constant 24 : index
    %c0_9 = arith.constant 0 : index
    %10 = vector.load %arg21[%c24, %c0_9] : memref<384x7xf32, #tpu.memory_space<vmem>>, vector<24x7xf32>
    tpu.vector_store %arg21[%c24, %c0_9], %9 {strides = array<i32>} : memref<384x7xf32, #tpu.memory_space<vmem>>, vector<24x7xf32>,
    %11 = vector.extract_strided_slice %8 {offsets = [24, 0], sizes = [24, 7], strides = [1, 1]} : vector<48x7xf32> to vector<24x7xf32>
    %c24_10 = arith.constant 24 : index
    %c0_11 = arith.constant 0 : index
    %12 = vector.load %arg22[%c24_10, %c0_11] : memref<384x7xf32, #tpu.memory_space<vmem>>, vector<24x7xf32>
    tpu.vector_store %arg22[%c24_10, %c0_11], %11 {strides = array<i32>} : memref<384x7xf32, #tpu.memory_space<vmem>>, vector<24x7xf32>,
    %c16 = arith.constant 16 : index
    %c0_12 = arith.constant 0 : index
    %13 = vector.load %arg1[%c16, %c0_12] : memref<128x7xf32, #tpu.memory_space<vmem>>, vector<8x7xf32>
    %cst_13 = arith.constant dense<0.000000e+00> : vector<48x7xf32>
    %14 = tpu.matmul %0, %13, %cst_13 {dimension_numbers = #tpu.dot_dimension_numbers<[1], [0], [0], [1], [0, 0, 1, 1], [], []>} : vector<48x8xf32>, vector<8x7xf32>, vector<48x7xf32> -> vector<48x7xf32>
    %15 = vector.extract_strided_slice %14 {offsets = [0, 0], sizes = [24, 7], strides = [1, 1]} : vector<48x7xf32> to vector<24x7xf32>
    %c48 = arith.constant 48 : index
    %c0_14 = arith.constant 0 : index
    %16 = vector.load %arg21[%c48, %c0_14] : memref<384x7xf32, #tpu.memory_space<vmem>>, vector<24x7xf32>
    tpu.vector_store %arg21[%c48, %c0_14], %15 {strides = array<i32>} : memref<384x7xf32, #tpu.memory_space<vmem>>, vector<24x7xf32>,
    %17 = vector.extract_strided_slice %14 {offsets = [24, 0], sizes = [24, 7], strides = [1, 1]} : vector<48x7xf32> to vector<24x7xf32>
    %c48_15 = arith.constant 48 : index
    %c0_16 = arith.constant 0 : index
    %18 = vector.load %arg22[%c48_15, %c0_16] : memref<384x7xf32, #tpu.memory_space<vmem>>, vector<24x7xf32>
    tpu.vector_store %arg22[%c48_15, %c0_16], %17 {strides = array<i32>} : memref<384x7xf32, #tpu.memory_space<vmem>>, vector<24x7xf32>,
    %c24_17 = arith.constant 24 : index
    %c0_18 = arith.constant 0 : index
    %19 = vector.load %arg1[%c24_17, %c0_18] : memref<128x7xf32, #tpu.memory_space<vmem>>, vector<8x7xf32>
    %cst_19 = arith.constant dense<0.000000e+00> : vector<48x7xf32>
    %20 = tpu.matmul %0, %19, %cst_19 {dimension_numbers = #tpu.dot_dimension_numbers<[1], [0], [0], [1], [0, 0, 1, 1], [], []>} : vector<48x8xf32>, vector<8x7xf32>, vector<48x7xf32> -> vector<48x7xf32>
    %21 = vector.extract_strided_slice %20 {offsets = [0, 0], sizes = [24, 7], strides = [1, 1]} : vector<48x7xf32> to vector<24x7xf32>
    %c72 = arith.constant 72 : index
    %c0_20 = arith.constant 0 : index
    %22 = vector.load %arg21[%c72, %c0_20] : memref<384x7xf32, #tpu.memory_space<vmem>>, vector<24x7xf32>
    tpu.vector_store %arg21[%c72, %c0_20], %21 {strides = array<i32>} : memref<384x7xf32, #tpu.memory_space<vmem>>, vector<24x7xf32>,
    %23 = vector.extract_strided_slice %20 {offsets = [24, 0], sizes = [24, 7], strides = [1, 1]} : vector<48x7xf32> to vector<24x7xf32>
    %c72_21 = arith.constant 72 : index
    %c0_22 = arith.constant 0 : index
    %24 = vector.load %arg22[%c72_21, %c0_22] : memref<384x7xf32, #tpu.memory_space<vmem>>, vector<24x7xf32>
    tpu.vector_store %arg22[%c72_21, %c0_22], %23 {strides = array<i32>} : memref<384x7xf32, #tpu.memory_space<vmem>>, vector<24x7xf32>,
    %c32 = arith.constant 32 : index
    %c0_23 = arith.constant 0 : index
    %25 = vector.load %arg1[%c32, %c0_23] : memref<128x7xf32, #tpu.memory_space<vmem>>, vector<8x7xf32>
    %cst_24 = arith.constant dense<0.000000e+00> : vector<48x7xf32>
    %26 = tpu.matmul %0, %25, %cst_24 {dimension_numbers = #tpu.dot_dimension_numbers<[1], [0], [0], [1], [0, 0, 1, 1], [], []>} : vector<48x8xf32>, vector<8x7xf32>, vector<48x7xf32> -> vector<48x7xf32>
    %27 = vector.extract_strided_slice %26 {offsets = [0, 0], sizes = [24, 7], strides = [1, 1]} : vector<48x7xf32> to vector<24x7xf32>
    %c96 = arith.constant 96 : index
    %c0_25 = arith.constant 0 : index
    %28 = vector.load %arg21[%c96, %c0_25] : memref<384x7xf32, #tpu.memory_space<vmem>>, vector<24x7xf32>
    tpu.vector_store %arg21[%c96, %c0_25], %27 {strides = array<i32>} : memref<384x7xf32, #tpu.memory_space<vmem>>, vector<24x7xf32>,
    %29 = vector.extract_strided_slice %26 {offsets = [24, 0], sizes = [24, 7], strides = [1, 1]} : vector<48x7xf32> to vector<24x7xf32>
    %c96_26 = arith.constant 96 : index
    %c0_27 = arith.constant 0 : index
    %30 = vector.load %arg22[%c96_26, %c0_27] : memref<384x7xf32, #tpu.memory_space<vmem>>, vector<24x7xf32>
    tpu.vector_store %arg22[%c96_26, %c0_27], %29 {strides = array<i32>} : memref<384x7xf32, #tpu.memory_space<vmem>>, vector<24x7xf32>,
    %c40 = arith.constant 40 : index
    %c0_28 = arith.constant 0 : index
    %31 = vector.load %arg1[%c40, %c0_28] : memref<128x7xf32, #tpu.memory_space<vmem>>, vector<8x7xf32>
    %cst_29 = arith.constant dense<0.000000e+00> : vector<48x7xf32>
    %32 = tpu.matmul %0, %31, %cst_29 {dimension_numbers = #tpu.dot_dimension_numbers<[1], [0], [0], [1], [0, 0, 1, 1], [], []>} : vector<48x8xf32>, vector<8x7xf32>, vector<48x7xf32> -> vector<48x7xf32>
    %33 = vector.extract_strided_slice %32 {offsets = [0, 0], sizes = [24, 7], strides = [1, 1]} : vector<48x7xf32> to vector<24x7xf32>
    %c120 = arith.constant 120 : index
    %c0_30 = arith.constant 0 : index
    %34 = vector.load %arg21[%c120, %c0_30] : memref<384x7xf32, #tpu.memory_space<vmem>>, vector<24x7xf32>
    tpu.vector_store %arg21[%c120, %c0_30], %33 {strides = array<i32>} : memref<384x7xf32, #tpu.memory_space<vmem>>, vector<24x7xf32>,
    %35 = vector.extract_strided_slice %32 {offsets = [24, 0], sizes = [24, 7], strides = [1, 1]} : vector<48x7xf32> to vector<24x7xf32>
    %c120_31 = arith.constant 120 : index
    %c0_32 = arith.constant 0 : index
    %36 = vector.load %arg22[%c120_31, %c0_32] : memref<384x7xf32, #tpu.memory_space<vmem>>, vector<24x7xf32>
    tpu.vector_store %arg22[%c120_31, %c0_32], %35 {strides = array<i32>} : memref<384x7xf32, #tpu.memory_space<vmem>>, vector<24x7xf32>,
    %c48_33 = arith.constant 48 : index
    %c0_34 = arith.constant 0 : index
    %37 = vector.load %arg1[%c48_33, %c0_34] : memref<128x7xf32, #tpu.memory_space<vmem>>, vector<8x7xf32>
    %cst_35 = arith.constant dense<0.000000e+00> : vector<48x7xf32>
    %38 = tpu.matmul %0, %37, %cst_35 {dimension_numbers = #tpu.dot_dimension_numbers<[1], [0], [0], [1], [0, 0, 1, 1], [], []>} : vector<48x8xf32>, vector<8x7xf32>, vector<48x7xf32> -> vector<48x7xf32>
    %39 = vector.extract_strided_slice %38 {offsets = [0, 0], sizes = [24, 7], strides = [1, 1]} : vector<48x7xf32> to vector<24x7xf32>
    %c144 = arith.constant 144 : index
    %c0_36 = arith.constant 0 : index
    %40 = vector.load %arg21[%c144, %c0_36] : memref<384x7xf32, #tpu.memory_space<vmem>>, vector<24x7xf32>
    tpu.vector_store %arg21[%c144, %c0_36], %39 {strides = array<i32>} : memref<384x7xf32, #tpu.memory_space<vmem>>, vector<24x7xf32>,
    %41 = vector.extract_strided_slice %38 {offsets = [24, 0], sizes = [24, 7], strides = [1, 1]} : vector<48x7xf32> to vector<24x7xf32>
    %c144_37 = arith.constant 144 : index
    %c0_38 = arith.constant 0 : index
    %42 = vector.load %arg22[%c144_37, %c0_38] : memref<384x7xf32, #tpu.memory_space<vmem>>, vector<24x7xf32>
    tpu.vector_store %arg22[%c144_37, %c0_38], %41 {strides = array<i32>} : memref<384x7xf32, #tpu.memory_space<vmem>>, vector<24x7xf32>,
    %c56 = arith.constant 56 : index
    %c0_39 = arith.constant 0 : index
    %43 = vector.load %arg1[%c56, %c0_39] : memref<128x7xf32, #tpu.memory_space<vmem>>, vector<8x7xf32>
    %cst_40 = arith.constant dense<0.000000e+00> : vector<48x7xf32>
    %44 = tpu.matmul %0, %43, %cst_40 {dimension_numbers = #tpu.dot_dimension_numbers<[1], [0], [0], [1], [0, 0, 1, 1], [], []>} : vector<48x8xf32>, vector<8x7xf32>, vector<48x7xf32> -> vector<48x7xf32>
    %45 = vector.extract_strided_slice %44 {offsets = [0, 0], sizes = [24, 7], strides = [1, 1]} : vector<48x7xf32> to vector<24x7xf32>
    %c168 = arith.constant 168 : index
    %c0_41 = arith.constant 0 : index
    %46 = vector.load %arg21[%c168, %c0_41] : memref<384x7xf32, #tpu.memory_space<vmem>>, vector<24x7xf32>
    tpu.vector_store %arg21[%c168, %c0_41], %45 {strides = array<i32>} : memref<384x7xf32, #tpu.memory_space<vmem>>, vector<24x7xf32>,
    %47 = vector.extract_strided_slice %44 {offsets = [24, 0], sizes = [24, 7], strides = [1, 1]} : vector<48x7xf32> to vector<24x7xf32>
    %c168_42 = arith.constant 168 : index
    %c0_43 = arith.constant 0 : index
    %48 = vector.load %arg22[%c168_42, %c0_43] : memref<384x7xf32, #tpu.memory_space<vmem>>, vector<24x7xf32>
    tpu.vector_store %arg22[%c168_42, %c0_43], %47 {strides = array<i32>} : memref<384x7xf32, #tpu.memory_space<vmem>>, vector<24x7xf32>,
    %c64 = arith.constant 64 : index
    %c0_44 = arith.constant 0 : index
    %49 = vector.load %arg1[%c64, %c0_44] : memref<128x7xf32, #tpu.memory_space<vmem>>, vector<8x7xf32>
    %cst_45 = arith.constant dense<0.000000e+00> : vector<48x7xf32>
    %50 = tpu.matmul %0, %49, %cst_45 {dimension_numbers = #tpu.dot_dimension_numbers<[1], [0], [0], [1], [0, 0, 1, 1], [], []>} : vector<48x8xf32>, vector<8x7xf32>, vector<48x7xf32> -> vector<48x7xf32>
    %51 = vector.extract_strided_slice %50 {offsets = [0, 0], sizes = [24, 7], strides = [1, 1]} : vector<48x7xf32> to vector<24x7xf32>
    %c192 = arith.constant 192 : index
    %c0_46 = arith.constant 0 : index
    %52 = vector.load %arg21[%c192, %c0_46] : memref<384x7xf32, #tpu.memory_space<vmem>>, vector<24x7xf32>
    tpu.vector_store %arg21[%c192, %c0_46], %51 {strides = array<i32>} : memref<384x7xf32, #tpu.memory_space<vmem>>, vector<24x7xf32>,
    %53 = vector.extract_strided_slice %50 {offsets = [24, 0], sizes = [24, 7], strides = [1, 1]} : vector<48x7xf32> to vector<24x7xf32>
    %c192_47 = arith.constant 192 : index
    %c0_48 = arith.constant 0 : index
    %54 = vector.load %arg22[%c192_47, %c0_48] : memref<384x7xf32, #tpu.memory_space<vmem>>, vector<24x7xf32>
    tpu.vector_store %arg22[%c192_47, %c0_48], %53 {strides = array<i32>} : memref<384x7xf32, #tpu.memory_space<vmem>>, vector<24x7xf32>,
    %c72_49 = arith.constant 72 : index
    %c0_50 = arith.constant 0 : index
    %55 = vector.load %arg1[%c72_49, %c0_50] : memref<128x7xf32, #tpu.memory_space<vmem>>, vector<8x7xf32>
    %cst_51 = arith.constant dense<0.000000e+00> : vector<48x7xf32>
    %56 = tpu.matmul %0, %55, %cst_51 {dimension_numbers = #tpu.dot_dimension_numbers<[1], [0], [0], [1], [0, 0, 1, 1], [], []>} : vector<48x8xf32>, vector<8x7xf32>, vector<48x7xf32> -> vector<48x7xf32>
    %57 = vector.extract_strided_slice %56 {offsets = [0, 0], sizes = [24, 7], strides = [1, 1]} : vector<48x7xf32> to vector<24x7xf32>
    %c216 = arith.constant 216 : index
    %c0_52 = arith.constant 0 : index
    %58 = vector.load %arg21[%c216, %c0_52] : memref<384x7xf32, #tpu.memory_space<vmem>>, vector<24x7xf32>
    tpu.vector_store %arg21[%c216, %c0_52], %57 {strides = array<i32>} : memref<384x7xf32, #tpu.memory_space<vmem>>, vector<24x7xf32>,
    %59 = vector.extract_strided_slice %56 {offsets = [24, 0], sizes = [24, 7], strides = [1, 1]} : vector<48x7xf32> to vector<24x7xf32>
    %c216_53 = arith.constant 216 : index
    %c0_54 = arith.constant 0 : index
    %60 = vector.load %arg22[%c216_53, %c0_54] : memref<384x7xf32, #tpu.memory_space<vmem>>, vector<24x7xf32>
    tpu.vector_store %arg22[%c216_53, %c0_54], %59 {strides = array<i32>} : memref<384x7xf32, #tpu.memory_space<vmem>>, vector<24x7xf32>,
    %c80 = arith.constant 80 : index
    %c0_55 = arith.constant 0 : index
    %61 = vector.load %arg1[%c80, %c0_55] : memref<128x7xf32, #tpu.memory_space<vmem>>, vector<8x7xf32>
    %cst_56 = arith.constant dense<0.000000e+00> : vector<48x7xf32>
    %62 = tpu.matmul %0, %61, %cst_56 {dimension_numbers = #tpu.dot_dimension_numbers<[1], [0], [0], [1], [0, 0, 1, 1], [], []>} : vector<48x8xf32>, vector<8x7xf32>, vector<48x7xf32> -> vector<48x7xf32>
    %63 = vector.extract_strided_slice %62 {offsets = [0, 0], sizes = [24, 7], strides = [1, 1]} : vector<48x7xf32> to vector<24x7xf32>
    %c240 = arith.constant 240 : index
    %c0_57 = arith.constant 0 : index
    %64 = vector.load %arg21[%c240, %c0_57] : memref<384x7xf32, #tpu.memory_space<vmem>>, vector<24x7xf32>
    tpu.vector_store %arg21[%c240, %c0_57], %63 {strides = array<i32>} : memref<384x7xf32, #tpu.memory_space<vmem>>, vector<24x7xf32>,
    %65 = vector.extract_strided_slice %62 {offsets = [24, 0], sizes = [24, 7], strides = [1, 1]} : vector<48x7xf32> to vector<24x7xf32>
    %c240_58 = arith.constant 240 : index
    %c0_59 = arith.constant 0 : index
    %66 = vector.load %arg22[%c240_58, %c0_59] : memref<384x7xf32, #tpu.memory_space<vmem>>, vector<24x7xf32>
    tpu.vector_store %arg22[%c240_58, %c0_59], %65 {strides = array<i32>} : memref<384x7xf32, #tpu.memory_space<vmem>>, vector<24x7xf32>,
    %c88 = arith.constant 88 : index
    %c0_60 = arith.constant 0 : index
    %67 = vector.load %arg1[%c88, %c0_60] : memref<128x7xf32, #tpu.memory_space<vmem>>, vector<8x7xf32>
    %cst_61 = arith.constant dense<0.000000e+00> : vector<48x7xf32>
    %68 = tpu.matmul %0, %67, %cst_61 {dimension_numbers = #tpu.dot_dimension_numbers<[1], [0], [0], [1], [0, 0, 1, 1], [], []>} : vector<48x8xf32>, vector<8x7xf32>, vector<48x7xf32> -> vector<48x7xf32>
    %69 = vector.extract_strided_slice %68 {offsets = [0, 0], sizes = [24, 7], strides = [1, 1]} : vector<48x7xf32> to vector<24x7xf32>
    %c264 = arith.constant 264 : index
    %c0_62 = arith.constant 0 : index
    %70 = vector.load %arg21[%c264, %c0_62] : memref<384x7xf32, #tpu.memory_space<vmem>>, vector<24x7xf32>
    tpu.vector_store %arg21[%c264, %c0_62], %69 {strides = array<i32>} : memref<384x7xf32, #tpu.memory_space<vmem>>, vector<24x7xf32>,
    %71 = vector.extract_strided_slice %68 {offsets = [24, 0], sizes = [24, 7], strides = [1, 1]} : vector<48x7xf32> to vector<24x7xf32>
    %c264_63 = arith.constant 264 : index
    %c0_64 = arith.constant 0 : index
    %72 = vector.load %arg22[%c264_63, %c0_64] : memref<384x7xf32, #tpu.memory_space<vmem>>, vector<24x7xf32>
    tpu.vector_store %arg22[%c264_63, %c0_64], %71 {strides = array<i32>} : memref<384x7xf32, #tpu.memory_space<vmem>>, vector<24x7xf32>,
    %c96_65 = arith.constant 96 : index
    %c0_66 = arith.constant 0 : index
    %73 = vector.load %arg1[%c96_65, %c0_66] : memref<128x7xf32, #tpu.memory_space<vmem>>, vector<8x7xf32>
    %cst_67 = arith.constant dense<0.000000e+00> : vector<48x7xf32>
    %74 = tpu.matmul %0, %73, %cst_67 {dimension_numbers = #tpu.dot_dimension_numbers<[1], [0], [0], [1], [0, 0, 1, 1], [], []>} : vector<48x8xf32>, vector<8x7xf32>, vector<48x7xf32> -> vector<48x7xf32>
    %75 = vector.extract_strided_slice %74 {offsets = [0, 0], sizes = [24, 7], strides = [1, 1]} : vector<48x7xf32> to vector<24x7xf32>
    %c288 = arith.constant 288 : index
    %c0_68 = arith.constant 0 : index
    %76 = vector.load %arg21[%c288, %c0_68] : memref<384x7xf32, #tpu.memory_space<vmem>>, vector<24x7xf32>
    tpu.vector_store %arg21[%c288, %c0_68], %75 {strides = array<i32>} : memref<384x7xf32, #tpu.memory_space<vmem>>, vector<24x7xf32>,
    %77 = vector.extract_strided_slice %74 {offsets = [24, 0], sizes = [24, 7], strides = [1, 1]} : vector<48x7xf32> to vector<24x7xf32>
    %c288_69 = arith.constant 288 : index
    %c0_70 = arith.constant 0 : index
    %78 = vector.load %arg22[%c288_69, %c0_70] : memref<384x7xf32, #tpu.memory_space<vmem>>, vector<24x7xf32>
    tpu.vector_store %arg22[%c288_69, %c0_70], %77 {strides = array<i32>} : memref<384x7xf32, #tpu.memory_space<vmem>>, vector<24x7xf32>,
    %c104 = arith.constant 104 : index
    %c0_71 = arith.constant 0 : index
    %79 = vector.load %arg1[%c104, %c0_71] : memref<128x7xf32, #tpu.memory_space<vmem>>, vector<8x7xf32>
    %cst_72 = arith.constant dense<0.000000e+00> : vector<48x7xf32>
    %80 = tpu.matmul %0, %79, %cst_72 {dimension_numbers = #tpu.dot_dimension_numbers<[1], [0], [0], [1], [0, 0, 1, 1], [], []>} : vector<48x8xf32>, vector<8x7xf32>, vector<48x7xf32> -> vector<48x7xf32>
    %81 = vector.extract_strided_slice %80 {offsets = [0, 0], sizes = [24, 7], strides = [1, 1]} : vector<48x7xf32> to vector<24x7xf32>
    %c312 = arith.constant 312 : index
    %c0_73 = arith.constant 0 : index
    %82 = vector.load %arg21[%c312, %c0_73] : memref<384x7xf32, #tpu.memory_space<vmem>>, vector<24x7xf32>
    tpu.vector_store %arg21[%c312, %c0_73], %81 {strides = array<i32>} : memref<384x7xf32, #tpu.memory_space<vmem>>, vector<24x7xf32>,
    %83 = vector.extract_strided_slice %80 {offsets = [24, 0], sizes = [24, 7], strides = [1, 1]} : vector<48x7xf32> to vector<24x7xf32>
    %c312_74 = arith.constant 312 : index
    %c0_75 = arith.constant 0 : index
    %84 = vector.load %arg22[%c312_74, %c0_75] : memref<384x7xf32, #tpu.memory_space<vmem>>, vector<24x7xf32>
    tpu.vector_store %arg22[%c312_74, %c0_75], %83 {strides = array<i32>} : memref<384x7xf32, #tpu.memory_space<vmem>>, vector<24x7xf32>,
    %c112 = arith.constant 112 : index
    %c0_76 = arith.constant 0 : index
    %85 = vector.load %arg1[%c112, %c0_76] : memref<128x7xf32, #tpu.memory_space<vmem>>, vector<8x7xf32>
    %cst_77 = arith.constant dense<0.000000e+00> : vector<48x7xf32>
    %86 = tpu.matmul %0, %85, %cst_77 {dimension_numbers = #tpu.dot_dimension_numbers<[1], [0], [0], [1], [0, 0, 1, 1], [], []>} : vector<48x8xf32>, vector<8x7xf32>, vector<48x7xf32> -> vector<48x7xf32>
    %87 = vector.extract_strided_slice %86 {offsets = [0, 0], sizes = [24, 7], strides = [1, 1]} : vector<48x7xf32> to vector<24x7xf32>
    %c336 = arith.constant 336 : index
    %c0_78 = arith.constant 0 : index
    %88 = vector.load %arg21[%c336, %c0_78] : memref<384x7xf32, #tpu.memory_space<vmem>>, vector<24x7xf32>
    tpu.vector_store %arg21[%c336, %c0_78], %87 {strides = array<i32>} : memref<384x7xf32, #tpu.memory_space<vmem>>, vector<24x7xf32>,
    %89 = vector.extract_strided_slice %86 {offsets = [24, 0], sizes = [24, 7], strides = [1, 1]} : vector<48x7xf32> to vector<24x7xf32>
    %c336_79 = arith.constant 336 : index
    %c0_80 = arith.constant 0 : index
    %90 = vector.load %arg22[%c336_79, %c0_80] : memref<384x7xf32, #tpu.memory_space<vmem>>, vector<24x7xf32>
    tpu.vector_store %arg22[%c336_79, %c0_80], %89 {strides = array<i32>} : memref<384x7xf32, #tpu.memory_space<vmem>>, vector<24x7xf32>,
    %c120_81 = arith.constant 120 : index
    %c0_82 = arith.constant 0 : index
    %91 = vector.load %arg1[%c120_81, %c0_82] : memref<128x7xf32, #tpu.memory_space<vmem>>, vector<8x7xf32>
    %cst_83 = arith.constant dense<0.000000e+00> : vector<48x7xf32>
    %92 = tpu.matmul %0, %91, %cst_83 {dimension_numbers = #tpu.dot_dimension_numbers<[1], [0], [0], [1], [0, 0, 1, 1], [], []>} : vector<48x8xf32>, vector<8x7xf32>, vector<48x7xf32> -> vector<48x7xf32>
    %93 = vector.extract_strided_slice %92 {offsets = [0, 0], sizes = [24, 7], strides = [1, 1]} : vector<48x7xf32> to vector<24x7xf32>
    %c360 = arith.constant 360 : index
    %c0_84 = arith.constant 0 : index
    %94 = vector.load %arg21[%c360, %c0_84] : memref<384x7xf32, #tpu.memory_space<vmem>>, vector<24x7xf32>
    tpu.vector_store %arg21[%c360, %c0_84], %93 {strides = array<i32>} : memref<384x7xf32, #tpu.memory_space<vmem>>, vector<24x7xf32>,
    %95 = vector.extract_strided_slice %92 {offsets = [24, 0], sizes = [24, 7], strides = [1, 1]} : vector<48x7xf32> to vector<24x7xf32>
    %c360_85 = arith.constant 360 : index
    %c0_86 = arith.constant 0 : index
    %96 = vector.load %arg22[%c360_85, %c0_86] : memref<384x7xf32, #tpu.memory_space<vmem>>, vector<24x7xf32>
    tpu.vector_store %arg22[%c360_85, %c0_86], %95 {strides = array<i32>} : memref<384x7xf32, #tpu.memory_space<vmem>>, vector<24x7xf32>,
    %c0_87 = arith.constant 0 : index
    %c0_88 = arith.constant 0 : index
    %97 = vector.load %arg21[%c0_87, %c0_88] : memref<384x7xf32, #tpu.memory_space<vmem>>, vector<384x7xf32>
    %c0_89 = arith.constant 0 : index
    %c0_90 = arith.constant 0 : index
    %98 = vector.load %arg22[%c0_89, %c0_90] : memref<384x7xf32, #tpu.memory_space<vmem>>, vector<384x7xf32>
    %c0_91 = arith.constant 0 : index
    %c0_92 = arith.constant 0 : index
    %99 = vector.load %arg5[%c0_91, %c0_92] : memref<7x64xf32, #tpu.memory_space<vmem>>, vector<7x64xf32>
    %cst_93 = arith.constant dense<0.000000e+00> : vector<384x64xf32>
    %100 = tpu.matmul %97, %99, %cst_93 {dimension_numbers = #tpu.dot_dimension_numbers<[1], [0], [0], [1], [0, 0, 1, 1], [], []>} : vector<384x7xf32>, vector<7x64xf32>, vector<384x64xf32> -> vector<384x64xf32>
    %c0_94 = arith.constant 0 : index
    %c0_95 = arith.constant 0 : index
    %101 = vector.load %arg6[%c0_94, %c0_95] : memref<7x64xf32, #tpu.memory_space<vmem>>, vector<7x64xf32>
    %cst_96 = arith.constant dense<0.000000e+00> : vector<384x64xf32>
    %102 = tpu.matmul %98, %101, %cst_96 {dimension_numbers = #tpu.dot_dimension_numbers<[1], [0], [0], [1], [0, 0, 1, 1], [], []>} : vector<384x7xf32>, vector<7x64xf32>, vector<384x64xf32> -> vector<384x64xf32>
    %103 = arith.addf %100, %102 : vector<384x64xf32>
    %cst_97 = arith.constant 0.000000e+00 : f32
    %104 = vector.broadcast %cst_97 : f32 to vector<384x64xf32>
    %105 = arith.maximumf %103, %104 : vector<384x64xf32>
    %c0_98 = arith.constant 0 : index
    %c0_99 = arith.constant 0 : index
    %106 = vector.load %arg7[%c0_98, %c0_99] : memref<64x64xf32, #tpu.memory_space<vmem>>, vector<64x64xf32>
    %cst_100 = arith.constant dense<0.000000e+00> : vector<384x64xf32>
    %107 = tpu.matmul %105, %106, %cst_100 {dimension_numbers = #tpu.dot_dimension_numbers<[1], [0], [0], [1], [0, 0, 1, 1], [], []>} : vector<384x64xf32>, vector<64x64xf32>, vector<384x64xf32> -> vector<384x64xf32>
    %c0_101 = arith.constant 0 : index
    %c0_102 = arith.constant 0 : index
    %108 = vector.load %arg8[%c0_101, %c0_102] : memref<1x64xf32, #tpu.memory_space<vmem>>, vector<1x64xf32>
    %109 = vector.broadcast %108 : vector<1x64xf32> to vector<384x64xf32>
    %110 = arith.addf %107, %109 : vector<384x64xf32>
    %cst_103 = arith.constant 0.000000e+00 : f32
    %111 = vector.broadcast %cst_103 : f32 to vector<384x64xf32>
    %112 = arith.maximumf %110, %111 : vector<384x64xf32>
    %c0_104 = arith.constant 0 : index
    %c0_105 = arith.constant 0 : index
    %113 = vector.load %arg9[%c0_104, %c0_105] : memref<64x64xf32, #tpu.memory_space<vmem>>, vector<64x64xf32>
    %cst_106 = arith.constant dense<0.000000e+00> : vector<384x64xf32>
    %114 = tpu.matmul %112, %113, %cst_106 {dimension_numbers = #tpu.dot_dimension_numbers<[1], [0], [0], [1], [0, 0, 1, 1], [], []>} : vector<384x64xf32>, vector<64x64xf32>, vector<384x64xf32> -> vector<384x64xf32>
    %c0_107 = arith.constant 0 : index
    %c0_108 = arith.constant 0 : index
    %115 = vector.load %arg10[%c0_107, %c0_108] : memref<1x64xf32, #tpu.memory_space<vmem>>, vector<1x64xf32>
    %116 = vector.broadcast %115 : vector<1x64xf32> to vector<384x64xf32>
    %117 = arith.addf %114, %116 : vector<384x64xf32>
    %cst_109 = arith.constant 0.000000e+00 : f32
    %118 = vector.broadcast %cst_109 : f32 to vector<384x64xf32>
    %119 = arith.maximumf %117, %118 : vector<384x64xf32>
    %c0_110 = arith.constant 0 : index
    %c0_111 = arith.constant 0 : index
    %120 = vector.load %arg2[%c0_110, %c0_111] : memref<384x64xf32, #tpu.memory_space<vmem>>, vector<384x64xf32>
    %121 = arith.mulf %119, %120 : vector<384x64xf32>
    %c0_112 = arith.constant 0 : index
    %c0_113 = arith.constant 0 : index
    %122 = vector.load %arg11[%c0_112, %c0_113] : memref<64x32xf32, #tpu.memory_space<vmem>>, vector<64x32xf32>
    %cst_114 = arith.constant dense<0.000000e+00> : vector<384x32xf32>
    %123 = tpu.matmul %121, %122, %cst_114 {dimension_numbers = #tpu.dot_dimension_numbers<[1], [0], [0], [1], [0, 0, 1, 1], [], []>} : vector<384x64xf32>, vector<64x32xf32>, vector<384x32xf32> -> vector<384x32xf32>
    %c0_115 = arith.constant 0 : index
    %c0_116 = arith.constant 0 : index
    %124 = vector.load %arg4[%c0_115, %c0_116] : memref<8x24xf32, #tpu.memory_space<vmem>>, vector<8x24xf32>
    %125 = vector.extract_strided_slice %123 {offsets = [0, 0], sizes = [24, 32], strides = [1, 1]} : vector<384x32xf32> to vector<24x32xf32>
    %cst_117 = arith.constant dense<0.000000e+00> : vector<8x32xf32>
    %126 = tpu.matmul %124, %125, %cst_117 {dimension_numbers = #tpu.dot_dimension_numbers<[1], [0], [0], [1], [0, 0, 1, 1], [], []>} : vector<8x24xf32>, vector<24x32xf32>, vector<8x32xf32> -> vector<8x32xf32>
    %c0_118 = arith.constant 0 : index
    %c0_119 = arith.constant 0 : index
    %127 = vector.load %arg23[%c0_118, %c0_119] : memref<128x32xf32, #tpu.memory_space<vmem>>, vector<8x32xf32>
    tpu.vector_store %arg23[%c0_118, %c0_119], %126 {strides = array<i32>} : memref<128x32xf32, #tpu.memory_space<vmem>>, vector<8x32xf32>,
    %128 = vector.extract_strided_slice %123 {offsets = [24, 0], sizes = [24, 32], strides = [1, 1]} : vector<384x32xf32> to vector<24x32xf32>
    %cst_120 = arith.constant dense<0.000000e+00> : vector<8x32xf32>
    %129 = tpu.matmul %124, %128, %cst_120 {dimension_numbers = #tpu.dot_dimension_numbers<[1], [0], [0], [1], [0, 0, 1, 1], [], []>} : vector<8x24xf32>, vector<24x32xf32>, vector<8x32xf32> -> vector<8x32xf32>
    %c8_121 = arith.constant 8 : index
    %c0_122 = arith.constant 0 : index
    %130 = vector.load %arg23[%c8_121, %c0_122] : memref<128x32xf32, #tpu.memory_space<vmem>>, vector<8x32xf32>
    tpu.vector_store %arg23[%c8_121, %c0_122], %129 {strides = array<i32>} : memref<128x32xf32, #tpu.memory_space<vmem>>, vector<8x32xf32>,
    %131 = vector.extract_strided_slice %123 {offsets = [48, 0], sizes = [24, 32], strides = [1, 1]} : vector<384x32xf32> to vector<24x32xf32>
    %cst_123 = arith.constant dense<0.000000e+00> : vector<8x32xf32>
    %132 = tpu.matmul %124, %131, %cst_123 {dimension_numbers = #tpu.dot_dimension_numbers<[1], [0], [0], [1], [0, 0, 1, 1], [], []>} : vector<8x24xf32>, vector<24x32xf32>, vector<8x32xf32> -> vector<8x32xf32>
    %c16_124 = arith.constant 16 : index
    %c0_125 = arith.constant 0 : index
    %133 = vector.load %arg23[%c16_124, %c0_125] : memref<128x32xf32, #tpu.memory_space<vmem>>, vector<8x32xf32>
    tpu.vector_store %arg23[%c16_124, %c0_125], %132 {strides = array<i32>} : memref<128x32xf32, #tpu.memory_space<vmem>>, vector<8x32xf32>,
    %134 = vector.extract_strided_slice %123 {offsets = [72, 0], sizes = [24, 32], strides = [1, 1]} : vector<384x32xf32> to vector<24x32xf32>
    %cst_126 = arith.constant dense<0.000000e+00> : vector<8x32xf32>
    %135 = tpu.matmul %124, %134, %cst_126 {dimension_numbers = #tpu.dot_dimension_numbers<[1], [0], [0], [1], [0, 0, 1, 1], [], []>} : vector<8x24xf32>, vector<24x32xf32>, vector<8x32xf32> -> vector<8x32xf32>
    %c24_127 = arith.constant 24 : index
    %c0_128 = arith.constant 0 : index
    %136 = vector.load %arg23[%c24_127, %c0_128] : memref<128x32xf32, #tpu.memory_space<vmem>>, vector<8x32xf32>
    tpu.vector_store %arg23[%c24_127, %c0_128], %135 {strides = array<i32>} : memref<128x32xf32, #tpu.memory_space<vmem>>, vector<8x32xf32>,
    %137 = vector.extract_strided_slice %123 {offsets = [96, 0], sizes = [24, 32], strides = [1, 1]} : vector<384x32xf32> to vector<24x32xf32>
    %cst_129 = arith.constant dense<0.000000e+00> : vector<8x32xf32>
    %138 = tpu.matmul %124, %137, %cst_129 {dimension_numbers = #tpu.dot_dimension_numbers<[1], [0], [0], [1], [0, 0, 1, 1], [], []>} : vector<8x24xf32>, vector<24x32xf32>, vector<8x32xf32> -> vector<8x32xf32>
    %c32_130 = arith.constant 32 : index
    %c0_131 = arith.constant 0 : index
    %139 = vector.load %arg23[%c32_130, %c0_131] : memref<128x32xf32, #tpu.memory_space<vmem>>, vector<8x32xf32>
    tpu.vector_store %arg23[%c32_130, %c0_131], %138 {strides = array<i32>} : memref<128x32xf32, #tpu.memory_space<vmem>>, vector<8x32xf32>,
    %140 = vector.extract_strided_slice %123 {offsets = [120, 0], sizes = [24, 32], strides = [1, 1]} : vector<384x32xf32> to vector<24x32xf32>
    %cst_132 = arith.constant dense<0.000000e+00> : vector<8x32xf32>
    %141 = tpu.matmul %124, %140, %cst_132 {dimension_numbers = #tpu.dot_dimension_numbers<[1], [0], [0], [1], [0, 0, 1, 1], [], []>} : vector<8x24xf32>, vector<24x32xf32>, vector<8x32xf32> -> vector<8x32xf32>
    %c40_133 = arith.constant 40 : index
    %c0_134 = arith.constant 0 : index
    %142 = vector.load %arg23[%c40_133, %c0_134] : memref<128x32xf32, #tpu.memory_space<vmem>>, vector<8x32xf32>
    tpu.vector_store %arg23[%c40_133, %c0_134], %141 {strides = array<i32>} : memref<128x32xf32, #tpu.memory_space<vmem>>, vector<8x32xf32>,
    %143 = vector.extract_strided_slice %123 {offsets = [144, 0], sizes = [24, 32], strides = [1, 1]} : vector<384x32xf32> to vector<24x32xf32>
    %cst_135 = arith.constant dense<0.000000e+00> : vector<8x32xf32>
    %144 = tpu.matmul %124, %143, %cst_135 {dimension_numbers = #tpu.dot_dimension_numbers<[1], [0], [0], [1], [0, 0, 1, 1], [], []>} : vector<8x24xf32>, vector<24x32xf32>, vector<8x32xf32> -> vector<8x32xf32>
    %c48_136 = arith.constant 48 : index
    %c0_137 = arith.constant 0 : index
    %145 = vector.load %arg23[%c48_136, %c0_137] : memref<128x32xf32, #tpu.memory_space<vmem>>, vector<8x32xf32>
    tpu.vector_store %arg23[%c48_136, %c0_137], %144 {strides = array<i32>} : memref<128x32xf32, #tpu.memory_space<vmem>>, vector<8x32xf32>,
    %146 = vector.extract_strided_slice %123 {offsets = [168, 0], sizes = [24, 32], strides = [1, 1]} : vector<384x32xf32> to vector<24x32xf32>
    %cst_138 = arith.constant dense<0.000000e+00> : vector<8x32xf32>
    %147 = tpu.matmul %124, %146, %cst_138 {dimension_numbers = #tpu.dot_dimension_numbers<[1], [0], [0], [1], [0, 0, 1, 1], [], []>} : vector<8x24xf32>, vector<24x32xf32>, vector<8x32xf32> -> vector<8x32xf32>
    %c56_139 = arith.constant 56 : index
    %c0_140 = arith.constant 0 : index
    %148 = vector.load %arg23[%c56_139, %c0_140] : memref<128x32xf32, #tpu.memory_space<vmem>>, vector<8x32xf32>
    tpu.vector_store %arg23[%c56_139, %c0_140], %147 {strides = array<i32>} : memref<128x32xf32, #tpu.memory_space<vmem>>, vector<8x32xf32>,
    %149 = vector.extract_strided_slice %123 {offsets = [192, 0], sizes = [24, 32], strides = [1, 1]} : vector<384x32xf32> to vector<24x32xf32>
    %cst_141 = arith.constant dense<0.000000e+00> : vector<8x32xf32>
    %150 = tpu.matmul %124, %149, %cst_141 {dimension_numbers = #tpu.dot_dimension_numbers<[1], [0], [0], [1], [0, 0, 1, 1], [], []>} : vector<8x24xf32>, vector<24x32xf32>, vector<8x32xf32> -> vector<8x32xf32>
    %c64_142 = arith.constant 64 : index
    %c0_143 = arith.constant 0 : index
    %151 = vector.load %arg23[%c64_142, %c0_143] : memref<128x32xf32, #tpu.memory_space<vmem>>, vector<8x32xf32>
    tpu.vector_store %arg23[%c64_142, %c0_143], %150 {strides = array<i32>} : memref<128x32xf32, #tpu.memory_space<vmem>>, vector<8x32xf32>,
    %152 = vector.extract_strided_slice %123 {offsets = [216, 0], sizes = [24, 32], strides = [1, 1]} : vector<384x32xf32> to vector<24x32xf32>
    %cst_144 = arith.constant dense<0.000000e+00> : vector<8x32xf32>
    %153 = tpu.matmul %124, %152, %cst_144 {dimension_numbers = #tpu.dot_dimension_numbers<[1], [0], [0], [1], [0, 0, 1, 1], [], []>} : vector<8x24xf32>, vector<24x32xf32>, vector<8x32xf32> -> vector<8x32xf32>
    %c72_145 = arith.constant 72 : index
    %c0_146 = arith.constant 0 : index
    %154 = vector.load %arg23[%c72_145, %c0_146] : memref<128x32xf32, #tpu.memory_space<vmem>>, vector<8x32xf32>
    tpu.vector_store %arg23[%c72_145, %c0_146], %153 {strides = array<i32>} : memref<128x32xf32, #tpu.memory_space<vmem>>, vector<8x32xf32>,
    %155 = vector.extract_strided_slice %123 {offsets = [240, 0], sizes = [24, 32], strides = [1, 1]} : vector<384x32xf32> to vector<24x32xf32>
    %cst_147 = arith.constant dense<0.000000e+00> : vector<8x32xf32>
    %156 = tpu.matmul %124, %155, %cst_147 {dimension_numbers = #tpu.dot_dimension_numbers<[1], [0], [0], [1], [0, 0, 1, 1], [], []>} : vector<8x24xf32>, vector<24x32xf32>, vector<8x32xf32> -> vector<8x32xf32>
    %c80_148 = arith.constant 80 : index
    %c0_149 = arith.constant 0 : index
    %157 = vector.load %arg23[%c80_148, %c0_149] : memref<128x32xf32, #tpu.memory_space<vmem>>, vector<8x32xf32>
    tpu.vector_store %arg23[%c80_148, %c0_149], %156 {strides = array<i32>} : memref<128x32xf32, #tpu.memory_space<vmem>>, vector<8x32xf32>,
    %158 = vector.extract_strided_slice %123 {offsets = [264, 0], sizes = [24, 32], strides = [1, 1]} : vector<384x32xf32> to vector<24x32xf32>
    %cst_150 = arith.constant dense<0.000000e+00> : vector<8x32xf32>
    %159 = tpu.matmul %124, %158, %cst_150 {dimension_numbers = #tpu.dot_dimension_numbers<[1], [0], [0], [1], [0, 0, 1, 1], [], []>} : vector<8x24xf32>, vector<24x32xf32>, vector<8x32xf32> -> vector<8x32xf32>
    %c88_151 = arith.constant 88 : index
    %c0_152 = arith.constant 0 : index
    %160 = vector.load %arg23[%c88_151, %c0_152] : memref<128x32xf32, #tpu.memory_space<vmem>>, vector<8x32xf32>
    tpu.vector_store %arg23[%c88_151, %c0_152], %159 {strides = array<i32>} : memref<128x32xf32, #tpu.memory_space<vmem>>, vector<8x32xf32>,
    %161 = vector.extract_strided_slice %123 {offsets = [288, 0], sizes = [24, 32], strides = [1, 1]} : vector<384x32xf32> to vector<24x32xf32>
    %cst_153 = arith.constant dense<0.000000e+00> : vector<8x32xf32>
    %162 = tpu.matmul %124, %161, %cst_153 {dimension_numbers = #tpu.dot_dimension_numbers<[1], [0], [0], [1], [0, 0, 1, 1], [], []>} : vector<8x24xf32>, vector<24x32xf32>, vector<8x32xf32> -> vector<8x32xf32>
    %c96_154 = arith.constant 96 : index
    %c0_155 = arith.constant 0 : index
    %163 = vector.load %arg23[%c96_154, %c0_155] : memref<128x32xf32, #tpu.memory_space<vmem>>, vector<8x32xf32>
    tpu.vector_store %arg23[%c96_154, %c0_155], %162 {strides = array<i32>} : memref<128x32xf32, #tpu.memory_space<vmem>>, vector<8x32xf32>,
    %164 = vector.extract_strided_slice %123 {offsets = [312, 0], sizes = [24, 32], strides = [1, 1]} : vector<384x32xf32> to vector<24x32xf32>
    %cst_156 = arith.constant dense<0.000000e+00> : vector<8x32xf32>
    %165 = tpu.matmul %124, %164, %cst_156 {dimension_numbers = #tpu.dot_dimension_numbers<[1], [0], [0], [1], [0, 0, 1, 1], [], []>} : vector<8x24xf32>, vector<24x32xf32>, vector<8x32xf32> -> vector<8x32xf32>
    %c104_157 = arith.constant 104 : index
    %c0_158 = arith.constant 0 : index
    %166 = vector.load %arg23[%c104_157, %c0_158] : memref<128x32xf32, #tpu.memory_space<vmem>>, vector<8x32xf32>
    tpu.vector_store %arg23[%c104_157, %c0_158], %165 {strides = array<i32>} : memref<128x32xf32, #tpu.memory_space<vmem>>, vector<8x32xf32>,
    %167 = vector.extract_strided_slice %123 {offsets = [336, 0], sizes = [24, 32], strides = [1, 1]} : vector<384x32xf32> to vector<24x32xf32>
    %cst_159 = arith.constant dense<0.000000e+00> : vector<8x32xf32>
    %168 = tpu.matmul %124, %167, %cst_159 {dimension_numbers = #tpu.dot_dimension_numbers<[1], [0], [0], [1], [0, 0, 1, 1], [], []>} : vector<8x24xf32>, vector<24x32xf32>, vector<8x32xf32> -> vector<8x32xf32>
    %c112_160 = arith.constant 112 : index
    %c0_161 = arith.constant 0 : index
    %169 = vector.load %arg23[%c112_160, %c0_161] : memref<128x32xf32, #tpu.memory_space<vmem>>, vector<8x32xf32>
    tpu.vector_store %arg23[%c112_160, %c0_161], %168 {strides = array<i32>} : memref<128x32xf32, #tpu.memory_space<vmem>>, vector<8x32xf32>,
    %170 = vector.extract_strided_slice %123 {offsets = [360, 0], sizes = [24, 32], strides = [1, 1]} : vector<384x32xf32> to vector<24x32xf32>
    %cst_162 = arith.constant dense<0.000000e+00> : vector<8x32xf32>
    %171 = tpu.matmul %124, %170, %cst_162 {dimension_numbers = #tpu.dot_dimension_numbers<[1], [0], [0], [1], [0, 0, 1, 1], [], []>} : vector<8x24xf32>, vector<24x32xf32>, vector<8x32xf32> -> vector<8x32xf32>
    %c120_163 = arith.constant 120 : index
    %c0_164 = arith.constant 0 : index
    %172 = vector.load %arg23[%c120_163, %c0_164] : memref<128x32xf32, #tpu.memory_space<vmem>>, vector<8x32xf32>
    tpu.vector_store %arg23[%c120_163, %c0_164], %171 {strides = array<i32>} : memref<128x32xf32, #tpu.memory_space<vmem>>, vector<8x32xf32>,
    %c0_165 = arith.constant 0 : index
    %c0_166 = arith.constant 0 : index
    %173 = vector.load %arg1[%c0_165, %c0_166] : memref<128x7xf32, #tpu.memory_space<vmem>>, vector<128x7xf32>
    %c0_167 = arith.constant 0 : index
    %c0_168 = arith.constant 0 : index
    %174 = vector.load %arg23[%c0_167, %c0_168] : memref<128x32xf32, #tpu.memory_space<vmem>>, vector<128x32xf32>
    %c0_169 = arith.constant 0 : index
    %c0_170 = arith.constant 0 : index
    %175 = vector.load %arg12[%c0_169, %c0_170] : memref<7x32xf32, #tpu.memory_space<vmem>>, vector<7x32xf32>
    %cst_171 = arith.constant dense<0.000000e+00> : vector<128x32xf32>
    %176 = tpu.matmul %173, %175, %cst_171 {dimension_numbers = #tpu.dot_dimension_numbers<[1], [0], [0], [1], [0, 0, 1, 1], [], []>} : vector<128x7xf32>, vector<7x32xf32>, vector<128x32xf32> -> vector<128x32xf32>
    %c0_172 = arith.constant 0 : index
    %c0_173 = arith.constant 0 : index
    %177 = vector.load %arg13[%c0_172, %c0_173] : memref<32x32xf32, #tpu.memory_space<vmem>>, vector<32x32xf32>
    %cst_174 = arith.constant dense<0.000000e+00> : vector<128x32xf32>
    %178 = tpu.matmul %174, %177, %cst_174 {dimension_numbers = #tpu.dot_dimension_numbers<[1], [0], [0], [1], [0, 0, 1, 1], [], []>} : vector<128x32xf32>, vector<32x32xf32>, vector<128x32xf32> -> vector<128x32xf32>
    %179 = arith.addf %176, %178 : vector<128x32xf32>
    %cst_175 = arith.constant 0.000000e+00 : f32
    %180 = vector.broadcast %cst_175 : f32 to vector<128x32xf32>
    %181 = arith.maximumf %179, %180 : vector<128x32xf32>
    %c0_176 = arith.constant 0 : index
    %c0_177 = arith.constant 0 : index
    %182 = vector.load %arg14[%c0_176, %c0_177] : memref<32x32xf32, #tpu.memory_space<vmem>>, vector<32x32xf32>
    %cst_178 = arith.constant dense<0.000000e+00> : vector<128x32xf32>
    %183 = tpu.matmul %181, %182, %cst_178 {dimension_numbers = #tpu.dot_dimension_numbers<[1], [0], [0], [1], [0, 0, 1, 1], [], []>} : vector<128x32xf32>, vector<32x32xf32>, vector<128x32xf32> -> vector<128x32xf32>
    %c0_179 = arith.constant 0 : index
    %c0_180 = arith.constant 0 : index
    %184 = vector.load %arg15[%c0_179, %c0_180] : memref<1x32xf32, #tpu.memory_space<vmem>>, vector<1x32xf32>
    %185 = vector.broadcast %184 : vector<1x32xf32> to vector<128x32xf32>
    %186 = arith.addf %183, %185 : vector<128x32xf32>
    %cst_181 = arith.constant 0.000000e+00 : f32
    %187 = vector.broadcast %cst_181 : f32 to vector<128x32xf32>
    %188 = arith.maximumf %186, %187 : vector<128x32xf32>
    %c0_182 = arith.constant 0 : index
    %c0_183 = arith.constant 0 : index
    %189 = vector.load %arg16[%c0_182, %c0_183] : memref<32x32xf32, #tpu.memory_space<vmem>>, vector<32x32xf32>
    %cst_184 = arith.constant dense<0.000000e+00> : vector<128x32xf32>
    %190 = tpu.matmul %188, %189, %cst_184 {dimension_numbers = #tpu.dot_dimension_numbers<[1], [0], [0], [1], [0, 0, 1, 1], [], []>} : vector<128x32xf32>, vector<32x32xf32>, vector<128x32xf32> -> vector<128x32xf32>
    %c0_185 = arith.constant 0 : index
    %c0_186 = arith.constant 0 : index
    %191 = vector.load %arg17[%c0_185, %c0_186] : memref<1x32xf32, #tpu.memory_space<vmem>>, vector<1x32xf32>
    %192 = vector.broadcast %191 : vector<1x32xf32> to vector<128x32xf32>
    %193 = arith.addf %190, %192 : vector<128x32xf32>
    %cst_187 = arith.constant 0.000000e+00 : f32
    %194 = vector.broadcast %cst_187 : f32 to vector<128x32xf32>
    %195 = arith.maximumf %193, %194 : vector<128x32xf32>
    %c0_188 = arith.constant 0 : index
    %c0_189 = arith.constant 0 : index
    %196 = vector.load %arg18[%c0_188, %c0_189] : memref<32x6xf32, #tpu.memory_space<vmem>>, vector<32x6xf32>
    %cst_190 = arith.constant dense<0.000000e+00> : vector<128x6xf32>
    %197 = tpu.matmul %195, %196, %cst_190 {dimension_numbers = #tpu.dot_dimension_numbers<[1], [0], [0], [1], [0, 0, 1, 1], [], []>} : vector<128x32xf32>, vector<32x6xf32>, vector<128x6xf32> -> vector<128x6xf32>
    %c0_191 = arith.constant 0 : index
    %c0_192 = arith.constant 0 : index
    %198 = vector.load %arg19[%c0_191, %c0_192] : memref<1x6xf32, #tpu.memory_space<vmem>>, vector<1x6xf32>
    %199 = vector.broadcast %198 : vector<1x6xf32> to vector<128x6xf32>
    %200 = arith.addf %197, %199 : vector<128x6xf32>
    %201 = vector.extract_strided_slice %173 {offsets = [0, 0], sizes = [128, 6], strides = [1, 1]} : vector<128x7xf32> to vector<128x6xf32>
    %202 = arith.addf %201, %200 : vector<128x6xf32>
    %c0_193 = arith.constant 0 : index
    %c0_194 = arith.constant 0 : index
    %203 = vector.load %arg20[%c0_193, %c0_194] : memref<128x6xf32, #tpu.memory_space<vmem>>, vector<128x6xf32>
    tpu.vector_store %arg20[%c0_193, %c0_194], %202 {strides = array<i32>} : memref<128x6xf32, #tpu.memory_space<vmem>>, vector<128x6xf32>,
    return
  }
  func.func @transform_0(%arg0: i32) -> (i32, i32) {
    %c0_i32 = arith.constant 0 : i32
    %c0_i32_0 = arith.constant 0 : i32
    return %arg0, %c0_i32 : i32, i32
  }
  func.func @transform_1(%arg0: i32) -> (i32, i32) {
    %c0_i32 = arith.constant 0 : i32
    %c0_i32_0 = arith.constant 0 : i32
    return %arg0, %c0_i32 : i32, i32
  }
  func.func @transform_2(%arg0: i32) -> (i32, i32) {
    %c0_i32 = arith.constant 0 : i32
    %c0_i32_0 = arith.constant 0 : i32
    %c0_i32_1 = arith.constant 0 : i32
    return %c0_i32, %c0_i32_0 : i32, i32
  }
  func.func @transform_3(%arg0: i32) -> (i32, i32) {
    %c0_i32 = arith.constant 0 : i32
    %c0_i32_0 = arith.constant 0 : i32
    %c0_i32_1 = arith.constant 0 : i32
    return %c0_i32, %c0_i32_0 : i32, i32
  }
  func.func @transform_4(%arg0: i32) -> (i32, i32) {
    %c0_i32 = arith.constant 0 : i32
    %c0_i32_0 = arith.constant 0 : i32
    %c0_i32_1 = arith.constant 0 : i32
    return %c0_i32, %c0_i32_0 : i32, i32
  }
  func.func @transform_5(%arg0: i32) -> (i32, i32) {
    %c0_i32 = arith.constant 0 : i32
    %c0_i32_0 = arith.constant 0 : i32
    %c0_i32_1 = arith.constant 0 : i32
    return %c0_i32, %c0_i32_0 : i32, i32
  }
  func.func @transform_6(%arg0: i32) -> (i32, i32) {
    %c0_i32 = arith.constant 0 : i32
    %c0_i32_0 = arith.constant 0 : i32
    %c0_i32_1 = arith.constant 0 : i32
    return %c0_i32, %c0_i32_0 : i32, i32
  }
  func.func @transform_7(%arg0: i32) -> (i32, i32) {
    %c0_i32 = arith.constant 0 : i32
    %c0_i32_0 = arith.constant 0 : i32
    %c0_i32_1 = arith.constant 0 : i32
    return %c0_i32, %c0_i32_0 : i32, i32
  }
  func.func @transform_8(%arg0: i32) -> (i32, i32) {
    %c0_i32 = arith.constant 0 : i32
    %c0_i32_0 = arith.constant 0 : i32
    %c0_i32_1 = arith.constant 0 : i32
    return %c0_i32, %c0_i32_0 : i32, i32
  }
  func.func @transform_9(%arg0: i32) -> (i32, i32) {
    %c0_i32 = arith.constant 0 : i32
    %c0_i32_0 = arith.constant 0 : i32
    %c0_i32_1 = arith.constant 0 : i32
    return %c0_i32, %c0_i32_0 : i32, i32
  }
  func.func @transform_10(%arg0: i32) -> (i32, i32) {
    %c0_i32 = arith.constant 0 : i32
    %c0_i32_0 = arith.constant 0 : i32
    %c0_i32_1 = arith.constant 0 : i32
    return %c0_i32, %c0_i32_0 : i32, i32
  }
  func.func @transform_11(%arg0: i32) -> (i32, i32) {
    %c0_i32 = arith.constant 0 : i32
    %c0_i32_0 = arith.constant 0 : i32
    %c0_i32_1 = arith.constant 0 : i32
    return %c0_i32, %c0_i32_0 : i32, i32
  }
  func.func @transform_12(%arg0: i32) -> (i32, i32) {
    %c0_i32 = arith.constant 0 : i32
    %c0_i32_0 = arith.constant 0 : i32
    %c0_i32_1 = arith.constant 0 : i32
    return %c0_i32, %c0_i32_0 : i32, i32
  }
  func.func @transform_13(%arg0: i32) -> (i32, i32) {
    %c0_i32 = arith.constant 0 : i32
    %c0_i32_0 = arith.constant 0 : i32
    %c0_i32_1 = arith.constant 0 : i32
    return %c0_i32, %c0_i32_0 : i32, i32
  }
  func.func @transform_14(%arg0: i32) -> (i32, i32) {
    %c0_i32 = arith.constant 0 : i32
    %c0_i32_0 = arith.constant 0 : i32
    %c0_i32_1 = arith.constant 0 : i32
    return %c0_i32, %c0_i32_0 : i32, i32
  }
  func.func @transform_15(%arg0: i32) -> (i32, i32) {
    %c0_i32 = arith.constant 0 : i32
    %c0_i32_0 = arith.constant 0 : i32
    %c0_i32_1 = arith.constant 0 : i32
    return %c0_i32, %c0_i32_0 : i32, i32
  }
  func.func @transform_16(%arg0: i32) -> (i32, i32) {
    %c0_i32 = arith.constant 0 : i32
    %c0_i32_0 = arith.constant 0 : i32
    %c0_i32_1 = arith.constant 0 : i32
    return %c0_i32, %c0_i32_0 : i32, i32
  }
  func.func @transform_17(%arg0: i32) -> (i32, i32) {
    %c0_i32 = arith.constant 0 : i32
    %c0_i32_0 = arith.constant 0 : i32
    %c0_i32_1 = arith.constant 0 : i32
    return %c0_i32, %c0_i32_0 : i32, i32
  }
  func.func @transform_18(%arg0: i32) -> (i32, i32) {
    %c0_i32 = arith.constant 0 : i32
    %c0_i32_0 = arith.constant 0 : i32
    %c0_i32_1 = arith.constant 0 : i32
    return %c0_i32, %c0_i32_0 : i32, i32
  }
  func.func @transform_19(%arg0: i32) -> (i32, i32) {
    %c0_i32 = arith.constant 0 : i32
    %c0_i32_0 = arith.constant 0 : i32
    return %arg0, %c0_i32 : i32, i32
  }
}

</mosaic_0001>

<llo_original>
// kernel: sub.2
$region0: #{sub.2}
  #allocation0 [shape = 's32[1]{0}', space=sflag, size = 0x4, scoped, tag = 'scoped memory for sub.2']
  %s0 = inlined_call_operand.vmem [shape: f32[2,7,5,2], index: 0, kind: input, shape index: {}]
  %s1 = inlined_call_operand.vmem [shape: f32[2,7,5,2], index: 1, kind: input, shape index: {}]
  %s2 = inlined_call_operand.vmem [shape: f32[2,7,5,2], index: 2, kind: output, shape index: {}]
  %v3 = vld [vmem:[%s0] sm:$0x3]
  %v4 = vld [vmem:[%s1] sm:$0x3]
  %5 = xla_tuple %v3, %v4
  %6 = xla_tuple %5
  %v7 = vsub.f32 %v3, %v4
  %8 = xla_tuple %v7
  %9 = vst [vmem:[%s2] sm:$0x3] %v7
  %s10 = scalar_lea.vmem %s0, 10
  %v11 = vld [vmem:[%s10] sm:$0x3]
  %s12 = scalar_lea.vmem %s1, 10
  %v13 = vld [vmem:[%s12] sm:$0x3]
  %14 = xla_tuple %v11, %v13
  %15 = xla_tuple %14
  %v16 = vsub.f32 %v11, %v13
  %17 = xla_tuple %v16
  %s18 = scalar_lea.vmem %s2, 10
  %19 = vst [vmem:[%s18] sm:$0x3] %v16
  %s20 = scalar_lea.vmem %s0, 2
  %v21 = vld [vmem:[%s20] sm:$0x3]
  %s22 = scalar_lea.vmem %s1, 2
  %v23 = vld [vmem:[%s22] sm:$0x3]
  %24 = xla_tuple %v21, %v23
  %25 = xla_tuple %24
  %v26 = vsub.f32 %v21, %v23
  %27 = xla_tuple %v26
  %s28 = scalar_lea.vmem %s2, 2
  %29 = vst [vmem:[%s28] sm:$0x3] %v26
  %s30 = scalar_lea.vmem %s0, 12
  %v31 = vld [vmem:[%s30] sm:$0x3]
  %s32 = scalar_lea.vmem %s1, 12
  %v33 = vld [vmem:[%s32] sm:$0x3]
  %34 = xla_tuple %v31, %v33
  %35 = xla_tuple %34
  %v36 = vsub.f32 %v31, %v33
  %37 = xla_tuple %v36
  %s38 = scalar_lea.vmem %s2, 12
  %39 = vst [vmem:[%s38] sm:$0x3] %v36
  %s40 = scalar_lea.vmem %s0, 4
  %v41 = vld [vmem:[%s40] sm:$0x3]
  %s42 = scalar_lea.vmem %s1, 4
  %v43 = vld [vmem:[%s42] sm:$0x3]
  %44 = xla_tuple %v41, %v43
  %45 = xla_tuple %44
  %v46 = vsub.f32 %v41, %v43
  %47 = xla_tuple %v46
  %s48 = scalar_lea.vmem %s2, 4
  %49 = vst [vmem:[%s48] sm:$0x3] %v46
  %s50 = scalar_lea.vmem %s0, 14
  %v51 = vld [vmem:[%s50] sm:$0x3]
  %s52 = scalar_lea.vmem %s1, 14
  %v53 = vld [vmem:[%s52] sm:$0x3]
  %54 = xla_tuple %v51, %v53
  %55 = xla_tuple %54
  %v56 = vsub.f32 %v51, %v53
  %57 = xla_tuple %v56
  %s58 = scalar_lea.vmem %s2, 14
  %59 = vst [vmem:[%s58] sm:$0x3] %v56
  %s60 = scalar_lea.vmem %s0, 6
  %v61 = vld [vmem:[%s60] sm:$0x3]
  %s62 = scalar_lea.vmem %s1, 6
  %v63 = vld [vmem:[%s62] sm:$0x3]
  %64 = xla_tuple %v61, %v63
  %65 = xla_tuple %64
  %v66 = vsub.f32 %v61, %v63
  %67 = xla_tuple %v66
  %s68 = scalar_lea.vmem %s2, 6
  %69 = vst [vmem:[%s68] sm:$0x3] %v66
  %s70 = scalar_lea.vmem %s0, 16
  %v71 = vld [vmem:[%s70] sm:$0x3]
  %s72 = scalar_lea.vmem %s1, 16
  %v73 = vld [vmem:[%s72] sm:$0x3]
  %74 = xla_tuple %v71, %v73
  %75 = xla_tuple %74
  %v76 = vsub.f32 %v71, %v73
  %77 = xla_tuple %v76
  %s78 = scalar_lea.vmem %s2, 16
  %79 = vst [vmem:[%s78] sm:$0x3] %v76
  %s80 = scalar_lea.vmem %s0, 8
  %v81 = vld [vmem:[%s80] sm:$0x3]
  %s82 = scalar_lea.vmem %s1, 8
  %v83 = vld [vmem:[%s82] sm:$0x3]
  %84 = xla_tuple %v81, %v83
  %85 = xla_tuple %84
  %v86 = vsub.f32 %v81, %v83
  %87 = xla_tuple %v86
  %s88 = scalar_lea.vmem %s2, 8
  %89 = vst [vmem:[%s88] sm:$0x3] %v86
  %s90 = scalar_lea.vmem %s0, 18
  %v91 = vld [vmem:[%s90] sm:$0x3]
  %s92 = scalar_lea.vmem %s1, 18
  %v93 = vld [vmem:[%s92] sm:$0x3]
  %94 = xla_tuple %v91, %v93
  %95 = xla_tuple %94
  %v96 = vsub.f32 %v91, %v93
  %97 = xla_tuple %v96
  %s98 = scalar_lea.vmem %s2, 18
  %99 = vst [vmem:[%s98] sm:$0x3] %v96

// kernel: run_forward.1
$region0: #{run_forward.1}
  #allocation0 [shape = 'u32[]', space=smem, size = 0x4, offset = 0x4, fixed_abs, tag = 'smem constant byte address 0x4 - core index']
  #allocation1 [shape = 'u32[144,128]{1,0:T(1,128)}', space=vmem, size = 0x12000, scoped, tag = 'internal scratch']
  #allocation2 [shape = 'f32[384,7]{1,0:T(8,128)}', space=vmem, size = 0x30000, scoped, tag = 'scratch operand']
  #allocation3 [shape = 'f32[384,7]{1,0:T(8,128)}', space=vmem, size = 0x30000, scoped, tag = 'scratch operand']
  #allocation4 [shape = 'f32[128,32]{1,0:T(8,128)}', space=vmem, size = 0x10000, scoped, tag = 'scratch operand']
  %s0 = inlined_call_operand.vmem [shape: f32[128,7], index: 0, kind: input, shape index: {}]
  %s1 = inlined_call_operand.vmem [shape: f32[384,64], index: 1, kind: input, shape index: {}]
  %s2 = inlined_call_operand.vmem [shape: f32[48,8], index: 2, kind: input, shape index: {}]
  %s3 = inlined_call_operand.vmem [shape: f32[8,24], index: 3, kind: input, shape index: {}]
  %s4 = inlined_call_operand.vmem [shape: f32[7,64], index: 4, kind: input, shape index: {}]
  %s5 = inlined_call_operand.vmem [shape: f32[7,64], index: 5, kind: input, shape index: {}]
  %s6 = inlined_call_operand.vmem [shape: f32[64,64], index: 6, kind: input, shape index: {}]
  %s7 = inlined_call_operand.vmem [shape: f32[1,64], index: 7, kind: input, shape index: {}]
  %s8 = inlined_call_operand.vmem [shape: f32[64,64], index: 8, kind: input, shape index: {}]
  %s9 = inlined_call_operand.vmem [shape: f32[1,64], index: 9, kind: input, shape index: {}]
  %s10 = inlined_call_operand.vmem [shape: f32[64,32], index: 10, kind: input, shape index: {}]
  %s11 = inlined_call_operand.vmem [shape: f32[7,32], index: 11, kind: input, shape index: {}]
  %s12 = inlined_call_operand.vmem [shape: f32[32,32], index: 12, kind: input, shape index: {}]
  %s13 = inlined_call_operand.vmem [shape: f32[32,32], index: 13, kind: input, shape index: {}]
  %s14 = inlined_call_operand.vmem [shape: f32[1,32], index: 14, kind: input, shape index: {}]
  %s15 = inlined_call_operand.vmem [shape: f32[32,32], index: 15, kind: input, shape index: {}]
  %s16 = inlined_call_operand.vmem [shape: f32[1,32], index: 16, kind: input, shape index: {}]
  %s17 = inlined_call_operand.vmem [shape: f32[32,6], index: 17, kind: input, shape index: {}]
  %s18 = inlined_call_operand.vmem [shape: f32[1,6], index: 18, kind: input, shape index: {}]
  %s19 = inlined_call_operand.vmem [shape: f32[128,6], index: 19, kind: output, shape index: {}]
  %s20 = sld [smem:[#allocation0]]
  $region86: #{run_forward.1} parent=0
    _
  %s22 = ssub.s32 1, %s20
  %s23 = scalar_select 0, %s22, %s20
  // Predicated region
  $region2: #{run_forward.1} parent=0 // pred_check
    _
  $region3: #{run_forward.1} parent=0 // pred_check_branch
    %25 = sbr.rel (0) target = $region5
  $region4: #{run_forward.1} parent=0 // pred_region
    _
  $region5: #{run_forward.1} parent=0 // pred_fallthru
    _
  // Predicated region
  $region6: #{run_forward.1} parent=0 // pred_check
    _
  $region7: #{run_forward.1} parent=0 // pred_check_branch
    %27 = sbr.rel (0) target = $region9
  $region8: #{run_forward.1} parent=0 // pred_region
    _
  $region9: #{run_forward.1} parent=0 // pred_fallthru
    _
  // Predicated region
  $region10: #{run_forward.1} parent=0 // pred_check
    _
  $region11: #{run_forward.1} parent=0 // pred_check_branch
    %29 = sbr.rel (0) target = $region13
  $region12: #{run_forward.1} parent=0 // pred_region
    _
  $region13: #{run_forward.1} parent=0 // pred_fallthru
    _
  // Predicated region
  $region14: #{run_forward.1} parent=0 // pred_check
    _
  $region15: #{run_forward.1} parent=0 // pred_check_branch
    %31 = sbr.rel (0) target = $region17
  $region16: #{run_forward.1} parent=0 // pred_region
    _
  $region17: #{run_forward.1} parent=0 // pred_fallthru
    _
  // Predicated region
  $region18: #{run_forward.1} parent=0 // pred_check
    _
  $region19: #{run_forward.1} parent=0 // pred_check_branch
    %33 = sbr.rel (0) target = $region21
  $region20: #{run_forward.1} parent=0 // pred_region
    _
  $region21: #{run_forward.1} parent=0 // pred_fallthru
    _
  // Predicated region
  $region22: #{run_forward.1} parent=0 // pred_check
    _
  $region23: #{run_forward.1} parent=0 // pred_check_branch
    %35 = sbr.rel (0) target = $region25
  $region24: #{run_forward.1} parent=0 // pred_region
    _
  $region25: #{run_forward.1} parent=0 // pred_fallthru
    _
  // Predicated region
  $region26: #{run_forward.1} parent=0 // pred_check
    _
  $region27: #{run_forward.1} parent=0 // pred_check_branch
    %37 = sbr.rel (0) target = $region29
  $region28: #{run_forward.1} parent=0 // pred_region
    _
  $region29: #{run_forward.1} parent=0 // pred_fallthru
    _
  // Predicated region
  $region30: #{run_forward.1} parent=0 // pred_check
    _
  $region31: #{run_forward.1} parent=0 // pred_check_branch
    %39 = sbr.rel (0) target = $region33
  $region32: #{run_forward.1} parent=0 // pred_region
    _
  $region33: #{run_forward.1} parent=0 // pred_fallthru
    _
  // Predicated region
  $region34: #{run_forward.1} parent=0 // pred_check
    _
  $region35: #{run_forward.1} parent=0 // pred_check_branch
    %41 = sbr.rel (0) target = $region37
  $region36: #{run_forward.1} parent=0 // pred_region
    _
  $region37: #{run_forward.1} parent=0 // pred_fallthru
    _
  // Predicated region
  $region38: #{run_forward.1} parent=0 // pred_check
    _
  $region39: #{run_forward.1} parent=0 // pred_check_branch
    %43 = sbr.rel (0) target = $region41
  $region40: #{run_forward.1} parent=0 // pred_region
    _
  $region41: #{run_forward.1} parent=0 // pred_fallthru
    _
  // Predicated region
  $region42: #{run_forward.1} parent=0 // pred_check
    _
  $region43: #{run_forward.1} parent=0 // pred_check_branch
    %45 = sbr.rel (0) target = $region45
  $region44: #{run_forward.1} parent=0 // pred_region
    _
  $region45: #{run_forward.1} parent=0 // pred_fallthru
    _
  // Predicated region
  $region46: #{run_forward.1} parent=0 // pred_check
    _
  $region47: #{run_forward.1} parent=0 // pred_check_branch
    %47 = sbr.rel (0) target = $region49
  $region48: #{run_forward.1} parent=0 // pred_region
    _
  $region49: #{run_forward.1} parent=0 // pred_fallthru
    _
  // Predicated region
  $region50: #{run_forward.1} parent=0 // pred_check
    _
  $region51: #{run_forward.1} parent=0 // pred_check_branch
    %49 = sbr.rel (0) target = $region53
  $region52: #{run_forward.1} parent=0 // pred_region
    _
  $region53: #{run_forward.1} parent=0 // pred_fallthru
    _
  // Predicated region
  $region54: #{run_forward.1} parent=0 // pred_check
    _
  $region55: #{run_forward.1} parent=0 // pred_check_branch
    %51 = sbr.rel (0) target = $region57
  $region56: #{run_forward.1} parent=0 // pred_region
    _
  $region57: #{run_forward.1} parent=0 // pred_fallthru
    _
  // Predicated region
  $region58: #{run_forward.1} parent=0 // pred_check
    _
  $region59: #{run_forward.1} parent=0 // pred_check_branch
    %53 = sbr.rel (0) target = $region61
  $region60: #{run_forward.1} parent=0 // pred_region
    _
  $region61: #{run_forward.1} parent=0 // pred_fallthru
    _
  // Predicated region
  $region62: #{run_forward.1} parent=0 // pred_check
    _
  $region63: #{run_forward.1} parent=0 // pred_check_branch
    %55 = sbr.rel (0) target = $region65
  $region64: #{run_forward.1} parent=0 // pred_region
    _
  $region65: #{run_forward.1} parent=0 // pred_fallthru
    _
  // Predicated region
  $region66: #{run_forward.1} parent=0 // pred_check
    _
  $region67: #{run_forward.1} parent=0 // pred_check_branch
    %57 = sbr.rel (0) target = $region69
  $region68: #{run_forward.1} parent=0 // pred_region
    _
  $region69: #{run_forward.1} parent=0 // pred_fallthru
    _
  // Predicated region
  $region70: #{run_forward.1} parent=0 // pred_check
    _
  $region71: #{run_forward.1} parent=0 // pred_check_branch
    %59 = sbr.rel (0) target = $region73
  $region72: #{run_forward.1} parent=0 // pred_region
    _
  $region73: #{run_forward.1} parent=0 // pred_fallthru
    _
  // Predicated region
  $region74: #{run_forward.1} parent=0 // pred_check
    _
  $region75: #{run_forward.1} parent=0 // pred_check_branch
    %61 = sbr.rel (0) target = $region77
  $region76: #{run_forward.1} parent=0 // pred_region
    _
  $region77: #{run_forward.1} parent=0 // pred_fallthru
    _
  %v62 = vld [vmem:[%s2] sm:$0xff]
  %v63 = vld [vmem:[%s2 + $0x8] sm:$0xff]
  %v64 = vld [vmem:[%s2 + $0x10] sm:$0xff]
  %v65 = vld [vmem:[%s2 + $0x18] sm:$0xff]
  %v66 = vld [vmem:[%s2 + $0x20] sm:$0xff]
  %v67 = vld [vmem:[%s2 + $0x28] sm:$0xff]
  %v68 = vld [vmem:[%s0] sm:$0xff]
  %vm69 = vcmask 64512
  %v71 = vsel %vm69, %v62, 0
  %v74 = vsel %vm69, %v63, 0
  %v77 = vsel %vm69, %v64, 0
  %v80 = vsel %vm69, %v65, 0
  %v83 = vsel %vm69, %v66, 0
  %v86 = vsel %vm69, %v67, 0
  %88 = vmatprep.subr.mxu0 0.0
  %89 = vmatpush1.msra.mxu0 0.0
  %90 = vmatprep.subr.mxu0 0.0
  %91 = vmatpush1.msra.mxu0 0.0
  %92 = vmatprep.subr.mxu0 0.0
  %93 = vmatpush1.msra.mxu0 0.0
  %94 = vmatprep.subr.mxu0 0.0
  %95 = vmatpush1.msra.mxu0 0.0
  %96 = vmatprep.subr.mxu0 0.0
  %97 = vmatpush1.msra.mxu0 0.0
  %98 = vmatprep.subr.mxu0 0.0
  %99 = vmatpush1.msra.mxu0 0.0
  %100 = vmatprep.subr.mxu0 0.0
  %101 = vmatpush1.msra.mxu0 0.0
  %102 = vmatprep.subr.mxu0 0.0
  %103 = vmatpush1.msra.mxu0 0.0
  %104 = vmatprep.subr.mxu0 0.0
  %105 = vmatpush1.msra.mxu0 0.0
  %106 = vmatprep.subr.mxu0 0.0
  %107 = vmatpush1.msra.mxu0 0.0
  %108 = vmatprep.subr.mxu0 0.0
  %109 = vmatpush1.msra.mxu0 0.0
  %110 = vmatprep.subr.mxu0 0.0
  %111 = vmatpush1.msra.mxu0 0.0
  %112 = vmatprep.subr.mxu0 0.0
  %113 = vmatpush1.msra.mxu0 0.0
  %114 = vmatprep.subr.mxu0 0.0
  %115 = vmatpush1.msra.mxu0 0.0
  %116 = vmatprep.subr.mxu0 0.0
  %117 = vmatpush1.msra.mxu0 0.0
  %118 = vmatprep.subr.mxu0 0.0
  %119 = vmatpush1.msra.mxu0 %v68
  %120 = vmatprep.subr.mxu0 0.0
  %121 = vmatpush2.msra.mxu0 0.0
  %122 = vmatprep.subr.mxu0 0.0
  %123 = vmatpush2.msra.mxu0 0.0
  %124 = vmatprep.subr.mxu0 0.0
  %125 = vmatpush2.msra.mxu0 0.0
  %126 = vmatprep.subr.mxu0 0.0
  %127 = vmatpush2.msra.mxu0 0.0
  %128 = vmatprep.subr.mxu0 0.0
  %129 = vmatpush2.msra.mxu0 0.0
  %130 = vmatprep.subr.mxu0 0.0
  %131 = vmatpush2.msra.mxu0 0.0
  %132 = vmatprep.subr.mxu0 0.0
  %133 = vmatpush2.msra.mxu0 0.0
  %134 = vmatprep.subr.mxu0 0.0
  %135 = vmatpush2.msra.mxu0 0.0
  %136 = vmatprep.subr.mxu0 0.0
  %137 = vmatpush2.msra.mxu0 0.0
  %138 = vmatprep.subr.mxu0 0.0
  %139 = vmatpush2.msra.mxu0 0.0
  %140 = vmatprep.subr.mxu0 0.0
  %141 = vmatpush2.msra.mxu0 0.0
  %142 = vmatprep.subr.mxu0 0.0
  %143 = vmatpush2.msra.mxu0 0.0
  %144 = vmatprep.subr.mxu0 0.0
  %145 = vmatpush2.msra.mxu0 0.0
  %146 = vmatprep.subr.mxu0 0.0
  %147 = vmatpush2.msra.mxu0 0.0
  %148 = vmatprep.subr.mxu0 0.0
  %149 = vmatpush2.msra.mxu0 0.0
  %150 = vmatprep.subr.mxu0 0.0
  %151 = vmatpush2.msra.mxu0 0.0
  %152 = vmatprep.mubr.f32.mxu0 0.0
  %153 = vmatmul.mubr.f32.gmra.mxu0 %v71
  %v154 = vpop.f32.mrf.mxu0
  %v155 = vadd.f32 0.0, %v154
  %v156 = vpop.f32.mrf.mxu0
  %157 = vmatprep.mubr.f32.mxu0 0.0
  %158 = vmatmul.mubr.f32.gmra.mxu0 %v74
  %v159 = vpop.f32.mrf.mxu0
  %v160 = vadd.f32 0.0, %v159
  %v161 = vpop.f32.mrf.mxu0
  %162 = vmatprep.mubr.f32.mxu0 0.0
  %163 = vmatmul.mubr.f32.gmra.mxu0 %v77
  %v164 = vpop.f32.mrf.mxu0
  %v165 = vadd.f32 0.0, %v164
  %v166 = vpop.f32.mrf.mxu0
  %167 = vmatprep.mubr.f32.mxu0 0.0
  %168 = vmatmul.mubr.f32.gmra.mxu0 %v80
  %v169 = vpop.f32.mrf.mxu0
  %v170 = vadd.f32 0.0, %v169
  %v171 = vpop.f32.mrf.mxu0
  %172 = vmatprep.mubr.f32.mxu0 0.0
  %173 = vmatmul.mubr.f32.gmra.mxu0 %v83
  %v174 = vpop.f32.mrf.mxu0
  %v175 = vadd.f32 0.0, %v174
  %v176 = vpop.f32.mrf.mxu0
  %177 = vmatprep.mubr.f32.mxu0 0.0
  %178 = vmatmul.mubr.f32.gmra.mxu0 %v86
  %v179 = vpop.f32.mrf.mxu0
  %v180 = vadd.f32 0.0, %v179
  %v181 = vpop.f32.mrf.mxu0
  %182 = vdwg.mxu0
  %vm183 = vcmask 56320
  %184 = vst.msk [vmem:[#allocation2] sm:$0xff] %vm183, %v155
  %185 = vst.msk [vmem:[#allocation2 + $0x8] sm:$0xff] %vm183, %v160
  %186 = vst.msk [vmem:[#allocation2 + $0x10] sm:$0xff] %vm183, %v165
  %187 = vst.msk [vmem:[#allocation3] sm:$0xff] %vm183, %v170
  %188 = vst.msk [vmem:[#allocation3 + $0x8] sm:$0xff] %vm183, %v175
  %189 = vst.msk [vmem:[#allocation3 + $0x10] sm:$0xff] %vm183, %v180
  %v190 = vld [vmem:[%s0 + $0x8] sm:$0xff]
  %191 = vmatprep.subr.mxu0 0.0
  %192 = vmatpush1.msra.mxu0 0.0
  %193 = vmatprep.subr.mxu0 0.0
  %194 = vmatpush1.msra.mxu0 0.0
  %195 = vmatprep.subr.mxu0 0.0
  %196 = vmatpush1.msra.mxu0 0.0
  %197 = vmatprep.subr.mxu0 0.0
  %198 = vmatpush1.msra.mxu0 0.0
  %199 = vmatprep.subr.mxu0 0.0
  %200 = vmatpush1.msra.mxu0 0.0
  %201 = vmatprep.subr.mxu0 0.0
  %202 = vmatpush1.msra.mxu0 0.0
  %203 = vmatprep.subr.mxu0 0.0
  %204 = vmatpush1.msra.mxu0 0.0
  %205 = vmatprep.subr.mxu0 0.0
  %206 = vmatpush1.msra.mxu0 0.0
  %207 = vmatprep.subr.mxu0 0.0
  %208 = vmatpush1.msra.mxu0 0.0
  %209 = vmatprep.subr.mxu0 0.0
  %210 = vmatpush1.msra.mxu0 0.0
  %211 = vmatprep.subr.mxu0 0.0
  %212 = vmatpush1.msra.mxu0 0.0
  %213 = vmatprep.subr.mxu0 0.0
  %214 = vmatpush1.msra.mxu0 0.0
  %215 = vmatprep.subr.mxu0 0.0
  %216 = vmatpush1.msra.mxu0 0.0
  %217 = vmatprep.subr.mxu0 0.0
  %218 = vmatpush1.msra.mxu0 0.0
  %219 = vmatprep.subr.mxu0 0.0
  %220 = vmatpush1.msra.mxu0 0.0
  %221 = vmatprep.subr.mxu0 0.0
  %222 = vmatpush1.msra.mxu0 %v190
  %223 = vmatprep.subr.mxu0 0.0
  %224 = vmatpush2.msra.mxu0 0.0
  %225 = vmatprep.subr.mxu0 0.0
  %226 = vmatpush2.msra.mxu0 0.0
  %227 = vmatprep.subr.mxu0 0.0
  %228 = vmatpush2.msra.mxu0 0.0
  %229 = vmatprep.subr.mxu0 0.0
  %230 = vmatpush2.msra.mxu0 0.0
  %231 = vmatprep.subr.mxu0 0.0
  %232 = vmatpush2.msra.mxu0 0.0
  %233 = vmatprep.subr.mxu0 0.0
  %234 = vmatpush2.msra.mxu0 0.0
  %235 = vmatprep.subr.mxu0 0.0
  %236 = vmatpush2.msra.mxu0 0.0
  %237 = vmatprep.subr.mxu0 0.0
  %238 = vmatpush2.msra.mxu0 0.0
  %239 = vmatprep.subr.mxu0 0.0
  %240 = vmatpush2.msra.mxu0 0.0
  %241 = vmatprep.subr.mxu0 0.0
  %242 = vmatpush2.msra.mxu0 0.0
  %243 = vmatprep.subr.mxu0 0.0
  %244 = vmatpush2.msra.mxu0 0.0
  %245 = vmatprep.subr.mxu0 0.0
  %246 = vmatpush2.msra.mxu0 0.0
  %247 = vmatprep.subr.mxu0 0.0
  %248 = vmatpush2.msra.mxu0 0.0
  %249 = vmatprep.subr.mxu0 0.0
  %250 = vmatpush2.msra.mxu0 0.0
  %251 = vmatprep.subr.mxu0 0.0
  %252 = vmatpush2.msra.mxu0 0.0
  %253 = vmatprep.subr.mxu0 0.0
  %254 = vmatpush2.msra.mxu0 0.0
  %255 = vmatprep.mubr.f32.mxu0 0.0
  %256 = vmatmul.mubr.f32.gmra.mxu0 %v71
  %v257 = vpop.f32.mrf.mxu0
  %v258 = vadd.f32 0.0, %v257
  %v259 = vpop.f32.mrf.mxu0
  %260 = vmatprep.mubr.f32.mxu0 0.0
  %261 = vmatmul.mubr.f32.gmra.mxu0 %v74
  %v262 = vpop.f32.mrf.mxu0
  %v263 = vadd.f32 0.0, %v262
  %v264 = vpop.f32.mrf.mxu0
  %265 = vmatprep.mubr.f32.mxu0 0.0
  %266 = vmatmul.mubr.f32.gmra.mxu0 %v77
  %v267 = vpop.f32.mrf.mxu0
  %v268 = vadd.f32 0.0, %v267
  %v269 = vpop.f32.mrf.mxu0
  %270 = vmatprep.mubr.f32.mxu0 0.0
  %271 = vmatmul.mubr.f32.gmra.mxu0 %v80
  %v272 = vpop.f32.mrf.mxu0
  %v273 = vadd.f32 0.0, %v272
  %v274 = vpop.f32.mrf.mxu0
  %275 = vmatprep.mubr.f32.mxu0 0.0
  %276 = vmatmul.mubr.f32.gmra.mxu0 %v83
  %v277 = vpop.f32.mrf.mxu0
  %v278 = vadd.f32 0.0, %v277
  %v279 = vpop.f32.mrf.mxu0
  %280 = vmatprep.mubr.f32.mxu0 0.0
  %281 = vmatmul.mubr.f32.gmra.mxu0 %v86
  %v282 = vpop.f32.mrf.mxu0
  %v283 = vadd.f32 0.0, %v282
  %v284 = vpop.f32.mrf.mxu0
  %285 = vdwg.mxu0
  %286 = vst.msk [vmem:[#allocation2 + $0x18] sm:$0xff] %vm183, %v258
  %287 = vst.msk [vmem:[#allocation2 + $0x20] sm:$0xff] %vm183, %v263
  %288 = vst.msk [vmem:[#allocation2 + $0x28] sm:$0xff] %vm183, %v268
  %289 = vst.msk [vmem:[#allocation3 + $0x18] sm:$0xff] %vm183, %v273
  %290 = vst.msk [vmem:[#allocation3 + $0x20] sm:$0xff] %vm183, %v278
  %291 = vst.msk [vmem:[#allocation3 + $0x28] sm:$0xff] %vm183, %v283
  %v292 = vld [vmem:[%s0 + $0x10] sm:$0xff]
  %293 = vmatprep.subr.mxu0 0.0
  %294 = vmatpush1.msra.mxu0 0.0
  %295 = vmatprep.subr.mxu0 0.0
  %296 = vmatpush1.msra.mxu0 0.0
  %297 = vmatprep.subr.mxu0 0.0
  %298 = vmatpush1.msra.mxu0 0.0
  %299 = vmatprep.subr.mxu0 0.0
  %300 = vmatpush1.msra.mxu0 0.0
  %301 = vmatprep.subr.mxu0 0.0
  %302 = vmatpush1.msra.mxu0 0.0
  %303 = vmatprep.subr.mxu0 0.0
  %304 = vmatpush1.msra.mxu0 0.0
  %305 = vmatprep.subr.mxu0 0.0
  %306 = vmatpush1.msra.mxu0 0.0
  %307 = vmatprep.subr.mxu0 0.0
  %308 = vmatpush1.msra.mxu0 0.0
  %309 = vmatprep.subr.mxu0 0.0
  %310 = vmatpush1.msra.mxu0 0.0
  %311 = vmatprep.subr.mxu0 0.0
  %312 = vmatpush1.msra.mxu0 0.0
  %313 = vmatprep.subr.mxu0 0.0
  %314 = vmatpush1.msra.mxu0 0.0
  %315 = vmatprep.subr.mxu0 0.0
  %316 = vmatpush1.msra.mxu0 0.0
  %317 = vmatprep.subr.mxu0 0.0
  %318 = vmatpush1.msra.mxu0 0.0
  %319 = vmatprep.subr.mxu0 0.0
  %320 = vmatpush1.msra.mxu0 0.0
  %321 = vmatprep.subr.mxu0 0.0
  %322 = vmatpush1.msra.mxu0 0.0
  %323 = vmatprep.subr.mxu0 0.0
  %324 = vmatpush1.msra.mxu0 %v292
  %325 = vmatprep.subr.mxu0 0.0
  %326 = vmatpush2.msra.mxu0 0.0
  %327 = vmatprep.subr.mxu0 0.0
  %328 = vmatpush2.msra.mxu0 0.0
  %329 = vmatprep.subr.mxu0 0.0
  %330 = vmatpush2.msra.mxu0 0.0
  %331 = vmatprep.subr.mxu0 0.0
  %332 = vmatpush2.msra.mxu0 0.0
  %333 = vmatprep.subr.mxu0 0.0
  %334 = vmatpush2.msra.mxu0 0.0
  %335 = vmatprep.subr.mxu0 0.0
  %336 = vmatpush2.msra.mxu0 0.0
  %337 = vmatprep.subr.mxu0 0.0
  %338 = vmatpush2.msra.mxu0 0.0
  %339 = vmatprep.subr.mxu0 0.0
  %340 = vmatpush2.msra.mxu0 0.0
  %341 = vmatprep.subr.mxu0 0.0
  %342 = vmatpush2.msra.mxu0 0.0
  %343 = vmatprep.subr.mxu0 0.0
  %344 = vmatpush2.msra.mxu0 0.0
  %345 = vmatprep.subr.mxu0 0.0
  %346 = vmatpush2.msra.mxu0 0.0
  %347 = vmatprep.subr.mxu0 0.0
  %348 = vmatpush2.msra.mxu0 0.0
  %349 = vmatprep.subr.mxu0 0.0
  %350 = vmatpush2.msra.mxu0 0.0
  %351 = vmatprep.subr.mxu0 0.0
  %352 = vmatpush2.msra.mxu0 0.0
  %353 = vmatprep.subr.mxu0 0.0
  %354 = vmatpush2.msra.mxu0 0.0
  %355 = vmatprep.subr.mxu0 0.0
  %356 = vmatpush2.msra.mxu0 0.0
  %357 = vmatprep.mubr.f32.mxu0 0.0
  %358 = vmatmul.mubr.f32.gmra.mxu0 %v71
  %v359 = vpop.f32.mrf.mxu0
  %v360 = vadd.f32 0.0, %v359
  %v361 = vpop.f32.mrf.mxu0
  %362 = vmatprep.mubr.f32.mxu0 0.0
  %363 = vmatmul.mubr.f32.gmra.mxu0 %v74
  %v364 = vpop.f32.mrf.mxu0
  %v365 = vadd.f32 0.0, %v364
  %v366 = vpop.f32.mrf.mxu0
  %367 = vmatprep.mubr.f32.mxu0 0.0
  %368 = vmatmul.mubr.f32.gmra.mxu0 %v77
  %v369 = vpop.f32.mrf.mxu0
  %v370 = vadd.f32 0.0, %v369
  %v371 = vpop.f32.mrf.mxu0
  %372 = vmatprep.mubr.f32.mxu0 0.0
  %373 = vmatmul.mubr.f32.gmra.mxu0 %v80
  %v374 = vpop.f32.mrf.mxu0
  %v375 = vadd.f32 0.0, %v374
  %v376 = vpop.f32.mrf.mxu0
  %377 = vmatprep.mubr.f32.mxu0 0.0
  %378 = vmatmul.mubr.f32.gmra.mxu0 %v83
  %v379 = vpop.f32.mrf.mxu0
  %v380 = vadd.f32 0.0, %v379
  %v381 = vpop.f32.mrf.mxu0
  %382 = vmatprep.mubr.f32.mxu0 0.0
  %383 = vmatmul.mubr.f32.gmra.mxu0 %v86
  %v384 = vpop.f32.mrf.mxu0
  %v385 = vadd.f32 0.0, %v384
  %v386 = vpop.f32.mrf.mxu0
  %387 = vdwg.mxu0
  %388 = vst.msk [vmem:[#allocation2 + $0x30] sm:$0xff] %vm183, %v360
  %389 = vst.msk [vmem:[#allocation2 + $0x38] sm:$0xff] %vm183, %v365
  %390 = vst.msk [vmem:[#allocation2 + $0x40] sm:$0xff] %vm183, %v370
  %391 = vst.msk [vmem:[#allocation3 + $0x30] sm:$0xff] %vm183, %v375
  %392 = vst.msk [vmem:[#allocation3 + $0x38] sm:$0xff] %vm183, %v380
  %393 = vst.msk [vmem:[#allocation3 + $0x40] sm:$0xff] %vm183, %v385
  %v394 = vld [vmem:[%s0 + $0x18] sm:$0xff]
  %395 = vmatprep.subr.mxu0 0.0
  %396 = vmatpush1.msra.mxu0 0.0
  %397 = vmatprep.subr.mxu0 0.0
  %398 = vmatpush1.msra.mxu0 0.0
  %399 = vmatprep.subr.mxu0 0.0
  %400 = vmatpush1.msra.mxu0 0.0
  %401 = vmatprep.subr.mxu0 0.0
  %402 = vmatpush1.msra.mxu0 0.0
  %403 = vmatprep.subr.mxu0 0.0
  %404 = vmatpush1.msra.mxu0 0.0
  %405 = vmatprep.subr.mxu0 0.0
  %406 = vmatpush1.msra.mxu0 0.0
  %407 = vmatprep.subr.mxu0 0.0
  %408 = vmatpush1.msra.mxu0 0.0
  %409 = vmatprep.subr.mxu0 0.0
  %410 = vmatpush1.msra.mxu0 0.0
  %411 = vmatprep.subr.mxu0 0.0
  %412 = vmatpush1.msra.mxu0 0.0
  %413 = vmatprep.subr.mxu0 0.0
  %414 = vmatpush1.msra.mxu0 0.0
  %415 = vmatprep.subr.mxu0 0.0
  %416 = vmatpush1.msra.mxu0 0.0
  %417 = vmatprep.subr.mxu0 0.0
  %418 = vmatpush1.msra.mxu0 0.0
  %419 = vmatprep.subr.mxu0 0.0
  %420 = vmatpush1.msra.mxu0 0.0
  %421 = vmatprep.subr.mxu0 0.0
  %422 = vmatpush1.msra.mxu0 0.0
  %423 = vmatprep.subr.mxu0 0.0
  %424 = vmatpush1.msra.mxu0 0.0
  %425 = vmatprep.subr.mxu0 0.0
  %426 = vmatpush1.msra.mxu0 %v394
  %427 = vmatprep.subr.mxu0 0.0
  %428 = vmatpush2.msra.mxu0 0.0
  %429 = vmatprep.subr.mxu0 0.0
  %430 = vmatpush2.msra.mxu0 0.0
  %431 = vmatprep.subr.mxu0 0.0
  %432 = vmatpush2.msra.mxu0 0.0
  %433 = vmatprep.subr.mxu0 0.0
  %434 = vmatpush2.msra.mxu0 0.0
  %435 = vmatprep.subr.mxu0 0.0
  %436 = vmatpush2.msra.mxu0 0.0
  %437 = vmatprep.subr.mxu0 0.0
  %438 = vmatpush2.msra.mxu0 0.0
  %439 = vmatprep.subr.mxu0 0.0
  %440 = vmatpush2.msra.mxu0 0.0
  %441 = vmatprep.subr.mxu0 0.0
  %442 = vmatpush2.msra.mxu0 0.0
  %443 = vmatprep.subr.mxu0 0.0
  %444 = vmatpush2.msra.mxu0 0.0
  %445 = vmatprep.subr.mxu0 0.0
  %446 = vmatpush2.msra.mxu0 0.0
  %447 = vmatprep.subr.mxu0 0.0
  %448 = vmatpush2.msra.mxu0 0.0
  %449 = vmatprep.subr.mxu0 0.0
  %450 = vmatpush2.msra.mxu0 0.0
  %451 = vmatprep.subr.mxu0 0.0
  %452 = vmatpush2.msra.mxu0 0.0
  %453 = vmatprep.subr.mxu0 0.0
  %454 = vmatpush2.msra.mxu0 0.0
  %455 = vmatprep.subr.mxu0 0.0
  %456 = vmatpush2.msra.mxu0 0.0
  %457 = vmatprep.subr.mxu0 0.0
  %458 = vmatpush2.msra.mxu0 0.0
  %459 = vmatprep.mubr.f32.mxu0 0.0
  %460 = vmatmul.mubr.f32.gmra.mxu0 %v71
  %v461 = vpop.f32.mrf.mxu0
  %v462 = vadd.f32 0.0, %v461
  %v463 = vpop.f32.mrf.mxu0
  %464 = vmatprep.mubr.f32.mxu0 0.0
  %465 = vmatmul.mubr.f32.gmra.mxu0 %v74
  %v466 = vpop.f32.mrf.mxu0
  %v467 = vadd.f32 0.0, %v466
  %v468 = vpop.f32.mrf.mxu0
  %469 = vmatprep.mubr.f32.mxu0 0.0
  %470 = vmatmul.mubr.f32.gmra.mxu0 %v77
  %v471 = vpop.f32.mrf.mxu0
  %v472 = vadd.f32 0.0, %v471
  %v473 = vpop.f32.mrf.mxu0
  %474 = vmatprep.mubr.f32.mxu0 0.0
  %475 = vmatmul.mubr.f32.gmra.mxu0 %v80
  %v476 = vpop.f32.mrf.mxu0
  %v477 = vadd.f32 0.0, %v476
  %v478 = vpop.f32.mrf.mxu0
  %479 = vmatprep.mubr.f32.mxu0 0.0
  %480 = vmatmul.mubr.f32.gmra.mxu0 %v83
  %v481 = vpop.f32.mrf.mxu0
  %v482 = vadd.f32 0.0, %v481
  %v483 = vpop.f32.mrf.mxu0
  %484 = vmatprep.mubr.f32.mxu0 0.0
  %485 = vmatmul.mubr.f32.gmra.mxu0 %v86
  %v486 = vpop.f32.mrf.mxu0
  %v487 = vadd.f32 0.0, %v486
  %v488 = vpop.f32.mrf.mxu0
  %489 = vdwg.mxu0
  %490 = vst.msk [vmem:[#allocation2 + $0x48] sm:$0xff] %vm183, %v462
  %491 = vst.msk [vmem:[#allocation2 + $0x50] sm:$0xff] %vm183, %v467
  %492 = vst.msk [vmem:[#allocation2 + $0x58] sm:$0xff] %vm183, %v472
  %493 = vst.msk [vmem:[#allocation3 + $0x48] sm:$0xff] %vm183, %v477
  %494 = vst.msk [vmem:[#allocation3 + $0x50] sm:$0xff] %vm183, %v482
  %495 = vst.msk [vmem:[#allocation3 + $0x58] sm:$0xff] %vm183, %v487
  %v496 = vld [vmem:[%s0 + $0x20] sm:$0xff]
  %497 = vmatprep.subr.mxu0 0.0
  %498 = vmatpush1.msra.mxu0 0.0
  %499 = vmatprep.subr.mxu0 0.0
  %500 = vmatpush1.msra.mxu0 0.0
  %501 = vmatprep.subr.mxu0 0.0
  %502 = vmatpush1.msra.mxu0 0.0
  %503 = vmatprep.subr.mxu0 0.0
  %504 = vmatpush1.msra.mxu0 0.0
  %505 = vmatprep.subr.mxu0 0.0
  %506 = vmatpush1.msra.mxu0 0.0
  %507 = vmatprep.subr.mxu0 0.0
  %508 = vmatpush1.msra.mxu0 0.0
  %509 = vmatprep.subr.mxu0 0.0
  %510 = vmatpush1.msra.mxu0 0.0
  %511 = vmatprep.subr.mxu0 0.0
  %512 = vmatpush1.msra.mxu0 0.0
  %513 = vmatprep.subr.mxu0 0.0
  %514 = vmatpush1.msra.mxu0 0.0
  %515 = vmatprep.subr.mxu0 0.0
  %516 = vmatpush1.msra.mxu0 0.0
  %517 = vmatprep.subr.mxu0 0.0
  %518 = vmatpush1.msra.mxu0 0.0
  %519 = vmatprep.subr.mxu0 0.0
  %520 = vmatpush1.msra.mxu0 0.0
  %521 = vmatprep.subr.mxu0 0.0
  %522 = vmatpush1.msra.mxu0 0.0
  %523 = vmatprep.subr.mxu0 0.0
  %524 = vmatpush1.msra.mxu0 0.0
  %525 = vmatprep.subr.mxu0 0.0
  %526 = vmatpush1.msra.mxu0 0.0
  %527 = vmatprep.subr.mxu0 0.0
  %528 = vmatpush1.msra.mxu0 %v496
  %529 = vmatprep.subr.mxu0 0.0
  %530 = vmatpush2.msra.mxu0 0.0
  %531 = vmatprep.subr.mxu0 0.0
  %532 = vmatpush2.msra.mxu0 0.0
  %533 = vmatprep.subr.mxu0 0.0
  %534 = vmatpush2.msra.mxu0 0.0
  %535 = vmatprep.subr.mxu0 0.0
  %536 = vmatpush2.msra.mxu0 0.0
  %537 = vmatprep.subr.mxu0 0.0
  %538 = vmatpush2.msra.mxu0 0.0
  %539 = vmatprep.subr.mxu0 0.0
  %540 = vmatpush2.msra.mxu0 0.0
  %541 = vmatprep.subr.mxu0 0.0
  %542 = vmatpush2.msra.mxu0 0.0
  %543 = vmatprep.subr.mxu0 0.0
  %544 = vmatpush2.msra.mxu0 0.0
  %545 = vmatprep.subr.mxu0 0.0
  %546 = vmatpush2.msra.mxu0 0.0
  %547 = vmatprep.subr.mxu0 0.0
  %548 = vmatpush2.msra.mxu0 0.0
  %549 = vmatprep.subr.mxu0 0.0
  %550 = vmatpush2.msra.mxu0 0.0
  %551 = vmatprep.subr.mxu0 0.0
  %552 = vmatpush2.msra.mxu0 0.0
  %553 = vmatprep.subr.mxu0 0.0
  %554 = vmatpush2.msra.mxu0 0.0
  %555 = vmatprep.subr.mxu0 0.0
  %556 = vmatpush2.msra.mxu0 0.0
  %557 = vmatprep.subr.mxu0 0.0
  %558 = vmatpush2.msra.mxu0 0.0
  %559 = vmatprep.subr.mxu0 0.0
  %560 = vmatpush2.msra.mxu0 0.0
  %561 = vmatprep.mubr.f32.mxu0 0.0
  %562 = vmatmul.mubr.f32.gmra.mxu0 %v71
  %v563 = vpop.f32.mrf.mxu0
  %v564 = vadd.f32 0.0, %v563
  %v565 = vpop.f32.mrf.mxu0
  %566 = vmatprep.mubr.f32.mxu0 0.0
  %567 = vmatmul.mubr.f32.gmra.mxu0 %v74
  %v568 = vpop.f32.mrf.mxu0
  %v569 = vadd.f32 0.0, %v568
  %v570 = vpop.f32.mrf.mxu0
  %571 = vmatprep.mubr.f32.mxu0 0.0
  %572 = vmatmul.mubr.f32.gmra.mxu0 %v77
  %v573 = vpop.f32.mrf.mxu0
  %v574 = vadd.f32 0.0, %v573
  %v575 = vpop.f32.mrf.mxu0
  %576 = vmatprep.mubr.f32.mxu0 0.0
  %577 = vmatmul.mubr.f32.gmra.mxu0 %v80
  %v578 = vpop.f32.mrf.mxu0
  %v579 = vadd.f32 0.0, %v578
  %v580 = vpop.f32.mrf.mxu0
  %581 = vmatprep.mubr.f32.mxu0 0.0
  %582 = vmatmul.mubr.f32.gmra.mxu0 %v83
  %v583 = vpop.f32.mrf.mxu0
  %v584 = vadd.f32 0.0, %v583
  %v585 = vpop.f32.mrf.mxu0
  %586 = vmatprep.mubr.f32.mxu0 0.0
  %587 = vmatmul.mubr.f32.gmra.mxu0 %v86
  %v588 = vpop.f32.mrf.mxu0
  %v589 = vadd.f32 0.0, %v588
  %v590 = vpop.f32.mrf.mxu0
  %591 = vdwg.mxu0
  %592 = vst.msk [vmem:[#allocation2 + $0x60] sm:$0xff] %vm183, %v564
  %593 = vst.msk [vmem:[#allocation2 + $0x68] sm:$0xff] %vm183, %v569
  %594 = vst.msk [vmem:[#allocation2 + $0x70] sm:$0xff] %vm183, %v574
  %595 = vst.msk [vmem:[#allocation3 + $0x60] sm:$0xff] %vm183, %v579
  %596 = vst.msk [vmem:[#allocation3 + $0x68] sm:$0xff] %vm183, %v584
  %597 = vst.msk [vmem:[#allocation3 + $0x70] sm:$0xff] %vm183, %v589
  %v598 = vld [vmem:[%s0 + $0x28] sm:$0xff]
  %599 = vmatprep.subr.mxu0 0.0
  %600 = vmatpush1.msra.mxu0 0.0
  %601 = vmatprep.subr.mxu0 0.0
  %602 = vmatpush1.msra.mxu0 0.0
  %603 = vmatprep.subr.mxu0 0.0
  %604 = vmatpush1.msra.mxu0 0.0
  %605 = vmatprep.subr.mxu0 0.0
  %606 = vmatpush1.msra.mxu0 0.0
  %607 = vmatprep.subr.mxu0 0.0
  %608 = vmatpush1.msra.mxu0 0.0
  %609 = vmatprep.subr.mxu0 0.0
  %610 = vmatpush1.msra.mxu0 0.0
  %611 = vmatprep.subr.mxu0 0.0
  %612 = vmatpush1.msra.mxu0 0.0
  %613 = vmatprep.subr.mxu0 0.0
  %614 = vmatpush1.msra.mxu0 0.0
  %615 = vmatprep.subr.mxu0 0.0
  %616 = vmatpush1.msra.mxu0 0.0
  %617 = vmatprep.subr.mxu0 0.0
  %618 = vmatpush1.msra.mxu0 0.0
  %619 = vmatprep.subr.mxu0 0.0
  %620 = vmatpush1.msra.mxu0 0.0
  %621 = vmatprep.subr.mxu0 0.0
  %622 = vmatpush1.msra.mxu0 0.0
  %623 = vmatprep.subr.mxu0 0.0
  %624 = vmatpush1.msra.mxu0 0.0
  %625 = vmatprep.subr.mxu0 0.0
  %626 = vmatpush1.msra.mxu0 0.0
  %627 = vmatprep.subr.mxu0 0.0
  %628 = vmatpush1.msra.mxu0 0.0
  %629 = vmatprep.subr.mxu0 0.0
  %630 = vmatpush1.msra.mxu0 %v598
  %631 = vmatprep.subr.mxu0 0.0
  %632 = vmatpush2.msra.mxu0 0.0
  %633 = vmatprep.subr.mxu0 0.0
  %634 = vmatpush2.msra.mxu0 0.0
  %635 = vmatprep.subr.mxu0 0.0
  %636 = vmatpush2.msra.mxu0 0.0
  %637 = vmatprep.subr.mxu0 0.0
  %638 = vmatpush2.msra.mxu0 0.0
  %639 = vmatprep.subr.mxu0 0.0
  %640 = vmatpush2.msra.mxu0 0.0
  %641 = vmatprep.subr.mxu0 0.0
  %642 = vmatpush2.msra.mxu0 0.0
  %643 = vmatprep.subr.mxu0 0.0
  %644 = vmatpush2.msra.mxu0 0.0
  %645 = vmatprep.subr.mxu0 0.0
  %646 = vmatpush2.msra.mxu0 0.0
  %647 = vmatprep.subr.mxu0 0.0
  %648 = vmatpush2.msra.mxu0 0.0
  %649 = vmatprep.subr.mxu0 0.0
  %650 = vmatpush2.msra.mxu0 0.0
  %651 = vmatprep.subr.mxu0 0.0
  %652 = vmatpush2.msra.mxu0 0.0
  %653 = vmatprep.subr.mxu0 0.0
  %654 = vmatpush2.msra.mxu0 0.0
  %655 = vmatprep.subr.mxu0 0.0
  %656 = vmatpush2.msra.mxu0 0.0
  %657 = vmatprep.subr.mxu0 0.0
  %658 = vmatpush2.msra.mxu0 0.0
  %659 = vmatprep.subr.mxu0 0.0
  %660 = vmatpush2.msra.mxu0 0.0
  %661 = vmatprep.subr.mxu0 0.0
  %662 = vmatpush2.msra.mxu0 0.0
  %663 = vmatprep.mubr.f32.mxu0 0.0
  %664 = vmatmul.mubr.f32.gmra.mxu0 %v71
  %v665 = vpop.f32.mrf.mxu0
  %v666 = vadd.f32 0.0, %v665
  %v667 = vpop.f32.mrf.mxu0
  %668 = vmatprep.mubr.f32.mxu0 0.0
  %669 = vmatmul.mubr.f32.gmra.mxu0 %v74
  %v670 = vpop.f32.mrf.mxu0
  %v671 = vadd.f32 0.0, %v670
  %v672 = vpop.f32.mrf.mxu0
  %673 = vmatprep.mubr.f32.mxu0 0.0
  %674 = vmatmul.mubr.f32.gmra.mxu0 %v77
  %v675 = vpop.f32.mrf.mxu0
  %v676 = vadd.f32 0.0, %v675
  %v677 = vpop.f32.mrf.mxu0
  %678 = vmatprep.mubr.f32.mxu0 0.0
  %679 = vmatmul.mubr.f32.gmra.mxu0 %v80
  %v680 = vpop.f32.mrf.mxu0
  %v681 = vadd.f32 0.0, %v680
  %v682 = vpop.f32.mrf.mxu0
  %683 = vmatprep.mubr.f32.mxu0 0.0
  %684 = vmatmul.mubr.f32.gmra.mxu0 %v83
  %v685 = vpop.f32.mrf.mxu0
  %v686 = vadd.f32 0.0, %v685
  %v687 = vpop.f32.mrf.mxu0
  %688 = vmatprep.mubr.f32.mxu0 0.0
  %689 = vmatmul.mubr.f32.gmra.mxu0 %v86
  %v690 = vpop.f32.mrf.mxu0
  %v691 = vadd.f32 0.0, %v690
  %v692 = vpop.f32.mrf.mxu0
  %693 = vdwg.mxu0
  %694 = vst.msk [vmem:[#allocation2 + $0x78] sm:$0xff] %vm183, %v666
  %695 = vst.msk [vmem:[#allocation2 + $0x80] sm:$0xff] %vm183, %v671
  %696 = vst.msk [vmem:[#allocation2 + $0x88] sm:$0xff] %vm183, %v676
  %697 = vst.msk [vmem:[#allocation3 + $0x78] sm:$0xff] %vm183, %v681
  %698 = vst.msk [vmem:[#allocation3 + $0x80] sm:$0xff] %vm183, %v686
  %699 = vst.msk [vmem:[#allocation3 + $0x88] sm:$0xff] %vm183, %v691
  %v700 = vld [vmem:[%s0 + $0x30] sm:$0xff]
  %701 = vmatprep.subr.mxu0 0.0
  %702 = vmatpush1.msra.mxu0 0.0
  %703 = vmatprep.subr.mxu0 0.0
  %704 = vmatpush1.msra.mxu0 0.0
  %705 = vmatprep.subr.mxu0 0.0
  %706 = vmatpush1.msra.mxu0 0.0
  %707 = vmatprep.subr.mxu0 0.0
  %708 = vmatpush1.msra.mxu0 0.0
  %709 = vmatprep.subr.mxu0 0.0
  %710 = vmatpush1.msra.mxu0 0.0
  %711 = vmatprep.subr.mxu0 0.0
  %712 = vmatpush1.msra.mxu0 0.0
  %713 = vmatprep.subr.mxu0 0.0
  %714 = vmatpush1.msra.mxu0 0.0
  %715 = vmatprep.subr.mxu0 0.0
  %716 = vmatpush1.msra.mxu0 0.0
  %717 = vmatprep.subr.mxu0 0.0
  %718 = vmatpush1.msra.mxu0 0.0
  %719 = vmatprep.subr.mxu0 0.0
  %720 = vmatpush1.msra.mxu0 0.0
  %721 = vmatprep.subr.mxu0 0.0
  %722 = vmatpush1.msra.mxu0 0.0
  %723 = vmatprep.subr.mxu0 0.0
  %724 = vmatpush1.msra.mxu0 0.0
  %725 = vmatprep.subr.mxu0 0.0
  %726 = vmatpush1.msra.mxu0 0.0
  %727 = vmatprep.subr.mxu0 0.0
  %728 = vmatpush1.msra.mxu0 0.0
  %729 = vmatprep.subr.mxu0 0.0
  %730 = vmatpush1.msra.mxu0 0.0
  %731 = vmatprep.subr.mxu0 0.0
  %732 = vmatpush1.msra.mxu0 %v700
  %733 = vmatprep.subr.mxu0 0.0
  %734 = vmatpush2.msra.mxu0 0.0
  %735 = vmatprep.subr.mxu0 0.0
  %736 = vmatpush2.msra.mxu0 0.0
  %737 = vmatprep.subr.mxu0 0.0
  %738 = vmatpush2.msra.mxu0 0.0
  %739 = vmatprep.subr.mxu0 0.0
  %740 = vmatpush2.msra.mxu0 0.0
  %741 = vmatprep.subr.mxu0 0.0
  %742 = vmatpush2.msra.mxu0 0.0
  %743 = vmatprep.subr.mxu0 0.0
  %744 = vmatpush2.msra.mxu0 0.0
  %745 = vmatprep.subr.mxu0 0.0
  %746 = vmatpush2.msra.mxu0 0.0
  %747 = vmatprep.subr.mxu0 0.0
  %748 = vmatpush2.msra.mxu0 0.0
  %749 = vmatprep.subr.mxu0 0.0
  %750 = vmatpush2.msra.mxu0 0.0
  %751 = vmatprep.subr.mxu0 0.0
  %752 = vmatpush2.msra.mxu0 0.0
  %753 = vmatprep.subr.mxu0 0.0
  %754 = vmatpush2.msra.mxu0 0.0
  %755 = vmatprep.subr.mxu0 0.0
  %756 = vmatpush2.msra.mxu0 0.0
  %757 = vmatprep.subr.mxu0 0.0
  %758 = vmatpush2.msra.mxu0 0.0
  %759 = vmatprep.subr.mxu0 0.0
  %760 = vmatpush2.msra.mxu0 0.0
  %761 = vmatprep.subr.mxu0 0.0
  %762 = vmatpush2.msra.mxu0 0.0
  %763 = vmatprep.subr.mxu0 0.0
  %764 = vmatpush2.msra.mxu0 0.0
  %765 = vmatprep.mubr.f32.mxu0 0.0
  %766 = vmatmul.mubr.f32.gmra.mxu0 %v71
  %v767 = vpop.f32.mrf.mxu0
  %v768 = vadd.f32 0.0, %v767
  %v769 = vpop.f32.mrf.mxu0
  %770 = vmatprep.mubr.f32.mxu0 0.0
  %771 = vmatmul.mubr.f32.gmra.mxu0 %v74
  %v772 = vpop.f32.mrf.mxu0
  %v773 = vadd.f32 0.0, %v772
  %v774 = vpop.f32.mrf.mxu0
  %775 = vmatprep.mubr.f32.mxu0 0.0
  %776 = vmatmul.mubr.f32.gmra.mxu0 %v77
  %v777 = vpop.f32.mrf.mxu0
  %v778 = vadd.f32 0.0, %v777
  %v779 = vpop.f32.mrf.mxu0
  %780 = vmatprep.mubr.f32.mxu0 0.0
  %781 = vmatmul.mubr.f32.gmra.mxu0 %v80
  %v782 = vpop.f32.mrf.mxu0
  %v783 = vadd.f32 0.0, %v782
  %v784 = vpop.f32.mrf.mxu0
  %785 = vmatprep.mubr.f32.mxu0 0.0
  %786 = vmatmul.mubr.f32.gmra.mxu0 %v83
  %v787 = vpop.f32.mrf.mxu0
  %v788 = vadd.f32 0.0, %v787
  %v789 = vpop.f32.mrf.mxu0
  %790 = vmatprep.mubr.f32.mxu0 0.0
  %791 = vmatmul.mubr.f32.gmra.mxu0 %v86
  %v792 = vpop.f32.mrf.mxu0
  %v793 = vadd.f32 0.0, %v792
  %v794 = vpop.f32.mrf.mxu0
  %795 = vdwg.mxu0
  %796 = vst.msk [vmem:[#allocation2 + $0x90] sm:$0xff] %vm183, %v768
  %797 = vst.msk [vmem:[#allocation2 + $0x98] sm:$0xff] %vm183, %v773
  %798 = vst.msk [vmem:[#allocation2 + $0xa0] sm:$0xff] %vm183, %v778
  %799 = vst.msk [vmem:[#allocation3 + $0x90] sm:$0xff] %vm183, %v783
  %800 = vst.msk [vmem:[#allocation3 + $0x98] sm:$0xff] %vm183, %v788
  %801 = vst.msk [vmem:[#allocation3 + $0xa0] sm:$0xff] %vm183, %v793
  %v802 = vld [vmem:[%s0 + $0x38] sm:$0xff]
  %803 = vmatprep.subr.mxu0 0.0
  %804 = vmatpush1.msra.mxu0 0.0
  %805 = vmatprep.subr.mxu0 0.0
  %806 = vmatpush1.msra.mxu0 0.0
  %807 = vmatprep.subr.mxu0 0.0
  %808 = vmatpush1.msra.mxu0 0.0
  %809 = vmatprep.subr.mxu0 0.0
  %810 = vmatpush1.msra.mxu0 0.0
  %811 = vmatprep.subr.mxu0 0.0
  %812 = vmatpush1.msra.mxu0 0.0
  %813 = vmatprep.subr.mxu0 0.0
  %814 = vmatpush1.msra.mxu0 0.0
  %815 = vmatprep.subr.mxu0 0.0
  %816 = vmatpush1.msra.mxu0 0.0
  %817 = vmatprep.subr.mxu0 0.0
  %818 = vmatpush1.msra.mxu0 0.0
  %819 = vmatprep.subr.mxu0 0.0
  %820 = vmatpush1.msra.mxu0 0.0
  %821 = vmatprep.subr.mxu0 0.0
  %822 = vmatpush1.msra.mxu0 0.0
  %823 = vmatprep.subr.mxu0 0.0
  %824 = vmatpush1.msra.mxu0 0.0
  %825 = vmatprep.subr.mxu0 0.0
  %826 = vmatpush1.msra.mxu0 0.0
  %827 = vmatprep.subr.mxu0 0.0
  %828 = vmatpush1.msra.mxu0 0.0
  %829 = vmatprep.subr.mxu0 0.0
  %830 = vmatpush1.msra.mxu0 0.0
  %831 = vmatprep.subr.mxu0 0.0
  %832 = vmatpush1.msra.mxu0 0.0
  %833 = vmatprep.subr.mxu0 0.0
  %834 = vmatpush1.msra.mxu0 %v802
  %835 = vmatprep.subr.mxu0 0.0
  %836 = vmatpush2.msra.mxu0 0.0
  %837 = vmatprep.subr.mxu0 0.0
  %838 = vmatpush2.msra.mxu0 0.0
  %839 = vmatprep.subr.mxu0 0.0
  %840 = vmatpush2.msra.mxu0 0.0
  %841 = vmatprep.subr.mxu0 0.0
  %842 = vmatpush2.msra.mxu0 0.0
  %843 = vmatprep.subr.mxu0 0.0
  %844 = vmatpush2.msra.mxu0 0.0
  %845 = vmatprep.subr.mxu0 0.0
  %846 = vmatpush2.msra.mxu0 0.0
  %847 = vmatprep.subr.mxu0 0.0
  %848 = vmatpush2.msra.mxu0 0.0
  %849 = vmatprep.subr.mxu0 0.0
  %850 = vmatpush2.msra.mxu0 0.0
  %851 = vmatprep.subr.mxu0 0.0
  %852 = vmatpush2.msra.mxu0 0.0
  %853 = vmatprep.subr.mxu0 0.0
  %854 = vmatpush2.msra.mxu0 0.0
  %855 = vmatprep.subr.mxu0 0.0
  %856 = vmatpush2.msra.mxu0 0.0
  %857 = vmatprep.subr.mxu0 0.0
  %858 = vmatpush2.msra.mxu0 0.0
  %859 = vmatprep.subr.mxu0 0.0
  %860 = vmatpush2.msra.mxu0 0.0
  %861 = vmatprep.subr.mxu0 0.0
  %862 = vmatpush2.msra.mxu0 0.0
  %863 = vmatprep.subr.mxu0 0.0
  %864 = vmatpush2.msra.mxu0 0.0
  %865 = vmatprep.subr.mxu0 0.0
  %866 = vmatpush2.msra.mxu0 0.0
  %867 = vmatprep.mubr.f32.mxu0 0.0
  %868 = vmatmul.mubr.f32.gmra.mxu0 %v71
  %v869 = vpop.f32.mrf.mxu0
  %v870 = vadd.f32 0.0, %v869
  %v871 = vpop.f32.mrf.mxu0
  %872 = vmatprep.mubr.f32.mxu0 0.0
  %873 = vmatmul.mubr.f32.gmra.mxu0 %v74
  %v874 = vpop.f32.mrf.mxu0
  %v875 = vadd.f32 0.0, %v874
  %v876 = vpop.f32.mrf.mxu0
  %877 = vmatprep.mubr.f32.mxu0 0.0
  %878 = vmatmul.mubr.f32.gmra.mxu0 %v77
  %v879 = vpop.f32.mrf.mxu0
  %v880 = vadd.f32 0.0, %v879
  %v881 = vpop.f32.mrf.mxu0
  %882 = vmatprep.mubr.f32.mxu0 0.0
  %883 = vmatmul.mubr.f32.gmra.mxu0 %v80
  %v884 = vpop.f32.mrf.mxu0
  %v885 = vadd.f32 0.0, %v884
  %v886 = vpop.f32.mrf.mxu0
  %887 = vmatprep.mubr.f32.mxu0 0.0
  %888 = vmatmul.mubr.f32.gmra.mxu0 %v83
  %v889 = vpop.f32.mrf.mxu0
  %v890 = vadd.f32 0.0, %v889
  %v891 = vpop.f32.mrf.mxu0
  %892 = vmatprep.mubr.f32.mxu0 0.0
  %893 = vmatmul.mubr.f32.gmra.mxu0 %v86
  %v894 = vpop.f32.mrf.mxu0
  %v895 = vadd.f32 0.0, %v894
  %v896 = vpop.f32.mrf.mxu0
  %897 = vdwg.mxu0
  %898 = vst.msk [vmem:[#allocation2 + $0xa8] sm:$0xff] %vm183, %v870
  %899 = vst.msk [vmem:[#allocation2 + $0xb0] sm:$0xff] %vm183, %v875
  %900 = vst.msk [vmem:[#allocation2 + $0xb8] sm:$0xff] %vm183, %v880
  %901 = vst.msk [vmem:[#allocation3 + $0xa8] sm:$0xff] %vm183, %v885
  %902 = vst.msk [vmem:[#allocation3 + $0xb0] sm:$0xff] %vm183, %v890
  %903 = vst.msk [vmem:[#allocation3 + $0xb8] sm:$0xff] %vm183, %v895
  %v904 = vld [vmem:[%s0 + $0x40] sm:$0xff]
  %905 = vmatprep.subr.mxu0 0.0
  %906 = vmatpush1.msra.mxu0 0.0
  %907 = vmatprep.subr.mxu0 0.0
  %908 = vmatpush1.msra.mxu0 0.0
  %909 = vmatprep.subr.mxu0 0.0
  %910 = vmatpush1.msra.mxu0 0.0
  %911 = vmatprep.subr.mxu0 0.0
  %912 = vmatpush1.msra.mxu0 0.0
  %913 = vmatprep.subr.mxu0 0.0
  %914 = vmatpush1.msra.mxu0 0.0
  %915 = vmatprep.subr.mxu0 0.0
  %916 = vmatpush1.msra.mxu0 0.0
  %917 = vmatprep.subr.mxu0 0.0
  %918 = vmatpush1.msra.mxu0 0.0
  %919 = vmatprep.subr.mxu0 0.0
  %920 = vmatpush1.msra.mxu0 0.0
  %921 = vmatprep.subr.mxu0 0.0
  %922 = vmatpush1.msra.mxu0 0.0
  %923 = vmatprep.subr.mxu0 0.0
  %924 = vmatpush1.msra.mxu0 0.0
  %925 = vmatprep.subr.mxu0 0.0
  %926 = vmatpush1.msra.mxu0 0.0
  %927 = vmatprep.subr.mxu0 0.0
  %928 = vmatpush1.msra.mxu0 0.0
  %929 = vmatprep.subr.mxu0 0.0
  %930 = vmatpush1.msra.mxu0 0.0
  %931 = vmatprep.subr.mxu0 0.0
  %932 = vmatpush1.msra.mxu0 0.0
  %933 = vmatprep.subr.mxu0 0.0
  %934 = vmatpush1.msra.mxu0 0.0
  %935 = vmatprep.subr.mxu0 0.0
  %936 = vmatpush1.msra.mxu0 %v904
  %937 = vmatprep.subr.mxu0 0.0
  %938 = vmatpush2.msra.mxu0 0.0
  %939 = vmatprep.subr.mxu0 0.0
  %940 = vmatpush2.msra.mxu0 0.0
  %941 = vmatprep.subr.mxu0 0.0
  %942 = vmatpush2.msra.mxu0 0.0
  %943 = vmatprep.subr.mxu0 0.0
  %944 = vmatpush2.msra.mxu0 0.0
  %945 = vmatprep.subr.mxu0 0.0
  %946 = vmatpush2.msra.mxu0 0.0
  %947 = vmatprep.subr.mxu0 0.0
  %948 = vmatpush2.msra.mxu0 0.0
  %949 = vmatprep.subr.mxu0 0.0
  %950 = vmatpush2.msra.mxu0 0.0
  %951 = vmatprep.subr.mxu0 0.0
  %952 = vmatpush2.msra.mxu0 0.0
  %953 = vmatprep.subr.mxu0 0.0
  %954 = vmatpush2.msra.mxu0 0.0
  %955 = vmatprep.subr.mxu0 0.0
  %956 = vmatpush2.msra.mxu0 0.0
  %957 = vmatprep.subr.mxu0 0.0
  %958 = vmatpush2.msra.mxu0 0.0
  %959 = vmatprep.subr.mxu0 0.0
  %960 = vmatpush2.msra.mxu0 0.0
  %961 = vmatprep.subr.mxu0 0.0
  %962 = vmatpush2.msra.mxu0 0.0
  %963 = vmatprep.subr.mxu0 0.0
  %964 = vmatpush2.msra.mxu0 0.0
  %965 = vmatprep.subr.mxu0 0.0
  %966 = vmatpush2.msra.mxu0 0.0
  %967 = vmatprep.subr.mxu0 0.0
  %968 = vmatpush2.msra.mxu0 0.0
  %969 = vmatprep.mubr.f32.mxu0 0.0
  %970 = vmatmul.mubr.f32.gmra.mxu0 %v71
  %v971 = vpop.f32.mrf.mxu0
  %v972 = vadd.f32 0.0, %v971
  %v973 = vpop.f32.mrf.mxu0
  %974 = vmatprep.mubr.f32.mxu0 0.0
  %975 = vmatmul.mubr.f32.gmra.mxu0 %v74
  %v976 = vpop.f32.mrf.mxu0
  %v977 = vadd.f32 0.0, %v976
  %v978 = vpop.f32.mrf.mxu0
  %979 = vmatprep.mubr.f32.mxu0 0.0
  %980 = vmatmul.mubr.f32.gmra.mxu0 %v77
  %v981 = vpop.f32.mrf.mxu0
  %v982 = vadd.f32 0.0, %v981
  %v983 = vpop.f32.mrf.mxu0
  %984 = vmatprep.mubr.f32.mxu0 0.0
  %985 = vmatmul.mubr.f32.gmra.mxu0 %v80
  %v986 = vpop.f32.mrf.mxu0
  %v987 = vadd.f32 0.0, %v986
  %v988 = vpop.f32.mrf.mxu0
  %989 = vmatprep.mubr.f32.mxu0 0.0
  %990 = vmatmul.mubr.f32.gmra.mxu0 %v83
  %v991 = vpop.f32.mrf.mxu0
  %v992 = vadd.f32 0.0, %v991
  %v993 = vpop.f32.mrf.mxu0
  %994 = vmatprep.mubr.f32.mxu0 0.0
  %995 = vmatmul.mubr.f32.gmra.mxu0 %v86
  %v996 = vpop.f32.mrf.mxu0
  %v997 = vadd.f32 0.0, %v996
  %v998 = vpop.f32.mrf.mxu0
  %999 = vdwg.mxu0
  %1000 = vst.msk [vmem:[#allocation2 + $0xc0] sm:$0xff] %vm183, %v972
  %1001 = vst.msk [vmem:[#allocation2 + $0xc8] sm:$0xff] %vm183, %v977
  %1002 = vst.msk [vmem:[#allocation2 + $0xd0] sm:$0xff] %vm183, %v982
  %1003 = vst.msk [vmem:[#allocation3 + $0xc0] sm:$0xff] %vm183, %v987
  %1004 = vst.msk [vmem:[#allocation3 + $0xc8] sm:$0xff] %vm183, %v992
  %1005 = vst.msk [vmem:[#allocation3 + $0xd0] sm:$0xff] %vm183, %v997
  %v1006 = vld [vmem:[%s0 + $0x48] sm:$0xff]
  %1007 = vmatprep.subr.mxu0 0.0
  %1008 = vmatpush1.msra.mxu0 0.0
  %1009 = vmatprep.subr.mxu0 0.0
  %1010 = vmatpush1.msra.mxu0 0.0
  %1011 = vmatprep.subr.mxu0 0.0
  %1012 = vmatpush1.msra.mxu0 0.0
  %1013 = vmatprep.subr.mxu0 0.0
  %1014 = vmatpush1.msra.mxu0 0.0
  %1015 = vmatprep.subr.mxu0 0.0
  %1016 = vmatpush1.msra.mxu0 0.0
  %1017 = vmatprep.subr.mxu0 0.0
  %1018 = vmatpush1.msra.mxu0 0.0
  %1019 = vmatprep.subr.mxu0 0.0
  %1020 = vmatpush1.msra.mxu0 0.0
  %1021 = vmatprep.subr.mxu0 0.0
  %1022 = vmatpush1.msra.mxu0 0.0
  %1023 = vmatprep.subr.mxu0 0.0
  %1024 = vmatpush1.msra.mxu0 0.0
  %1025 = vmatprep.subr.mxu0 0.0
  %1026 = vmatpush1.msra.mxu0 0.0
  %1027 = vmatprep.subr.mxu0 0.0
  %1028 = vmatpush1.msra.mxu0 0.0
  %1029 = vmatprep.subr.mxu0 0.0
  %1030 = vmatpush1.msra.mxu0 0.0
  %1031 = vmatprep.subr.mxu0 0.0
  %1032 = vmatpush1.msra.mxu0 0.0
  %1033 = vmatprep.subr.mxu0 0.0
  %1034 = vmatpush1.msra.mxu0 0.0
  %1035 = vmatprep.subr.mxu0 0.0
  %1036 = vmatpush1.msra.mxu0 0.0
  %1037 = vmatprep.subr.mxu0 0.0
  %1038 = vmatpush1.msra.mxu0 %v1006
  %1039 = vmatprep.subr.mxu0 0.0
  %1040 = vmatpush2.msra.mxu0 0.0
  %1041 = vmatprep.subr.mxu0 0.0
  %1042 = vmatpush2.msra.mxu0 0.0
  %1043 = vmatprep.subr.mxu0 0.0
  %1044 = vmatpush2.msra.mxu0 0.0
  %1045 = vmatprep.subr.mxu0 0.0
  %1046 = vmatpush2.msra.mxu0 0.0
  %1047 = vmatprep.subr.mxu0 0.0
  %1048 = vmatpush2.msra.mxu0 0.0
  %1049 = vmatprep.subr.mxu0 0.0
  %1050 = vmatpush2.msra.mxu0 0.0
  %1051 = vmatprep.subr.mxu0 0.0
  %1052 = vmatpush2.msra.mxu0 0.0
  %1053 = vmatprep.subr.mxu0 0.0
  %1054 = vmatpush2.msra.mxu0 0.0
  %1055 = vmatprep.subr.mxu0 0.0
  %1056 = vmatpush2.msra.mxu0 0.0
  %1057 = vmatprep.subr.mxu0 0.0
  %1058 = vmatpush2.msra.mxu0 0.0
  %1059 = vmatprep.subr.mxu0 0.0
  %1060 = vmatpush2.msra.mxu0 0.0
  %1061 = vmatprep.subr.mxu0 0.0
  %1062 = vmatpush2.msra.mxu0 0.0
  %1063 = vmatprep.subr.mxu0 0.0
  %1064 = vmatpush2.msra.mxu0 0.0
  %1065 = vmatprep.subr.mxu0 0.0
  %1066 = vmatpush2.msra.mxu0 0.0
  %1067 = vmatprep.subr.mxu0 0.0
  %1068 = vmatpush2.msra.mxu0 0.0
  %1069 = vmatprep.subr.mxu0 0.0
  %1070 = vmatpush2.msra.mxu0 0.0
  %1071 = vmatprep.mubr.f32.mxu0 0.0
  %1072 = vmatmul.mubr.f32.gmra.mxu0 %v71
  %v1073 = vpop.f32.mrf.mxu0
  %v1074 = vadd.f32 0.0, %v1073
  %v1075 = vpop.f32.mrf.mxu0
  %1076 = vmatprep.mubr.f32.mxu0 0.0
  %1077 = vmatmul.mubr.f32.gmra.mxu0 %v74
  %v1078 = vpop.f32.mrf.mxu0
  %v1079 = vadd.f32 0.0, %v1078
  %v1080 = vpop.f32.mrf.mxu0
  %1081 = vmatprep.mubr.f32.mxu0 0.0
  %1082 = vmatmul.mubr.f32.gmra.mxu0 %v77
  %v1083 = vpop.f32.mrf.mxu0
  %v1084 = vadd.f32 0.0, %v1083
  %v1085 = vpop.f32.mrf.mxu0
  %1086 = vmatprep.mubr.f32.mxu0 0.0
  %1087 = vmatmul.mubr.f32.gmra.mxu0 %v80
  %v1088 = vpop.f32.mrf.mxu0
  %v1089 = vadd.f32 0.0, %v1088
  %v1090 = vpop.f32.mrf.mxu0
  %1091 = vmatprep.mubr.f32.mxu0 0.0
  %1092 = vmatmul.mubr.f32.gmra.mxu0 %v83
  %v1093 = vpop.f32.mrf.mxu0
  %v1094 = vadd.f32 0.0, %v1093
  %v1095 = vpop.f32.mrf.mxu0
  %1096 = vmatprep.mubr.f32.mxu0 0.0
  %1097 = vmatmul.mubr.f32.gmra.mxu0 %v86
  %v1098 = vpop.f32.mrf.mxu0
  %v1099 = vadd.f32 0.0, %v1098
  %v1100 = vpop.f32.mrf.mxu0
  %1101 = vdwg.mxu0
  %1102 = vst.msk [vmem:[#allocation2 + $0xd8] sm:$0xff] %vm183, %v1074
  %1103 = vst.msk [vmem:[#allocation2 + $0xe0] sm:$0xff] %vm183, %v1079
  %1104 = vst.msk [vmem:[#allocation2 + $0xe8] sm:$0xff] %vm183, %v1084
  %1105 = vst.msk [vmem:[#allocation3 + $0xd8] sm:$0xff] %vm183, %v1089
  %1106 = vst.msk [vmem:[#allocation3 + $0xe0] sm:$0xff] %vm183, %v1094
  %1107 = vst.msk [vmem:[#allocation3 + $0xe8] sm:$0xff] %vm183, %v1099
  %v1108 = vld [vmem:[%s0 + $0x50] sm:$0xff]
  %1109 = vmatprep.subr.mxu0 0.0
  %1110 = vmatpush1.msra.mxu0 0.0
  %1111 = vmatprep.subr.mxu0 0.0
  %1112 = vmatpush1.msra.mxu0 0.0
  %1113 = vmatprep.subr.mxu0 0.0
  %1114 = vmatpush1.msra.mxu0 0.0
  %1115 = vmatprep.subr.mxu0 0.0
  %1116 = vmatpush1.msra.mxu0 0.0
  %1117 = vmatprep.subr.mxu0 0.0
  %1118 = vmatpush1.msra.mxu0 0.0
  %1119 = vmatprep.subr.mxu0 0.0
  %1120 = vmatpush1.msra.mxu0 0.0
  %1121 = vmatprep.subr.mxu0 0.0
  %1122 = vmatpush1.msra.mxu0 0.0
  %1123 = vmatprep.subr.mxu0 0.0
  %1124 = vmatpush1.msra.mxu0 0.0
  %1125 = vmatprep.subr.mxu0 0.0
  %1126 = vmatpush1.msra.mxu0 0.0
  %1127 = vmatprep.subr.mxu0 0.0
  %1128 = vmatpush1.msra.mxu0 0.0
  %1129 = vmatprep.subr.mxu0 0.0
  %1130 = vmatpush1.msra.mxu0 0.0
  %1131 = vmatprep.subr.mxu0 0.0
  %1132 = vmatpush1.msra.mxu0 0.0
  %1133 = vmatprep.subr.mxu0 0.0
  %1134 = vmatpush1.msra.mxu0 0.0
  %1135 = vmatprep.subr.mxu0 0.0
  %1136 = vmatpush1.msra.mxu0 0.0
  %1137 = vmatprep.subr.mxu0 0.0
  %1138 = vmatpush1.msra.mxu0 0.0
  %1139 = vmatprep.subr.mxu0 0.0
  %1140 = vmatpush1.msra.mxu0 %v1108
  %1141 = vmatprep.subr.mxu0 0.0
  %1142 = vmatpush2.msra.mxu0 0.0
  %1143 = vmatprep.subr.mxu0 0.0
  %1144 = vmatpush2.msra.mxu0 0.0
  %1145 = vmatprep.subr.mxu0 0.0
  %1146 = vmatpush2.msra.mxu0 0.0
  %1147 = vmatprep.subr.mxu0 0.0
  %1148 = vmatpush2.msra.mxu0 0.0
  %1149 = vmatprep.subr.mxu0 0.0
  %1150 = vmatpush2.msra.mxu0 0.0
  %1151 = vmatprep.subr.mxu0 0.0
  %1152 = vmatpush2.msra.mxu0 0.0
  %1153 = vmatprep.subr.mxu0 0.0
  %1154 = vmatpush2.msra.mxu0 0.0
  %1155 = vmatprep.subr.mxu0 0.0
  %1156 = vmatpush2.msra.mxu0 0.0
  %1157 = vmatprep.subr.mxu0 0.0
  %1158 = vmatpush2.msra.mxu0 0.0
  %1159 = vmatprep.subr.mxu0 0.0
  %1160 = vmatpush2.msra.mxu0 0.0
  %1161 = vmatprep.subr.mxu0 0.0
  %1162 = vmatpush2.msra.mxu0 0.0
  %1163 = vmatprep.subr.mxu0 0.0
  %1164 = vmatpush2.msra.mxu0 0.0
  %1165 = vmatprep.subr.mxu0 0.0
  %1166 = vmatpush2.msra.mxu0 0.0
  %1167 = vmatprep.subr.mxu0 0.0
  %1168 = vmatpush2.msra.mxu0 0.0
  %1169 = vmatprep.subr.mxu0 0.0
  %1170 = vmatpush2.msra.mxu0 0.0
  %1171 = vmatprep.subr.mxu0 0.0
  %1172 = vmatpush2.msra.mxu0 0.0
  %1173 = vmatprep.mubr.f32.mxu0 0.0
  %1174 = vmatmul.mubr.f32.gmra.mxu0 %v71
  %v1175 = vpop.f32.mrf.mxu0
  %v1176 = vadd.f32 0.0, %v1175
  %v1177 = vpop.f32.mrf.mxu0
  %1178 = vmatprep.mubr.f32.mxu0 0.0
  %1179 = vmatmul.mubr.f32.gmra.mxu0 %v74
  %v1180 = vpop.f32.mrf.mxu0
  %v1181 = vadd.f32 0.0, %v1180
  %v1182 = vpop.f32.mrf.mxu0
  %1183 = vmatprep.mubr.f32.mxu0 0.0
  %1184 = vmatmul.mubr.f32.gmra.mxu0 %v77
  %v1185 = vpop.f32.mrf.mxu0
  %v1186 = vadd.f32 0.0, %v1185
  %v1187 = vpop.f32.mrf.mxu0
  %1188 = vmatprep.mubr.f32.mxu0 0.0
  %1189 = vmatmul.mubr.f32.gmra.mxu0 %v80
  %v1190 = vpop.f32.mrf.mxu0
  %v1191 = vadd.f32 0.0, %v1190
  %v1192 = vpop.f32.mrf.mxu0
  %1193 = vmatprep.mubr.f32.mxu0 0.0
  %1194 = vmatmul.mubr.f32.gmra.mxu0 %v83
  %v1195 = vpop.f32.mrf.mxu0
  %v1196 = vadd.f32 0.0, %v1195
  %v1197 = vpop.f32.mrf.mxu0
  %1198 = vmatprep.mubr.f32.mxu0 0.0
  %1199 = vmatmul.mubr.f32.gmra.mxu0 %v86
  %v1200 = vpop.f32.mrf.mxu0
  %v1201 = vadd.f32 0.0, %v1200
  %v1202 = vpop.f32.mrf.mxu0
  %1203 = vdwg.mxu0
  %1204 = vst.msk [vmem:[#allocation2 + $0xf0] sm:$0xff] %vm183, %v1176
  %1205 = vst.msk [vmem:[#allocation2 + $0xf8] sm:$0xff] %vm183, %v1181
  %1206 = vst.msk [vmem:[#allocation2 + $0x100] sm:$0xff] %vm183, %v1186
  %1207 = vst.msk [vmem:[#allocation3 + $0xf0] sm:$0xff] %vm183, %v1191
  %1208 = vst.msk [vmem:[#allocation3 + $0xf8] sm:$0xff] %vm183, %v1196
  %1209 = vst.msk [vmem:[#allocation3 + $0x100] sm:$0xff] %vm183, %v1201
  %v1210 = vld [vmem:[%s0 + $0x58] sm:$0xff]
  %1211 = vmatprep.subr.mxu0 0.0
  %1212 = vmatpush1.msra.mxu0 0.0
  %1213 = vmatprep.subr.mxu0 0.0
  %1214 = vmatpush1.msra.mxu0 0.0
  %1215 = vmatprep.subr.mxu0 0.0
  %1216 = vmatpush1.msra.mxu0 0.0
  %1217 = vmatprep.subr.mxu0 0.0
  %1218 = vmatpush1.msra.mxu0 0.0
  %1219 = vmatprep.subr.mxu0 0.0
  %1220 = vmatpush1.msra.mxu0 0.0
  %1221 = vmatprep.subr.mxu0 0.0
  %1222 = vmatpush1.msra.mxu0 0.0
  %1223 = vmatprep.subr.mxu0 0.0
  %1224 = vmatpush1.msra.mxu0 0.0
  %1225 = vmatprep.subr.mxu0 0.0
  %1226 = vmatpush1.msra.mxu0 0.0
  %1227 = vmatprep.subr.mxu0 0.0
  %1228 = vmatpush1.msra.mxu0 0.0
  %1229 = vmatprep.subr.mxu0 0.0
  %1230 = vmatpush1.msra.mxu0 0.0
  %1231 = vmatprep.subr.mxu0 0.0
  %1232 = vmatpush1.msra.mxu0 0.0
  %1233 = vmatprep.subr.mxu0 0.0
  %1234 = vmatpush1.msra.mxu0 0.0
  %1235 = vmatprep.subr.mxu0 0.0
  %1236 = vmatpush1.msra.mxu0 0.0
  %1237 = vmatprep.subr.mxu0 0.0
  %1238 = vmatpush1.msra.mxu0 0.0
  %1239 = vmatprep.subr.mxu0 0.0
  %1240 = vmatpush1.msra.mxu0 0.0
  %1241 = vmatprep.subr.mxu0 0.0
  %1242 = vmatpush1.msra.mxu0 %v1210
  %1243 = vmatprep.subr.mxu0 0.0
  %1244 = vmatpush2.msra.mxu0 0.0
  %1245 = vmatprep.subr.mxu0 0.0
  %1246 = vmatpush2.msra.mxu0 0.0
  %1247 = vmatprep.subr.mxu0 0.0
  %1248 = vmatpush2.msra.mxu0 0.0
  %1249 = vmatprep.subr.mxu0 0.0
  %1250 = vmatpush2.msra.mxu0 0.0
  %1251 = vmatprep.subr.mxu0 0.0
  %1252 = vmatpush2.msra.mxu0 0.0
  %1253 = vmatprep.subr.mxu0 0.0
  %1254 = vmatpush2.msra.mxu0 0.0
  %1255 = vmatprep.subr.mxu0 0.0
  %1256 = vmatpush2.msra.mxu0 0.0
  %1257 = vmatprep.subr.mxu0 0.0
  %1258 = vmatpush2.msra.mxu0 0.0
  %1259 = vmatprep.subr.mxu0 0.0
  %1260 = vmatpush2.msra.mxu0 0.0
  %1261 = vmatprep.subr.mxu0 0.0
  %1262 = vmatpush2.msra.mxu0 0.0
  %1263 = vmatprep.subr.mxu0 0.0
  %1264 = vmatpush2.msra.mxu0 0.0
  %1265 = vmatprep.subr.mxu0 0.0
  %1266 = vmatpush2.msra.mxu0 0.0
  %1267 = vmatprep.subr.mxu0 0.0
  %1268 = vmatpush2.msra.mxu0 0.0
  %1269 = vmatprep.subr.mxu0 0.0
  %1270 = vmatpush2.msra.mxu0 0.0
  %1271 = vmatprep.subr.mxu0 0.0
  %1272 = vmatpush2.msra.mxu0 0.0
  %1273 = vmatprep.subr.mxu0 0.0
  %1274 = vmatpush2.msra.mxu0 0.0
  %1275 = vmatprep.mubr.f32.mxu0 0.0
  %1276 = vmatmul.mubr.f32.gmra.mxu0 %v71
  %v1277 = vpop.f32.mrf.mxu0
  %v1278 = vadd.f32 0.0, %v1277
  %v1279 = vpop.f32.mrf.mxu0
  %1280 = vmatprep.mubr.f32.mxu0 0.0
  %1281 = vmatmul.mubr.f32.gmra.mxu0 %v74
  %v1282 = vpop.f32.mrf.mxu0
  %v1283 = vadd.f32 0.0, %v1282
  %v1284 = vpop.f32.mrf.mxu0
  %1285 = vmatprep.mubr.f32.mxu0 0.0
  %1286 = vmatmul.mubr.f32.gmra.mxu0 %v77
  %v1287 = vpop.f32.mrf.mxu0
  %v1288 = vadd.f32 0.0, %v1287
  %v1289 = vpop.f32.mrf.mxu0
  %1290 = vmatprep.mubr.f32.mxu0 0.0
  %1291 = vmatmul.mubr.f32.gmra.mxu0 %v80
  %v1292 = vpop.f32.mrf.mxu0
  %v1293 = vadd.f32 0.0, %v1292
  %v1294 = vpop.f32.mrf.mxu0
  %1295 = vmatprep.mubr.f32.mxu0 0.0
  %1296 = vmatmul.mubr.f32.gmra.mxu0 %v83
  %v1297 = vpop.f32.mrf.mxu0
  %v1298 = vadd.f32 0.0, %v1297
  %v1299 = vpop.f32.mrf.mxu0
  %1300 = vmatprep.mubr.f32.mxu0 0.0
  %1301 = vmatmul.mubr.f32.gmra.mxu0 %v86
  %v1302 = vpop.f32.mrf.mxu0
  %v1303 = vadd.f32 0.0, %v1302
  %v1304 = vpop.f32.mrf.mxu0
  %1305 = vdwg.mxu0
  %1306 = vst.msk [vmem:[#allocation2 + $0x108] sm:$0xff] %vm183, %v1278
  %1307 = vst.msk [vmem:[#allocation2 + $0x110] sm:$0xff] %vm183, %v1283
  %1308 = vst.msk [vmem:[#allocation2 + $0x118] sm:$0xff] %vm183, %v1288
  %1309 = vst.msk [vmem:[#allocation3 + $0x108] sm:$0xff] %vm183, %v1293
  %1310 = vst.msk [vmem:[#allocation3 + $0x110] sm:$0xff] %vm183, %v1298
  %1311 = vst.msk [vmem:[#allocation3 + $0x118] sm:$0xff] %vm183, %v1303
  %v1312 = vld [vmem:[%s0 + $0x60] sm:$0xff]
  %1313 = vmatprep.subr.mxu0 0.0
  %1314 = vmatpush1.msra.mxu0 0.0
  %1315 = vmatprep.subr.mxu0 0.0
  %1316 = vmatpush1.msra.mxu0 0.0
  %1317 = vmatprep.subr.mxu0 0.0
  %1318 = vmatpush1.msra.mxu0 0.0
  %1319 = vmatprep.subr.mxu0 0.0
  %1320 = vmatpush1.msra.mxu0 0.0
  %1321 = vmatprep.subr.mxu0 0.0
  %1322 = vmatpush1.msra.mxu0 0.0
  %1323 = vmatprep.subr.mxu0 0.0
  %1324 = vmatpush1.msra.mxu0 0.0
  %1325 = vmatprep.subr.mxu0 0.0
  %1326 = vmatpush1.msra.mxu0 0.0
  %1327 = vmatprep.subr.mxu0 0.0
  %1328 = vmatpush1.msra.mxu0 0.0
  %1329 = vmatprep.subr.mxu0 0.0
  %1330 = vmatpush1.msra.mxu0 0.0
  %1331 = vmatprep.subr.mxu0 0.0
  %1332 = vmatpush1.msra.mxu0 0.0
  %1333 = vmatprep.subr.mxu0 0.0
  %1334 = vmatpush1.msra.mxu0 0.0
  %1335 = vmatprep.subr.mxu0 0.0
  %1336 = vmatpush1.msra.mxu0 0.0
  %1337 = vmatprep.subr.mxu0 0.0
  %1338 = vmatpush1.msra.mxu0 0.0
  %1339 = vmatprep.subr.mxu0 0.0
  %1340 = vmatpush1.msra.mxu0 0.0
  %1341 = vmatprep.subr.mxu0 0.0
  %1342 = vmatpush1.msra.mxu0 0.0
  %1343 = vmatprep.subr.mxu0 0.0
  %1344 = vmatpush1.msra.mxu0 %v1312
  %1345 = vmatprep.subr.mxu0 0.0
  %1346 = vmatpush2.msra.mxu0 0.0
  %1347 = vmatprep.subr.mxu0 0.0
  %1348 = vmatpush2.msra.mxu0 0.0
  %1349 = vmatprep.subr.mxu0 0.0
  %1350 = vmatpush2.msra.mxu0 0.0
  %1351 = vmatprep.subr.mxu0 0.0
  %1352 = vmatpush2.msra.mxu0 0.0
  %1353 = vmatprep.subr.mxu0 0.0
  %1354 = vmatpush2.msra.mxu0 0.0
  %1355 = vmatprep.subr.mxu0 0.0
  %1356 = vmatpush2.msra.mxu0 0.0
  %1357 = vmatprep.subr.mxu0 0.0
  %1358 = vmatpush2.msra.mxu0 0.0
  %1359 = vmatprep.subr.mxu0 0.0
  %1360 = vmatpush2.msra.mxu0 0.0
  %1361 = vmatprep.subr.mxu0 0.0
  %1362 = vmatpush2.msra.mxu0 0.0
  %1363 = vmatprep.subr.mxu0 0.0
  %1364 = vmatpush2.msra.mxu0 0.0
  %1365 = vmatprep.subr.mxu0 0.0
  %1366 = vmatpush2.msra.mxu0 0.0
  %1367 = vmatprep.subr.mxu0 0.0
  %1368 = vmatpush2.msra.mxu0 0.0
  %1369 = vmatprep.subr.mxu0 0.0
  %1370 = vmatpush2.msra.mxu0 0.0
  %1371 = vmatprep.subr.mxu0 0.0
  %1372 = vmatpush2.msra.mxu0 0.0
  %1373 = vmatprep.subr.mxu0 0.0
  %1374 = vmatpush2.msra.mxu0 0.0
  %1375 = vmatprep.subr.mxu0 0.0
  %1376 = vmatpush2.msra.mxu0 0.0
  %1377 = vmatprep.mubr.f32.mxu0 0.0
  %1378 = vmatmul.mubr.f32.gmra.mxu0 %v71
  %v1379 = vpop.f32.mrf.mxu0
  %v1380 = vadd.f32 0.0, %v1379
  %v1381 = vpop.f32.mrf.mxu0
  %1382 = vmatprep.mubr.f32.mxu0 0.0
  %1383 = vmatmul.mubr.f32.gmra.mxu0 %v74
  %v1384 = vpop.f32.mrf.mxu0
  %v1385 = vadd.f32 0.0, %v1384
  %v1386 = vpop.f32.mrf.mxu0
  %1387 = vmatprep.mubr.f32.mxu0 0.0
  %1388 = vmatmul.mubr.f32.gmra.mxu0 %v77
  %v1389 = vpop.f32.mrf.mxu0
  %v1390 = vadd.f32 0.0, %v1389
  %v1391 = vpop.f32.mrf.mxu0
  %1392 = vmatprep.mubr.f32.mxu0 0.0
  %1393 = vmatmul.mubr.f32.gmra.mxu0 %v80
  %v1394 = vpop.f32.mrf.mxu0
  %v1395 = vadd.f32 0.0, %v1394
  %v1396 = vpop.f32.mrf.mxu0
  %1397 = vmatprep.mubr.f32.mxu0 0.0
  %1398 = vmatmul.mubr.f32.gmra.mxu0 %v83
  %v1399 = vpop.f32.mrf.mxu0
  %v1400 = vadd.f32 0.0, %v1399
  %v1401 = vpop.f32.mrf.mxu0
  %1402 = vmatprep.mubr.f32.mxu0 0.0
  %1403 = vmatmul.mubr.f32.gmra.mxu0 %v86
  %v1404 = vpop.f32.mrf.mxu0
  %v1405 = vadd.f32 0.0, %v1404
  %v1406 = vpop.f32.mrf.mxu0
  %1407 = vdwg.mxu0
  %1408 = vst.msk [vmem:[#allocation2 + $0x120] sm:$0xff] %vm183, %v1380
  %1409 = vst.msk [vmem:[#allocation2 + $0x128] sm:$0xff] %vm183, %v1385
  %1410 = vst.msk [vmem:[#allocation2 + $0x130] sm:$0xff] %vm183, %v1390
  %1411 = vst.msk [vmem:[#allocation3 + $0x120] sm:$0xff] %vm183, %v1395
  %1412 = vst.msk [vmem:[#allocation3 + $0x128] sm:$0xff] %vm183, %v1400
  %1413 = vst.msk [vmem:[#allocation3 + $0x130] sm:$0xff] %vm183, %v1405
  %v1414 = vld [vmem:[%s0 + $0x68] sm:$0xff]
  %1415 = vmatprep.subr.mxu0 0.0
  %1416 = vmatpush1.msra.mxu0 0.0
  %1417 = vmatprep.subr.mxu0 0.0
  %1418 = vmatpush1.msra.mxu0 0.0
  %1419 = vmatprep.subr.mxu0 0.0
  %1420 = vmatpush1.msra.mxu0 0.0
  %1421 = vmatprep.subr.mxu0 0.0
  %1422 = vmatpush1.msra.mxu0 0.0
  %1423 = vmatprep.subr.mxu0 0.0
  %1424 = vmatpush1.msra.mxu0 0.0
  %1425 = vmatprep.subr.mxu0 0.0
  %1426 = vmatpush1.msra.mxu0 0.0
  %1427 = vmatprep.subr.mxu0 0.0
  %1428 = vmatpush1.msra.mxu0 0.0
  %1429 = vmatprep.subr.mxu0 0.0
  %1430 = vmatpush1.msra.mxu0 0.0
  %1431 = vmatprep.subr.mxu0 0.0
  %1432 = vmatpush1.msra.mxu0 0.0
  %1433 = vmatprep.subr.mxu0 0.0
  %1434 = vmatpush1.msra.mxu0 0.0
  %1435 = vmatprep.subr.mxu0 0.0
  %1436 = vmatpush1.msra.mxu0 0.0
  %1437 = vmatprep.subr.mxu0 0.0
  %1438 = vmatpush1.msra.mxu0 0.0
  %1439 = vmatprep.subr.mxu0 0.0
  %1440 = vmatpush1.msra.mxu0 0.0
  %1441 = vmatprep.subr.mxu0 0.0
  %1442 = vmatpush1.msra.mxu0 0.0
  %1443 = vmatprep.subr.mxu0 0.0
  %1444 = vmatpush1.msra.mxu0 0.0
  %1445 = vmatprep.subr.mxu0 0.0
  %1446 = vmatpush1.msra.mxu0 %v1414
  %1447 = vmatprep.subr.mxu0 0.0
  %1448 = vmatpush2.msra.mxu0 0.0
  %1449 = vmatprep.subr.mxu0 0.0
  %1450 = vmatpush2.msra.mxu0 0.0
  %1451 = vmatprep.subr.mxu0 0.0
  %1452 = vmatpush2.msra.mxu0 0.0
  %1453 = vmatprep.subr.mxu0 0.0
  %1454 = vmatpush2.msra.mxu0 0.0
  %1455 = vmatprep.subr.mxu0 0.0
  %1456 = vmatpush2.msra.mxu0 0.0
  %1457 = vmatprep.subr.mxu0 0.0
  %1458 = vmatpush2.msra.mxu0 0.0
  %1459 = vmatprep.subr.mxu0 0.0
  %1460 = vmatpush2.msra.mxu0 0.0
  %1461 = vmatprep.subr.mxu0 0.0
  %1462 = vmatpush2.msra.mxu0 0.0
  %1463 = vmatprep.subr.mxu0 0.0
  %1464 = vmatpush2.msra.mxu0 0.0
  %1465 = vmatprep.subr.mxu0 0.0
  %1466 = vmatpush2.msra.mxu0 0.0
  %1467 = vmatprep.subr.mxu0 0.0
  %1468 = vmatpush2.msra.mxu0 0.0
  %1469 = vmatprep.subr.mxu0 0.0
  %1470 = vmatpush2.msra.mxu0 0.0
  %1471 = vmatprep.subr.mxu0 0.0
  %1472 = vmatpush2.msra.mxu0 0.0
  %1473 = vmatprep.subr.mxu0 0.0
  %1474 = vmatpush2.msra.mxu0 0.0
  %1475 = vmatprep.subr.mxu0 0.0
  %1476 = vmatpush2.msra.mxu0 0.0
  %1477 = vmatprep.subr.mxu0 0.0
  %1478 = vmatpush2.msra.mxu0 0.0
  %1479 = vmatprep.mubr.f32.mxu0 0.0
  %1480 = vmatmul.mubr.f32.gmra.mxu0 %v71
  %v1481 = vpop.f32.mrf.mxu0
  %v1482 = vadd.f32 0.0, %v1481
  %v1483 = vpop.f32.mrf.mxu0
  %1484 = vmatprep.mubr.f32.mxu0 0.0
  %1485 = vmatmul.mubr.f32.gmra.mxu0 %v74
  %v1486 = vpop.f32.mrf.mxu0
  %v1487 = vadd.f32 0.0, %v1486
  %v1488 = vpop.f32.mrf.mxu0
  %1489 = vmatprep.mubr.f32.mxu0 0.0
  %1490 = vmatmul.mubr.f32.gmra.mxu0 %v77
  %v1491 = vpop.f32.mrf.mxu0
  %v1492 = vadd.f32 0.0, %v1491
  %v1493 = vpop.f32.mrf.mxu0
  %1494 = vmatprep.mubr.f32.mxu0 0.0
  %1495 = vmatmul.mubr.f32.gmra.mxu0 %v80
  %v1496 = vpop.f32.mrf.mxu0
  %v1497 = vadd.f32 0.0, %v1496
  %v1498 = vpop.f32.mrf.mxu0
  %1499 = vmatprep.mubr.f32.mxu0 0.0
  %1500 = vmatmul.mubr.f32.gmra.mxu0 %v83
  %v1501 = vpop.f32.mrf.mxu0
  %v1502 = vadd.f32 0.0, %v1501
  %v1503 = vpop.f32.mrf.mxu0
  %1504 = vmatprep.mubr.f32.mxu0 0.0
  %1505 = vmatmul.mubr.f32.gmra.mxu0 %v86
  %v1506 = vpop.f32.mrf.mxu0
  %v1507 = vadd.f32 0.0, %v1506
  %v1508 = vpop.f32.mrf.mxu0
  %1509 = vdwg.mxu0
  %1510 = vst.msk [vmem:[#allocation2 + $0x138] sm:$0xff] %vm183, %v1482
  %1511 = vst.msk [vmem:[#allocation2 + $0x140] sm:$0xff] %vm183, %v1487
  %1512 = vst.msk [vmem:[#allocation2 + $0x148] sm:$0xff] %vm183, %v1492
  %1513 = vst.msk [vmem:[#allocation3 + $0x138] sm:$0xff] %vm183, %v1497
  %1514 = vst.msk [vmem:[#allocation3 + $0x140] sm:$0xff] %vm183, %v1502
  %1515 = vst.msk [vmem:[#allocation3 + $0x148] sm:$0xff] %vm183, %v1507
  %v1516 = vld [vmem:[%s0 + $0x70] sm:$0xff]
  %1517 = vmatprep.subr.mxu0 0.0
  %1518 = vmatpush1.msra.mxu0 0.0
  %1519 = vmatprep.subr.mxu0 0.0
  %1520 = vmatpush1.msra.mxu0 0.0
  %1521 = vmatprep.subr.mxu0 0.0
  %1522 = vmatpush1.msra.mxu0 0.0
  %1523 = vmatprep.subr.mxu0 0.0
  %1524 = vmatpush1.msra.mxu0 0.0
  %1525 = vmatprep.subr.mxu0 0.0
  %1526 = vmatpush1.msra.mxu0 0.0
  %1527 = vmatprep.subr.mxu0 0.0
  %1528 = vmatpush1.msra.mxu0 0.0
  %1529 = vmatprep.subr.mxu0 0.0
  %1530 = vmatpush1.msra.mxu0 0.0
  %1531 = vmatprep.subr.mxu0 0.0
  %1532 = vmatpush1.msra.mxu0 0.0
  %1533 = vmatprep.subr.mxu0 0.0
  %1534 = vmatpush1.msra.mxu0 0.0
  %1535 = vmatprep.subr.mxu0 0.0
  %1536 = vmatpush1.msra.mxu0 0.0
  %1537 = vmatprep.subr.mxu0 0.0
  %1538 = vmatpush1.msra.mxu0 0.0
  %1539 = vmatprep.subr.mxu0 0.0
  %1540 = vmatpush1.msra.mxu0 0.0
  %1541 = vmatprep.subr.mxu0 0.0
  %1542 = vmatpush1.msra.mxu0 0.0
  %1543 = vmatprep.subr.mxu0 0.0
  %1544 = vmatpush1.msra.mxu0 0.0
  %1545 = vmatprep.subr.mxu0 0.0
  %1546 = vmatpush1.msra.mxu0 0.0
  %1547 = vmatprep.subr.mxu0 0.0
  %1548 = vmatpush1.msra.mxu0 %v1516
  %1549 = vmatprep.subr.mxu0 0.0
  %1550 = vmatpush2.msra.mxu0 0.0
  %1551 = vmatprep.subr.mxu0 0.0
  %1552 = vmatpush2.msra.mxu0 0.0
  %1553 = vmatprep.subr.mxu0 0.0
  %1554 = vmatpush2.msra.mxu0 0.0
  %1555 = vmatprep.subr.mxu0 0.0
  %1556 = vmatpush2.msra.mxu0 0.0
  %1557 = vmatprep.subr.mxu0 0.0
  %1558 = vmatpush2.msra.mxu0 0.0
  %1559 = vmatprep.subr.mxu0 0.0
  %1560 = vmatpush2.msra.mxu0 0.0
  %1561 = vmatprep.subr.mxu0 0.0
  %1562 = vmatpush2.msra.mxu0 0.0
  %1563 = vmatprep.subr.mxu0 0.0
  %1564 = vmatpush2.msra.mxu0 0.0
  %1565 = vmatprep.subr.mxu0 0.0
  %1566 = vmatpush2.msra.mxu0 0.0
  %1567 = vmatprep.subr.mxu0 0.0
  %1568 = vmatpush2.msra.mxu0 0.0
  %1569 = vmatprep.subr.mxu0 0.0
  %1570 = vmatpush2.msra.mxu0 0.0
  %1571 = vmatprep.subr.mxu0 0.0
  %1572 = vmatpush2.msra.mxu0 0.0
  %1573 = vmatprep.subr.mxu0 0.0
  %1574 = vmatpush2.msra.mxu0 0.0
  %1575 = vmatprep.subr.mxu0 0.0
  %1576 = vmatpush2.msra.mxu0 0.0
  %1577 = vmatprep.subr.mxu0 0.0
  %1578 = vmatpush2.msra.mxu0 0.0
  %1579 = vmatprep.subr.mxu0 0.0
  %1580 = vmatpush2.msra.mxu0 0.0
  %1581 = vmatprep.mubr.f32.mxu0 0.0
  %1582 = vmatmul.mubr.f32.gmra.mxu0 %v71
  %v1583 = vpop.f32.mrf.mxu0
  %v1584 = vadd.f32 0.0, %v1583
  %v1585 = vpop.f32.mrf.mxu0
  %1586 = vmatprep.mubr.f32.mxu0 0.0
  %1587 = vmatmul.mubr.f32.gmra.mxu0 %v74
  %v1588 = vpop.f32.mrf.mxu0
  %v1589 = vadd.f32 0.0, %v1588
  %v1590 = vpop.f32.mrf.mxu0
  %1591 = vmatprep.mubr.f32.mxu0 0.0
  %1592 = vmatmul.mubr.f32.gmra.mxu0 %v77
  %v1593 = vpop.f32.mrf.mxu0
  %v1594 = vadd.f32 0.0, %v1593
  %v1595 = vpop.f32.mrf.mxu0
  %1596 = vmatprep.mubr.f32.mxu0 0.0
  %1597 = vmatmul.mubr.f32.gmra.mxu0 %v80
  %v1598 = vpop.f32.mrf.mxu0
  %v1599 = vadd.f32 0.0, %v1598
  %v1600 = vpop.f32.mrf.mxu0
  %1601 = vmatprep.mubr.f32.mxu0 0.0
  %1602 = vmatmul.mubr.f32.gmra.mxu0 %v83
  %v1603 = vpop.f32.mrf.mxu0
  %v1604 = vadd.f32 0.0, %v1603
  %v1605 = vpop.f32.mrf.mxu0
  %1606 = vmatprep.mubr.f32.mxu0 0.0
  %1607 = vmatmul.mubr.f32.gmra.mxu0 %v86
  %v1608 = vpop.f32.mrf.mxu0
  %v1609 = vadd.f32 0.0, %v1608
  %v1610 = vpop.f32.mrf.mxu0
  %1611 = vdwg.mxu0
  %1612 = vst.msk [vmem:[#allocation2 + $0x150] sm:$0xff] %vm183, %v1584
  %1613 = vst.msk [vmem:[#allocation2 + $0x158] sm:$0xff] %vm183, %v1589
  %1614 = vst.msk [vmem:[#allocation2 + $0x160] sm:$0xff] %vm183, %v1594
  %1615 = vst.msk [vmem:[#allocation3 + $0x150] sm:$0xff] %vm183, %v1599
  %1616 = vst.msk [vmem:[#allocation3 + $0x158] sm:$0xff] %vm183, %v1604
  %1617 = vst.msk [vmem:[#allocation3 + $0x160] sm:$0xff] %vm183, %v1609
  %v1618 = vld [vmem:[%s0 + $0x78] sm:$0xff]
  %1619 = vmatprep.subr.mxu0 0.0
  %1620 = vmatpush1.msra.mxu0 0.0
  %1621 = vmatprep.subr.mxu0 0.0
  %1622 = vmatpush1.msra.mxu0 0.0
  %1623 = vmatprep.subr.mxu0 0.0
  %1624 = vmatpush1.msra.mxu0 0.0
  %1625 = vmatprep.subr.mxu0 0.0
  %1626 = vmatpush1.msra.mxu0 0.0
  %1627 = vmatprep.subr.mxu0 0.0
  %1628 = vmatpush1.msra.mxu0 0.0
  %1629 = vmatprep.subr.mxu0 0.0
  %1630 = vmatpush1.msra.mxu0 0.0
  %1631 = vmatprep.subr.mxu0 0.0
  %1632 = vmatpush1.msra.mxu0 0.0
  %1633 = vmatprep.subr.mxu0 0.0
  %1634 = vmatpush1.msra.mxu0 0.0
  %1635 = vmatprep.subr.mxu0 0.0
  %1636 = vmatpush1.msra.mxu0 0.0
  %1637 = vmatprep.subr.mxu0 0.0
  %1638 = vmatpush1.msra.mxu0 0.0
  %1639 = vmatprep.subr.mxu0 0.0
  %1640 = vmatpush1.msra.mxu0 0.0
  %1641 = vmatprep.subr.mxu0 0.0
  %1642 = vmatpush1.msra.mxu0 0.0
  %1643 = vmatprep.subr.mxu0 0.0
  %1644 = vmatpush1.msra.mxu0 0.0
  %1645 = vmatprep.subr.mxu0 0.0
  %1646 = vmatpush1.msra.mxu0 0.0
  %1647 = vmatprep.subr.mxu0 0.0
  %1648 = vmatpush1.msra.mxu0 0.0
  %1649 = vmatprep.subr.mxu0 0.0
  %1650 = vmatpush1.msra.mxu0 %v1618
  %1651 = vmatprep.subr.mxu0 0.0
  %1652 = vmatpush2.msra.mxu0 0.0
  %1653 = vmatprep.subr.mxu0 0.0
  %1654 = vmatpush2.msra.mxu0 0.0
  %1655 = vmatprep.subr.mxu0 0.0
  %1656 = vmatpush2.msra.mxu0 0.0
  %1657 = vmatprep.subr.mxu0 0.0
  %1658 = vmatpush2.msra.mxu0 0.0
  %1659 = vmatprep.subr.mxu0 0.0
  %1660 = vmatpush2.msra.mxu0 0.0
  %1661 = vmatprep.subr.mxu0 0.0
  %1662 = vmatpush2.msra.mxu0 0.0
  %1663 = vmatprep.subr.mxu0 0.0
  %1664 = vmatpush2.msra.mxu0 0.0
  %1665 = vmatprep.subr.mxu0 0.0
  %1666 = vmatpush2.msra.mxu0 0.0
  %1667 = vmatprep.subr.mxu0 0.0
  %1668 = vmatpush2.msra.mxu0 0.0
  %1669 = vmatprep.subr.mxu0 0.0
  %1670 = vmatpush2.msra.mxu0 0.0
  %1671 = vmatprep.subr.mxu0 0.0
  %1672 = vmatpush2.msra.mxu0 0.0
  %1673 = vmatprep.subr.mxu0 0.0
  %1674 = vmatpush2.msra.mxu0 0.0
  %1675 = vmatprep.subr.mxu0 0.0
  %1676 = vmatpush2.msra.mxu0 0.0
  %1677 = vmatprep.subr.mxu0 0.0
  %1678 = vmatpush2.msra.mxu0 0.0
  %1679 = vmatprep.subr.mxu0 0.0
  %1680 = vmatpush2.msra.mxu0 0.0
  %1681 = vmatprep.subr.mxu0 0.0
  %1682 = vmatpush2.msra.mxu0 0.0
  %1683 = vmatprep.mubr.f32.mxu0 0.0
  %1684 = vmatmul.mubr.f32.gmra.mxu0 %v71
  %v1685 = vpop.f32.mrf.mxu0
  %v1686 = vadd.f32 0.0, %v1685
  %v1687 = vpop.f32.mrf.mxu0
  %1688 = vmatprep.mubr.f32.mxu0 0.0
  %1689 = vmatmul.mubr.f32.gmra.mxu0 %v74
  %v1690 = vpop.f32.mrf.mxu0
  %v1691 = vadd.f32 0.0, %v1690
  %v1692 = vpop.f32.mrf.mxu0
  %1693 = vmatprep.mubr.f32.mxu0 0.0
  %1694 = vmatmul.mubr.f32.gmra.mxu0 %v77
  %v1695 = vpop.f32.mrf.mxu0
  %v1696 = vadd.f32 0.0, %v1695
  %v1697 = vpop.f32.mrf.mxu0
  %1698 = vmatprep.mubr.f32.mxu0 0.0
  %1699 = vmatmul.mubr.f32.gmra.mxu0 %v80
  %v1700 = vpop.f32.mrf.mxu0
  %v1701 = vadd.f32 0.0, %v1700
  %v1702 = vpop.f32.mrf.mxu0
  %1703 = vmatprep.mubr.f32.mxu0 0.0
  %1704 = vmatmul.mubr.f32.gmra.mxu0 %v83
  %v1705 = vpop.f32.mrf.mxu0
  %v1706 = vadd.f32 0.0, %v1705
  %v1707 = vpop.f32.mrf.mxu0
  %1708 = vmatprep.mubr.f32.mxu0 0.0
  %1709 = vmatmul.mubr.f32.gmra.mxu0 %v86
  %v1710 = vpop.f32.mrf.mxu0
  %v1711 = vadd.f32 0.0, %v1710
  %v1712 = vpop.f32.mrf.mxu0
  %1713 = vdwg.mxu0
  %1714 = vst.msk [vmem:[#allocation2 + $0x168] sm:$0xff] %vm183, %v1686
  %1715 = vst.msk [vmem:[#allocation2 + $0x170] sm:$0xff] %vm183, %v1691
  %1716 = vst.msk [vmem:[#allocation2 + $0x178] sm:$0xff] %vm183, %v1696
  %1717 = vst.msk [vmem:[#allocation3 + $0x168] sm:$0xff] %vm183, %v1701
  %1718 = vst.msk [vmem:[#allocation3 + $0x170] sm:$0xff] %vm183, %v1706
  %1719 = vst.msk [vmem:[#allocation3 + $0x178] sm:$0xff] %vm183, %v1711
  %v1720 = vld [vmem:[#allocation2] sm:$0xff]
  %v1721 = vld [vmem:[#allocation2 + $0x8] sm:$0xff]
  %v1722 = vld [vmem:[#allocation2 + $0x10] sm:$0xff]
  %v1723 = vld [vmem:[#allocation2 + $0x18] sm:$0xff]
  %v1724 = vld [vmem:[#allocation2 + $0x20] sm:$0xff]
  %v1725 = vld [vmem:[#allocation2 + $0x28] sm:$0xff]
  %v1726 = vld [vmem:[#allocation2 + $0x30] sm:$0xff]
  %v1727 = vld [vmem:[#allocation2 + $0x38] sm:$0xff]
  %v1728 = vld [vmem:[#allocation2 + $0x40] sm:$0xff]
  %v1729 = vld [vmem:[#allocation2 + $0x48] sm:$0xff]
  %v1730 = vld [vmem:[#allocation2 + $0x50] sm:$0xff]
  %v1731 = vld [vmem:[#allocation2 + $0x58] sm:$0xff]
  %v1732 = vld [vmem:[#allocation2 + $0x60] sm:$0xff]
  %v1733 = vld [vmem:[#allocation2 + $0x68] sm:$0xff]
  %v1734 = vld [vmem:[#allocation2 + $0x70] sm:$0xff]
  %v1735 = vld [vmem:[#allocation2 + $0x78] sm:$0xff]
  %v1736 = vld [vmem:[#allocation2 + $0x80] sm:$0xff]
  %v1737 = vld [vmem:[#allocation2 + $0x88] sm:$0xff]
  %v1738 = vld [vmem:[#allocation2 + $0x90] sm:$0xff]
  %v1739 = vld [vmem:[#allocation2 + $0x98] sm:$0xff]
  %v1740 = vld [vmem:[#allocation2 + $0xa0] sm:$0xff]
  %v1741 = vld [vmem:[#allocation2 + $0xa8] sm:$0xff]
  %v1742 = vld [vmem:[#allocation2 + $0xb0] sm:$0xff]
  %v1743 = vld [vmem:[#allocation2 + $0xb8] sm:$0xff]
  %v1744 = vld [vmem:[#allocation2 + $0xc0] sm:$0xff]
  %v1745 = vld [vmem:[#allocation2 + $0xc8] sm:$0xff]
  %v1746 = vld [vmem:[#allocation2 + $0xd0] sm:$0xff]
  %v1747 = vld [vmem:[#allocation2 + $0xd8] sm:$0xff]
  %v1748 = vld [vmem:[#allocation2 + $0xe0] sm:$0xff]
  %v1749 = vld [vmem:[#allocation2 + $0xe8] sm:$0xff]
  %v1750 = vld [vmem:[#allocation2 + $0xf0] sm:$0xff]
  %v1751 = vld [vmem:[#allocation2 + $0xf8] sm:$0xff]
  %v1752 = vld [vmem:[#allocation2 + $0x100] sm:$0xff]
  %v1753 = vld [vmem:[#allocation2 + $0x108] sm:$0xff]
  %v1754 = vld [vmem:[#allocation2 + $0x110] sm:$0xff]
  %v1755 = vld [vmem:[#allocation2 + $0x118] sm:$0xff]
  %v1756 = vld [vmem:[#allocation2 + $0x120] sm:$0xff]
  %v1757 = vld [vmem:[#allocation2 + $0x128] sm:$0xff]
  %v1758 = vld [vmem:[#allocation2 + $0x130] sm:$0xff]
  %v1759 = vld [vmem:[#allocation2 + $0x138] sm:$0xff]
  %v1760 = vld [vmem:[#allocation2 + $0x140] sm:$0xff]
  %v1761 = vld [vmem:[#allocation2 + $0x148] sm:$0xff]
  %v1762 = vld [vmem:[#allocation2 + $0x150] sm:$0xff]
  %v1763 = vld [vmem:[#allocation2 + $0x158] sm:$0xff]
  %v1764 = vld [vmem:[#allocation2 + $0x160] sm:$0xff]
  %v1765 = vld [vmem:[#allocation2 + $0x168] sm:$0xff]
  %v1766 = vld [vmem:[#allocation2 + $0x170] sm:$0xff]
  %v1767 = vld [vmem:[#allocation2 + $0x178] sm:$0xff]
  %v1768 = vld [vmem:[#allocation3] sm:$0xff]
  %v1769 = vld [vmem:[#allocation3 + $0x8] sm:$0xff]
  %v1770 = vld [vmem:[#allocation3 + $0x10] sm:$0xff]
  %v1771 = vld [vmem:[#allocation3 + $0x18] sm:$0xff]
  %v1772 = vld [vmem:[#allocation3 + $0x20] sm:$0xff]
  %v1773 = vld [vmem:[#allocation3 + $0x28] sm:$0xff]
  %v1774 = vld [vmem:[#allocation3 + $0x30] sm:$0xff]
  %v1775 = vld [vmem:[#allocation3 + $0x38] sm:$0xff]
  %v1776 = vld [vmem:[#allocation3 + $0x40] sm:$0xff]
  %v1777 = vld [vmem:[#allocation3 + $0x48] sm:$0xff]
  %v1778 = vld [vmem:[#allocation3 + $0x50] sm:$0xff]
  %v1779 = vld [vmem:[#allocation3 + $0x58] sm:$0xff]
  %v1780 = vld [vmem:[#allocation3 + $0x60] sm:$0xff]
  %v1781 = vld [vmem:[#allocation3 + $0x68] sm:$0xff]
  %v1782 = vld [vmem:[#allocation3 + $0x70] sm:$0xff]
  %v1783 = vld [vmem:[#allocation3 + $0x78] sm:$0xff]
  %v1784 = vld [vmem:[#allocation3 + $0x80] sm:$0xff]
  %v1785 = vld [vmem:[#allocation3 + $0x88] sm:$0xff]
  %v1786 = vld [vmem:[#allocation3 + $0x90] sm:$0xff]
  %v1787 = vld [vmem:[#allocation3 + $0x98] sm:$0xff]
  %v1788 = vld [vmem:[#allocation3 + $0xa0] sm:$0xff]
  %v1789 = vld [vmem:[#allocation3 + $0xa8] sm:$0xff]
  %v1790 = vld [vmem:[#allocation3 + $0xb0] sm:$0xff]
  %v1791 = vld [vmem:[#allocation3 + $0xb8] sm:$0xff]
  %v1792 = vld [vmem:[#allocation3 + $0xc0] sm:$0xff]
  %v1793 = vld [vmem:[#allocation3 + $0xc8] sm:$0xff]
  %v1794 = vld [vmem:[#allocation3 + $0xd0] sm:$0xff]
  %v1795 = vld [vmem:[#allocation3 + $0xd8] sm:$0xff]
  %v1796 = vld [vmem:[#allocation3 + $0xe0] sm:$0xff]
  %v1797 = vld [vmem:[#allocation3 + $0xe8] sm:$0xff]
  %v1798 = vld [vmem:[#allocation3 + $0xf0] sm:$0xff]
  %v1799 = vld [vmem:[#allocation3 + $0xf8] sm:$0xff]
  %v1800 = vld [vmem:[#allocation3 + $0x100] sm:$0xff]
  %v1801 = vld [vmem:[#allocation3 + $0x108] sm:$0xff]
  %v1802 = vld [vmem:[#allocation3 + $0x110] sm:$0xff]
  %v1803 = vld [vmem:[#allocation3 + $0x118] sm:$0xff]
  %v1804 = vld [vmem:[#allocation3 + $0x120] sm:$0xff]
  %v1805 = vld [vmem:[#allocation3 + $0x128] sm:$0xff]
  %v1806 = vld [vmem:[#allocation3 + $0x130] sm:$0xff]
  %v1807 = vld [vmem:[#allocation3 + $0x138] sm:$0xff]
  %v1808 = vld [vmem:[#allocation3 + $0x140] sm:$0xff]
  %v1809 = vld [vmem:[#allocation3 + $0x148] sm:$0xff]
  %v1810 = vld [vmem:[#allocation3 + $0x150] sm:$0xff]
  %v1811 = vld [vmem:[#allocation3 + $0x158] sm:$0xff]
  %v1812 = vld [vmem:[#allocation3 + $0x160] sm:$0xff]
  %v1813 = vld [vmem:[#allocation3 + $0x168] sm:$0xff]
  %v1814 = vld [vmem:[#allocation3 + $0x170] sm:$0xff]
  %v1815 = vld [vmem:[#allocation3 + $0x178] sm:$0xff]
  %v1816 = vld [vmem:[%s4] sm:$0x7f]
  %v1817 = vld [vmem:[%s5] sm:$0x7f]
  %v1819 = vsel %vm183, %v1768, 0
  %v1822 = vsel %vm183, %v1769, 0
  %v1825 = vsel %vm183, %v1770, 0
  %v1828 = vsel %vm183, %v1771, 0
  %v1831 = vsel %vm183, %v1772, 0
  %v1834 = vsel %vm183, %v1773, 0
  %v1837 = vsel %vm183, %v1774, 0
  %v1840 = vsel %vm183, %v1775, 0
  %v1843 = vsel %vm183, %v1776, 0
  %v1846 = vsel %vm183, %v1777, 0
  %v1849 = vsel %vm183, %v1778, 0
  %v1852 = vsel %vm183, %v1779, 0
  %v1855 = vsel %vm183, %v1780, 0
  %v1858 = vsel %vm183, %v1781, 0
  %v1861 = vsel %vm183, %v1782, 0
  %v1864 = vsel %vm183, %v1783, 0
  %v1867 = vsel %vm183, %v1784, 0
  %v1870 = vsel %vm183, %v1785, 0
  %v1873 = vsel %vm183, %v1786, 0
  %v1876 = vsel %vm183, %v1787, 0
  %v1879 = vsel %vm183, %v1788, 0
  %v1882 = vsel %vm183, %v1789, 0
  %v1885 = vsel %vm183, %v1790, 0
  %v1888 = vsel %vm183, %v1791, 0
  %v1891 = vsel %vm183, %v1792, 0
  %v1894 = vsel %vm183, %v1793, 0
  %v1897 = vsel %vm183, %v1794, 0
  %v1900 = vsel %vm183, %v1795, 0
  %v1903 = vsel %vm183, %v1796, 0
  %v1906 = vsel %vm183, %v1797, 0
  %v1909 = vsel %vm183, %v1798, 0
  %v1912 = vsel %vm183, %v1799, 0
  %v1915 = vsel %vm183, %v1800, 0
  %v1918 = vsel %vm183, %v1801, 0
  %v1921 = vsel %vm183, %v1802, 0
  %v1924 = vsel %vm183, %v1803, 0
  %v1927 = vsel %vm183, %v1804, 0
  %v1930 = vsel %vm183, %v1805, 0
  %v1933 = vsel %vm183, %v1806, 0
  %v1936 = vsel %vm183, %v1807, 0
  %v1939 = vsel %vm183, %v1808, 0
  %v1942 = vsel %vm183, %v1809, 0
  %v1945 = vsel %vm183, %v1810, 0
  %v1948 = vsel %vm183, %v1811, 0
  %v1951 = vsel %vm183, %v1812, 0
  %v1954 = vsel %vm183, %v1813, 0
  %v1957 = vsel %vm183, %v1814, 0
  %v1960 = vsel %vm183, %v1815, 0
  %vm1962 = vcmask 1046528
  %v1964 = vsel %vm1962, %v1817, 0
  %1966 = vmatprep.subr.mxu0 0.0
  %1967 = vmatpush1.msra.mxu0 0.0
  %1968 = vmatprep.subr.mxu0 0.0
  %1969 = vmatpush1.msra.mxu0 0.0
  %1970 = vmatprep.subr.mxu0 0.0
  %1971 = vmatpush1.msra.mxu0 0.0
  %1972 = vmatprep.subr.mxu0 0.0
  %1973 = vmatpush1.msra.mxu0 0.0
  %1974 = vmatprep.subr.mxu0 0.0
  %1975 = vmatpush1.msra.mxu0 0.0
  %1976 = vmatprep.subr.mxu0 0.0
  %1977 = vmatpush1.msra.mxu0 0.0
  %1978 = vmatprep.subr.mxu0 0.0
  %1979 = vmatpush1.msra.mxu0 0.0
  %1980 = vmatprep.subr.mxu0 0.0
  %1981 = vmatpush1.msra.mxu0 0.0
  %1982 = vmatprep.subr.mxu0 0.0
  %1983 = vmatpush1.msra.mxu0 0.0
  %1984 = vmatprep.subr.mxu0 0.0
  %1985 = vmatpush1.msra.mxu0 0.0
  %1986 = vmatprep.subr.mxu0 0.0
  %1987 = vmatpush1.msra.mxu0 0.0
  %1988 = vmatprep.subr.mxu0 0.0
  %1989 = vmatpush1.msra.mxu0 0.0
  %1990 = vmatprep.subr.mxu0 0.0
  %1991 = vmatpush1.msra.mxu0 0.0
  %1992 = vmatprep.subr.mxu0 0.0
  %1993 = vmatpush1.msra.mxu0 0.0
  %1994 = vmatprep.subr.mxu0 0.0
  %1995 = vmatpush1.msra.mxu0 0.0
  %1996 = vmatprep.subr.mxu0 0.0
  %1997 = vmatpush1.msra.mxu0 %v1964
  %1998 = vmatprep.subr.mxu0 0.0
  %1999 = vmatpush2.msra.mxu0 0.0
  %2000 = vmatprep.subr.mxu0 0.0
  %2001 = vmatpush2.msra.mxu0 0.0
  %2002 = vmatprep.subr.mxu0 0.0
  %2003 = vmatpush2.msra.mxu0 0.0
  %2004 = vmatprep.subr.mxu0 0.0
  %2005 = vmatpush2.msra.mxu0 0.0
  %2006 = vmatprep.subr.mxu0 0.0
  %2007 = vmatpush2.msra.mxu0 0.0
  %2008 = vmatprep.subr.mxu0 0.0
  %2009 = vmatpush2.msra.mxu0 0.0
  %2010 = vmatprep.subr.mxu0 0.0
  %2011 = vmatpush2.msra.mxu0 0.0
  %2012 = vmatprep.subr.mxu0 0.0
  %2013 = vmatpush2.msra.mxu0 0.0
  %2014 = vmatprep.subr.mxu0 0.0
  %2015 = vmatpush2.msra.mxu0 0.0
  %2016 = vmatprep.subr.mxu0 0.0
  %2017 = vmatpush2.msra.mxu0 0.0
  %2018 = vmatprep.subr.mxu0 0.0
  %2019 = vmatpush2.msra.mxu0 0.0
  %2020 = vmatprep.subr.mxu0 0.0
  %2021 = vmatpush2.msra.mxu0 0.0
  %2022 = vmatprep.subr.mxu0 0.0
  %2023 = vmatpush2.msra.mxu0 0.0
  %2024 = vmatprep.subr.mxu0 0.0
  %2025 = vmatpush2.msra.mxu0 0.0
  %2026 = vmatprep.subr.mxu0 0.0
  %2027 = vmatpush2.msra.mxu0 0.0
  %2028 = vmatprep.subr.mxu0 0.0
  %2029 = vmatpush2.msra.mxu0 0.0
  %2030 = vmatprep.mubr.f32.mxu0 0.0
  %2031 = vmatmul.mubr.f32.gmra.mxu0 %v1819
  %v2032 = vpop.f32.mrf.mxu0
  %v2033 = vadd.f32 0.0, %v2032
  %v2034 = vpop.f32.mrf.mxu0
  %2035 = vmatprep.mubr.f32.mxu0 0.0
  %2036 = vmatmul.mubr.f32.gmra.mxu0 %v1822
  %v2037 = vpop.f32.mrf.mxu0
  %v2038 = vadd.f32 0.0, %v2037
  %v2039 = vpop.f32.mrf.mxu0
  %2040 = vmatprep.mubr.f32.mxu0 0.0
  %2041 = vmatmul.mubr.f32.gmra.mxu0 %v1825
  %v2042 = vpop.f32.mrf.mxu0
  %v2043 = vadd.f32 0.0, %v2042
  %v2044 = vpop.f32.mrf.mxu0
  %2045 = vmatprep.mubr.f32.mxu0 0.0
  %2046 = vmatmul.mubr.f32.gmra.mxu0 %v1828
  %v2047 = vpop.f32.mrf.mxu0
  %v2048 = vadd.f32 0.0, %v2047
  %v2049 = vpop.f32.mrf.mxu0
  %2050 = vmatprep.mubr.f32.mxu0 0.0
  %2051 = vmatmul.mubr.f32.gmra.mxu0 %v1831
  %v2052 = vpop.f32.mrf.mxu0
  %v2053 = vadd.f32 0.0, %v2052
  %v2054 = vpop.f32.mrf.mxu0
  %2055 = vmatprep.mubr.f32.mxu0 0.0
  %2056 = vmatmul.mubr.f32.gmra.mxu0 %v1834
  %v2057 = vpop.f32.mrf.mxu0
  %v2058 = vadd.f32 0.0, %v2057
  %v2059 = vpop.f32.mrf.mxu0
  %2060 = vmatprep.mubr.f32.mxu0 0.0
  %2061 = vmatmul.mubr.f32.gmra.mxu0 %v1837
  %v2062 = vpop.f32.mrf.mxu0
  %v2063 = vadd.f32 0.0, %v2062
  %v2064 = vpop.f32.mrf.mxu0
  %2065 = vmatprep.mubr.f32.mxu0 0.0
  %2066 = vmatmul.mubr.f32.gmra.mxu0 %v1840
  %v2067 = vpop.f32.mrf.mxu0
  %v2068 = vadd.f32 0.0, %v2067
  %v2069 = vpop.f32.mrf.mxu0
  %2070 = vmatprep.mubr.f32.mxu0 0.0
  %2071 = vmatmul.mubr.f32.gmra.mxu0 %v1843
  %v2072 = vpop.f32.mrf.mxu0
  %v2073 = vadd.f32 0.0, %v2072
  %v2074 = vpop.f32.mrf.mxu0
  %2075 = vmatprep.mubr.f32.mxu0 0.0
  %2076 = vmatmul.mubr.f32.gmra.mxu0 %v1846
  %v2077 = vpop.f32.mrf.mxu0
  %v2078 = vadd.f32 0.0, %v2077
  %v2079 = vpop.f32.mrf.mxu0
  %2080 = vmatprep.mubr.f32.mxu0 0.0
  %2081 = vmatmul.mubr.f32.gmra.mxu0 %v1849
  %v2082 = vpop.f32.mrf.mxu0
  %v2083 = vadd.f32 0.0, %v2082
  %v2084 = vpop.f32.mrf.mxu0
  %2085 = vmatprep.mubr.f32.mxu0 0.0
  %2086 = vmatmul.mubr.f32.gmra.mxu0 %v1852
  %v2087 = vpop.f32.mrf.mxu0
  %v2088 = vadd.f32 0.0, %v2087
  %v2089 = vpop.f32.mrf.mxu0
  %2090 = vmatprep.mubr.f32.mxu0 0.0
  %2091 = vmatmul.mubr.f32.gmra.mxu0 %v1855
  %v2092 = vpop.f32.mrf.mxu0
  %v2093 = vadd.f32 0.0, %v2092
  %v2094 = vpop.f32.mrf.mxu0
  %2095 = vmatprep.mubr.f32.mxu0 0.0
  %2096 = vmatmul.mubr.f32.gmra.mxu0 %v1858
  %v2097 = vpop.f32.mrf.mxu0
  %v2098 = vadd.f32 0.0, %v2097
  %v2099 = vpop.f32.mrf.mxu0
  %2100 = vmatprep.mubr.f32.mxu0 0.0
  %2101 = vmatmul.mubr.f32.gmra.mxu0 %v1861
  %v2102 = vpop.f32.mrf.mxu0
  %v2103 = vadd.f32 0.0, %v2102
  %v2104 = vpop.f32.mrf.mxu0
  %2105 = vmatprep.mubr.f32.mxu0 0.0
  %2106 = vmatmul.mubr.f32.gmra.mxu0 %v1864
  %v2107 = vpop.f32.mrf.mxu0
  %v2108 = vadd.f32 0.0, %v2107
  %v2109 = vpop.f32.mrf.mxu0
  %2110 = vmatprep.mubr.f32.mxu0 0.0
  %2111 = vmatmul.mubr.f32.gmra.mxu0 %v1867
  %v2112 = vpop.f32.mrf.mxu0
  %v2113 = vadd.f32 0.0, %v2112
  %v2114 = vpop.f32.mrf.mxu0
  %2115 = vmatprep.mubr.f32.mxu0 0.0
  %2116 = vmatmul.mubr.f32.gmra.mxu0 %v1870
  %v2117 = vpop.f32.mrf.mxu0
  %v2118 = vadd.f32 0.0, %v2117
  %v2119 = vpop.f32.mrf.mxu0
  %2120 = vmatprep.mubr.f32.mxu0 0.0
  %2121 = vmatmul.mubr.f32.gmra.mxu0 %v1873
  %v2122 = vpop.f32.mrf.mxu0
  %v2123 = vadd.f32 0.0, %v2122
  %v2124 = vpop.f32.mrf.mxu0
  %2125 = vmatprep.mubr.f32.mxu0 0.0
  %2126 = vmatmul.mubr.f32.gmra.mxu0 %v1876
  %v2127 = vpop.f32.mrf.mxu0
  %v2128 = vadd.f32 0.0, %v2127
  %v2129 = vpop.f32.mrf.mxu0
  %2130 = vmatprep.mubr.f32.mxu0 0.0
  %2131 = vmatmul.mubr.f32.gmra.mxu0 %v1879
  %v2132 = vpop.f32.mrf.mxu0
  %v2133 = vadd.f32 0.0, %v2132
  %v2134 = vpop.f32.mrf.mxu0
  %2135 = vmatprep.mubr.f32.mxu0 0.0
  %2136 = vmatmul.mubr.f32.gmra.mxu0 %v1882
  %v2137 = vpop.f32.mrf.mxu0
  %v2138 = vadd.f32 0.0, %v2137
  %v2139 = vpop.f32.mrf.mxu0
  %2140 = vmatprep.mubr.f32.mxu0 0.0
  %2141 = vmatmul.mubr.f32.gmra.mxu0 %v1885
  %v2142 = vpop.f32.mrf.mxu0
  %v2143 = vadd.f32 0.0, %v2142
  %v2144 = vpop.f32.mrf.mxu0
  %2145 = vmatprep.mubr.f32.mxu0 0.0
  %2146 = vmatmul.mubr.f32.gmra.mxu0 %v1888
  %v2147 = vpop.f32.mrf.mxu0
  %v2148 = vadd.f32 0.0, %v2147
  %v2149 = vpop.f32.mrf.mxu0
  %2150 = vmatprep.mubr.f32.mxu0 0.0
  %2151 = vmatmul.mubr.f32.gmra.mxu0 %v1891
  %v2152 = vpop.f32.mrf.mxu0
  %v2153 = vadd.f32 0.0, %v2152
  %v2154 = vpop.f32.mrf.mxu0
  %2155 = vmatprep.mubr.f32.mxu0 0.0
  %2156 = vmatmul.mubr.f32.gmra.mxu0 %v1894
  %v2157 = vpop.f32.mrf.mxu0
  %v2158 = vadd.f32 0.0, %v2157
  %v2159 = vpop.f32.mrf.mxu0
  %2160 = vmatprep.mubr.f32.mxu0 0.0
  %2161 = vmatmul.mubr.f32.gmra.mxu0 %v1897
  %v2162 = vpop.f32.mrf.mxu0
  %v2163 = vadd.f32 0.0, %v2162
  %v2164 = vpop.f32.mrf.mxu0
  %2165 = vmatprep.mubr.f32.mxu0 0.0
  %2166 = vmatmul.mubr.f32.gmra.mxu0 %v1900
  %v2167 = vpop.f32.mrf.mxu0
  %v2168 = vadd.f32 0.0, %v2167
  %v2169 = vpop.f32.mrf.mxu0
  %2170 = vmatprep.mubr.f32.mxu0 0.0
  %2171 = vmatmul.mubr.f32.gmra.mxu0 %v1903
  %v2172 = vpop.f32.mrf.mxu0
  %v2173 = vadd.f32 0.0, %v2172
  %v2174 = vpop.f32.mrf.mxu0
  %2175 = vmatprep.mubr.f32.mxu0 0.0
  %2176 = vmatmul.mubr.f32.gmra.mxu0 %v1906
  %v2177 = vpop.f32.mrf.mxu0
  %v2178 = vadd.f32 0.0, %v2177
  %v2179 = vpop.f32.mrf.mxu0
  %2180 = vmatprep.mubr.f32.mxu0 0.0
  %2181 = vmatmul.mubr.f32.gmra.mxu0 %v1909
  %v2182 = vpop.f32.mrf.mxu0
  %v2183 = vadd.f32 0.0, %v2182
  %v2184 = vpop.f32.mrf.mxu0
  %2185 = vmatprep.mubr.f32.mxu0 0.0
  %2186 = vmatmul.mubr.f32.gmra.mxu0 %v1912
  %v2187 = vpop.f32.mrf.mxu0
  %v2188 = vadd.f32 0.0, %v2187
  %v2189 = vpop.f32.mrf.mxu0
  %2190 = vmatprep.mubr.f32.mxu0 0.0
  %2191 = vmatmul.mubr.f32.gmra.mxu0 %v1915
  %v2192 = vpop.f32.mrf.mxu0
  %v2193 = vadd.f32 0.0, %v2192
  %v2194 = vpop.f32.mrf.mxu0
  %2195 = vmatprep.mubr.f32.mxu0 0.0
  %2196 = vmatmul.mubr.f32.gmra.mxu0 %v1918
  %v2197 = vpop.f32.mrf.mxu0
  %v2198 = vadd.f32 0.0, %v2197
  %v2199 = vpop.f32.mrf.mxu0
  %2200 = vmatprep.mubr.f32.mxu0 0.0
  %2201 = vmatmul.mubr.f32.gmra.mxu0 %v1921
  %v2202 = vpop.f32.mrf.mxu0
  %v2203 = vadd.f32 0.0, %v2202
  %v2204 = vpop.f32.mrf.mxu0
  %2205 = vmatprep.mubr.f32.mxu0 0.0
  %2206 = vmatmul.mubr.f32.gmra.mxu0 %v1924
  %v2207 = vpop.f32.mrf.mxu0
  %v2208 = vadd.f32 0.0, %v2207
  %v2209 = vpop.f32.mrf.mxu0
  %2210 = vmatprep.mubr.f32.mxu0 0.0
  %2211 = vmatmul.mubr.f32.gmra.mxu0 %v1927
  %v2212 = vpop.f32.mrf.mxu0
  %v2213 = vadd.f32 0.0, %v2212
  %v2214 = vpop.f32.mrf.mxu0
  %2215 = vmatprep.mubr.f32.mxu0 0.0
  %2216 = vmatmul.mubr.f32.gmra.mxu0 %v1930
  %v2217 = vpop.f32.mrf.mxu0
  %v2218 = vadd.f32 0.0, %v2217
  %v2219 = vpop.f32.mrf.mxu0
  %2220 = vmatprep.mubr.f32.mxu0 0.0
  %2221 = vmatmul.mubr.f32.gmra.mxu0 %v1933
  %v2222 = vpop.f32.mrf.mxu0
  %v2223 = vadd.f32 0.0, %v2222
  %v2224 = vpop.f32.mrf.mxu0
  %2225 = vmatprep.mubr.f32.mxu0 0.0
  %2226 = vmatmul.mubr.f32.gmra.mxu0 %v1936
  %v2227 = vpop.f32.mrf.mxu0
  %v2228 = vadd.f32 0.0, %v2227
  %v2229 = vpop.f32.mrf.mxu0
  %2230 = vmatprep.mubr.f32.mxu0 0.0
  %2231 = vmatmul.mubr.f32.gmra.mxu0 %v1939
  %v2232 = vpop.f32.mrf.mxu0
  %v2233 = vadd.f32 0.0, %v2232
  %v2234 = vpop.f32.mrf.mxu0
  %2235 = vmatprep.mubr.f32.mxu0 0.0
  %2236 = vmatmul.mubr.f32.gmra.mxu0 %v1942
  %v2237 = vpop.f32.mrf.mxu0
  %v2238 = vadd.f32 0.0, %v2237
  %v2239 = vpop.f32.mrf.mxu0
  %2240 = vmatprep.mubr.f32.mxu0 0.0
  %2241 = vmatmul.mubr.f32.gmra.mxu0 %v1945
  %v2242 = vpop.f32.mrf.mxu0
  %v2243 = vadd.f32 0.0, %v2242
  %v2244 = vpop.f32.mrf.mxu0
  %2245 = vmatprep.mubr.f32.mxu0 0.0
  %2246 = vmatmul.mubr.f32.gmra.mxu0 %v1948
  %v2247 = vpop.f32.mrf.mxu0
  %v2248 = vadd.f32 0.0, %v2247
  %v2249 = vpop.f32.mrf.mxu0
  %2250 = vmatprep.mubr.f32.mxu0 0.0
  %2251 = vmatmul.mubr.f32.gmra.mxu0 %v1951
  %v2252 = vpop.f32.mrf.mxu0
  %v2253 = vadd.f32 0.0, %v2252
  %v2254 = vpop.f32.mrf.mxu0
  %2255 = vmatprep.mubr.f32.mxu0 0.0
  %2256 = vmatmul.mubr.f32.gmra.mxu0 %v1954
  %v2257 = vpop.f32.mrf.mxu0
  %v2258 = vadd.f32 0.0, %v2257
  %v2259 = vpop.f32.mrf.mxu0
  %2260 = vmatprep.mubr.f32.mxu0 0.0
  %2261 = vmatmul.mubr.f32.gmra.mxu0 %v1957
  %v2262 = vpop.f32.mrf.mxu0
  %v2263 = vadd.f32 0.0, %v2262
  %v2264 = vpop.f32.mrf.mxu0
  %2265 = vmatprep.mubr.f32.mxu0 0.0
  %2266 = vmatmul.mubr.f32.gmra.mxu0 %v1960
  %v2267 = vpop.f32.mrf.mxu0
  %v2268 = vadd.f32 0.0, %v2267
  %v2269 = vpop.f32.mrf.mxu0
  %2270 = vdwg.mxu0
  %v2272 = vsel %vm183, %v1720, 0
  %v2275 = vsel %vm183, %v1721, 0
  %v2278 = vsel %vm183, %v1722, 0
  %v2281 = vsel %vm183, %v1723, 0
  %v2284 = vsel %vm183, %v1724, 0
  %v2287 = vsel %vm183, %v1725, 0
  %v2290 = vsel %vm183, %v1726, 0
  %v2293 = vsel %vm183, %v1727, 0
  %v2296 = vsel %vm183, %v1728, 0
  %v2299 = vsel %vm183, %v1729, 0
  %v2302 = vsel %vm183, %v1730, 0
  %v2305 = vsel %vm183, %v1731, 0
  %v2308 = vsel %vm183, %v1732, 0
  %v2311 = vsel %vm183, %v1733, 0
  %v2314 = vsel %vm183, %v1734, 0
  %v2317 = vsel %vm183, %v1735, 0
  %v2320 = vsel %vm183, %v1736, 0
  %v2323 = vsel %vm183, %v1737, 0
  %v2326 = vsel %vm183, %v1738, 0
  %v2329 = vsel %vm183, %v1739, 0
  %v2332 = vsel %vm183, %v1740, 0
  %v2335 = vsel %vm183, %v1741, 0
  %v2338 = vsel %vm183, %v1742, 0
  %v2341 = vsel %vm183, %v1743, 0
  %v2344 = vsel %vm183, %v1744, 0
  %v2347 = vsel %vm183, %v1745, 0
  %v2350 = vsel %vm183, %v1746, 0
  %v2353 = vsel %vm183, %v1747, 0
  %v2356 = vsel %vm183, %v1748, 0
  %v2359 = vsel %vm183, %v1749, 0
  %v2362 = vsel %vm183, %v1750, 0
  %v2365 = vsel %vm183, %v1751, 0
  %v2368 = vsel %vm183, %v1752, 0
  %v2371 = vsel %vm183, %v1753, 0
  %v2374 = vsel %vm183, %v1754, 0
  %v2377 = vsel %vm183, %v1755, 0
  %v2380 = vsel %vm183, %v1756, 0
  %v2383 = vsel %vm183, %v1757, 0
  %v2386 = vsel %vm183, %v1758, 0
  %v2389 = vsel %vm183, %v1759, 0
  %v2392 = vsel %vm183, %v1760, 0
  %v2395 = vsel %vm183, %v1761, 0
  %v2398 = vsel %vm183, %v1762, 0
  %v2401 = vsel %vm183, %v1763, 0
  %v2404 = vsel %vm183, %v1764, 0
  %v2407 = vsel %vm183, %v1765, 0
  %v2410 = vsel %vm183, %v1766, 0
  %v2413 = vsel %vm183, %v1767, 0
  %v2416 = vsel %vm1962, %v1816, 0
  %2418 = vmatprep.subr.mxu0 0.0
  %2419 = vmatpush1.msra.mxu0 0.0
  %2420 = vmatprep.subr.mxu0 0.0
  %2421 = vmatpush1.msra.mxu0 0.0
  %2422 = vmatprep.subr.mxu0 0.0
  %2423 = vmatpush1.msra.mxu0 0.0
  %2424 = vmatprep.subr.mxu0 0.0
  %2425 = vmatpush1.msra.mxu0 0.0
  %2426 = vmatprep.subr.mxu0 0.0
  %2427 = vmatpush1.msra.mxu0 0.0
  %2428 = vmatprep.subr.mxu0 0.0
  %2429 = vmatpush1.msra.mxu0 0.0
  %2430 = vmatprep.subr.mxu0 0.0
  %2431 = vmatpush1.msra.mxu0 0.0
  %2432 = vmatprep.subr.mxu0 0.0
  %2433 = vmatpush1.msra.mxu0 0.0
  %2434 = vmatprep.subr.mxu0 0.0
  %2435 = vmatpush1.msra.mxu0 0.0
  %2436 = vmatprep.subr.mxu0 0.0
  %2437 = vmatpush1.msra.mxu0 0.0
  %2438 = vmatprep.subr.mxu0 0.0
  %2439 = vmatpush1.msra.mxu0 0.0
  %2440 = vmatprep.subr.mxu0 0.0
  %2441 = vmatpush1.msra.mxu0 0.0
  %2442 = vmatprep.subr.mxu0 0.0
  %2443 = vmatpush1.msra.mxu0 0.0
  %2444 = vmatprep.subr.mxu0 0.0
  %2445 = vmatpush1.msra.mxu0 0.0
  %2446 = vmatprep.subr.mxu0 0.0
  %2447 = vmatpush1.msra.mxu0 0.0
  %2448 = vmatprep.subr.mxu0 0.0
  %2449 = vmatpush1.msra.mxu0 %v2416
  %2450 = vmatprep.subr.mxu0 0.0
  %2451 = vmatpush2.msra.mxu0 0.0
  %2452 = vmatprep.subr.mxu0 0.0
  %2453 = vmatpush2.msra.mxu0 0.0
  %2454 = vmatprep.subr.mxu0 0.0
  %2455 = vmatpush2.msra.mxu0 0.0
  %2456 = vmatprep.subr.mxu0 0.0
  %2457 = vmatpush2.msra.mxu0 0.0
  %2458 = vmatprep.subr.mxu0 0.0
  %2459 = vmatpush2.msra.mxu0 0.0
  %2460 = vmatprep.subr.mxu0 0.0
  %2461 = vmatpush2.msra.mxu0 0.0
  %2462 = vmatprep.subr.mxu0 0.0
  %2463 = vmatpush2.msra.mxu0 0.0
  %2464 = vmatprep.subr.mxu0 0.0
  %2465 = vmatpush2.msra.mxu0 0.0
  %2466 = vmatprep.subr.mxu0 0.0
  %2467 = vmatpush2.msra.mxu0 0.0
  %2468 = vmatprep.subr.mxu0 0.0
  %2469 = vmatpush2.msra.mxu0 0.0
  %2470 = vmatprep.subr.mxu0 0.0
  %2471 = vmatpush2.msra.mxu0 0.0
  %2472 = vmatprep.subr.mxu0 0.0
  %2473 = vmatpush2.msra.mxu0 0.0
  %2474 = vmatprep.subr.mxu0 0.0
  %2475 = vmatpush2.msra.mxu0 0.0
  %2476 = vmatprep.subr.mxu0 0.0
  %2477 = vmatpush2.msra.mxu0 0.0
  %2478 = vmatprep.subr.mxu0 0.0
  %2479 = vmatpush2.msra.mxu0 0.0
  %2480 = vmatprep.subr.mxu0 0.0
  %2481 = vmatpush2.msra.mxu0 0.0
  %2482 = vmatprep.mubr.f32.mxu0 0.0
  %2483 = vmatmul.mubr.f32.gmra.mxu0 %v2272
  %v2484 = vpop.f32.mrf.mxu0
  %v2485 = vadd.f32 %v2033, %v2484
  %v2486 = vpop.f32.mrf.mxu0
  %2487 = vmatprep.mubr.f32.mxu0 0.0
  %2488 = vmatmul.mubr.f32.gmra.mxu0 %v2275
  %v2489 = vpop.f32.mrf.mxu0
  %v2490 = vadd.f32 %v2038, %v2489
  %v2491 = vpop.f32.mrf.mxu0
  %2492 = vmatprep.mubr.f32.mxu0 0.0
  %2493 = vmatmul.mubr.f32.gmra.mxu0 %v2278
  %v2494 = vpop.f32.mrf.mxu0
  %v2495 = vadd.f32 %v2043, %v2494
  %v2496 = vpop.f32.mrf.mxu0
  %2497 = vmatprep.mubr.f32.mxu0 0.0
  %2498 = vmatmul.mubr.f32.gmra.mxu0 %v2281
  %v2499 = vpop.f32.mrf.mxu0
  %v2500 = vadd.f32 %v2048, %v2499
  %v2501 = vpop.f32.mrf.mxu0
  %2502 = vmatprep.mubr.f32.mxu0 0.0
  %2503 = vmatmul.mubr.f32.gmra.mxu0 %v2284
  %v2504 = vpop.f32.mrf.mxu0
  %v2505 = vadd.f32 %v2053, %v2504
  %v2506 = vpop.f32.mrf.mxu0
  %2507 = vmatprep.mubr.f32.mxu0 0.0
  %2508 = vmatmul.mubr.f32.gmra.mxu0 %v2287
  %v2509 = vpop.f32.mrf.mxu0
  %v2510 = vadd.f32 %v2058, %v2509
  %v2511 = vpop.f32.mrf.mxu0
  %2512 = vmatprep.mubr.f32.mxu0 0.0
  %2513 = vmatmul.mubr.f32.gmra.mxu0 %v2290
  %v2514 = vpop.f32.mrf.mxu0
  %v2515 = vadd.f32 %v2063, %v2514
  %v2516 = vpop.f32.mrf.mxu0
  %2517 = vmatprep.mubr.f32.mxu0 0.0
  %2518 = vmatmul.mubr.f32.gmra.mxu0 %v2293
  %v2519 = vpop.f32.mrf.mxu0
  %v2520 = vadd.f32 %v2068, %v2519
  %v2521 = vpop.f32.mrf.mxu0
  %2522 = vmatprep.mubr.f32.mxu0 0.0
  %2523 = vmatmul.mubr.f32.gmra.mxu0 %v2296
  %v2524 = vpop.f32.mrf.mxu0
  %v2525 = vadd.f32 %v2073, %v2524
  %v2526 = vpop.f32.mrf.mxu0
  %2527 = vmatprep.mubr.f32.mxu0 0.0
  %2528 = vmatmul.mubr.f32.gmra.mxu0 %v2299
  %v2529 = vpop.f32.mrf.mxu0
  %v2530 = vadd.f32 %v2078, %v2529
  %v2531 = vpop.f32.mrf.mxu0
  %2532 = vmatprep.mubr.f32.mxu0 0.0
  %2533 = vmatmul.mubr.f32.gmra.mxu0 %v2302
  %v2534 = vpop.f32.mrf.mxu0
  %v2535 = vadd.f32 %v2083, %v2534
  %v2536 = vpop.f32.mrf.mxu0
  %2537 = vmatprep.mubr.f32.mxu0 0.0
  %2538 = vmatmul.mubr.f32.gmra.mxu0 %v2305
  %v2539 = vpop.f32.mrf.mxu0
  %v2540 = vadd.f32 %v2088, %v2539
  %v2541 = vpop.f32.mrf.mxu0
  %2542 = vmatprep.mubr.f32.mxu0 0.0
  %2543 = vmatmul.mubr.f32.gmra.mxu0 %v2308
  %v2544 = vpop.f32.mrf.mxu0
  %v2545 = vadd.f32 %v2093, %v2544
  %v2546 = vpop.f32.mrf.mxu0
  %2547 = vmatprep.mubr.f32.mxu0 0.0
  %2548 = vmatmul.mubr.f32.gmra.mxu0 %v2311
  %v2549 = vpop.f32.mrf.mxu0
  %v2550 = vadd.f32 %v2098, %v2549
  %v2551 = vpop.f32.mrf.mxu0
  %2552 = vmatprep.mubr.f32.mxu0 0.0
  %2553 = vmatmul.mubr.f32.gmra.mxu0 %v2314
  %v2554 = vpop.f32.mrf.mxu0
  %v2555 = vadd.f32 %v2103, %v2554
  %v2556 = vpop.f32.mrf.mxu0
  %2557 = vmatprep.mubr.f32.mxu0 0.0
  %2558 = vmatmul.mubr.f32.gmra.mxu0 %v2317
  %v2559 = vpop.f32.mrf.mxu0
  %v2560 = vadd.f32 %v2108, %v2559
  %v2561 = vpop.f32.mrf.mxu0
  %2562 = vmatprep.mubr.f32.mxu0 0.0
  %2563 = vmatmul.mubr.f32.gmra.mxu0 %v2320
  %v2564 = vpop.f32.mrf.mxu0
  %v2565 = vadd.f32 %v2113, %v2564
  %v2566 = vpop.f32.mrf.mxu0
  %2567 = vmatprep.mubr.f32.mxu0 0.0
  %2568 = vmatmul.mubr.f32.gmra.mxu0 %v2323
  %v2569 = vpop.f32.mrf.mxu0
  %v2570 = vadd.f32 %v2118, %v2569
  %v2571 = vpop.f32.mrf.mxu0
  %2572 = vmatprep.mubr.f32.mxu0 0.0
  %2573 = vmatmul.mubr.f32.gmra.mxu0 %v2326
  %v2574 = vpop.f32.mrf.mxu0
  %v2575 = vadd.f32 %v2123, %v2574
  %v2576 = vpop.f32.mrf.mxu0
  %2577 = vmatprep.mubr.f32.mxu0 0.0
  %2578 = vmatmul.mubr.f32.gmra.mxu0 %v2329
  %v2579 = vpop.f32.mrf.mxu0
  %v2580 = vadd.f32 %v2128, %v2579
  %v2581 = vpop.f32.mrf.mxu0
  %2582 = vmatprep.mubr.f32.mxu0 0.0
  %2583 = vmatmul.mubr.f32.gmra.mxu0 %v2332
  %v2584 = vpop.f32.mrf.mxu0
  %v2585 = vadd.f32 %v2133, %v2584
  %v2586 = vpop.f32.mrf.mxu0
  %2587 = vmatprep.mubr.f32.mxu0 0.0
  %2588 = vmatmul.mubr.f32.gmra.mxu0 %v2335
  %v2589 = vpop.f32.mrf.mxu0
  %v2590 = vadd.f32 %v2138, %v2589
  %v2591 = vpop.f32.mrf.mxu0
  %2592 = vmatprep.mubr.f32.mxu0 0.0
  %2593 = vmatmul.mubr.f32.gmra.mxu0 %v2338
  %v2594 = vpop.f32.mrf.mxu0
  %v2595 = vadd.f32 %v2143, %v2594
  %v2596 = vpop.f32.mrf.mxu0
  %2597 = vmatprep.mubr.f32.mxu0 0.0
  %2598 = vmatmul.mubr.f32.gmra.mxu0 %v2341
  %v2599 = vpop.f32.mrf.mxu0
  %v2600 = vadd.f32 %v2148, %v2599
  %v2601 = vpop.f32.mrf.mxu0
  %2602 = vmatprep.mubr.f32.mxu0 0.0
  %2603 = vmatmul.mubr.f32.gmra.mxu0 %v2344
  %v2604 = vpop.f32.mrf.mxu0
  %v2605 = vadd.f32 %v2153, %v2604
  %v2606 = vpop.f32.mrf.mxu0
  %2607 = vmatprep.mubr.f32.mxu0 0.0
  %2608 = vmatmul.mubr.f32.gmra.mxu0 %v2347
  %v2609 = vpop.f32.mrf.mxu0
  %v2610 = vadd.f32 %v2158, %v2609
  %v2611 = vpop.f32.mrf.mxu0
  %2612 = vmatprep.mubr.f32.mxu0 0.0
  %2613 = vmatmul.mubr.f32.gmra.mxu0 %v2350
  %v2614 = vpop.f32.mrf.mxu0
  %v2615 = vadd.f32 %v2163, %v2614
  %v2616 = vpop.f32.mrf.mxu0
  %2617 = vmatprep.mubr.f32.mxu0 0.0
  %2618 = vmatmul.mubr.f32.gmra.mxu0 %v2353
  %v2619 = vpop.f32.mrf.mxu0
  %v2620 = vadd.f32 %v2168, %v2619
  %v2621 = vpop.f32.mrf.mxu0
  %2622 = vmatprep.mubr.f32.mxu0 0.0
  %2623 = vmatmul.mubr.f32.gmra.mxu0 %v2356
  %v2624 = vpop.f32.mrf.mxu0
  %v2625 = vadd.f32 %v2173, %v2624
  %v2626 = vpop.f32.mrf.mxu0
  %2627 = vmatprep.mubr.f32.mxu0 0.0
  %2628 = vmatmul.mubr.f32.gmra.mxu0 %v2359
  %v2629 = vpop.f32.mrf.mxu0
  %v2630 = vadd.f32 %v2178, %v2629
  %v2631 = vpop.f32.mrf.mxu0
  %2632 = vmatprep.mubr.f32.mxu0 0.0
  %2633 = vmatmul.mubr.f32.gmra.mxu0 %v2362
  %v2634 = vpop.f32.mrf.mxu0
  %v2635 = vadd.f32 %v2183, %v2634
  %v2636 = vpop.f32.mrf.mxu0
  %2637 = vmatprep.mubr.f32.mxu0 0.0
  %2638 = vmatmul.mubr.f32.gmra.mxu0 %v2365
  %v2639 = vpop.f32.mrf.mxu0
  %v2640 = vadd.f32 %v2188, %v2639
  %v2641 = vpop.f32.mrf.mxu0
  %2642 = vmatprep.mubr.f32.mxu0 0.0
  %2643 = vmatmul.mubr.f32.gmra.mxu0 %v2368
  %v2644 = vpop.f32.mrf.mxu0
  %v2645 = vadd.f32 %v2193, %v2644
  %v2646 = vpop.f32.mrf.mxu0
  %2647 = vmatprep.mubr.f32.mxu0 0.0
  %2648 = vmatmul.mubr.f32.gmra.mxu0 %v2371
  %v2649 = vpop.f32.mrf.mxu0
  %v2650 = vadd.f32 %v2198, %v2649
  %v2651 = vpop.f32.mrf.mxu0
  %2652 = vmatprep.mubr.f32.mxu0 0.0
  %2653 = vmatmul.mubr.f32.gmra.mxu0 %v2374
  %v2654 = vpop.f32.mrf.mxu0
  %v2655 = vadd.f32 %v2203, %v2654
  %v2656 = vpop.f32.mrf.mxu0
  %2657 = vmatprep.mubr.f32.mxu0 0.0
  %2658 = vmatmul.mubr.f32.gmra.mxu0 %v2377
  %v2659 = vpop.f32.mrf.mxu0
  %v2660 = vadd.f32 %v2208, %v2659
  %v2661 = vpop.f32.mrf.mxu0
  %2662 = vmatprep.mubr.f32.mxu0 0.0
  %2663 = vmatmul.mubr.f32.gmra.mxu0 %v2380
  %v2664 = vpop.f32.mrf.mxu0
  %v2665 = vadd.f32 %v2213, %v2664
  %v2666 = vpop.f32.mrf.mxu0
  %2667 = vmatprep.mubr.f32.mxu0 0.0
  %2668 = vmatmul.mubr.f32.gmra.mxu0 %v2383
  %v2669 = vpop.f32.mrf.mxu0
  %v2670 = vadd.f32 %v2218, %v2669
  %v2671 = vpop.f32.mrf.mxu0
  %2672 = vmatprep.mubr.f32.mxu0 0.0
  %2673 = vmatmul.mubr.f32.gmra.mxu0 %v2386
  %v2674 = vpop.f32.mrf.mxu0
  %v2675 = vadd.f32 %v2223, %v2674
  %v2676 = vpop.f32.mrf.mxu0
  %2677 = vmatprep.mubr.f32.mxu0 0.0
  %2678 = vmatmul.mubr.f32.gmra.mxu0 %v2389
  %v2679 = vpop.f32.mrf.mxu0
  %v2680 = vadd.f32 %v2228, %v2679
  %v2681 = vpop.f32.mrf.mxu0
  %2682 = vmatprep.mubr.f32.mxu0 0.0
  %2683 = vmatmul.mubr.f32.gmra.mxu0 %v2392
  %v2684 = vpop.f32.mrf.mxu0
  %v2685 = vadd.f32 %v2233, %v2684
  %v2686 = vpop.f32.mrf.mxu0
  %2687 = vmatprep.mubr.f32.mxu0 0.0
  %2688 = vmatmul.mubr.f32.gmra.mxu0 %v2395
  %v2689 = vpop.f32.mrf.mxu0
  %v2690 = vadd.f32 %v2238, %v2689
  %v2691 = vpop.f32.mrf.mxu0
  %2692 = vmatprep.mubr.f32.mxu0 0.0
  %2693 = vmatmul.mubr.f32.gmra.mxu0 %v2398
  %v2694 = vpop.f32.mrf.mxu0
  %v2695 = vadd.f32 %v2243, %v2694
  %v2696 = vpop.f32.mrf.mxu0
  %2697 = vmatprep.mubr.f32.mxu0 0.0
  %2698 = vmatmul.mubr.f32.gmra.mxu0 %v2401
  %v2699 = vpop.f32.mrf.mxu0
  %v2700 = vadd.f32 %v2248, %v2699
  %v2701 = vpop.f32.mrf.mxu0
  %2702 = vmatprep.mubr.f32.mxu0 0.0
  %2703 = vmatmul.mubr.f32.gmra.mxu0 %v2404
  %v2704 = vpop.f32.mrf.mxu0
  %v2705 = vadd.f32 %v2253, %v2704
  %v2706 = vpop.f32.mrf.mxu0
  %2707 = vmatprep.mubr.f32.mxu0 0.0
  %2708 = vmatmul.mubr.f32.gmra.mxu0 %v2407
  %v2709 = vpop.f32.mrf.mxu0
  %v2710 = vadd.f32 %v2258, %v2709
  %v2711 = vpop.f32.mrf.mxu0
  %2712 = vmatprep.mubr.f32.mxu0 0.0
  %2713 = vmatmul.mubr.f32.gmra.mxu0 %v2410
  %v2714 = vpop.f32.mrf.mxu0
  %v2715 = vadd.f32 %v2263, %v2714
  %v2716 = vpop.f32.mrf.mxu0
  %2717 = vmatprep.mubr.f32.mxu0 0.0
  %2718 = vmatmul.mubr.f32.gmra.mxu0 %v2413
  %v2719 = vpop.f32.mrf.mxu0
  %v2720 = vadd.f32 %v2268, %v2719
  %v2721 = vpop.f32.mrf.mxu0
  %2722 = vdwg.mxu0
  %v2723 = vmax.f32 %v2485, 0.0
  %v2724 = vmax.f32 %v2490, 0.0
  %v2725 = vmax.f32 %v2495, 0.0
  %v2726 = vmax.f32 %v2500, 0.0
  %v2727 = vmax.f32 %v2505, 0.0
  %v2728 = vmax.f32 %v2510, 0.0
  %v2729 = vmax.f32 %v2515, 0.0
  %v2730 = vmax.f32 %v2520, 0.0
  %v2731 = vmax.f32 %v2525, 0.0
  %v2732 = vmax.f32 %v2530, 0.0
  %v2733 = vmax.f32 %v2535, 0.0
  %v2734 = vmax.f32 %v2540, 0.0
  %v2735 = vmax.f32 %v2545, 0.0
  %v2736 = vmax.f32 %v2550, 0.0
  %v2737 = vmax.f32 %v2555, 0.0
  %v2738 = vmax.f32 %v2560, 0.0
  %v2739 = vmax.f32 %v2565, 0.0
  %v2740 = vmax.f32 %v2570, 0.0
  %v2741 = vmax.f32 %v2575, 0.0
  %v2742 = vmax.f32 %v2580, 0.0
  %v2743 = vmax.f32 %v2585, 0.0
  %v2744 = vmax.f32 %v2590, 0.0
  %v2745 = vmax.f32 %v2595, 0.0
  %v2746 = vmax.f32 %v2600, 0.0
  %v2747 = vmax.f32 %v2605, 0.0
  %v2748 = vmax.f32 %v2610, 0.0
  %v2749 = vmax.f32 %v2615, 0.0
  %v2750 = vmax.f32 %v2620, 0.0
  %v2751 = vmax.f32 %v2625, 0.0
  %v2752 = vmax.f32 %v2630, 0.0
  %v2753 = vmax.f32 %v2635, 0.0
  %v2754 = vmax.f32 %v2640, 0.0
  %v2755 = vmax.f32 %v2645, 0.0
  %v2756 = vmax.f32 %v2650, 0.0
  %v2757 = vmax.f32 %v2655, 0.0
  %v2758 = vmax.f32 %v2660, 0.0
  %v2759 = vmax.f32 %v2665, 0.0
  %v2760 = vmax.f32 %v2670, 0.0
  %v2761 = vmax.f32 %v2675, 0.0
  %v2762 = vmax.f32 %v2680, 0.0
  %v2763 = vmax.f32 %v2685, 0.0
  %v2764 = vmax.f32 %v2690, 0.0
  %v2765 = vmax.f32 %v2695, 0.0
  %v2766 = vmax.f32 %v2700, 0.0
  %v2767 = vmax.f32 %v2705, 0.0
  %v2768 = vmax.f32 %v2710, 0.0
  %v2769 = vmax.f32 %v2715, 0.0
  %v2770 = vmax.f32 %v2720, 0.0
  %v2771 = vld [vmem:[%s6] sm:$0xff]
  %v2772 = vld [vmem:[%s6 + $0x8] sm:$0xff]
  %v2773 = vld [vmem:[%s6 + $0x10] sm:$0xff]
  %v2774 = vld [vmem:[%s6 + $0x18] sm:$0xff]
  %v2775 = vld [vmem:[%s6 + $0x20] sm:$0xff]
  %v2776 = vld [vmem:[%s6 + $0x28] sm:$0xff]
  %v2777 = vld [vmem:[%s6 + $0x30] sm:$0xff]
  %v2778 = vld [vmem:[%s6 + $0x38] sm:$0xff]
  %v2779 = vld [vmem:[%s7] sm:$0x1]
  %v2781 = vlaneseq
  %v2782 = vshrl.u32 %v2781, 7
  %v2783 = vsub.s32 0, %v2782
  %v2784 = vrot.slane %v2779, %v2783
  %vm2786 = vcmask 523264
  %v2788 = vsel %vm2786, %v2723, 0
  %v2791 = vsel %vm2786, %v2724, 0
  %v2794 = vsel %vm2786, %v2725, 0
  %v2797 = vsel %vm2786, %v2726, 0
  %v2800 = vsel %vm2786, %v2727, 0
  %v2803 = vsel %vm2786, %v2728, 0
  %v2806 = vsel %vm2786, %v2729, 0
  %v2809 = vsel %vm2786, %v2730, 0
  %v2812 = vsel %vm2786, %v2731, 0
  %v2815 = vsel %vm2786, %v2732, 0
  %v2818 = vsel %vm2786, %v2733, 0
  %v2821 = vsel %vm2786, %v2734, 0
  %v2824 = vsel %vm2786, %v2735, 0
  %v2827 = vsel %vm2786, %v2736, 0
  %v2830 = vsel %vm2786, %v2737, 0
  %v2833 = vsel %vm2786, %v2738, 0
  %v2836 = vsel %vm2786, %v2739, 0
  %v2839 = vsel %vm2786, %v2740, 0
  %v2842 = vsel %vm2786, %v2741, 0
  %v2845 = vsel %vm2786, %v2742, 0
  %v2848 = vsel %vm2786, %v2743, 0
  %v2851 = vsel %vm2786, %v2744, 0
  %v2854 = vsel %vm2786, %v2745, 0
  %v2857 = vsel %vm2786, %v2746, 0
  %v2860 = vsel %vm2786, %v2747, 0
  %v2863 = vsel %vm2786, %v2748, 0
  %v2866 = vsel %vm2786, %v2749, 0
  %v2869 = vsel %vm2786, %v2750, 0
  %v2872 = vsel %vm2786, %v2751, 0
  %v2875 = vsel %vm2786, %v2752, 0
  %v2878 = vsel %vm2786, %v2753, 0
  %v2881 = vsel %vm2786, %v2754, 0
  %v2884 = vsel %vm2786, %v2755, 0
  %v2887 = vsel %vm2786, %v2756, 0
  %v2890 = vsel %vm2786, %v2757, 0
  %v2893 = vsel %vm2786, %v2758, 0
  %v2896 = vsel %vm2786, %v2759, 0
  %v2899 = vsel %vm2786, %v2760, 0
  %v2902 = vsel %vm2786, %v2761, 0
  %v2905 = vsel %vm2786, %v2762, 0
  %v2908 = vsel %vm2786, %v2763, 0
  %v2911 = vsel %vm2786, %v2764, 0
  %v2914 = vsel %vm2786, %v2765, 0
  %v2917 = vsel %vm2786, %v2766, 0
  %v2920 = vsel %vm2786, %v2767, 0
  %v2923 = vsel %vm2786, %v2768, 0
  %v2926 = vsel %vm2786, %v2769, 0
  %v2929 = vsel %vm2786, %v2770, 0
  %2931 = vmatprep.subr.mxu0 0.0
  %2932 = vmatpush1.msra.mxu0 0.0
  %2933 = vmatprep.subr.mxu0 0.0
  %2934 = vmatpush1.msra.mxu0 0.0
  %2935 = vmatprep.subr.mxu0 0.0
  %2936 = vmatpush1.msra.mxu0 0.0
  %2937 = vmatprep.subr.mxu0 0.0
  %2938 = vmatpush1.msra.mxu0 0.0
  %2939 = vmatprep.subr.mxu0 0.0
  %2940 = vmatpush1.msra.mxu0 0.0
  %2941 = vmatprep.subr.mxu0 0.0
  %2942 = vmatpush1.msra.mxu0 0.0
  %2943 = vmatprep.subr.mxu0 0.0
  %2944 = vmatpush1.msra.mxu0 0.0
  %2945 = vmatprep.subr.mxu0 0.0
  %2946 = vmatpush1.msra.mxu0 0.0
  %2947 = vmatprep.subr.mxu0 0.0
  %2948 = vmatpush1.msra.mxu0 %v2778
  %2949 = vmatprep.subr.mxu0 0.0
  %2950 = vmatpush1.msra.mxu0 %v2777
  %2951 = vmatprep.subr.mxu0 0.0
  %2952 = vmatpush1.msra.mxu0 %v2776
  %2953 = vmatprep.subr.mxu0 0.0
  %2954 = vmatpush1.msra.mxu0 %v2775
  %2955 = vmatprep.subr.mxu0 0.0
  %2956 = vmatpush1.msra.mxu0 %v2774
  %2957 = vmatprep.subr.mxu0 0.0
  %2958 = vmatpush1.msra.mxu0 %v2773
  %2959 = vmatprep.subr.mxu0 0.0
  %2960 = vmatpush1.msra.mxu0 %v2772
  %2961 = vmatprep.subr.mxu0 0.0
  %2962 = vmatpush1.msra.mxu0 %v2771
  %2963 = vmatprep.subr.mxu0 0.0
  %2964 = vmatpush2.msra.mxu0 0.0
  %2965 = vmatprep.subr.mxu0 0.0
  %2966 = vmatpush2.msra.mxu0 0.0
  %2967 = vmatprep.subr.mxu0 0.0
  %2968 = vmatpush2.msra.mxu0 0.0
  %2969 = vmatprep.subr.mxu0 0.0
  %2970 = vmatpush2.msra.mxu0 0.0
  %2971 = vmatprep.subr.mxu0 0.0
  %2972 = vmatpush2.msra.mxu0 0.0
  %2973 = vmatprep.subr.mxu0 0.0
  %2974 = vmatpush2.msra.mxu0 0.0
  %2975 = vmatprep.subr.mxu0 0.0
  %2976 = vmatpush2.msra.mxu0 0.0
  %2977 = vmatprep.subr.mxu0 0.0
  %2978 = vmatpush2.msra.mxu0 0.0
  %2979 = vmatprep.subr.mxu0 0.0
  %2980 = vmatpush2.msra.mxu0 0.0
  %2981 = vmatprep.subr.mxu0 0.0
  %2982 = vmatpush2.msra.mxu0 0.0
  %2983 = vmatprep.subr.mxu0 0.0
  %2984 = vmatpush2.msra.mxu0 0.0
  %2985 = vmatprep.subr.mxu0 0.0
  %2986 = vmatpush2.msra.mxu0 0.0
  %2987 = vmatprep.subr.mxu0 0.0
  %2988 = vmatpush2.msra.mxu0 0.0
  %2989 = vmatprep.subr.mxu0 0.0
  %2990 = vmatpush2.msra.mxu0 0.0
  %2991 = vmatprep.subr.mxu0 0.0
  %2992 = vmatpush2.msra.mxu0 0.0
  %2993 = vmatprep.subr.mxu0 0.0
  %2994 = vmatpush2.msra.mxu0 0.0
  %2995 = vmatprep.mubr.f32.mxu0 0.0
  %2996 = vmatmul.mubr.f32.gmra.mxu0 %v2788
  %v2997 = vpop.f32.mrf.mxu0
  %v2998 = vadd.f32 %v2784, %v2997
  %v2999 = vpop.f32.mrf.mxu0
  %3000 = vmatprep.mubr.f32.mxu0 0.0
  %3001 = vmatmul.mubr.f32.gmra.mxu0 %v2791
  %v3002 = vpop.f32.mrf.mxu0
  %v3003 = vadd.f32 %v2784, %v3002
  %v3004 = vpop.f32.mrf.mxu0
  %3005 = vmatprep.mubr.f32.mxu0 0.0
  %3006 = vmatmul.mubr.f32.gmra.mxu0 %v2794
  %v3007 = vpop.f32.mrf.mxu0
  %v3008 = vadd.f32 %v2784, %v3007
  %v3009 = vpop.f32.mrf.mxu0
  %3010 = vmatprep.mubr.f32.mxu0 0.0
  %3011 = vmatmul.mubr.f32.gmra.mxu0 %v2797
  %v3012 = vpop.f32.mrf.mxu0
  %v3013 = vadd.f32 %v2784, %v3012
  %v3014 = vpop.f32.mrf.mxu0
  %3015 = vmatprep.mubr.f32.mxu0 0.0
  %3016 = vmatmul.mubr.f32.gmra.mxu0 %v2800
  %v3017 = vpop.f32.mrf.mxu0
  %v3018 = vadd.f32 %v2784, %v3017
  %v3019 = vpop.f32.mrf.mxu0
  %3020 = vmatprep.mubr.f32.mxu0 0.0
  %3021 = vmatmul.mubr.f32.gmra.mxu0 %v2803
  %v3022 = vpop.f32.mrf.mxu0
  %v3023 = vadd.f32 %v2784, %v3022
  %v3024 = vpop.f32.mrf.mxu0
  %3025 = vmatprep.mubr.f32.mxu0 0.0
  %3026 = vmatmul.mubr.f32.gmra.mxu0 %v2806
  %v3027 = vpop.f32.mrf.mxu0
  %v3028 = vadd.f32 %v2784, %v3027
  %v3029 = vpop.f32.mrf.mxu0
  %3030 = vmatprep.mubr.f32.mxu0 0.0
  %3031 = vmatmul.mubr.f32.gmra.mxu0 %v2809
  %v3032 = vpop.f32.mrf.mxu0
  %v3033 = vadd.f32 %v2784, %v3032
  %v3034 = vpop.f32.mrf.mxu0
  %3035 = vmatprep.mubr.f32.mxu0 0.0
  %3036 = vmatmul.mubr.f32.gmra.mxu0 %v2812
  %v3037 = vpop.f32.mrf.mxu0
  %v3038 = vadd.f32 %v2784, %v3037
  %v3039 = vpop.f32.mrf.mxu0
  %3040 = vmatprep.mubr.f32.mxu0 0.0
  %3041 = vmatmul.mubr.f32.gmra.mxu0 %v2815
  %v3042 = vpop.f32.mrf.mxu0
  %v3043 = vadd.f32 %v2784, %v3042
  %v3044 = vpop.f32.mrf.mxu0
  %3045 = vmatprep.mubr.f32.mxu0 0.0
  %3046 = vmatmul.mubr.f32.gmra.mxu0 %v2818
  %v3047 = vpop.f32.mrf.mxu0
  %v3048 = vadd.f32 %v2784, %v3047
  %v3049 = vpop.f32.mrf.mxu0
  %3050 = vmatprep.mubr.f32.mxu0 0.0
  %3051 = vmatmul.mubr.f32.gmra.mxu0 %v2821
  %v3052 = vpop.f32.mrf.mxu0
  %v3053 = vadd.f32 %v2784, %v3052
  %v3054 = vpop.f32.mrf.mxu0
  %3055 = vmatprep.mubr.f32.mxu0 0.0
  %3056 = vmatmul.mubr.f32.gmra.mxu0 %v2824
  %v3057 = vpop.f32.mrf.mxu0
  %v3058 = vadd.f32 %v2784, %v3057
  %v3059 = vpop.f32.mrf.mxu0
  %3060 = vmatprep.mubr.f32.mxu0 0.0
  %3061 = vmatmul.mubr.f32.gmra.mxu0 %v2827
  %v3062 = vpop.f32.mrf.mxu0
  %v3063 = vadd.f32 %v2784, %v3062
  %v3064 = vpop.f32.mrf.mxu0
  %3065 = vmatprep.mubr.f32.mxu0 0.0
  %3066 = vmatmul.mubr.f32.gmra.mxu0 %v2830
  %v3067 = vpop.f32.mrf.mxu0
  %v3068 = vadd.f32 %v2784, %v3067
  %v3069 = vpop.f32.mrf.mxu0
  %3070 = vmatprep.mubr.f32.mxu0 0.0
  %3071 = vmatmul.mubr.f32.gmra.mxu0 %v2833
  %v3072 = vpop.f32.mrf.mxu0
  %v3073 = vadd.f32 %v2784, %v3072
  %v3074 = vpop.f32.mrf.mxu0
  %3075 = vmatprep.mubr.f32.mxu0 0.0
  %3076 = vmatmul.mubr.f32.gmra.mxu0 %v2836
  %v3077 = vpop.f32.mrf.mxu0
  %v3078 = vadd.f32 %v2784, %v3077
  %v3079 = vpop.f32.mrf.mxu0
  %3080 = vmatprep.mubr.f32.mxu0 0.0
  %3081 = vmatmul.mubr.f32.gmra.mxu0 %v2839
  %v3082 = vpop.f32.mrf.mxu0
  %v3083 = vadd.f32 %v2784, %v3082
  %v3084 = vpop.f32.mrf.mxu0
  %3085 = vmatprep.mubr.f32.mxu0 0.0
  %3086 = vmatmul.mubr.f32.gmra.mxu0 %v2842
  %v3087 = vpop.f32.mrf.mxu0
  %v3088 = vadd.f32 %v2784, %v3087
  %v3089 = vpop.f32.mrf.mxu0
  %3090 = vmatprep.mubr.f32.mxu0 0.0
  %3091 = vmatmul.mubr.f32.gmra.mxu0 %v2845
  %v3092 = vpop.f32.mrf.mxu0
  %v3093 = vadd.f32 %v2784, %v3092
  %v3094 = vpop.f32.mrf.mxu0
  %3095 = vmatprep.mubr.f32.mxu0 0.0
  %3096 = vmatmul.mubr.f32.gmra.mxu0 %v2848
  %v3097 = vpop.f32.mrf.mxu0
  %v3098 = vadd.f32 %v2784, %v3097
  %v3099 = vpop.f32.mrf.mxu0
  %3100 = vmatprep.mubr.f32.mxu0 0.0
  %3101 = vmatmul.mubr.f32.gmra.mxu0 %v2851
  %v3102 = vpop.f32.mrf.mxu0
  %v3103 = vadd.f32 %v2784, %v3102
  %v3104 = vpop.f32.mrf.mxu0
  %3105 = vmatprep.mubr.f32.mxu0 0.0
  %3106 = vmatmul.mubr.f32.gmra.mxu0 %v2854
  %v3107 = vpop.f32.mrf.mxu0
  %v3108 = vadd.f32 %v2784, %v3107
  %v3109 = vpop.f32.mrf.mxu0
  %3110 = vmatprep.mubr.f32.mxu0 0.0
  %3111 = vmatmul.mubr.f32.gmra.mxu0 %v2857
  %v3112 = vpop.f32.mrf.mxu0
  %v3113 = vadd.f32 %v2784, %v3112
  %v3114 = vpop.f32.mrf.mxu0
  %3115 = vmatprep.mubr.f32.mxu0 0.0
  %3116 = vmatmul.mubr.f32.gmra.mxu0 %v2860
  %v3117 = vpop.f32.mrf.mxu0
  %v3118 = vadd.f32 %v2784, %v3117
  %v3119 = vpop.f32.mrf.mxu0
  %3120 = vmatprep.mubr.f32.mxu0 0.0
  %3121 = vmatmul.mubr.f32.gmra.mxu0 %v2863
  %v3122 = vpop.f32.mrf.mxu0
  %v3123 = vadd.f32 %v2784, %v3122
  %v3124 = vpop.f32.mrf.mxu0
  %3125 = vmatprep.mubr.f32.mxu0 0.0
  %3126 = vmatmul.mubr.f32.gmra.mxu0 %v2866
  %v3127 = vpop.f32.mrf.mxu0
  %v3128 = vadd.f32 %v2784, %v3127
  %v3129 = vpop.f32.mrf.mxu0
  %3130 = vmatprep.mubr.f32.mxu0 0.0
  %3131 = vmatmul.mubr.f32.gmra.mxu0 %v2869
  %v3132 = vpop.f32.mrf.mxu0
  %v3133 = vadd.f32 %v2784, %v3132
  %v3134 = vpop.f32.mrf.mxu0
  %3135 = vmatprep.mubr.f32.mxu0 0.0
  %3136 = vmatmul.mubr.f32.gmra.mxu0 %v2872
  %v3137 = vpop.f32.mrf.mxu0
  %v3138 = vadd.f32 %v2784, %v3137
  %v3139 = vpop.f32.mrf.mxu0
  %3140 = vmatprep.mubr.f32.mxu0 0.0
  %3141 = vmatmul.mubr.f32.gmra.mxu0 %v2875
  %v3142 = vpop.f32.mrf.mxu0
  %v3143 = vadd.f32 %v2784, %v3142
  %v3144 = vpop.f32.mrf.mxu0
  %3145 = vmatprep.mubr.f32.mxu0 0.0
  %3146 = vmatmul.mubr.f32.gmra.mxu0 %v2878
  %v3147 = vpop.f32.mrf.mxu0
  %v3148 = vadd.f32 %v2784, %v3147
  %v3149 = vpop.f32.mrf.mxu0
  %3150 = vmatprep.mubr.f32.mxu0 0.0
  %3151 = vmatmul.mubr.f32.gmra.mxu0 %v2881
  %v3152 = vpop.f32.mrf.mxu0
  %v3153 = vadd.f32 %v2784, %v3152
  %v3154 = vpop.f32.mrf.mxu0
  %3155 = vmatprep.mubr.f32.mxu0 0.0
  %3156 = vmatmul.mubr.f32.gmra.mxu0 %v2884
  %v3157 = vpop.f32.mrf.mxu0
  %v3158 = vadd.f32 %v2784, %v3157
  %v3159 = vpop.f32.mrf.mxu0
  %3160 = vmatprep.mubr.f32.mxu0 0.0
  %3161 = vmatmul.mubr.f32.gmra.mxu0 %v2887
  %v3162 = vpop.f32.mrf.mxu0
  %v3163 = vadd.f32 %v2784, %v3162
  %v3164 = vpop.f32.mrf.mxu0
  %3165 = vmatprep.mubr.f32.mxu0 0.0
  %3166 = vmatmul.mubr.f32.gmra.mxu0 %v2890
  %v3167 = vpop.f32.mrf.mxu0
  %v3168 = vadd.f32 %v2784, %v3167
  %v3169 = vpop.f32.mrf.mxu0
  %3170 = vmatprep.mubr.f32.mxu0 0.0
  %3171 = vmatmul.mubr.f32.gmra.mxu0 %v2893
  %v3172 = vpop.f32.mrf.mxu0
  %v3173 = vadd.f32 %v2784, %v3172
  %v3174 = vpop.f32.mrf.mxu0
  %3175 = vmatprep.mubr.f32.mxu0 0.0
  %3176 = vmatmul.mubr.f32.gmra.mxu0 %v2896
  %v3177 = vpop.f32.mrf.mxu0
  %v3178 = vadd.f32 %v2784, %v3177
  %v3179 = vpop.f32.mrf.mxu0
  %3180 = vmatprep.mubr.f32.mxu0 0.0
  %3181 = vmatmul.mubr.f32.gmra.mxu0 %v2899
  %v3182 = vpop.f32.mrf.mxu0
  %v3183 = vadd.f32 %v2784, %v3182
  %v3184 = vpop.f32.mrf.mxu0
  %3185 = vmatprep.mubr.f32.mxu0 0.0
  %3186 = vmatmul.mubr.f32.gmra.mxu0 %v2902
  %v3187 = vpop.f32.mrf.mxu0
  %v3188 = vadd.f32 %v2784, %v3187
  %v3189 = vpop.f32.mrf.mxu0
  %3190 = vmatprep.mubr.f32.mxu0 0.0
  %3191 = vmatmul.mubr.f32.gmra.mxu0 %v2905
  %v3192 = vpop.f32.mrf.mxu0
  %v3193 = vadd.f32 %v2784, %v3192
  %v3194 = vpop.f32.mrf.mxu0
  %3195 = vmatprep.mubr.f32.mxu0 0.0
  %3196 = vmatmul.mubr.f32.gmra.mxu0 %v2908
  %v3197 = vpop.f32.mrf.mxu0
  %v3198 = vadd.f32 %v2784, %v3197
  %v3199 = vpop.f32.mrf.mxu0
  %3200 = vmatprep.mubr.f32.mxu0 0.0
  %3201 = vmatmul.mubr.f32.gmra.mxu0 %v2911
  %v3202 = vpop.f32.mrf.mxu0
  %v3203 = vadd.f32 %v2784, %v3202
  %v3204 = vpop.f32.mrf.mxu0
  %3205 = vmatprep.mubr.f32.mxu0 0.0
  %3206 = vmatmul.mubr.f32.gmra.mxu0 %v2914
  %v3207 = vpop.f32.mrf.mxu0
  %v3208 = vadd.f32 %v2784, %v3207
  %v3209 = vpop.f32.mrf.mxu0
  %3210 = vmatprep.mubr.f32.mxu0 0.0
  %3211 = vmatmul.mubr.f32.gmra.mxu0 %v2917
  %v3212 = vpop.f32.mrf.mxu0
  %v3213 = vadd.f32 %v2784, %v3212
  %v3214 = vpop.f32.mrf.mxu0
  %3215 = vmatprep.mubr.f32.mxu0 0.0
  %3216 = vmatmul.mubr.f32.gmra.mxu0 %v2920
  %v3217 = vpop.f32.mrf.mxu0
  %v3218 = vadd.f32 %v2784, %v3217
  %v3219 = vpop.f32.mrf.mxu0
  %3220 = vmatprep.mubr.f32.mxu0 0.0
  %3221 = vmatmul.mubr.f32.gmra.mxu0 %v2923
  %v3222 = vpop.f32.mrf.mxu0
  %v3223 = vadd.f32 %v2784, %v3222
  %v3224 = vpop.f32.mrf.mxu0
  %3225 = vmatprep.mubr.f32.mxu0 0.0
  %3226 = vmatmul.mubr.f32.gmra.mxu0 %v2926
  %v3227 = vpop.f32.mrf.mxu0
  %v3228 = vadd.f32 %v2784, %v3227
  %v3229 = vpop.f32.mrf.mxu0
  %3230 = vmatprep.mubr.f32.mxu0 0.0
  %3231 = vmatmul.mubr.f32.gmra.mxu0 %v2929
  %v3232 = vpop.f32.mrf.mxu0
  %v3233 = vadd.f32 %v2784, %v3232
  %v3234 = vpop.f32.mrf.mxu0
  %3235 = vdwg.mxu0
  %v3236 = vmax.f32 %v2998, 0.0
  %v3237 = vmax.f32 %v3003, 0.0
  %v3238 = vmax.f32 %v3008, 0.0
  %v3239 = vmax.f32 %v3013, 0.0
  %v3240 = vmax.f32 %v3018, 0.0
  %v3241 = vmax.f32 %v3023, 0.0
  %v3242 = vmax.f32 %v3028, 0.0
  %v3243 = vmax.f32 %v3033, 0.0
  %v3244 = vmax.f32 %v3038, 0.0
  %v3245 = vmax.f32 %v3043, 0.0
  %v3246 = vmax.f32 %v3048, 0.0
  %v3247 = vmax.f32 %v3053, 0.0
  %v3248 = vmax.f32 %v3058, 0.0
  %v3249 = vmax.f32 %v3063, 0.0
  %v3250 = vmax.f32 %v3068, 0.0
  %v3251 = vmax.f32 %v3073, 0.0
  %v3252 = vmax.f32 %v3078, 0.0
  %v3253 = vmax.f32 %v3083, 0.0
  %v3254 = vmax.f32 %v3088, 0.0
  %v3255 = vmax.f32 %v3093, 0.0
  %v3256 = vmax.f32 %v3098, 0.0
  %v3257 = vmax.f32 %v3103, 0.0
  %v3258 = vmax.f32 %v3108, 0.0
  %v3259 = vmax.f32 %v3113, 0.0
  %v3260 = vmax.f32 %v3118, 0.0
  %v3261 = vmax.f32 %v3123, 0.0
  %v3262 = vmax.f32 %v3128, 0.0
  %v3263 = vmax.f32 %v3133, 0.0
  %v3264 = vmax.f32 %v3138, 0.0
  %v3265 = vmax.f32 %v3143, 0.0
  %v3266 = vmax.f32 %v3148, 0.0
  %v3267 = vmax.f32 %v3153, 0.0
  %v3268 = vmax.f32 %v3158, 0.0
  %v3269 = vmax.f32 %v3163, 0.0
  %v3270 = vmax.f32 %v3168, 0.0
  %v3271 = vmax.f32 %v3173, 0.0
  %v3272 = vmax.f32 %v3178, 0.0
  %v3273 = vmax.f32 %v3183, 0.0
  %v3274 = vmax.f32 %v3188, 0.0
  %v3275 = vmax.f32 %v3193, 0.0
  %v3276 = vmax.f32 %v3198, 0.0
  %v3277 = vmax.f32 %v3203, 0.0
  %v3278 = vmax.f32 %v3208, 0.0
  %v3279 = vmax.f32 %v3213, 0.0
  %v3280 = vmax.f32 %v3218, 0.0
  %v3281 = vmax.f32 %v3223, 0.0
  %v3282 = vmax.f32 %v3228, 0.0
  %v3283 = vmax.f32 %v3233, 0.0
  %v3284 = vld [vmem:[%s8] sm:$0xff]
  %v3285 = vld [vmem:[%s8 + $0x8] sm:$0xff]
  %v3286 = vld [vmem:[%s8 + $0x10] sm:$0xff]
  %v3287 = vld [vmem:[%s8 + $0x18] sm:$0xff]
  %v3288 = vld [vmem:[%s8 + $0x20] sm:$0xff]
  %v3289 = vld [vmem:[%s8 + $0x28] sm:$0xff]
  %v3290 = vld [vmem:[%s8 + $0x30] sm:$0xff]
  %v3291 = vld [vmem:[%s8 + $0x38] sm:$0xff]
  %v3292 = vld [vmem:[%s9] sm:$0x1]
  %v3294 = vlaneseq
  %v3295 = vshrl.u32 %v3294, 7
  %v3296 = vsub.s32 0, %v3295
  %v3297 = vrot.slane %v3292, %v3296
  %v3300 = vsel %vm2786, %v3236, 0
  %v3303 = vsel %vm2786, %v3237, 0
  %v3306 = vsel %vm2786, %v3238, 0
  %v3309 = vsel %vm2786, %v3239, 0
  %v3312 = vsel %vm2786, %v3240, 0
  %v3315 = vsel %vm2786, %v3241, 0
  %v3318 = vsel %vm2786, %v3242, 0
  %v3321 = vsel %vm2786, %v3243, 0
  %v3324 = vsel %vm2786, %v3244, 0
  %v3327 = vsel %vm2786, %v3245, 0
  %v3330 = vsel %vm2786, %v3246, 0
  %v3333 = vsel %vm2786, %v3247, 0
  %v3336 = vsel %vm2786, %v3248, 0
  %v3339 = vsel %vm2786, %v3249, 0
  %v3342 = vsel %vm2786, %v3250, 0
  %v3345 = vsel %vm2786, %v3251, 0
  %v3348 = vsel %vm2786, %v3252, 0
  %v3351 = vsel %vm2786, %v3253, 0
  %v3354 = vsel %vm2786, %v3254, 0
  %v3357 = vsel %vm2786, %v3255, 0
  %v3360 = vsel %vm2786, %v3256, 0
  %v3363 = vsel %vm2786, %v3257, 0
  %v3366 = vsel %vm2786, %v3258, 0
  %v3369 = vsel %vm2786, %v3259, 0
  %v3372 = vsel %vm2786, %v3260, 0
  %v3375 = vsel %vm2786, %v3261, 0
  %v3378 = vsel %vm2786, %v3262, 0
  %v3381 = vsel %vm2786, %v3263, 0
  %v3384 = vsel %vm2786, %v3264, 0
  %v3387 = vsel %vm2786, %v3265, 0
  %v3390 = vsel %vm2786, %v3266, 0
  %v3393 = vsel %vm2786, %v3267, 0
  %v3396 = vsel %vm2786, %v3268, 0
  %v3399 = vsel %vm2786, %v3269, 0
  %v3402 = vsel %vm2786, %v3270, 0
  %v3405 = vsel %vm2786, %v3271, 0
  %v3408 = vsel %vm2786, %v3272, 0
  %v3411 = vsel %vm2786, %v3273, 0
  %v3414 = vsel %vm2786, %v3274, 0
  %v3417 = vsel %vm2786, %v3275, 0
  %v3420 = vsel %vm2786, %v3276, 0
  %v3423 = vsel %vm2786, %v3277, 0
  %v3426 = vsel %vm2786, %v3278, 0
  %v3429 = vsel %vm2786, %v3279, 0
  %v3432 = vsel %vm2786, %v3280, 0
  %v3435 = vsel %vm2786, %v3281, 0
  %v3438 = vsel %vm2786, %v3282, 0
  %v3441 = vsel %vm2786, %v3283, 0
  %3443 = vmatprep.subr.mxu0 0.0
  %3444 = vmatpush1.msra.mxu0 0.0
  %3445 = vmatprep.subr.mxu0 0.0
  %3446 = vmatpush1.msra.mxu0 0.0
  %3447 = vmatprep.subr.mxu0 0.0
  %3448 = vmatpush1.msra.mxu0 0.0
  %3449 = vmatprep.subr.mxu0 0.0
  %3450 = vmatpush1.msra.mxu0 0.0
  %3451 = vmatprep.subr.mxu0 0.0
  %3452 = vmatpush1.msra.mxu0 0.0
  %3453 = vmatprep.subr.mxu0 0.0
  %3454 = vmatpush1.msra.mxu0 0.0
  %3455 = vmatprep.subr.mxu0 0.0
  %3456 = vmatpush1.msra.mxu0 0.0
  %3457 = vmatprep.subr.mxu0 0.0
  %3458 = vmatpush1.msra.mxu0 0.0
  %3459 = vmatprep.subr.mxu0 0.0
  %3460 = vmatpush1.msra.mxu0 %v3291
  %3461 = vmatprep.subr.mxu0 0.0
  %3462 = vmatpush1.msra.mxu0 %v3290
  %3463 = vmatprep.subr.mxu0 0.0
  %3464 = vmatpush1.msra.mxu0 %v3289
  %3465 = vmatprep.subr.mxu0 0.0
  %3466 = vmatpush1.msra.mxu0 %v3288
  %3467 = vmatprep.subr.mxu0 0.0
  %3468 = vmatpush1.msra.mxu0 %v3287
  %3469 = vmatprep.subr.mxu0 0.0
  %3470 = vmatpush1.msra.mxu0 %v3286
  %3471 = vmatprep.subr.mxu0 0.0
  %3472 = vmatpush1.msra.mxu0 %v3285
  %3473 = vmatprep.subr.mxu0 0.0
  %3474 = vmatpush1.msra.mxu0 %v3284
  %3475 = vmatprep.subr.mxu0 0.0
  %3476 = vmatpush2.msra.mxu0 0.0
  %3477 = vmatprep.subr.mxu0 0.0
  %3478 = vmatpush2.msra.mxu0 0.0
  %3479 = vmatprep.subr.mxu0 0.0
  %3480 = vmatpush2.msra.mxu0 0.0
  %3481 = vmatprep.subr.mxu0 0.0
  %3482 = vmatpush2.msra.mxu0 0.0
  %3483 = vmatprep.subr.mxu0 0.0
  %3484 = vmatpush2.msra.mxu0 0.0
  %3485 = vmatprep.subr.mxu0 0.0
  %3486 = vmatpush2.msra.mxu0 0.0
  %3487 = vmatprep.subr.mxu0 0.0
  %3488 = vmatpush2.msra.mxu0 0.0
  %3489 = vmatprep.subr.mxu0 0.0
  %3490 = vmatpush2.msra.mxu0 0.0
  %3491 = vmatprep.subr.mxu0 0.0
  %3492 = vmatpush2.msra.mxu0 0.0
  %3493 = vmatprep.subr.mxu0 0.0
  %3494 = vmatpush2.msra.mxu0 0.0
  %3495 = vmatprep.subr.mxu0 0.0
  %3496 = vmatpush2.msra.mxu0 0.0
  %3497 = vmatprep.subr.mxu0 0.0
  %3498 = vmatpush2.msra.mxu0 0.0
  %3499 = vmatprep.subr.mxu0 0.0
  %3500 = vmatpush2.msra.mxu0 0.0
  %3501 = vmatprep.subr.mxu0 0.0
  %3502 = vmatpush2.msra.mxu0 0.0
  %3503 = vmatprep.subr.mxu0 0.0
  %3504 = vmatpush2.msra.mxu0 0.0
  %3505 = vmatprep.subr.mxu0 0.0
  %3506 = vmatpush2.msra.mxu0 0.0
  %3507 = vmatprep.mubr.f32.mxu0 0.0
  %3508 = vmatmul.mubr.f32.gmra.mxu0 %v3300
  %v3509 = vpop.f32.mrf.mxu0
  %v3510 = vadd.f32 %v3297, %v3509
  %v3511 = vpop.f32.mrf.mxu0
  %3512 = vmatprep.mubr.f32.mxu0 0.0
  %3513 = vmatmul.mubr.f32.gmra.mxu0 %v3303
  %v3514 = vpop.f32.mrf.mxu0
  %v3515 = vadd.f32 %v3297, %v3514
  %v3516 = vpop.f32.mrf.mxu0
  %3517 = vmatprep.mubr.f32.mxu0 0.0
  %3518 = vmatmul.mubr.f32.gmra.mxu0 %v3306
  %v3519 = vpop.f32.mrf.mxu0
  %v3520 = vadd.f32 %v3297, %v3519
  %v3521 = vpop.f32.mrf.mxu0
  %3522 = vmatprep.mubr.f32.mxu0 0.0
  %3523 = vmatmul.mubr.f32.gmra.mxu0 %v3309
  %v3524 = vpop.f32.mrf.mxu0
  %v3525 = vadd.f32 %v3297, %v3524
  %v3526 = vpop.f32.mrf.mxu0
  %3527 = vmatprep.mubr.f32.mxu0 0.0
  %3528 = vmatmul.mubr.f32.gmra.mxu0 %v3312
  %v3529 = vpop.f32.mrf.mxu0
  %v3530 = vadd.f32 %v3297, %v3529
  %v3531 = vpop.f32.mrf.mxu0
  %3532 = vmatprep.mubr.f32.mxu0 0.0
  %3533 = vmatmul.mubr.f32.gmra.mxu0 %v3315
  %v3534 = vpop.f32.mrf.mxu0
  %v3535 = vadd.f32 %v3297, %v3534
  %v3536 = vpop.f32.mrf.mxu0
  %3537 = vmatprep.mubr.f32.mxu0 0.0
  %3538 = vmatmul.mubr.f32.gmra.mxu0 %v3318
  %v3539 = vpop.f32.mrf.mxu0
  %v3540 = vadd.f32 %v3297, %v3539
  %v3541 = vpop.f32.mrf.mxu0
  %3542 = vmatprep.mubr.f32.mxu0 0.0
  %3543 = vmatmul.mubr.f32.gmra.mxu0 %v3321
  %v3544 = vpop.f32.mrf.mxu0
  %v3545 = vadd.f32 %v3297, %v3544
  %v3546 = vpop.f32.mrf.mxu0
  %3547 = vmatprep.mubr.f32.mxu0 0.0
  %3548 = vmatmul.mubr.f32.gmra.mxu0 %v3324
  %v3549 = vpop.f32.mrf.mxu0
  %v3550 = vadd.f32 %v3297, %v3549
  %v3551 = vpop.f32.mrf.mxu0
  %3552 = vmatprep.mubr.f32.mxu0 0.0
  %3553 = vmatmul.mubr.f32.gmra.mxu0 %v3327
  %v3554 = vpop.f32.mrf.mxu0
  %v3555 = vadd.f32 %v3297, %v3554
  %v3556 = vpop.f32.mrf.mxu0
  %3557 = vmatprep.mubr.f32.mxu0 0.0
  %3558 = vmatmul.mubr.f32.gmra.mxu0 %v3330
  %v3559 = vpop.f32.mrf.mxu0
  %v3560 = vadd.f32 %v3297, %v3559
  %v3561 = vpop.f32.mrf.mxu0
  %3562 = vmatprep.mubr.f32.mxu0 0.0
  %3563 = vmatmul.mubr.f32.gmra.mxu0 %v3333
  %v3564 = vpop.f32.mrf.mxu0
  %v3565 = vadd.f32 %v3297, %v3564
  %v3566 = vpop.f32.mrf.mxu0
  %3567 = vmatprep.mubr.f32.mxu0 0.0
  %3568 = vmatmul.mubr.f32.gmra.mxu0 %v3336
  %v3569 = vpop.f32.mrf.mxu0
  %v3570 = vadd.f32 %v3297, %v3569
  %v3571 = vpop.f32.mrf.mxu0
  %3572 = vmatprep.mubr.f32.mxu0 0.0
  %3573 = vmatmul.mubr.f32.gmra.mxu0 %v3339
  %v3574 = vpop.f32.mrf.mxu0
  %v3575 = vadd.f32 %v3297, %v3574
  %v3576 = vpop.f32.mrf.mxu0
  %3577 = vmatprep.mubr.f32.mxu0 0.0
  %3578 = vmatmul.mubr.f32.gmra.mxu0 %v3342
  %v3579 = vpop.f32.mrf.mxu0
  %v3580 = vadd.f32 %v3297, %v3579
  %v3581 = vpop.f32.mrf.mxu0
  %3582 = vmatprep.mubr.f32.mxu0 0.0
  %3583 = vmatmul.mubr.f32.gmra.mxu0 %v3345
  %v3584 = vpop.f32.mrf.mxu0
  %v3585 = vadd.f32 %v3297, %v3584
  %v3586 = vpop.f32.mrf.mxu0
  %3587 = vmatprep.mubr.f32.mxu0 0.0
  %3588 = vmatmul.mubr.f32.gmra.mxu0 %v3348
  %v3589 = vpop.f32.mrf.mxu0
  %v3590 = vadd.f32 %v3297, %v3589
  %v3591 = vpop.f32.mrf.mxu0
  %3592 = vmatprep.mubr.f32.mxu0 0.0
  %3593 = vmatmul.mubr.f32.gmra.mxu0 %v3351
  %v3594 = vpop.f32.mrf.mxu0
  %v3595 = vadd.f32 %v3297, %v3594
  %v3596 = vpop.f32.mrf.mxu0
  %3597 = vmatprep.mubr.f32.mxu0 0.0
  %3598 = vmatmul.mubr.f32.gmra.mxu0 %v3354
  %v3599 = vpop.f32.mrf.mxu0
  %v3600 = vadd.f32 %v3297, %v3599
  %v3601 = vpop.f32.mrf.mxu0
  %3602 = vmatprep.mubr.f32.mxu0 0.0
  %3603 = vmatmul.mubr.f32.gmra.mxu0 %v3357
  %v3604 = vpop.f32.mrf.mxu0
  %v3605 = vadd.f32 %v3297, %v3604
  %v3606 = vpop.f32.mrf.mxu0
  %3607 = vmatprep.mubr.f32.mxu0 0.0
  %3608 = vmatmul.mubr.f32.gmra.mxu0 %v3360
  %v3609 = vpop.f32.mrf.mxu0
  %v3610 = vadd.f32 %v3297, %v3609
  %v3611 = vpop.f32.mrf.mxu0
  %3612 = vmatprep.mubr.f32.mxu0 0.0
  %3613 = vmatmul.mubr.f32.gmra.mxu0 %v3363
  %v3614 = vpop.f32.mrf.mxu0
  %v3615 = vadd.f32 %v3297, %v3614
  %v3616 = vpop.f32.mrf.mxu0
  %3617 = vmatprep.mubr.f32.mxu0 0.0
  %3618 = vmatmul.mubr.f32.gmra.mxu0 %v3366
  %v3619 = vpop.f32.mrf.mxu0
  %v3620 = vadd.f32 %v3297, %v3619
  %v3621 = vpop.f32.mrf.mxu0
  %3622 = vmatprep.mubr.f32.mxu0 0.0
  %3623 = vmatmul.mubr.f32.gmra.mxu0 %v3369
  %v3624 = vpop.f32.mrf.mxu0
  %v3625 = vadd.f32 %v3297, %v3624
  %v3626 = vpop.f32.mrf.mxu0
  %3627 = vmatprep.mubr.f32.mxu0 0.0
  %3628 = vmatmul.mubr.f32.gmra.mxu0 %v3372
  %v3629 = vpop.f32.mrf.mxu0
  %v3630 = vadd.f32 %v3297, %v3629
  %v3631 = vpop.f32.mrf.mxu0
  %3632 = vmatprep.mubr.f32.mxu0 0.0
  %3633 = vmatmul.mubr.f32.gmra.mxu0 %v3375
  %v3634 = vpop.f32.mrf.mxu0
  %v3635 = vadd.f32 %v3297, %v3634
  %v3636 = vpop.f32.mrf.mxu0
  %3637 = vmatprep.mubr.f32.mxu0 0.0
  %3638 = vmatmul.mubr.f32.gmra.mxu0 %v3378
  %v3639 = vpop.f32.mrf.mxu0
  %v3640 = vadd.f32 %v3297, %v3639
  %v3641 = vpop.f32.mrf.mxu0
  %3642 = vmatprep.mubr.f32.mxu0 0.0
  %3643 = vmatmul.mubr.f32.gmra.mxu0 %v3381
  %v3644 = vpop.f32.mrf.mxu0
  %v3645 = vadd.f32 %v3297, %v3644
  %v3646 = vpop.f32.mrf.mxu0
  %3647 = vmatprep.mubr.f32.mxu0 0.0
  %3648 = vmatmul.mubr.f32.gmra.mxu0 %v3384
  %v3649 = vpop.f32.mrf.mxu0
  %v3650 = vadd.f32 %v3297, %v3649
  %v3651 = vpop.f32.mrf.mxu0
  %3652 = vmatprep.mubr.f32.mxu0 0.0
  %3653 = vmatmul.mubr.f32.gmra.mxu0 %v3387
  %v3654 = vpop.f32.mrf.mxu0
  %v3655 = vadd.f32 %v3297, %v3654
  %v3656 = vpop.f32.mrf.mxu0
  %3657 = vmatprep.mubr.f32.mxu0 0.0
  %3658 = vmatmul.mubr.f32.gmra.mxu0 %v3390
  %v3659 = vpop.f32.mrf.mxu0
  %v3660 = vadd.f32 %v3297, %v3659
  %v3661 = vpop.f32.mrf.mxu0
  %3662 = vmatprep.mubr.f32.mxu0 0.0
  %3663 = vmatmul.mubr.f32.gmra.mxu0 %v3393
  %v3664 = vpop.f32.mrf.mxu0
  %v3665 = vadd.f32 %v3297, %v3664
  %v3666 = vpop.f32.mrf.mxu0
  %3667 = vmatprep.mubr.f32.mxu0 0.0
  %3668 = vmatmul.mubr.f32.gmra.mxu0 %v3396
  %v3669 = vpop.f32.mrf.mxu0
  %v3670 = vadd.f32 %v3297, %v3669
  %v3671 = vpop.f32.mrf.mxu0
  %3672 = vmatprep.mubr.f32.mxu0 0.0
  %3673 = vmatmul.mubr.f32.gmra.mxu0 %v3399
  %v3674 = vpop.f32.mrf.mxu0
  %v3675 = vadd.f32 %v3297, %v3674
  %v3676 = vpop.f32.mrf.mxu0
  %3677 = vmatprep.mubr.f32.mxu0 0.0
  %3678 = vmatmul.mubr.f32.gmra.mxu0 %v3402
  %v3679 = vpop.f32.mrf.mxu0
  %v3680 = vadd.f32 %v3297, %v3679
  %v3681 = vpop.f32.mrf.mxu0
  %3682 = vmatprep.mubr.f32.mxu0 0.0
  %3683 = vmatmul.mubr.f32.gmra.mxu0 %v3405
  %v3684 = vpop.f32.mrf.mxu0
  %v3685 = vadd.f32 %v3297, %v3684
  %v3686 = vpop.f32.mrf.mxu0
  %3687 = vmatprep.mubr.f32.mxu0 0.0
  %3688 = vmatmul.mubr.f32.gmra.mxu0 %v3408
  %v3689 = vpop.f32.mrf.mxu0
  %v3690 = vadd.f32 %v3297, %v3689
  %v3691 = vpop.f32.mrf.mxu0
  %3692 = vmatprep.mubr.f32.mxu0 0.0
  %3693 = vmatmul.mubr.f32.gmra.mxu0 %v3411
  %v3694 = vpop.f32.mrf.mxu0
  %v3695 = vadd.f32 %v3297, %v3694
  %v3696 = vpop.f32.mrf.mxu0
  %3697 = vmatprep.mubr.f32.mxu0 0.0
  %3698 = vmatmul.mubr.f32.gmra.mxu0 %v3414
  %v3699 = vpop.f32.mrf.mxu0
  %v3700 = vadd.f32 %v3297, %v3699
  %v3701 = vpop.f32.mrf.mxu0
  %3702 = vmatprep.mubr.f32.mxu0 0.0
  %3703 = vmatmul.mubr.f32.gmra.mxu0 %v3417
  %v3704 = vpop.f32.mrf.mxu0
  %v3705 = vadd.f32 %v3297, %v3704
  %v3706 = vpop.f32.mrf.mxu0
  %3707 = vmatprep.mubr.f32.mxu0 0.0
  %3708 = vmatmul.mubr.f32.gmra.mxu0 %v3420
  %v3709 = vpop.f32.mrf.mxu0
  %v3710 = vadd.f32 %v3297, %v3709
  %v3711 = vpop.f32.mrf.mxu0
  %3712 = vmatprep.mubr.f32.mxu0 0.0
  %3713 = vmatmul.mubr.f32.gmra.mxu0 %v3423
  %v3714 = vpop.f32.mrf.mxu0
  %v3715 = vadd.f32 %v3297, %v3714
  %v3716 = vpop.f32.mrf.mxu0
  %3717 = vmatprep.mubr.f32.mxu0 0.0
  %3718 = vmatmul.mubr.f32.gmra.mxu0 %v3426
  %v3719 = vpop.f32.mrf.mxu0
  %v3720 = vadd.f32 %v3297, %v3719
  %v3721 = vpop.f32.mrf.mxu0
  %3722 = vmatprep.mubr.f32.mxu0 0.0
  %3723 = vmatmul.mubr.f32.gmra.mxu0 %v3429
  %v3724 = vpop.f32.mrf.mxu0
  %v3725 = vadd.f32 %v3297, %v3724
  %v3726 = vpop.f32.mrf.mxu0
  %3727 = vmatprep.mubr.f32.mxu0 0.0
  %3728 = vmatmul.mubr.f32.gmra.mxu0 %v3432
  %v3729 = vpop.f32.mrf.mxu0
  %v3730 = vadd.f32 %v3297, %v3729
  %v3731 = vpop.f32.mrf.mxu0
  %3732 = vmatprep.mubr.f32.mxu0 0.0
  %3733 = vmatmul.mubr.f32.gmra.mxu0 %v3435
  %v3734 = vpop.f32.mrf.mxu0
  %v3735 = vadd.f32 %v3297, %v3734
  %v3736 = vpop.f32.mrf.mxu0
  %3737 = vmatprep.mubr.f32.mxu0 0.0
  %3738 = vmatmul.mubr.f32.gmra.mxu0 %v3438
  %v3739 = vpop.f32.mrf.mxu0
  %v3740 = vadd.f32 %v3297, %v3739
  %v3741 = vpop.f32.mrf.mxu0
  %3742 = vmatprep.mubr.f32.mxu0 0.0
  %3743 = vmatmul.mubr.f32.gmra.mxu0 %v3441
  %v3744 = vpop.f32.mrf.mxu0
  %v3745 = vadd.f32 %v3297, %v3744
  %v3746 = vpop.f32.mrf.mxu0
  %3747 = vdwg.mxu0
  %v3748 = vmax.f32 %v3510, 0.0
  %v3749 = vmax.f32 %v3515, 0.0
  %v3750 = vmax.f32 %v3520, 0.0
  %v3751 = vmax.f32 %v3525, 0.0
  %v3752 = vmax.f32 %v3530, 0.0
  %v3753 = vmax.f32 %v3535, 0.0
  %v3754 = vmax.f32 %v3540, 0.0
  %v3755 = vmax.f32 %v3545, 0.0
  %v3756 = vmax.f32 %v3550, 0.0
  %v3757 = vmax.f32 %v3555, 0.0
  %v3758 = vmax.f32 %v3560, 0.0
  %v3759 = vmax.f32 %v3565, 0.0
  %v3760 = vmax.f32 %v3570, 0.0
  %v3761 = vmax.f32 %v3575, 0.0
  %v3762 = vmax.f32 %v3580, 0.0
  %v3763 = vmax.f32 %v3585, 0.0
  %v3764 = vmax.f32 %v3590, 0.0
  %v3765 = vmax.f32 %v3595, 0.0
  %v3766 = vmax.f32 %v3600, 0.0
  %v3767 = vmax.f32 %v3605, 0.0
  %v3768 = vmax.f32 %v3610, 0.0
  %v3769 = vmax.f32 %v3615, 0.0
  %v3770 = vmax.f32 %v3620, 0.0
  %v3771 = vmax.f32 %v3625, 0.0
  %v3772 = vmax.f32 %v3630, 0.0
  %v3773 = vmax.f32 %v3635, 0.0
  %v3774 = vmax.f32 %v3640, 0.0
  %v3775 = vmax.f32 %v3645, 0.0
  %v3776 = vmax.f32 %v3650, 0.0
  %v3777 = vmax.f32 %v3655, 0.0
  %v3778 = vmax.f32 %v3660, 0.0
  %v3779 = vmax.f32 %v3665, 0.0
  %v3780 = vmax.f32 %v3670, 0.0
  %v3781 = vmax.f32 %v3675, 0.0
  %v3782 = vmax.f32 %v3680, 0.0
  %v3783 = vmax.f32 %v3685, 0.0
  %v3784 = vmax.f32 %v3690, 0.0
  %v3785 = vmax.f32 %v3695, 0.0
  %v3786 = vmax.f32 %v3700, 0.0
  %v3787 = vmax.f32 %v3705, 0.0
  %v3788 = vmax.f32 %v3710, 0.0
  %v3789 = vmax.f32 %v3715, 0.0
  %v3790 = vmax.f32 %v3720, 0.0
  %v3791 = vmax.f32 %v3725, 0.0
  %v3792 = vmax.f32 %v3730, 0.0
  %v3793 = vmax.f32 %v3735, 0.0
  %v3794 = vmax.f32 %v3740, 0.0
  %v3795 = vmax.f32 %v3745, 0.0
  %v3796 = vld [vmem:[%s1] sm:$0xff]
  %v3797 = vld [vmem:[%s1 + $0x8] sm:$0xff]
  %v3798 = vld [vmem:[%s1 + $0x10] sm:$0xff]
  %v3799 = vld [vmem:[%s1 + $0x18] sm:$0xff]
  %v3800 = vld [vmem:[%s1 + $0x20] sm:$0xff]
  %v3801 = vld [vmem:[%s1 + $0x28] sm:$0xff]
  %v3802 = vld [vmem:[%s1 + $0x30] sm:$0xff]
  %v3803 = vld [vmem:[%s1 + $0x38] sm:$0xff]
  %v3804 = vld [vmem:[%s1 + $0x40] sm:$0xff]
  %v3805 = vld [vmem:[%s1 + $0x48] sm:$0xff]
  %v3806 = vld [vmem:[%s1 + $0x50] sm:$0xff]
  %v3807 = vld [vmem:[%s1 + $0x58] sm:$0xff]
  %v3808 = vld [vmem:[%s1 + $0x60] sm:$0xff]
  %v3809 = vld [vmem:[%s1 + $0x68] sm:$0xff]
  %v3810 = vld [vmem:[%s1 + $0x70] sm:$0xff]
  %v3811 = vld [vmem:[%s1 + $0x78] sm:$0xff]
  %v3812 = vld [vmem:[%s1 + $0x80] sm:$0xff]
  %v3813 = vld [vmem:[%s1 + $0x88] sm:$0xff]
  %v3814 = vld [vmem:[%s1 + $0x90] sm:$0xff]
  %v3815 = vld [vmem:[%s1 + $0x98] sm:$0xff]
  %v3816 = vld [vmem:[%s1 + $0xa0] sm:$0xff]
  %v3817 = vld [vmem:[%s1 + $0xa8] sm:$0xff]
  %v3818 = vld [vmem:[%s1 + $0xb0] sm:$0xff]
  %v3819 = vld [vmem:[%s1 + $0xb8] sm:$0xff]
  %v3820 = vld [vmem:[%s1 + $0xc0] sm:$0xff]
  %v3821 = vld [vmem:[%s1 + $0xc8] sm:$0xff]
  %v3822 = vld [vmem:[%s1 + $0xd0] sm:$0xff]
  %v3823 = vld [vmem:[%s1 + $0xd8] sm:$0xff]
  %v3824 = vld [vmem:[%s1 + $0xe0] sm:$0xff]
  %v3825 = vld [vmem:[%s1 + $0xe8] sm:$0xff]
  %v3826 = vld [vmem:[%s1 + $0xf0] sm:$0xff]
  %v3827 = vld [vmem:[%s1 + $0xf8] sm:$0xff]
  %v3828 = vld [vmem:[%s1 + $0x100] sm:$0xff]
  %v3829 = vld [vmem:[%s1 + $0x108] sm:$0xff]
  %v3830 = vld [vmem:[%s1 + $0x110] sm:$0xff]
  %v3831 = vld [vmem:[%s1 + $0x118] sm:$0xff]
  %v3832 = vld [vmem:[%s1 + $0x120] sm:$0xff]
  %v3833 = vld [vmem:[%s1 + $0x128] sm:$0xff]
  %v3834 = vld [vmem:[%s1 + $0x130] sm:$0xff]
  %v3835 = vld [vmem:[%s1 + $0x138] sm:$0xff]
  %v3836 = vld [vmem:[%s1 + $0x140] sm:$0xff]
  %v3837 = vld [vmem:[%s1 + $0x148] sm:$0xff]
  %v3838 = vld [vmem:[%s1 + $0x150] sm:$0xff]
  %v3839 = vld [vmem:[%s1 + $0x158] sm:$0xff]
  %v3840 = vld [vmem:[%s1 + $0x160] sm:$0xff]
  %v3841 = vld [vmem:[%s1 + $0x168] sm:$0xff]
  %v3842 = vld [vmem:[%s1 + $0x170] sm:$0xff]
  %v3843 = vld [vmem:[%s1 + $0x178] sm:$0xff]
  %v3844 = vmul.f32 %v3748, %v3796
  %v3845 = vmul.f32 %v3749, %v3797
  %v3846 = vmul.f32 %v3750, %v3798
  %v3847 = vmul.f32 %v3751, %v3799
  %v3848 = vmul.f32 %v3752, %v3800
  %v3849 = vmul.f32 %v3753, %v3801
  %v3850 = vmul.f32 %v3754, %v3802
  %v3851 = vmul.f32 %v3755, %v3803
  %v3852 = vmul.f32 %v3756, %v3804
  %v3853 = vmul.f32 %v3757, %v3805
  %v3854 = vmul.f32 %v3758, %v3806
  %v3855 = vmul.f32 %v3759, %v3807
  %v3856 = vmul.f32 %v3760, %v3808
  %v3857 = vmul.f32 %v3761, %v3809
  %v3858 = vmul.f32 %v3762, %v3810
  %v3859 = vmul.f32 %v3763, %v3811
  %v3860 = vmul.f32 %v3764, %v3812
  %v3861 = vmul.f32 %v3765, %v3813
  %v3862 = vmul.f32 %v3766, %v3814
  %v3863 = vmul.f32 %v3767, %v3815
  %v3864 = vmul.f32 %v3768, %v3816
  %v3865 = vmul.f32 %v3769, %v3817
  %v3866 = vmul.f32 %v3770, %v3818
  %v3867 = vmul.f32 %v3771, %v3819
  %v3868 = vmul.f32 %v3772, %v3820
  %v3869 = vmul.f32 %v3773, %v3821
  %v3870 = vmul.f32 %v3774, %v3822
  %v3871 = vmul.f32 %v3775, %v3823
  %v3872 = vmul.f32 %v3776, %v3824
  %v3873 = vmul.f32 %v3777, %v3825
  %v3874 = vmul.f32 %v3778, %v3826
  %v3875 = vmul.f32 %v3779, %v3827
  %v3876 = vmul.f32 %v3780, %v3828
  %v3877 = vmul.f32 %v3781, %v3829
  %v3878 = vmul.f32 %v3782, %v3830
  %v3879 = vmul.f32 %v3783, %v3831
  %v3880 = vmul.f32 %v3784, %v3832
  %v3881 = vmul.f32 %v3785, %v3833
  %v3882 = vmul.f32 %v3786, %v3834
  %v3883 = vmul.f32 %v3787, %v3835
  %v3884 = vmul.f32 %v3788, %v3836
  %v3885 = vmul.f32 %v3789, %v3837
  %v3886 = vmul.f32 %v3790, %v3838
  %v3887 = vmul.f32 %v3791, %v3839
  %v3888 = vmul.f32 %v3792, %v3840
  %v3889 = vmul.f32 %v3793, %v3841
  %v3890 = vmul.f32 %v3794, %v3842
  %v3891 = vmul.f32 %v3795, %v3843
  %v3892 = vld [vmem:[%s10] sm:$0xff]
  %v3893 = vld [vmem:[%s10 + $0x8] sm:$0xff]
  %v3894 = vld [vmem:[%s10 + $0x10] sm:$0xff]
  %v3895 = vld [vmem:[%s10 + $0x18] sm:$0xff]
  %v3896 = vld [vmem:[%s10 + $0x20] sm:$0xff]
  %v3897 = vld [vmem:[%s10 + $0x28] sm:$0xff]
  %v3898 = vld [vmem:[%s10 + $0x30] sm:$0xff]
  %v3899 = vld [vmem:[%s10 + $0x38] sm:$0xff]
  %v3901 = vsel %vm2786, %v3844, 0
  %v3904 = vsel %vm2786, %v3845, 0
  %v3907 = vsel %vm2786, %v3846, 0
  %v3910 = vsel %vm2786, %v3847, 0
  %v3913 = vsel %vm2786, %v3848, 0
  %v3916 = vsel %vm2786, %v3849, 0
  %v3919 = vsel %vm2786, %v3850, 0
  %v3922 = vsel %vm2786, %v3851, 0
  %v3925 = vsel %vm2786, %v3852, 0
  %v3928 = vsel %vm2786, %v3853, 0
  %v3931 = vsel %vm2786, %v3854, 0
  %v3934 = vsel %vm2786, %v3855, 0
  %v3937 = vsel %vm2786, %v3856, 0
  %v3940 = vsel %vm2786, %v3857, 0
  %v3943 = vsel %vm2786, %v3858, 0
  %v3946 = vsel %vm2786, %v3859, 0
  %v3949 = vsel %vm2786, %v3860, 0
  %v3952 = vsel %vm2786, %v3861, 0
  %v3955 = vsel %vm2786, %v3862, 0
  %v3958 = vsel %vm2786, %v3863, 0
  %v3961 = vsel %vm2786, %v3864, 0
  %v3964 = vsel %vm2786, %v3865, 0
  %v3967 = vsel %vm2786, %v3866, 0
  %v3970 = vsel %vm2786, %v3867, 0
  %v3973 = vsel %vm2786, %v3868, 0
  %v3976 = vsel %vm2786, %v3869, 0
  %v3979 = vsel %vm2786, %v3870, 0
  %v3982 = vsel %vm2786, %v3871, 0
  %v3985 = vsel %vm2786, %v3872, 0
  %v3988 = vsel %vm2786, %v3873, 0
  %v3991 = vsel %vm2786, %v3874, 0
  %v3994 = vsel %vm2786, %v3875, 0
  %v3997 = vsel %vm2786, %v3876, 0
  %v4000 = vsel %vm2786, %v3877, 0
  %v4003 = vsel %vm2786, %v3878, 0
  %v4006 = vsel %vm2786, %v3879, 0
  %v4009 = vsel %vm2786, %v3880, 0
  %v4012 = vsel %vm2786, %v3881, 0
  %v4015 = vsel %vm2786, %v3882, 0
  %v4018 = vsel %vm2786, %v3883, 0
  %v4021 = vsel %vm2786, %v3884, 0
  %v4024 = vsel %vm2786, %v3885, 0
  %v4027 = vsel %vm2786, %v3886, 0
  %v4030 = vsel %vm2786, %v3887, 0
  %v4033 = vsel %vm2786, %v3888, 0
  %v4036 = vsel %vm2786, %v3889, 0
  %v4039 = vsel %vm2786, %v3890, 0
  %v4042 = vsel %vm2786, %v3891, 0
  %4044 = vmatprep.subr.mxu0 0.0
  %4045 = vmatpush1.msra.mxu0 0.0
  %4046 = vmatprep.subr.mxu0 0.0
  %4047 = vmatpush1.msra.mxu0 0.0
  %4048 = vmatprep.subr.mxu0 0.0
  %4049 = vmatpush1.msra.mxu0 0.0
  %4050 = vmatprep.subr.mxu0 0.0
  %4051 = vmatpush1.msra.mxu0 0.0
  %4052 = vmatprep.subr.mxu0 0.0
  %4053 = vmatpush1.msra.mxu0 0.0
  %4054 = vmatprep.subr.mxu0 0.0
  %4055 = vmatpush1.msra.mxu0 0.0
  %4056 = vmatprep.subr.mxu0 0.0
  %4057 = vmatpush1.msra.mxu0 0.0
  %4058 = vmatprep.subr.mxu0 0.0
  %4059 = vmatpush1.msra.mxu0 0.0
  %4060 = vmatprep.subr.mxu0 0.0
  %4061 = vmatpush1.msra.mxu0 %v3899
  %4062 = vmatprep.subr.mxu0 0.0
  %4063 = vmatpush1.msra.mxu0 %v3898
  %4064 = vmatprep.subr.mxu0 0.0
  %4065 = vmatpush1.msra.mxu0 %v3897
  %4066 = vmatprep.subr.mxu0 0.0
  %4067 = vmatpush1.msra.mxu0 %v3896
  %4068 = vmatprep.subr.mxu0 0.0
  %4069 = vmatpush1.msra.mxu0 %v3895
  %4070 = vmatprep.subr.mxu0 0.0
  %4071 = vmatpush1.msra.mxu0 %v3894
  %4072 = vmatprep.subr.mxu0 0.0
  %4073 = vmatpush1.msra.mxu0 %v3893
  %4074 = vmatprep.subr.mxu0 0.0
  %4075 = vmatpush1.msra.mxu0 %v3892
  %4076 = vmatprep.subr.mxu0 0.0
  %4077 = vmatpush2.msra.mxu0 0.0
  %4078 = vmatprep.subr.mxu0 0.0
  %4079 = vmatpush2.msra.mxu0 0.0
  %4080 = vmatprep.subr.mxu0 0.0
  %4081 = vmatpush2.msra.mxu0 0.0
  %4082 = vmatprep.subr.mxu0 0.0
  %4083 = vmatpush2.msra.mxu0 0.0
  %4084 = vmatprep.subr.mxu0 0.0
  %4085 = vmatpush2.msra.mxu0 0.0
  %4086 = vmatprep.subr.mxu0 0.0
  %4087 = vmatpush2.msra.mxu0 0.0
  %4088 = vmatprep.subr.mxu0 0.0
  %4089 = vmatpush2.msra.mxu0 0.0
  %4090 = vmatprep.subr.mxu0 0.0
  %4091 = vmatpush2.msra.mxu0 0.0
  %4092 = vmatprep.subr.mxu0 0.0
  %4093 = vmatpush2.msra.mxu0 0.0
  %4094 = vmatprep.subr.mxu0 0.0
  %4095 = vmatpush2.msra.mxu0 0.0
  %4096 = vmatprep.subr.mxu0 0.0
  %4097 = vmatpush2.msra.mxu0 0.0
  %4098 = vmatprep.subr.mxu0 0.0
  %4099 = vmatpush2.msra.mxu0 0.0
  %4100 = vmatprep.subr.mxu0 0.0
  %4101 = vmatpush2.msra.mxu0 0.0
  %4102 = vmatprep.subr.mxu0 0.0
  %4103 = vmatpush2.msra.mxu0 0.0
  %4104 = vmatprep.subr.mxu0 0.0
  %4105 = vmatpush2.msra.mxu0 0.0
  %4106 = vmatprep.subr.mxu0 0.0
  %4107 = vmatpush2.msra.mxu0 0.0
  %4108 = vmatprep.mubr.f32.mxu0 0.0
  %4109 = vmatmul.mubr.f32.gmra.mxu0 %v3901
  %v4110 = vpop.f32.mrf.mxu0
  %v4111 = vadd.f32 0.0, %v4110
  %v4112 = vpop.f32.mrf.mxu0
  %4113 = vmatprep.mubr.f32.mxu0 0.0
  %4114 = vmatmul.mubr.f32.gmra.mxu0 %v3904
  %v4115 = vpop.f32.mrf.mxu0
  %v4116 = vadd.f32 0.0, %v4115
  %v4117 = vpop.f32.mrf.mxu0
  %4118 = vmatprep.mubr.f32.mxu0 0.0
  %4119 = vmatmul.mubr.f32.gmra.mxu0 %v3907
  %v4120 = vpop.f32.mrf.mxu0
  %v4121 = vadd.f32 0.0, %v4120
  %v4122 = vpop.f32.mrf.mxu0
  %4123 = vmatprep.mubr.f32.mxu0 0.0
  %4124 = vmatmul.mubr.f32.gmra.mxu0 %v3910
  %v4125 = vpop.f32.mrf.mxu0
  %v4126 = vadd.f32 0.0, %v4125
  %v4127 = vpop.f32.mrf.mxu0
  %4128 = vmatprep.mubr.f32.mxu0 0.0
  %4129 = vmatmul.mubr.f32.gmra.mxu0 %v3913
  %v4130 = vpop.f32.mrf.mxu0
  %v4131 = vadd.f32 0.0, %v4130
  %v4132 = vpop.f32.mrf.mxu0
  %4133 = vmatprep.mubr.f32.mxu0 0.0
  %4134 = vmatmul.mubr.f32.gmra.mxu0 %v3916
  %v4135 = vpop.f32.mrf.mxu0
  %v4136 = vadd.f32 0.0, %v4135
  %v4137 = vpop.f32.mrf.mxu0
  %4138 = vmatprep.mubr.f32.mxu0 0.0
  %4139 = vmatmul.mubr.f32.gmra.mxu0 %v3919
  %v4140 = vpop.f32.mrf.mxu0
  %v4141 = vadd.f32 0.0, %v4140
  %v4142 = vpop.f32.mrf.mxu0
  %4143 = vmatprep.mubr.f32.mxu0 0.0
  %4144 = vmatmul.mubr.f32.gmra.mxu0 %v3922
  %v4145 = vpop.f32.mrf.mxu0
  %v4146 = vadd.f32 0.0, %v4145
  %v4147 = vpop.f32.mrf.mxu0
  %4148 = vmatprep.mubr.f32.mxu0 0.0
  %4149 = vmatmul.mubr.f32.gmra.mxu0 %v3925
  %v4150 = vpop.f32.mrf.mxu0
  %v4151 = vadd.f32 0.0, %v4150
  %v4152 = vpop.f32.mrf.mxu0
  %4153 = vmatprep.mubr.f32.mxu0 0.0
  %4154 = vmatmul.mubr.f32.gmra.mxu0 %v3928
  %v4155 = vpop.f32.mrf.mxu0
  %v4156 = vadd.f32 0.0, %v4155
  %v4157 = vpop.f32.mrf.mxu0
  %4158 = vmatprep.mubr.f32.mxu0 0.0
  %4159 = vmatmul.mubr.f32.gmra.mxu0 %v3931
  %v4160 = vpop.f32.mrf.mxu0
  %v4161 = vadd.f32 0.0, %v4160
  %v4162 = vpop.f32.mrf.mxu0
  %4163 = vmatprep.mubr.f32.mxu0 0.0
  %4164 = vmatmul.mubr.f32.gmra.mxu0 %v3934
  %v4165 = vpop.f32.mrf.mxu0
  %v4166 = vadd.f32 0.0, %v4165
  %v4167 = vpop.f32.mrf.mxu0
  %4168 = vmatprep.mubr.f32.mxu0 0.0
  %4169 = vmatmul.mubr.f32.gmra.mxu0 %v3937
  %v4170 = vpop.f32.mrf.mxu0
  %v4171 = vadd.f32 0.0, %v4170
  %v4172 = vpop.f32.mrf.mxu0
  %4173 = vmatprep.mubr.f32.mxu0 0.0
  %4174 = vmatmul.mubr.f32.gmra.mxu0 %v3940
  %v4175 = vpop.f32.mrf.mxu0
  %v4176 = vadd.f32 0.0, %v4175
  %v4177 = vpop.f32.mrf.mxu0
  %4178 = vmatprep.mubr.f32.mxu0 0.0
  %4179 = vmatmul.mubr.f32.gmra.mxu0 %v3943
  %v4180 = vpop.f32.mrf.mxu0
  %v4181 = vadd.f32 0.0, %v4180
  %v4182 = vpop.f32.mrf.mxu0
  %4183 = vmatprep.mubr.f32.mxu0 0.0
  %4184 = vmatmul.mubr.f32.gmra.mxu0 %v3946
  %v4185 = vpop.f32.mrf.mxu0
  %v4186 = vadd.f32 0.0, %v4185
  %v4187 = vpop.f32.mrf.mxu0
  %4188 = vmatprep.mubr.f32.mxu0 0.0
  %4189 = vmatmul.mubr.f32.gmra.mxu0 %v3949
  %v4190 = vpop.f32.mrf.mxu0
  %v4191 = vadd.f32 0.0, %v4190
  %v4192 = vpop.f32.mrf.mxu0
  %4193 = vmatprep.mubr.f32.mxu0 0.0
  %4194 = vmatmul.mubr.f32.gmra.mxu0 %v3952
  %v4195 = vpop.f32.mrf.mxu0
  %v4196 = vadd.f32 0.0, %v4195
  %v4197 = vpop.f32.mrf.mxu0
  %4198 = vmatprep.mubr.f32.mxu0 0.0
  %4199 = vmatmul.mubr.f32.gmra.mxu0 %v3955
  %v4200 = vpop.f32.mrf.mxu0
  %v4201 = vadd.f32 0.0, %v4200
  %v4202 = vpop.f32.mrf.mxu0
  %4203 = vmatprep.mubr.f32.mxu0 0.0
  %4204 = vmatmul.mubr.f32.gmra.mxu0 %v3958
  %v4205 = vpop.f32.mrf.mxu0
  %v4206 = vadd.f32 0.0, %v4205
  %v4207 = vpop.f32.mrf.mxu0
  %4208 = vmatprep.mubr.f32.mxu0 0.0
  %4209 = vmatmul.mubr.f32.gmra.mxu0 %v3961
  %v4210 = vpop.f32.mrf.mxu0
  %v4211 = vadd.f32 0.0, %v4210
  %v4212 = vpop.f32.mrf.mxu0
  %4213 = vmatprep.mubr.f32.mxu0 0.0
  %4214 = vmatmul.mubr.f32.gmra.mxu0 %v3964
  %v4215 = vpop.f32.mrf.mxu0
  %v4216 = vadd.f32 0.0, %v4215
  %v4217 = vpop.f32.mrf.mxu0
  %4218 = vmatprep.mubr.f32.mxu0 0.0
  %4219 = vmatmul.mubr.f32.gmra.mxu0 %v3967
  %v4220 = vpop.f32.mrf.mxu0
  %v4221 = vadd.f32 0.0, %v4220
  %v4222 = vpop.f32.mrf.mxu0
  %4223 = vmatprep.mubr.f32.mxu0 0.0
  %4224 = vmatmul.mubr.f32.gmra.mxu0 %v3970
  %v4225 = vpop.f32.mrf.mxu0
  %v4226 = vadd.f32 0.0, %v4225
  %v4227 = vpop.f32.mrf.mxu0
  %4228 = vmatprep.mubr.f32.mxu0 0.0
  %4229 = vmatmul.mubr.f32.gmra.mxu0 %v3973
  %v4230 = vpop.f32.mrf.mxu0
  %v4231 = vadd.f32 0.0, %v4230
  %v4232 = vpop.f32.mrf.mxu0
  %4233 = vmatprep.mubr.f32.mxu0 0.0
  %4234 = vmatmul.mubr.f32.gmra.mxu0 %v3976
  %v4235 = vpop.f32.mrf.mxu0
  %v4236 = vadd.f32 0.0, %v4235
  %v4237 = vpop.f32.mrf.mxu0
  %4238 = vmatprep.mubr.f32.mxu0 0.0
  %4239 = vmatmul.mubr.f32.gmra.mxu0 %v3979
  %v4240 = vpop.f32.mrf.mxu0
  %v4241 = vadd.f32 0.0, %v4240
  %v4242 = vpop.f32.mrf.mxu0
  %4243 = vmatprep.mubr.f32.mxu0 0.0
  %4244 = vmatmul.mubr.f32.gmra.mxu0 %v3982
  %v4245 = vpop.f32.mrf.mxu0
  %v4246 = vadd.f32 0.0, %v4245
  %v4247 = vpop.f32.mrf.mxu0
  %4248 = vmatprep.mubr.f32.mxu0 0.0
  %4249 = vmatmul.mubr.f32.gmra.mxu0 %v3985
  %v4250 = vpop.f32.mrf.mxu0
  %v4251 = vadd.f32 0.0, %v4250
  %v4252 = vpop.f32.mrf.mxu0
  %4253 = vmatprep.mubr.f32.mxu0 0.0
  %4254 = vmatmul.mubr.f32.gmra.mxu0 %v3988
  %v4255 = vpop.f32.mrf.mxu0
  %v4256 = vadd.f32 0.0, %v4255
  %v4257 = vpop.f32.mrf.mxu0
  %4258 = vmatprep.mubr.f32.mxu0 0.0
  %4259 = vmatmul.mubr.f32.gmra.mxu0 %v3991
  %v4260 = vpop.f32.mrf.mxu0
  %v4261 = vadd.f32 0.0, %v4260
  %v4262 = vpop.f32.mrf.mxu0
  %4263 = vmatprep.mubr.f32.mxu0 0.0
  %4264 = vmatmul.mubr.f32.gmra.mxu0 %v3994
  %v4265 = vpop.f32.mrf.mxu0
  %v4266 = vadd.f32 0.0, %v4265
  %v4267 = vpop.f32.mrf.mxu0
  %4268 = vmatprep.mubr.f32.mxu0 0.0
  %4269 = vmatmul.mubr.f32.gmra.mxu0 %v3997
  %v4270 = vpop.f32.mrf.mxu0
  %v4271 = vadd.f32 0.0, %v4270
  %v4272 = vpop.f32.mrf.mxu0
  %4273 = vmatprep.mubr.f32.mxu0 0.0
  %4274 = vmatmul.mubr.f32.gmra.mxu0 %v4000
  %v4275 = vpop.f32.mrf.mxu0
  %v4276 = vadd.f32 0.0, %v4275
  %v4277 = vpop.f32.mrf.mxu0
  %4278 = vmatprep.mubr.f32.mxu0 0.0
  %4279 = vmatmul.mubr.f32.gmra.mxu0 %v4003
  %v4280 = vpop.f32.mrf.mxu0
  %v4281 = vadd.f32 0.0, %v4280
  %v4282 = vpop.f32.mrf.mxu0
  %4283 = vmatprep.mubr.f32.mxu0 0.0
  %4284 = vmatmul.mubr.f32.gmra.mxu0 %v4006
  %v4285 = vpop.f32.mrf.mxu0
  %v4286 = vadd.f32 0.0, %v4285
  %v4287 = vpop.f32.mrf.mxu0
  %4288 = vmatprep.mubr.f32.mxu0 0.0
  %4289 = vmatmul.mubr.f32.gmra.mxu0 %v4009
  %v4290 = vpop.f32.mrf.mxu0
  %v4291 = vadd.f32 0.0, %v4290
  %v4292 = vpop.f32.mrf.mxu0
  %4293 = vmatprep.mubr.f32.mxu0 0.0
  %4294 = vmatmul.mubr.f32.gmra.mxu0 %v4012
  %v4295 = vpop.f32.mrf.mxu0
  %v4296 = vadd.f32 0.0, %v4295
  %v4297 = vpop.f32.mrf.mxu0
  %4298 = vmatprep.mubr.f32.mxu0 0.0
  %4299 = vmatmul.mubr.f32.gmra.mxu0 %v4015
  %v4300 = vpop.f32.mrf.mxu0
  %v4301 = vadd.f32 0.0, %v4300
  %v4302 = vpop.f32.mrf.mxu0
  %4303 = vmatprep.mubr.f32.mxu0 0.0
  %4304 = vmatmul.mubr.f32.gmra.mxu0 %v4018
  %v4305 = vpop.f32.mrf.mxu0
  %v4306 = vadd.f32 0.0, %v4305
  %v4307 = vpop.f32.mrf.mxu0
  %4308 = vmatprep.mubr.f32.mxu0 0.0
  %4309 = vmatmul.mubr.f32.gmra.mxu0 %v4021
  %v4310 = vpop.f32.mrf.mxu0
  %v4311 = vadd.f32 0.0, %v4310
  %v4312 = vpop.f32.mrf.mxu0
  %4313 = vmatprep.mubr.f32.mxu0 0.0
  %4314 = vmatmul.mubr.f32.gmra.mxu0 %v4024
  %v4315 = vpop.f32.mrf.mxu0
  %v4316 = vadd.f32 0.0, %v4315
  %v4317 = vpop.f32.mrf.mxu0
  %4318 = vmatprep.mubr.f32.mxu0 0.0
  %4319 = vmatmul.mubr.f32.gmra.mxu0 %v4027
  %v4320 = vpop.f32.mrf.mxu0
  %v4321 = vadd.f32 0.0, %v4320
  %v4322 = vpop.f32.mrf.mxu0
  %4323 = vmatprep.mubr.f32.mxu0 0.0
  %4324 = vmatmul.mubr.f32.gmra.mxu0 %v4030
  %v4325 = vpop.f32.mrf.mxu0
  %v4326 = vadd.f32 0.0, %v4325
  %v4327 = vpop.f32.mrf.mxu0
  %4328 = vmatprep.mubr.f32.mxu0 0.0
  %4329 = vmatmul.mubr.f32.gmra.mxu0 %v4033
  %v4330 = vpop.f32.mrf.mxu0
  %v4331 = vadd.f32 0.0, %v4330
  %v4332 = vpop.f32.mrf.mxu0
  %4333 = vmatprep.mubr.f32.mxu0 0.0
  %4334 = vmatmul.mubr.f32.gmra.mxu0 %v4036
  %v4335 = vpop.f32.mrf.mxu0
  %v4336 = vadd.f32 0.0, %v4335
  %v4337 = vpop.f32.mrf.mxu0
  %4338 = vmatprep.mubr.f32.mxu0 0.0
  %4339 = vmatmul.mubr.f32.gmra.mxu0 %v4039
  %v4340 = vpop.f32.mrf.mxu0
  %v4341 = vadd.f32 0.0, %v4340
  %v4342 = vpop.f32.mrf.mxu0
  %4343 = vmatprep.mubr.f32.mxu0 0.0
  %4344 = vmatmul.mubr.f32.gmra.mxu0 %v4042
  %v4345 = vpop.f32.mrf.mxu0
  %v4346 = vadd.f32 0.0, %v4345
  %v4347 = vpop.f32.mrf.mxu0
  %4348 = vdwg.mxu0
  %v4349 = vld [vmem:[%s3] sm:$0xff]
  %vm4350 = vcmask 195584
  %v4352 = vsel %vm4350, %v4349, 0
  %4354 = vmatprep.subr.mxu0 0.0
  %4355 = vmatpush1.msra.mxu0 0.0
  %4356 = vmatprep.subr.mxu0 0.0
  %4357 = vmatpush1.msra.mxu0 0.0
  %4358 = vmatprep.subr.mxu0 0.0
  %4359 = vmatpush1.msra.mxu0 0.0
  %4360 = vmatprep.subr.mxu0 0.0
  %4361 = vmatpush1.msra.mxu0 0.0
  %4362 = vmatprep.subr.mxu0 0.0
  %4363 = vmatpush1.msra.mxu0 0.0
  %4364 = vmatprep.subr.mxu0 0.0
  %4365 = vmatpush1.msra.mxu0 0.0
  %4366 = vmatprep.subr.mxu0 0.0
  %4367 = vmatpush1.msra.mxu0 0.0
  %4368 = vmatprep.subr.mxu0 0.0
  %4369 = vmatpush1.msra.mxu0 0.0
  %4370 = vmatprep.subr.mxu0 0.0
  %4371 = vmatpush1.msra.mxu0 0.0
  %4372 = vmatprep.subr.mxu0 0.0
  %4373 = vmatpush1.msra.mxu0 0.0
  %4374 = vmatprep.subr.mxu0 0.0
  %4375 = vmatpush1.msra.mxu0 0.0
  %4376 = vmatprep.subr.mxu0 0.0
  %4377 = vmatpush1.msra.mxu0 0.0
  %4378 = vmatprep.subr.mxu0 0.0
  %4379 = vmatpush1.msra.mxu0 0.0
  %4380 = vmatprep.subr.mxu0 0.0
  %4381 = vmatpush1.msra.mxu0 %v4121
  %4382 = vmatprep.subr.mxu0 0.0
  %4383 = vmatpush1.msra.mxu0 %v4116
  %4384 = vmatprep.subr.mxu0 0.0
  %4385 = vmatpush1.msra.mxu0 %v4111
  %4386 = vmatprep.subr.mxu0 0.0
  %4387 = vmatpush2.msra.mxu0 0.0
  %4388 = vmatprep.subr.mxu0 0.0
  %4389 = vmatpush2.msra.mxu0 0.0
  %4390 = vmatprep.subr.mxu0 0.0
  %4391 = vmatpush2.msra.mxu0 0.0
  %4392 = vmatprep.subr.mxu0 0.0
  %4393 = vmatpush2.msra.mxu0 0.0
  %4394 = vmatprep.subr.mxu0 0.0
  %4395 = vmatpush2.msra.mxu0 0.0
  %4396 = vmatprep.subr.mxu0 0.0
  %4397 = vmatpush2.msra.mxu0 0.0
  %4398 = vmatprep.subr.mxu0 0.0
  %4399 = vmatpush2.msra.mxu0 0.0
  %4400 = vmatprep.subr.mxu0 0.0
  %4401 = vmatpush2.msra.mxu0 0.0
  %4402 = vmatprep.subr.mxu0 0.0
  %4403 = vmatpush2.msra.mxu0 0.0
  %4404 = vmatprep.subr.mxu0 0.0
  %4405 = vmatpush2.msra.mxu0 0.0
  %4406 = vmatprep.subr.mxu0 0.0
  %4407 = vmatpush2.msra.mxu0 0.0
  %4408 = vmatprep.subr.mxu0 0.0
  %4409 = vmatpush2.msra.mxu0 0.0
  %4410 = vmatprep.subr.mxu0 0.0
  %4411 = vmatpush2.msra.mxu0 0.0
  %4412 = vmatprep.subr.mxu0 0.0
  %4413 = vmatpush2.msra.mxu0 0.0
  %4414 = vmatprep.subr.mxu0 0.0
  %4415 = vmatpush2.msra.mxu0 0.0
  %4416 = vmatprep.subr.mxu0 0.0
  %4417 = vmatpush2.msra.mxu0 0.0
  %4418 = vmatprep.mubr.f32.mxu0 0.0
  %4419 = vmatmul.mubr.f32.gmra.mxu0 %v4352
  %v4420 = vpop.f32.mrf.mxu0
  %v4421 = vadd.f32 0.0, %v4420
  %v4422 = vpop.f32.mrf.mxu0
  %4423 = vdwg.mxu0
  %vm4424 = vcmask 261120
  %4425 = vst.msk [vmem:[#allocation4] sm:$0xff] %vm4424, %v4421
  %4426 = vmatprep.subr.mxu0 0.0
  %4427 = vmatpush1.msra.mxu0 0.0
  %4428 = vmatprep.subr.mxu0 0.0
  %4429 = vmatpush1.msra.mxu0 0.0
  %4430 = vmatprep.subr.mxu0 0.0
  %4431 = vmatpush1.msra.mxu0 0.0
  %4432 = vmatprep.subr.mxu0 0.0
  %4433 = vmatpush1.msra.mxu0 0.0
  %4434 = vmatprep.subr.mxu0 0.0
  %4435 = vmatpush1.msra.mxu0 0.0
  %4436 = vmatprep.subr.mxu0 0.0
  %4437 = vmatpush1.msra.mxu0 0.0
  %4438 = vmatprep.subr.mxu0 0.0
  %4439 = vmatpush1.msra.mxu0 0.0
  %4440 = vmatprep.subr.mxu0 0.0
  %4441 = vmatpush1.msra.mxu0 0.0
  %4442 = vmatprep.subr.mxu0 0.0
  %4443 = vmatpush1.msra.mxu0 0.0
  %4444 = vmatprep.subr.mxu0 0.0
  %4445 = vmatpush1.msra.mxu0 0.0
  %4446 = vmatprep.subr.mxu0 0.0
  %4447 = vmatpush1.msra.mxu0 0.0
  %4448 = vmatprep.subr.mxu0 0.0
  %4449 = vmatpush1.msra.mxu0 0.0
  %4450 = vmatprep.subr.mxu0 0.0
  %4451 = vmatpush1.msra.mxu0 0.0
  %4452 = vmatprep.subr.mxu0 0.0
  %4453 = vmatpush1.msra.mxu0 %v4136
  %4454 = vmatprep.subr.mxu0 0.0
  %4455 = vmatpush1.msra.mxu0 %v4131
  %4456 = vmatprep.subr.mxu0 0.0
  %4457 = vmatpush1.msra.mxu0 %v4126
  %4458 = vmatprep.subr.mxu0 0.0
  %4459 = vmatpush2.msra.mxu0 0.0
  %4460 = vmatprep.subr.mxu0 0.0
  %4461 = vmatpush2.msra.mxu0 0.0
  %4462 = vmatprep.subr.mxu0 0.0
  %4463 = vmatpush2.msra.mxu0 0.0
  %4464 = vmatprep.subr.mxu0 0.0
  %4465 = vmatpush2.msra.mxu0 0.0
  %4466 = vmatprep.subr.mxu0 0.0
  %4467 = vmatpush2.msra.mxu0 0.0
  %4468 = vmatprep.subr.mxu0 0.0
  %4469 = vmatpush2.msra.mxu0 0.0
  %4470 = vmatprep.subr.mxu0 0.0
  %4471 = vmatpush2.msra.mxu0 0.0
  %4472 = vmatprep.subr.mxu0 0.0
  %4473 = vmatpush2.msra.mxu0 0.0
  %4474 = vmatprep.subr.mxu0 0.0
  %4475 = vmatpush2.msra.mxu0 0.0
  %4476 = vmatprep.subr.mxu0 0.0
  %4477 = vmatpush2.msra.mxu0 0.0
  %4478 = vmatprep.subr.mxu0 0.0
  %4479 = vmatpush2.msra.mxu0 0.0
  %4480 = vmatprep.subr.mxu0 0.0
  %4481 = vmatpush2.msra.mxu0 0.0
  %4482 = vmatprep.subr.mxu0 0.0
  %4483 = vmatpush2.msra.mxu0 0.0
  %4484 = vmatprep.subr.mxu0 0.0
  %4485 = vmatpush2.msra.mxu0 0.0
  %4486 = vmatprep.subr.mxu0 0.0
  %4487 = vmatpush2.msra.mxu0 0.0
  %4488 = vmatprep.subr.mxu0 0.0
  %4489 = vmatpush2.msra.mxu0 0.0
  %4490 = vmatprep.mubr.f32.mxu0 0.0
  %4491 = vmatmul.mubr.f32.gmra.mxu0 %v4352
  %v4492 = vpop.f32.mrf.mxu0
  %v4493 = vadd.f32 0.0, %v4492
  %v4494 = vpop.f32.mrf.mxu0
  %4495 = vdwg.mxu0
  %4496 = vst.msk [vmem:[#allocation4 + $0x8] sm:$0xff] %vm4424, %v4493
  %4497 = vmatprep.subr.mxu0 0.0
  %4498 = vmatpush1.msra.mxu0 0.0
  %4499 = vmatprep.subr.mxu0 0.0
  %4500 = vmatpush1.msra.mxu0 0.0
  %4501 = vmatprep.subr.mxu0 0.0
  %4502 = vmatpush1.msra.mxu0 0.0
  %4503 = vmatprep.subr.mxu0 0.0
  %4504 = vmatpush1.msra.mxu0 0.0
  %4505 = vmatprep.subr.mxu0 0.0
  %4506 = vmatpush1.msra.mxu0 0.0
  %4507 = vmatprep.subr.mxu0 0.0
  %4508 = vmatpush1.msra.mxu0 0.0
  %4509 = vmatprep.subr.mxu0 0.0
  %4510 = vmatpush1.msra.mxu0 0.0
  %4511 = vmatprep.subr.mxu0 0.0
  %4512 = vmatpush1.msra.mxu0 0.0
  %4513 = vmatprep.subr.mxu0 0.0
  %4514 = vmatpush1.msra.mxu0 0.0
  %4515 = vmatprep.subr.mxu0 0.0
  %4516 = vmatpush1.msra.mxu0 0.0
  %4517 = vmatprep.subr.mxu0 0.0
  %4518 = vmatpush1.msra.mxu0 0.0
  %4519 = vmatprep.subr.mxu0 0.0
  %4520 = vmatpush1.msra.mxu0 0.0
  %4521 = vmatprep.subr.mxu0 0.0
  %4522 = vmatpush1.msra.mxu0 0.0
  %4523 = vmatprep.subr.mxu0 0.0
  %4524 = vmatpush1.msra.mxu0 %v4151
  %4525 = vmatprep.subr.mxu0 0.0
  %4526 = vmatpush1.msra.mxu0 %v4146
  %4527 = vmatprep.subr.mxu0 0.0
  %4528 = vmatpush1.msra.mxu0 %v4141
  %4529 = vmatprep.subr.mxu0 0.0
  %4530 = vmatpush2.msra.mxu0 0.0
  %4531 = vmatprep.subr.mxu0 0.0
  %4532 = vmatpush2.msra.mxu0 0.0
  %4533 = vmatprep.subr.mxu0 0.0
  %4534 = vmatpush2.msra.mxu0 0.0
  %4535 = vmatprep.subr.mxu0 0.0
  %4536 = vmatpush2.msra.mxu0 0.0
  %4537 = vmatprep.subr.mxu0 0.0
  %4538 = vmatpush2.msra.mxu0 0.0
  %4539 = vmatprep.subr.mxu0 0.0
  %4540 = vmatpush2.msra.mxu0 0.0
  %4541 = vmatprep.subr.mxu0 0.0
  %4542 = vmatpush2.msra.mxu0 0.0
  %4543 = vmatprep.subr.mxu0 0.0
  %4544 = vmatpush2.msra.mxu0 0.0
  %4545 = vmatprep.subr.mxu0 0.0
  %4546 = vmatpush2.msra.mxu0 0.0
  %4547 = vmatprep.subr.mxu0 0.0
  %4548 = vmatpush2.msra.mxu0 0.0
  %4549 = vmatprep.subr.mxu0 0.0
  %4550 = vmatpush2.msra.mxu0 0.0
  %4551 = vmatprep.subr.mxu0 0.0
  %4552 = vmatpush2.msra.mxu0 0.0
  %4553 = vmatprep.subr.mxu0 0.0
  %4554 = vmatpush2.msra.mxu0 0.0
  %4555 = vmatprep.subr.mxu0 0.0
  %4556 = vmatpush2.msra.mxu0 0.0
  %4557 = vmatprep.subr.mxu0 0.0
  %4558 = vmatpush2.msra.mxu0 0.0
  %4559 = vmatprep.subr.mxu0 0.0
  %4560 = vmatpush2.msra.mxu0 0.0
  %4561 = vmatprep.mubr.f32.mxu0 0.0
  %4562 = vmatmul.mubr.f32.gmra.mxu0 %v4352
  %v4563 = vpop.f32.mrf.mxu0
  %v4564 = vadd.f32 0.0, %v4563
  %v4565 = vpop.f32.mrf.mxu0
  %4566 = vdwg.mxu0
  %4567 = vst.msk [vmem:[#allocation4 + $0x10] sm:$0xff] %vm4424, %v4564
  %4568 = vmatprep.subr.mxu0 0.0
  %4569 = vmatpush1.msra.mxu0 0.0
  %4570 = vmatprep.subr.mxu0 0.0
  %4571 = vmatpush1.msra.mxu0 0.0
  %4572 = vmatprep.subr.mxu0 0.0
  %4573 = vmatpush1.msra.mxu0 0.0
  %4574 = vmatprep.subr.mxu0 0.0
  %4575 = vmatpush1.msra.mxu0 0.0
  %4576 = vmatprep.subr.mxu0 0.0
  %4577 = vmatpush1.msra.mxu0 0.0
  %4578 = vmatprep.subr.mxu0 0.0
  %4579 = vmatpush1.msra.mxu0 0.0
  %4580 = vmatprep.subr.mxu0 0.0
  %4581 = vmatpush1.msra.mxu0 0.0
  %4582 = vmatprep.subr.mxu0 0.0
  %4583 = vmatpush1.msra.mxu0 0.0
  %4584 = vmatprep.subr.mxu0 0.0
  %4585 = vmatpush1.msra.mxu0 0.0
  %4586 = vmatprep.subr.mxu0 0.0
  %4587 = vmatpush1.msra.mxu0 0.0
  %4588 = vmatprep.subr.mxu0 0.0
  %4589 = vmatpush1.msra.mxu0 0.0
  %4590 = vmatprep.subr.mxu0 0.0
  %4591 = vmatpush1.msra.mxu0 0.0
  %4592 = vmatprep.subr.mxu0 0.0
  %4593 = vmatpush1.msra.mxu0 0.0
  %4594 = vmatprep.subr.mxu0 0.0
  %4595 = vmatpush1.msra.mxu0 %v4166
  %4596 = vmatprep.subr.mxu0 0.0
  %4597 = vmatpush1.msra.mxu0 %v4161
  %4598 = vmatprep.subr.mxu0 0.0
  %4599 = vmatpush1.msra.mxu0 %v4156
  %4600 = vmatprep.subr.mxu0 0.0
  %4601 = vmatpush2.msra.mxu0 0.0
  %4602 = vmatprep.subr.mxu0 0.0
  %4603 = vmatpush2.msra.mxu0 0.0
  %4604 = vmatprep.subr.mxu0 0.0
  %4605 = vmatpush2.msra.mxu0 0.0
  %4606 = vmatprep.subr.mxu0 0.0
  %4607 = vmatpush2.msra.mxu0 0.0
  %4608 = vmatprep.subr.mxu0 0.0
  %4609 = vmatpush2.msra.mxu0 0.0
  %4610 = vmatprep.subr.mxu0 0.0
  %4611 = vmatpush2.msra.mxu0 0.0
  %4612 = vmatprep.subr.mxu0 0.0
  %4613 = vmatpush2.msra.mxu0 0.0
  %4614 = vmatprep.subr.mxu0 0.0
  %4615 = vmatpush2.msra.mxu0 0.0
  %4616 = vmatprep.subr.mxu0 0.0
  %4617 = vmatpush2.msra.mxu0 0.0
  %4618 = vmatprep.subr.mxu0 0.0
  %4619 = vmatpush2.msra.mxu0 0.0
  %4620 = vmatprep.subr.mxu0 0.0
  %4621 = vmatpush2.msra.mxu0 0.0
  %4622 = vmatprep.subr.mxu0 0.0
  %4623 = vmatpush2.msra.mxu0 0.0
  %4624 = vmatprep.subr.mxu0 0.0
  %4625 = vmatpush2.msra.mxu0 0.0
  %4626 = vmatprep.subr.mxu0 0.0
  %4627 = vmatpush2.msra.mxu0 0.0
  %4628 = vmatprep.subr.mxu0 0.0
  %4629 = vmatpush2.msra.mxu0 0.0
  %4630 = vmatprep.subr.mxu0 0.0
  %4631 = vmatpush2.msra.mxu0 0.0
  %4632 = vmatprep.mubr.f32.mxu0 0.0
  %4633 = vmatmul.mubr.f32.gmra.mxu0 %v4352
  %v4634 = vpop.f32.mrf.mxu0
  %v4635 = vadd.f32 0.0, %v4634
  %v4636 = vpop.f32.mrf.mxu0
  %4637 = vdwg.mxu0
  %4638 = vst.msk [vmem:[#allocation4 + $0x18] sm:$0xff] %vm4424, %v4635
  %4639 = vmatprep.subr.mxu0 0.0
  %4640 = vmatpush1.msra.mxu0 0.0
  %4641 = vmatprep.subr.mxu0 0.0
  %4642 = vmatpush1.msra.mxu0 0.0
  %4643 = vmatprep.subr.mxu0 0.0
  %4644 = vmatpush1.msra.mxu0 0.0
  %4645 = vmatprep.subr.mxu0 0.0
  %4646 = vmatpush1.msra.mxu0 0.0
  %4647 = vmatprep.subr.mxu0 0.0
  %4648 = vmatpush1.msra.mxu0 0.0
  %4649 = vmatprep.subr.mxu0 0.0
  %4650 = vmatpush1.msra.mxu0 0.0
  %4651 = vmatprep.subr.mxu0 0.0
  %4652 = vmatpush1.msra.mxu0 0.0
  %4653 = vmatprep.subr.mxu0 0.0
  %4654 = vmatpush1.msra.mxu0 0.0
  %4655 = vmatprep.subr.mxu0 0.0
  %4656 = vmatpush1.msra.mxu0 0.0
  %4657 = vmatprep.subr.mxu0 0.0
  %4658 = vmatpush1.msra.mxu0 0.0
  %4659 = vmatprep.subr.mxu0 0.0
  %4660 = vmatpush1.msra.mxu0 0.0
  %4661 = vmatprep.subr.mxu0 0.0
  %4662 = vmatpush1.msra.mxu0 0.0
  %4663 = vmatprep.subr.mxu0 0.0
  %4664 = vmatpush1.msra.mxu0 0.0
  %4665 = vmatprep.subr.mxu0 0.0
  %4666 = vmatpush1.msra.mxu0 %v4181
  %4667 = vmatprep.subr.mxu0 0.0
  %4668 = vmatpush1.msra.mxu0 %v4176
  %4669 = vmatprep.subr.mxu0 0.0
  %4670 = vmatpush1.msra.mxu0 %v4171
  %4671 = vmatprep.subr.mxu0 0.0
  %4672 = vmatpush2.msra.mxu0 0.0
  %4673 = vmatprep.subr.mxu0 0.0
  %4674 = vmatpush2.msra.mxu0 0.0
  %4675 = vmatprep.subr.mxu0 0.0
  %4676 = vmatpush2.msra.mxu0 0.0
  %4677 = vmatprep.subr.mxu0 0.0
  %4678 = vmatpush2.msra.mxu0 0.0
  %4679 = vmatprep.subr.mxu0 0.0
  %4680 = vmatpush2.msra.mxu0 0.0
  %4681 = vmatprep.subr.mxu0 0.0
  %4682 = vmatpush2.msra.mxu0 0.0
  %4683 = vmatprep.subr.mxu0 0.0
  %4684 = vmatpush2.msra.mxu0 0.0
  %4685 = vmatprep.subr.mxu0 0.0
  %4686 = vmatpush2.msra.mxu0 0.0
  %4687 = vmatprep.subr.mxu0 0.0
  %4688 = vmatpush2.msra.mxu0 0.0
  %4689 = vmatprep.subr.mxu0 0.0
  %4690 = vmatpush2.msra.mxu0 0.0
  %4691 = vmatprep.subr.mxu0 0.0
  %4692 = vmatpush2.msra.mxu0 0.0
  %4693 = vmatprep.subr.mxu0 0.0
  %4694 = vmatpush2.msra.mxu0 0.0
  %4695 = vmatprep.subr.mxu0 0.0
  %4696 = vmatpush2.msra.mxu0 0.0
  %4697 = vmatprep.subr.mxu0 0.0
  %4698 = vmatpush2.msra.mxu0 0.0
  %4699 = vmatprep.subr.mxu0 0.0
  %4700 = vmatpush2.msra.mxu0 0.0
  %4701 = vmatprep.subr.mxu0 0.0
  %4702 = vmatpush2.msra.mxu0 0.0
  %4703 = vmatprep.mubr.f32.mxu0 0.0
  %4704 = vmatmul.mubr.f32.gmra.mxu0 %v4352
  %v4705 = vpop.f32.mrf.mxu0
  %v4706 = vadd.f32 0.0, %v4705
  %v4707 = vpop.f32.mrf.mxu0
  %4708 = vdwg.mxu0
  %4709 = vst.msk [vmem:[#allocation4 + $0x20] sm:$0xff] %vm4424, %v4706
  %4710 = vmatprep.subr.mxu0 0.0
  %4711 = vmatpush1.msra.mxu0 0.0
  %4712 = vmatprep.subr.mxu0 0.0
  %4713 = vmatpush1.msra.mxu0 0.0
  %4714 = vmatprep.subr.mxu0 0.0
  %4715 = vmatpush1.msra.mxu0 0.0
  %4716 = vmatprep.subr.mxu0 0.0
  %4717 = vmatpush1.msra.mxu0 0.0
  %4718 = vmatprep.subr.mxu0 0.0
  %4719 = vmatpush1.msra.mxu0 0.0
  %4720 = vmatprep.subr.mxu0 0.0
  %4721 = vmatpush1.msra.mxu0 0.0
  %4722 = vmatprep.subr.mxu0 0.0
  %4723 = vmatpush1.msra.mxu0 0.0
  %4724 = vmatprep.subr.mxu0 0.0
  %4725 = vmatpush1.msra.mxu0 0.0
  %4726 = vmatprep.subr.mxu0 0.0
  %4727 = vmatpush1.msra.mxu0 0.0
  %4728 = vmatprep.subr.mxu0 0.0
  %4729 = vmatpush1.msra.mxu0 0.0
  %4730 = vmatprep.subr.mxu0 0.0
  %4731 = vmatpush1.msra.mxu0 0.0
  %4732 = vmatprep.subr.mxu0 0.0
  %4733 = vmatpush1.msra.mxu0 0.0
  %4734 = vmatprep.subr.mxu0 0.0
  %4735 = vmatpush1.msra.mxu0 0.0
  %4736 = vmatprep.subr.mxu0 0.0
  %4737 = vmatpush1.msra.mxu0 %v4196
  %4738 = vmatprep.subr.mxu0 0.0
  %4739 = vmatpush1.msra.mxu0 %v4191
  %4740 = vmatprep.subr.mxu0 0.0
  %4741 = vmatpush1.msra.mxu0 %v4186
  %4742 = vmatprep.subr.mxu0 0.0
  %4743 = vmatpush2.msra.mxu0 0.0
  %4744 = vmatprep.subr.mxu0 0.0
  %4745 = vmatpush2.msra.mxu0 0.0
  %4746 = vmatprep.subr.mxu0 0.0
  %4747 = vmatpush2.msra.mxu0 0.0
  %4748 = vmatprep.subr.mxu0 0.0
  %4749 = vmatpush2.msra.mxu0 0.0
  %4750 = vmatprep.subr.mxu0 0.0
  %4751 = vmatpush2.msra.mxu0 0.0
  %4752 = vmatprep.subr.mxu0 0.0
  %4753 = vmatpush2.msra.mxu0 0.0
  %4754 = vmatprep.subr.mxu0 0.0
  %4755 = vmatpush2.msra.mxu0 0.0
  %4756 = vmatprep.subr.mxu0 0.0
  %4757 = vmatpush2.msra.mxu0 0.0
  %4758 = vmatprep.subr.mxu0 0.0
  %4759 = vmatpush2.msra.mxu0 0.0
  %4760 = vmatprep.subr.mxu0 0.0
  %4761 = vmatpush2.msra.mxu0 0.0
  %4762 = vmatprep.subr.mxu0 0.0
  %4763 = vmatpush2.msra.mxu0 0.0
  %4764 = vmatprep.subr.mxu0 0.0
  %4765 = vmatpush2.msra.mxu0 0.0
  %4766 = vmatprep.subr.mxu0 0.0
  %4767 = vmatpush2.msra.mxu0 0.0
  %4768 = vmatprep.subr.mxu0 0.0
  %4769 = vmatpush2.msra.mxu0 0.0
  %4770 = vmatprep.subr.mxu0 0.0
  %4771 = vmatpush2.msra.mxu0 0.0
  %4772 = vmatprep.subr.mxu0 0.0
  %4773 = vmatpush2.msra.mxu0 0.0
  %4774 = vmatprep.mubr.f32.mxu0 0.0
  %4775 = vmatmul.mubr.f32.gmra.mxu0 %v4352
  %v4776 = vpop.f32.mrf.mxu0
  %v4777 = vadd.f32 0.0, %v4776
  %v4778 = vpop.f32.mrf.mxu0
  %4779 = vdwg.mxu0
  %4780 = vst.msk [vmem:[#allocation4 + $0x28] sm:$0xff] %vm4424, %v4777
  %4781 = vmatprep.subr.mxu0 0.0
  %4782 = vmatpush1.msra.mxu0 0.0
  %4783 = vmatprep.subr.mxu0 0.0
  %4784 = vmatpush1.msra.mxu0 0.0
  %4785 = vmatprep.subr.mxu0 0.0
  %4786 = vmatpush1.msra.mxu0 0.0
  %4787 = vmatprep.subr.mxu0 0.0
  %4788 = vmatpush1.msra.mxu0 0.0
  %4789 = vmatprep.subr.mxu0 0.0
  %4790 = vmatpush1.msra.mxu0 0.0
  %4791 = vmatprep.subr.mxu0 0.0
  %4792 = vmatpush1.msra.mxu0 0.0
  %4793 = vmatprep.subr.mxu0 0.0
  %4794 = vmatpush1.msra.mxu0 0.0
  %4795 = vmatprep.subr.mxu0 0.0
  %4796 = vmatpush1.msra.mxu0 0.0
  %4797 = vmatprep.subr.mxu0 0.0
  %4798 = vmatpush1.msra.mxu0 0.0
  %4799 = vmatprep.subr.mxu0 0.0
  %4800 = vmatpush1.msra.mxu0 0.0
  %4801 = vmatprep.subr.mxu0 0.0
  %4802 = vmatpush1.msra.mxu0 0.0
  %4803 = vmatprep.subr.mxu0 0.0
  %4804 = vmatpush1.msra.mxu0 0.0
  %4805 = vmatprep.subr.mxu0 0.0
  %4806 = vmatpush1.msra.mxu0 0.0
  %4807 = vmatprep.subr.mxu0 0.0
  %4808 = vmatpush1.msra.mxu0 %v4211
  %4809 = vmatprep.subr.mxu0 0.0
  %4810 = vmatpush1.msra.mxu0 %v4206
  %4811 = vmatprep.subr.mxu0 0.0
  %4812 = vmatpush1.msra.mxu0 %v4201
  %4813 = vmatprep.subr.mxu0 0.0
  %4814 = vmatpush2.msra.mxu0 0.0
  %4815 = vmatprep.subr.mxu0 0.0
  %4816 = vmatpush2.msra.mxu0 0.0
  %4817 = vmatprep.subr.mxu0 0.0
  %4818 = vmatpush2.msra.mxu0 0.0
  %4819 = vmatprep.subr.mxu0 0.0
  %4820 = vmatpush2.msra.mxu0 0.0
  %4821 = vmatprep.subr.mxu0 0.0
  %4822 = vmatpush2.msra.mxu0 0.0
  %4823 = vmatprep.subr.mxu0 0.0
  %4824 = vmatpush2.msra.mxu0 0.0
  %4825 = vmatprep.subr.mxu0 0.0
  %4826 = vmatpush2.msra.mxu0 0.0
  %4827 = vmatprep.subr.mxu0 0.0
  %4828 = vmatpush2.msra.mxu0 0.0
  %4829 = vmatprep.subr.mxu0 0.0
  %4830 = vmatpush2.msra.mxu0 0.0
  %4831 = vmatprep.subr.mxu0 0.0
  %4832 = vmatpush2.msra.mxu0 0.0
  %4833 = vmatprep.subr.mxu0 0.0
  %4834 = vmatpush2.msra.mxu0 0.0
  %4835 = vmatprep.subr.mxu0 0.0
  %4836 = vmatpush2.msra.mxu0 0.0
  %4837 = vmatprep.subr.mxu0 0.0
  %4838 = vmatpush2.msra.mxu0 0.0
  %4839 = vmatprep.subr.mxu0 0.0
  %4840 = vmatpush2.msra.mxu0 0.0
  %4841 = vmatprep.subr.mxu0 0.0
  %4842 = vmatpush2.msra.mxu0 0.0
  %4843 = vmatprep.subr.mxu0 0.0
  %4844 = vmatpush2.msra.mxu0 0.0
  %4845 = vmatprep.mubr.f32.mxu0 0.0
  %4846 = vmatmul.mubr.f32.gmra.mxu0 %v4352
  %v4847 = vpop.f32.mrf.mxu0
  %v4848 = vadd.f32 0.0, %v4847
  %v4849 = vpop.f32.mrf.mxu0
  %4850 = vdwg.mxu0
  %4851 = vst.msk [vmem:[#allocation4 + $0x30] sm:$0xff] %vm4424, %v4848
  %4852 = vmatprep.subr.mxu0 0.0
  %4853 = vmatpush1.msra.mxu0 0.0
  %4854 = vmatprep.subr.mxu0 0.0
  %4855 = vmatpush1.msra.mxu0 0.0
  %4856 = vmatprep.subr.mxu0 0.0
  %4857 = vmatpush1.msra.mxu0 0.0
  %4858 = vmatprep.subr.mxu0 0.0
  %4859 = vmatpush1.msra.mxu0 0.0
  %4860 = vmatprep.subr.mxu0 0.0
  %4861 = vmatpush1.msra.mxu0 0.0
  %4862 = vmatprep.subr.mxu0 0.0
  %4863 = vmatpush1.msra.mxu0 0.0
  %4864 = vmatprep.subr.mxu0 0.0
  %4865 = vmatpush1.msra.mxu0 0.0
  %4866 = vmatprep.subr.mxu0 0.0
  %4867 = vmatpush1.msra.mxu0 0.0
  %4868 = vmatprep.subr.mxu0 0.0
  %4869 = vmatpush1.msra.mxu0 0.0
  %4870 = vmatprep.subr.mxu0 0.0
  %4871 = vmatpush1.msra.mxu0 0.0
  %4872 = vmatprep.subr.mxu0 0.0
  %4873 = vmatpush1.msra.mxu0 0.0
  %4874 = vmatprep.subr.mxu0 0.0
  %4875 = vmatpush1.msra.mxu0 0.0
  %4876 = vmatprep.subr.mxu0 0.0
  %4877 = vmatpush1.msra.mxu0 0.0
  %4878 = vmatprep.subr.mxu0 0.0
  %4879 = vmatpush1.msra.mxu0 %v4226
  %4880 = vmatprep.subr.mxu0 0.0
  %4881 = vmatpush1.msra.mxu0 %v4221
  %4882 = vmatprep.subr.mxu0 0.0
  %4883 = vmatpush1.msra.mxu0 %v4216
  %4884 = vmatprep.subr.mxu0 0.0
  %4885 = vmatpush2.msra.mxu0 0.0
  %4886 = vmatprep.subr.mxu0 0.0
  %4887 = vmatpush2.msra.mxu0 0.0
  %4888 = vmatprep.subr.mxu0 0.0
  %4889 = vmatpush2.msra.mxu0 0.0
  %4890 = vmatprep.subr.mxu0 0.0
  %4891 = vmatpush2.msra.mxu0 0.0
  %4892 = vmatprep.subr.mxu0 0.0
  %4893 = vmatpush2.msra.mxu0 0.0
  %4894 = vmatprep.subr.mxu0 0.0
  %4895 = vmatpush2.msra.mxu0 0.0
  %4896 = vmatprep.subr.mxu0 0.0
  %4897 = vmatpush2.msra.mxu0 0.0
  %4898 = vmatprep.subr.mxu0 0.0
  %4899 = vmatpush2.msra.mxu0 0.0
  %4900 = vmatprep.subr.mxu0 0.0
  %4901 = vmatpush2.msra.mxu0 0.0
  %4902 = vmatprep.subr.mxu0 0.0
  %4903 = vmatpush2.msra.mxu0 0.0
  %4904 = vmatprep.subr.mxu0 0.0
  %4905 = vmatpush2.msra.mxu0 0.0
  %4906 = vmatprep.subr.mxu0 0.0
  %4907 = vmatpush2.msra.mxu0 0.0
  %4908 = vmatprep.subr.mxu0 0.0
  %4909 = vmatpush2.msra.mxu0 0.0
  %4910 = vmatprep.subr.mxu0 0.0
  %4911 = vmatpush2.msra.mxu0 0.0
  %4912 = vmatprep.subr.mxu0 0.0
  %4913 = vmatpush2.msra.mxu0 0.0
  %4914 = vmatprep.subr.mxu0 0.0
  %4915 = vmatpush2.msra.mxu0 0.0
  %4916 = vmatprep.mubr.f32.mxu0 0.0
  %4917 = vmatmul.mubr.f32.gmra.mxu0 %v4352
  %v4918 = vpop.f32.mrf.mxu0
  %v4919 = vadd.f32 0.0, %v4918
  %v4920 = vpop.f32.mrf.mxu0
  %4921 = vdwg.mxu0
  %4922 = vst.msk [vmem:[#allocation4 + $0x38] sm:$0xff] %vm4424, %v4919
  %4923 = vmatprep.subr.mxu0 0.0
  %4924 = vmatpush1.msra.mxu0 0.0
  %4925 = vmatprep.subr.mxu0 0.0
  %4926 = vmatpush1.msra.mxu0 0.0
  %4927 = vmatprep.subr.mxu0 0.0
  %4928 = vmatpush1.msra.mxu0 0.0
  %4929 = vmatprep.subr.mxu0 0.0
  %4930 = vmatpush1.msra.mxu0 0.0
  %4931 = vmatprep.subr.mxu0 0.0
  %4932 = vmatpush1.msra.mxu0 0.0
  %4933 = vmatprep.subr.mxu0 0.0
  %4934 = vmatpush1.msra.mxu0 0.0
  %4935 = vmatprep.subr.mxu0 0.0
  %4936 = vmatpush1.msra.mxu0 0.0
  %4937 = vmatprep.subr.mxu0 0.0
  %4938 = vmatpush1.msra.mxu0 0.0
  %4939 = vmatprep.subr.mxu0 0.0
  %4940 = vmatpush1.msra.mxu0 0.0
  %4941 = vmatprep.subr.mxu0 0.0
  %4942 = vmatpush1.msra.mxu0 0.0
  %4943 = vmatprep.subr.mxu0 0.0
  %4944 = vmatpush1.msra.mxu0 0.0
  %4945 = vmatprep.subr.mxu0 0.0
  %4946 = vmatpush1.msra.mxu0 0.0
  %4947 = vmatprep.subr.mxu0 0.0
  %4948 = vmatpush1.msra.mxu0 0.0
  %4949 = vmatprep.subr.mxu0 0.0
  %4950 = vmatpush1.msra.mxu0 %v4241
  %4951 = vmatprep.subr.mxu0 0.0
  %4952 = vmatpush1.msra.mxu0 %v4236
  %4953 = vmatprep.subr.mxu0 0.0
  %4954 = vmatpush1.msra.mxu0 %v4231
  %4955 = vmatprep.subr.mxu0 0.0
  %4956 = vmatpush2.msra.mxu0 0.0
  %4957 = vmatprep.subr.mxu0 0.0
  %4958 = vmatpush2.msra.mxu0 0.0
  %4959 = vmatprep.subr.mxu0 0.0
  %4960 = vmatpush2.msra.mxu0 0.0
  %4961 = vmatprep.subr.mxu0 0.0
  %4962 = vmatpush2.msra.mxu0 0.0
  %4963 = vmatprep.subr.mxu0 0.0
  %4964 = vmatpush2.msra.mxu0 0.0
  %4965 = vmatprep.subr.mxu0 0.0
  %4966 = vmatpush2.msra.mxu0 0.0
  %4967 = vmatprep.subr.mxu0 0.0
  %4968 = vmatpush2.msra.mxu0 0.0
  %4969 = vmatprep.subr.mxu0 0.0
  %4970 = vmatpush2.msra.mxu0 0.0
  %4971 = vmatprep.subr.mxu0 0.0
  %4972 = vmatpush2.msra.mxu0 0.0
  %4973 = vmatprep.subr.mxu0 0.0
  %4974 = vmatpush2.msra.mxu0 0.0
  %4975 = vmatprep.subr.mxu0 0.0
  %4976 = vmatpush2.msra.mxu0 0.0
  %4977 = vmatprep.subr.mxu0 0.0
  %4978 = vmatpush2.msra.mxu0 0.0
  %4979 = vmatprep.subr.mxu0 0.0
  %4980 = vmatpush2.msra.mxu0 0.0
  %4981 = vmatprep.subr.mxu0 0.0
  %4982 = vmatpush2.msra.mxu0 0.0
  %4983 = vmatprep.subr.mxu0 0.0
  %4984 = vmatpush2.msra.mxu0 0.0
  %4985 = vmatprep.subr.mxu0 0.0
  %4986 = vmatpush2.msra.mxu0 0.0
  %4987 = vmatprep.mubr.f32.mxu0 0.0
  %4988 = vmatmul.mubr.f32.gmra.mxu0 %v4352
  %v4989 = vpop.f32.mrf.mxu0
  %v4990 = vadd.f32 0.0, %v4989
  %v4991 = vpop.f32.mrf.mxu0
  %4992 = vdwg.mxu0
  %4993 = vst.msk [vmem:[#allocation4 + $0x40] sm:$0xff] %vm4424, %v4990
  %4994 = vmatprep.subr.mxu0 0.0
  %4995 = vmatpush1.msra.mxu0 0.0
  %4996 = vmatprep.subr.mxu0 0.0
  %4997 = vmatpush1.msra.mxu0 0.0
  %4998 = vmatprep.subr.mxu0 0.0
  %4999 = vmatpush1.msra.mxu0 0.0
  %5000 = vmatprep.subr.mxu0 0.0
  %5001 = vmatpush1.msra.mxu0 0.0
  %5002 = vmatprep.subr.mxu0 0.0
  %5003 = vmatpush1.msra.mxu0 0.0
  %5004 = vmatprep.subr.mxu0 0.0
  %5005 = vmatpush1.msra.mxu0 0.0
  %5006 = vmatprep.subr.mxu0 0.0
  %5007 = vmatpush1.msra.mxu0 0.0
  %5008 = vmatprep.subr.mxu0 0.0
  %5009 = vmatpush1.msra.mxu0 0.0
  %5010 = vmatprep.subr.mxu0 0.0
  %5011 = vmatpush1.msra.mxu0 0.0
  %5012 = vmatprep.subr.mxu0 0.0
  %5013 = vmatpush1.msra.mxu0 0.0
  %5014 = vmatprep.subr.mxu0 0.0
  %5015 = vmatpush1.msra.mxu0 0.0
  %5016 = vmatprep.subr.mxu0 0.0
  %5017 = vmatpush1.msra.mxu0 0.0
  %5018 = vmatprep.subr.mxu0 0.0
  %5019 = vmatpush1.msra.mxu0 0.0
  %5020 = vmatprep.subr.mxu0 0.0
  %5021 = vmatpush1.msra.mxu0 %v4256
  %5022 = vmatprep.subr.mxu0 0.0
  %5023 = vmatpush1.msra.mxu0 %v4251
  %5024 = vmatprep.subr.mxu0 0.0
  %5025 = vmatpush1.msra.mxu0 %v4246
  %5026 = vmatprep.subr.mxu0 0.0
  %5027 = vmatpush2.msra.mxu0 0.0
  %5028 = vmatprep.subr.mxu0 0.0
  %5029 = vmatpush2.msra.mxu0 0.0
  %5030 = vmatprep.subr.mxu0 0.0
  %5031 = vmatpush2.msra.mxu0 0.0
  %5032 = vmatprep.subr.mxu0 0.0
  %5033 = vmatpush2.msra.mxu0 0.0
  %5034 = vmatprep.subr.mxu0 0.0
  %5035 = vmatpush2.msra.mxu0 0.0
  %5036 = vmatprep.subr.mxu0 0.0
  %5037 = vmatpush2.msra.mxu0 0.0
  %5038 = vmatprep.subr.mxu0 0.0
  %5039 = vmatpush2.msra.mxu0 0.0
  %5040 = vmatprep.subr.mxu0 0.0
  %5041 = vmatpush2.msra.mxu0 0.0
  %5042 = vmatprep.subr.mxu0 0.0
  %5043 = vmatpush2.msra.mxu0 0.0
  %5044 = vmatprep.subr.mxu0 0.0
  %5045 = vmatpush2.msra.mxu0 0.0
  %5046 = vmatprep.subr.mxu0 0.0
  %5047 = vmatpush2.msra.mxu0 0.0
  %5048 = vmatprep.subr.mxu0 0.0
  %5049 = vmatpush2.msra.mxu0 0.0
  %5050 = vmatprep.subr.mxu0 0.0
  %5051 = vmatpush2.msra.mxu0 0.0
  %5052 = vmatprep.subr.mxu0 0.0
  %5053 = vmatpush2.msra.mxu0 0.0
  %5054 = vmatprep.subr.mxu0 0.0
  %5055 = vmatpush2.msra.mxu0 0.0
  %5056 = vmatprep.subr.mxu0 0.0
  %5057 = vmatpush2.msra.mxu0 0.0
  %5058 = vmatprep.mubr.f32.mxu0 0.0
  %5059 = vmatmul.mubr.f32.gmra.mxu0 %v4352
  %v5060 = vpop.f32.mrf.mxu0
  %v5061 = vadd.f32 0.0, %v5060
  %v5062 = vpop.f32.mrf.mxu0
  %5063 = vdwg.mxu0
  %5064 = vst.msk [vmem:[#allocation4 + $0x48] sm:$0xff] %vm4424, %v5061
  %5065 = vmatprep.subr.mxu0 0.0
  %5066 = vmatpush1.msra.mxu0 0.0
  %5067 = vmatprep.subr.mxu0 0.0
  %5068 = vmatpush1.msra.mxu0 0.0
  %5069 = vmatprep.subr.mxu0 0.0
  %5070 = vmatpush1.msra.mxu0 0.0
  %5071 = vmatprep.subr.mxu0 0.0
  %5072 = vmatpush1.msra.mxu0 0.0
  %5073 = vmatprep.subr.mxu0 0.0
  %5074 = vmatpush1.msra.mxu0 0.0
  %5075 = vmatprep.subr.mxu0 0.0
  %5076 = vmatpush1.msra.mxu0 0.0
  %5077 = vmatprep.subr.mxu0 0.0
  %5078 = vmatpush1.msra.mxu0 0.0
  %5079 = vmatprep.subr.mxu0 0.0
  %5080 = vmatpush1.msra.mxu0 0.0
  %5081 = vmatprep.subr.mxu0 0.0
  %5082 = vmatpush1.msra.mxu0 0.0
  %5083 = vmatprep.subr.mxu0 0.0
  %5084 = vmatpush1.msra.mxu0 0.0
  %5085 = vmatprep.subr.mxu0 0.0
  %5086 = vmatpush1.msra.mxu0 0.0
  %5087 = vmatprep.subr.mxu0 0.0
  %5088 = vmatpush1.msra.mxu0 0.0
  %5089 = vmatprep.subr.mxu0 0.0
  %5090 = vmatpush1.msra.mxu0 0.0
  %5091 = vmatprep.subr.mxu0 0.0
  %5092 = vmatpush1.msra.mxu0 %v4271
  %5093 = vmatprep.subr.mxu0 0.0
  %5094 = vmatpush1.msra.mxu0 %v4266
  %5095 = vmatprep.subr.mxu0 0.0
  %5096 = vmatpush1.msra.mxu0 %v4261
  %5097 = vmatprep.subr.mxu0 0.0
  %5098 = vmatpush2.msra.mxu0 0.0
  %5099 = vmatprep.subr.mxu0 0.0
  %5100 = vmatpush2.msra.mxu0 0.0
  %5101 = vmatprep.subr.mxu0 0.0
  %5102 = vmatpush2.msra.mxu0 0.0
  %5103 = vmatprep.subr.mxu0 0.0
  %5104 = vmatpush2.msra.mxu0 0.0
  %5105 = vmatprep.subr.mxu0 0.0
  %5106 = vmatpush2.msra.mxu0 0.0
  %5107 = vmatprep.subr.mxu0 0.0
  %5108 = vmatpush2.msra.mxu0 0.0
  %5109 = vmatprep.subr.mxu0 0.0
  %5110 = vmatpush2.msra.mxu0 0.0
  %5111 = vmatprep.subr.mxu0 0.0
  %5112 = vmatpush2.msra.mxu0 0.0
  %5113 = vmatprep.subr.mxu0 0.0
  %5114 = vmatpush2.msra.mxu0 0.0
  %5115 = vmatprep.subr.mxu0 0.0
  %5116 = vmatpush2.msra.mxu0 0.0
  %5117 = vmatprep.subr.mxu0 0.0
  %5118 = vmatpush2.msra.mxu0 0.0
  %5119 = vmatprep.subr.mxu0 0.0
  %5120 = vmatpush2.msra.mxu0 0.0
  %5121 = vmatprep.subr.mxu0 0.0
  %5122 = vmatpush2.msra.mxu0 0.0
  %5123 = vmatprep.subr.mxu0 0.0
  %5124 = vmatpush2.msra.mxu0 0.0
  %5125 = vmatprep.subr.mxu0 0.0
  %5126 = vmatpush2.msra.mxu0 0.0
  %5127 = vmatprep.subr.mxu0 0.0
  %5128 = vmatpush2.msra.mxu0 0.0
  %5129 = vmatprep.mubr.f32.mxu0 0.0
  %5130 = vmatmul.mubr.f32.gmra.mxu0 %v4352
  %v5131 = vpop.f32.mrf.mxu0
  %v5132 = vadd.f32 0.0, %v5131
  %v5133 = vpop.f32.mrf.mxu0
  %5134 = vdwg.mxu0
  %5135 = vst.msk [vmem:[#allocation4 + $0x50] sm:$0xff] %vm4424, %v5132
  %5136 = vmatprep.subr.mxu0 0.0
  %5137 = vmatpush1.msra.mxu0 0.0
  %5138 = vmatprep.subr.mxu0 0.0
  %5139 = vmatpush1.msra.mxu0 0.0
  %5140 = vmatprep.subr.mxu0 0.0
  %5141 = vmatpush1.msra.mxu0 0.0
  %5142 = vmatprep.subr.mxu0 0.0
  %5143 = vmatpush1.msra.mxu0 0.0
  %5144 = vmatprep.subr.mxu0 0.0
  %5145 = vmatpush1.msra.mxu0 0.0
  %5146 = vmatprep.subr.mxu0 0.0
  %5147 = vmatpush1.msra.mxu0 0.0
  %5148 = vmatprep.subr.mxu0 0.0
  %5149 = vmatpush1.msra.mxu0 0.0
  %5150 = vmatprep.subr.mxu0 0.0
  %5151 = vmatpush1.msra.mxu0 0.0
  %5152 = vmatprep.subr.mxu0 0.0
  %5153 = vmatpush1.msra.mxu0 0.0
  %5154 = vmatprep.subr.mxu0 0.0
  %5155 = vmatpush1.msra.mxu0 0.0
  %5156 = vmatprep.subr.mxu0 0.0
  %5157 = vmatpush1.msra.mxu0 0.0
  %5158 = vmatprep.subr.mxu0 0.0
  %5159 = vmatpush1.msra.mxu0 0.0
  %5160 = vmatprep.subr.mxu0 0.0
  %5161 = vmatpush1.msra.mxu0 0.0
  %5162 = vmatprep.subr.mxu0 0.0
  %5163 = vmatpush1.msra.mxu0 %v4286
  %5164 = vmatprep.subr.mxu0 0.0
  %5165 = vmatpush1.msra.mxu0 %v4281
  %5166 = vmatprep.subr.mxu0 0.0
  %5167 = vmatpush1.msra.mxu0 %v4276
  %5168 = vmatprep.subr.mxu0 0.0
  %5169 = vmatpush2.msra.mxu0 0.0
  %5170 = vmatprep.subr.mxu0 0.0
  %5171 = vmatpush2.msra.mxu0 0.0
  %5172 = vmatprep.subr.mxu0 0.0
  %5173 = vmatpush2.msra.mxu0 0.0
  %5174 = vmatprep.subr.mxu0 0.0
  %5175 = vmatpush2.msra.mxu0 0.0
  %5176 = vmatprep.subr.mxu0 0.0
  %5177 = vmatpush2.msra.mxu0 0.0
  %5178 = vmatprep.subr.mxu0 0.0
  %5179 = vmatpush2.msra.mxu0 0.0
  %5180 = vmatprep.subr.mxu0 0.0
  %5181 = vmatpush2.msra.mxu0 0.0
  %5182 = vmatprep.subr.mxu0 0.0
  %5183 = vmatpush2.msra.mxu0 0.0
  %5184 = vmatprep.subr.mxu0 0.0
  %5185 = vmatpush2.msra.mxu0 0.0
  %5186 = vmatprep.subr.mxu0 0.0
  %5187 = vmatpush2.msra.mxu0 0.0
  %5188 = vmatprep.subr.mxu0 0.0
  %5189 = vmatpush2.msra.mxu0 0.0
  %5190 = vmatprep.subr.mxu0 0.0
  %5191 = vmatpush2.msra.mxu0 0.0
  %5192 = vmatprep.subr.mxu0 0.0
  %5193 = vmatpush2.msra.mxu0 0.0
  %5194 = vmatprep.subr.mxu0 0.0
  %5195 = vmatpush2.msra.mxu0 0.0
  %5196 = vmatprep.subr.mxu0 0.0
  %5197 = vmatpush2.msra.mxu0 0.0
  %5198 = vmatprep.subr.mxu0 0.0
  %5199 = vmatpush2.msra.mxu0 0.0
  %5200 = vmatprep.mubr.f32.mxu0 0.0
  %5201 = vmatmul.mubr.f32.gmra.mxu0 %v4352
  %v5202 = vpop.f32.mrf.mxu0
  %v5203 = vadd.f32 0.0, %v5202
  %v5204 = vpop.f32.mrf.mxu0
  %5205 = vdwg.mxu0
  %5206 = vst.msk [vmem:[#allocation4 + $0x58] sm:$0xff] %vm4424, %v5203
  %5207 = vmatprep.subr.mxu0 0.0
  %5208 = vmatpush1.msra.mxu0 0.0
  %5209 = vmatprep.subr.mxu0 0.0
  %5210 = vmatpush1.msra.mxu0 0.0
  %5211 = vmatprep.subr.mxu0 0.0
  %5212 = vmatpush1.msra.mxu0 0.0
  %5213 = vmatprep.subr.mxu0 0.0
  %5214 = vmatpush1.msra.mxu0 0.0
  %5215 = vmatprep.subr.mxu0 0.0
  %5216 = vmatpush1.msra.mxu0 0.0
  %5217 = vmatprep.subr.mxu0 0.0
  %5218 = vmatpush1.msra.mxu0 0.0
  %5219 = vmatprep.subr.mxu0 0.0
  %5220 = vmatpush1.msra.mxu0 0.0
  %5221 = vmatprep.subr.mxu0 0.0
  %5222 = vmatpush1.msra.mxu0 0.0
  %5223 = vmatprep.subr.mxu0 0.0
  %5224 = vmatpush1.msra.mxu0 0.0
  %5225 = vmatprep.subr.mxu0 0.0
  %5226 = vmatpush1.msra.mxu0 0.0
  %5227 = vmatprep.subr.mxu0 0.0
  %5228 = vmatpush1.msra.mxu0 0.0
  %5229 = vmatprep.subr.mxu0 0.0
  %5230 = vmatpush1.msra.mxu0 0.0
  %5231 = vmatprep.subr.mxu0 0.0
  %5232 = vmatpush1.msra.mxu0 0.0
  %5233 = vmatprep.subr.mxu0 0.0
  %5234 = vmatpush1.msra.mxu0 %v4301
  %5235 = vmatprep.subr.mxu0 0.0
  %5236 = vmatpush1.msra.mxu0 %v4296
  %5237 = vmatprep.subr.mxu0 0.0
  %5238 = vmatpush1.msra.mxu0 %v4291
  %5239 = vmatprep.subr.mxu0 0.0
  %5240 = vmatpush2.msra.mxu0 0.0
  %5241 = vmatprep.subr.mxu0 0.0
  %5242 = vmatpush2.msra.mxu0 0.0
  %5243 = vmatprep.subr.mxu0 0.0
  %5244 = vmatpush2.msra.mxu0 0.0
  %5245 = vmatprep.subr.mxu0 0.0
  %5246 = vmatpush2.msra.mxu0 0.0
  %5247 = vmatprep.subr.mxu0 0.0
  %5248 = vmatpush2.msra.mxu0 0.0
  %5249 = vmatprep.subr.mxu0 0.0
  %5250 = vmatpush2.msra.mxu0 0.0
  %5251 = vmatprep.subr.mxu0 0.0
  %5252 = vmatpush2.msra.mxu0 0.0
  %5253 = vmatprep.subr.mxu0 0.0
  %5254 = vmatpush2.msra.mxu0 0.0
  %5255 = vmatprep.subr.mxu0 0.0
  %5256 = vmatpush2.msra.mxu0 0.0
  %5257 = vmatprep.subr.mxu0 0.0
  %5258 = vmatpush2.msra.mxu0 0.0
  %5259 = vmatprep.subr.mxu0 0.0
  %5260 = vmatpush2.msra.mxu0 0.0
  %5261 = vmatprep.subr.mxu0 0.0
  %5262 = vmatpush2.msra.mxu0 0.0
  %5263 = vmatprep.subr.mxu0 0.0
  %5264 = vmatpush2.msra.mxu0 0.0
  %5265 = vmatprep.subr.mxu0 0.0
  %5266 = vmatpush2.msra.mxu0 0.0
  %5267 = vmatprep.subr.mxu0 0.0
  %5268 = vmatpush2.msra.mxu0 0.0
  %5269 = vmatprep.subr.mxu0 0.0
  %5270 = vmatpush2.msra.mxu0 0.0
  %5271 = vmatprep.mubr.f32.mxu0 0.0
  %5272 = vmatmul.mubr.f32.gmra.mxu0 %v4352
  %v5273 = vpop.f32.mrf.mxu0
  %v5274 = vadd.f32 0.0, %v5273
  %v5275 = vpop.f32.mrf.mxu0
  %5276 = vdwg.mxu0
  %5277 = vst.msk [vmem:[#allocation4 + $0x60] sm:$0xff] %vm4424, %v5274
  %5278 = vmatprep.subr.mxu0 0.0
  %5279 = vmatpush1.msra.mxu0 0.0
  %5280 = vmatprep.subr.mxu0 0.0
  %5281 = vmatpush1.msra.mxu0 0.0
  %5282 = vmatprep.subr.mxu0 0.0
  %5283 = vmatpush1.msra.mxu0 0.0
  %5284 = vmatprep.subr.mxu0 0.0
  %5285 = vmatpush1.msra.mxu0 0.0
  %5286 = vmatprep.subr.mxu0 0.0
  %5287 = vmatpush1.msra.mxu0 0.0
  %5288 = vmatprep.subr.mxu0 0.0
  %5289 = vmatpush1.msra.mxu0 0.0
  %5290 = vmatprep.subr.mxu0 0.0
  %5291 = vmatpush1.msra.mxu0 0.0
  %5292 = vmatprep.subr.mxu0 0.0
  %5293 = vmatpush1.msra.mxu0 0.0
  %5294 = vmatprep.subr.mxu0 0.0
  %5295 = vmatpush1.msra.mxu0 0.0
  %5296 = vmatprep.subr.mxu0 0.0
  %5297 = vmatpush1.msra.mxu0 0.0
  %5298 = vmatprep.subr.mxu0 0.0
  %5299 = vmatpush1.msra.mxu0 0.0
  %5300 = vmatprep.subr.mxu0 0.0
  %5301 = vmatpush1.msra.mxu0 0.0
  %5302 = vmatprep.subr.mxu0 0.0
  %5303 = vmatpush1.msra.mxu0 0.0
  %5304 = vmatprep.subr.mxu0 0.0
  %5305 = vmatpush1.msra.mxu0 %v4316
  %5306 = vmatprep.subr.mxu0 0.0
  %5307 = vmatpush1.msra.mxu0 %v4311
  %5308 = vmatprep.subr.mxu0 0.0
  %5309 = vmatpush1.msra.mxu0 %v4306
  %5310 = vmatprep.subr.mxu0 0.0
  %5311 = vmatpush2.msra.mxu0 0.0
  %5312 = vmatprep.subr.mxu0 0.0
  %5313 = vmatpush2.msra.mxu0 0.0
  %5314 = vmatprep.subr.mxu0 0.0
  %5315 = vmatpush2.msra.mxu0 0.0
  %5316 = vmatprep.subr.mxu0 0.0
  %5317 = vmatpush2.msra.mxu0 0.0
  %5318 = vmatprep.subr.mxu0 0.0
  %5319 = vmatpush2.msra.mxu0 0.0
  %5320 = vmatprep.subr.mxu0 0.0
  %5321 = vmatpush2.msra.mxu0 0.0
  %5322 = vmatprep.subr.mxu0 0.0
  %5323 = vmatpush2.msra.mxu0 0.0
  %5324 = vmatprep.subr.mxu0 0.0
  %5325 = vmatpush2.msra.mxu0 0.0
  %5326 = vmatprep.subr.mxu0 0.0
  %5327 = vmatpush2.msra.mxu0 0.0
  %5328 = vmatprep.subr.mxu0 0.0
  %5329 = vmatpush2.msra.mxu0 0.0
  %5330 = vmatprep.subr.mxu0 0.0
  %5331 = vmatpush2.msra.mxu0 0.0
  %5332 = vmatprep.subr.mxu0 0.0
  %5333 = vmatpush2.msra.mxu0 0.0
  %5334 = vmatprep.subr.mxu0 0.0
  %5335 = vmatpush2.msra.mxu0 0.0
  %5336 = vmatprep.subr.mxu0 0.0
  %5337 = vmatpush2.msra.mxu0 0.0
  %5338 = vmatprep.subr.mxu0 0.0
  %5339 = vmatpush2.msra.mxu0 0.0
  %5340 = vmatprep.subr.mxu0 0.0
  %5341 = vmatpush2.msra.mxu0 0.0
  %5342 = vmatprep.mubr.f32.mxu0 0.0
  %5343 = vmatmul.mubr.f32.gmra.mxu0 %v4352
  %v5344 = vpop.f32.mrf.mxu0
  %v5345 = vadd.f32 0.0, %v5344
  %v5346 = vpop.f32.mrf.mxu0
  %5347 = vdwg.mxu0
  %5348 = vst.msk [vmem:[#allocation4 + $0x68] sm:$0xff] %vm4424, %v5345
  %5349 = vmatprep.subr.mxu0 0.0
  %5350 = vmatpush1.msra.mxu0 0.0
  %5351 = vmatprep.subr.mxu0 0.0
  %5352 = vmatpush1.msra.mxu0 0.0
  %5353 = vmatprep.subr.mxu0 0.0
  %5354 = vmatpush1.msra.mxu0 0.0
  %5355 = vmatprep.subr.mxu0 0.0
  %5356 = vmatpush1.msra.mxu0 0.0
  %5357 = vmatprep.subr.mxu0 0.0
  %5358 = vmatpush1.msra.mxu0 0.0
  %5359 = vmatprep.subr.mxu0 0.0
  %5360 = vmatpush1.msra.mxu0 0.0
  %5361 = vmatprep.subr.mxu0 0.0
  %5362 = vmatpush1.msra.mxu0 0.0
  %5363 = vmatprep.subr.mxu0 0.0
  %5364 = vmatpush1.msra.mxu0 0.0
  %5365 = vmatprep.subr.mxu0 0.0
  %5366 = vmatpush1.msra.mxu0 0.0
  %5367 = vmatprep.subr.mxu0 0.0
  %5368 = vmatpush1.msra.mxu0 0.0
  %5369 = vmatprep.subr.mxu0 0.0
  %5370 = vmatpush1.msra.mxu0 0.0
  %5371 = vmatprep.subr.mxu0 0.0
  %5372 = vmatpush1.msra.mxu0 0.0
  %5373 = vmatprep.subr.mxu0 0.0
  %5374 = vmatpush1.msra.mxu0 0.0
  %5375 = vmatprep.subr.mxu0 0.0
  %5376 = vmatpush1.msra.mxu0 %v4331
  %5377 = vmatprep.subr.mxu0 0.0
  %5378 = vmatpush1.msra.mxu0 %v4326
  %5379 = vmatprep.subr.mxu0 0.0
  %5380 = vmatpush1.msra.mxu0 %v4321
  %5381 = vmatprep.subr.mxu0 0.0
  %5382 = vmatpush2.msra.mxu0 0.0
  %5383 = vmatprep.subr.mxu0 0.0
  %5384 = vmatpush2.msra.mxu0 0.0
  %5385 = vmatprep.subr.mxu0 0.0
  %5386 = vmatpush2.msra.mxu0 0.0
  %5387 = vmatprep.subr.mxu0 0.0
  %5388 = vmatpush2.msra.mxu0 0.0
  %5389 = vmatprep.subr.mxu0 0.0
  %5390 = vmatpush2.msra.mxu0 0.0
  %5391 = vmatprep.subr.mxu0 0.0
  %5392 = vmatpush2.msra.mxu0 0.0
  %5393 = vmatprep.subr.mxu0 0.0
  %5394 = vmatpush2.msra.mxu0 0.0
  %5395 = vmatprep.subr.mxu0 0.0
  %5396 = vmatpush2.msra.mxu0 0.0
  %5397 = vmatprep.subr.mxu0 0.0
  %5398 = vmatpush2.msra.mxu0 0.0
  %5399 = vmatprep.subr.mxu0 0.0
  %5400 = vmatpush2.msra.mxu0 0.0
  %5401 = vmatprep.subr.mxu0 0.0
  %5402 = vmatpush2.msra.mxu0 0.0
  %5403 = vmatprep.subr.mxu0 0.0
  %5404 = vmatpush2.msra.mxu0 0.0
  %5405 = vmatprep.subr.mxu0 0.0
  %5406 = vmatpush2.msra.mxu0 0.0
  %5407 = vmatprep.subr.mxu0 0.0
  %5408 = vmatpush2.msra.mxu0 0.0
  %5409 = vmatprep.subr.mxu0 0.0
  %5410 = vmatpush2.msra.mxu0 0.0
  %5411 = vmatprep.subr.mxu0 0.0
  %5412 = vmatpush2.msra.mxu0 0.0
  %5413 = vmatprep.mubr.f32.mxu0 0.0
  %5414 = vmatmul.mubr.f32.gmra.mxu0 %v4352
  %v5415 = vpop.f32.mrf.mxu0
  %v5416 = vadd.f32 0.0, %v5415
  %v5417 = vpop.f32.mrf.mxu0
  %5418 = vdwg.mxu0
  %5419 = vst.msk [vmem:[#allocation4 + $0x70] sm:$0xff] %vm4424, %v5416
  %5420 = vmatprep.subr.mxu0 0.0
  %5421 = vmatpush1.msra.mxu0 0.0
  %5422 = vmatprep.subr.mxu0 0.0
  %5423 = vmatpush1.msra.mxu0 0.0
  %5424 = vmatprep.subr.mxu0 0.0
  %5425 = vmatpush1.msra.mxu0 0.0
  %5426 = vmatprep.subr.mxu0 0.0
  %5427 = vmatpush1.msra.mxu0 0.0
  %5428 = vmatprep.subr.mxu0 0.0
  %5429 = vmatpush1.msra.mxu0 0.0
  %5430 = vmatprep.subr.mxu0 0.0
  %5431 = vmatpush1.msra.mxu0 0.0
  %5432 = vmatprep.subr.mxu0 0.0
  %5433 = vmatpush1.msra.mxu0 0.0
  %5434 = vmatprep.subr.mxu0 0.0
  %5435 = vmatpush1.msra.mxu0 0.0
  %5436 = vmatprep.subr.mxu0 0.0
  %5437 = vmatpush1.msra.mxu0 0.0
  %5438 = vmatprep.subr.mxu0 0.0
  %5439 = vmatpush1.msra.mxu0 0.0
  %5440 = vmatprep.subr.mxu0 0.0
  %5441 = vmatpush1.msra.mxu0 0.0
  %5442 = vmatprep.subr.mxu0 0.0
  %5443 = vmatpush1.msra.mxu0 0.0
  %5444 = vmatprep.subr.mxu0 0.0
  %5445 = vmatpush1.msra.mxu0 0.0
  %5446 = vmatprep.subr.mxu0 0.0
  %5447 = vmatpush1.msra.mxu0 %v4346
  %5448 = vmatprep.subr.mxu0 0.0
  %5449 = vmatpush1.msra.mxu0 %v4341
  %5450 = vmatprep.subr.mxu0 0.0
  %5451 = vmatpush1.msra.mxu0 %v4336
  %5452 = vmatprep.subr.mxu0 0.0
  %5453 = vmatpush2.msra.mxu0 0.0
  %5454 = vmatprep.subr.mxu0 0.0
  %5455 = vmatpush2.msra.mxu0 0.0
  %5456 = vmatprep.subr.mxu0 0.0
  %5457 = vmatpush2.msra.mxu0 0.0
  %5458 = vmatprep.subr.mxu0 0.0
  %5459 = vmatpush2.msra.mxu0 0.0
  %5460 = vmatprep.subr.mxu0 0.0
  %5461 = vmatpush2.msra.mxu0 0.0
  %5462 = vmatprep.subr.mxu0 0.0
  %5463 = vmatpush2.msra.mxu0 0.0
  %5464 = vmatprep.subr.mxu0 0.0
  %5465 = vmatpush2.msra.mxu0 0.0
  %5466 = vmatprep.subr.mxu0 0.0
  %5467 = vmatpush2.msra.mxu0 0.0
  %5468 = vmatprep.subr.mxu0 0.0
  %5469 = vmatpush2.msra.mxu0 0.0
  %5470 = vmatprep.subr.mxu0 0.0
  %5471 = vmatpush2.msra.mxu0 0.0
  %5472 = vmatprep.subr.mxu0 0.0
  %5473 = vmatpush2.msra.mxu0 0.0
  %5474 = vmatprep.subr.mxu0 0.0
  %5475 = vmatpush2.msra.mxu0 0.0
  %5476 = vmatprep.subr.mxu0 0.0
  %5477 = vmatpush2.msra.mxu0 0.0
  %5478 = vmatprep.subr.mxu0 0.0
  %5479 = vmatpush2.msra.mxu0 0.0
  %5480 = vmatprep.subr.mxu0 0.0
  %5481 = vmatpush2.msra.mxu0 0.0
  %5482 = vmatprep.subr.mxu0 0.0
  %5483 = vmatpush2.msra.mxu0 0.0
  %5484 = vmatprep.mubr.f32.mxu0 0.0
  %5485 = vmatmul.mubr.f32.gmra.mxu0 %v4352
  %v5486 = vpop.f32.mrf.mxu0
  %v5487 = vadd.f32 0.0, %v5486
  %v5488 = vpop.f32.mrf.mxu0
  %5489 = vdwg.mxu0
  %5490 = vst.msk [vmem:[#allocation4 + $0x78] sm:$0xff] %vm4424, %v5487
  %v5491 = vld [vmem:[%s0] sm:$0xff]
  %v5492 = vld [vmem:[%s0 + $0x8] sm:$0xff]
  %v5493 = vld [vmem:[%s0 + $0x10] sm:$0xff]
  %v5494 = vld [vmem:[%s0 + $0x18] sm:$0xff]
  %v5495 = vld [vmem:[%s0 + $0x20] sm:$0xff]
  %v5496 = vld [vmem:[%s0 + $0x28] sm:$0xff]
  %v5497 = vld [vmem:[%s0 + $0x30] sm:$0xff]
  %v5498 = vld [vmem:[%s0 + $0x38] sm:$0xff]
  %v5499 = vld [vmem:[%s0 + $0x40] sm:$0xff]
  %v5500 = vld [vmem:[%s0 + $0x48] sm:$0xff]
  %v5501 = vld [vmem:[%s0 + $0x50] sm:$0xff]
  %v5502 = vld [vmem:[%s0 + $0x58] sm:$0xff]
  %v5503 = vld [vmem:[%s0 + $0x60] sm:$0xff]
  %v5504 = vld [vmem:[%s0 + $0x68] sm:$0xff]
  %v5505 = vld [vmem:[%s0 + $0x70] sm:$0xff]
  %v5506 = vld [vmem:[%s0 + $0x78] sm:$0xff]
  %v5507 = vld [vmem:[#allocation4] sm:$0xff]
  %v5508 = vld [vmem:[#allocation4 + $0x8] sm:$0xff]
  %v5509 = vld [vmem:[#allocation4 + $0x10] sm:$0xff]
  %v5510 = vld [vmem:[#allocation4 + $0x18] sm:$0xff]
  %v5511 = vld [vmem:[#allocation4 + $0x20] sm:$0xff]
  %v5512 = vld [vmem:[#allocation4 + $0x28] sm:$0xff]
  %v5513 = vld [vmem:[#allocation4 + $0x30] sm:$0xff]
  %v5514 = vld [vmem:[#allocation4 + $0x38] sm:$0xff]
  %v5515 = vld [vmem:[#allocation4 + $0x40] sm:$0xff]
  %v5516 = vld [vmem:[#allocation4 + $0x48] sm:$0xff]
  %v5517 = vld [vmem:[#allocation4 + $0x50] sm:$0xff]
  %v5518 = vld [vmem:[#allocation4 + $0x58] sm:$0xff]
  %v5519 = vld [vmem:[#allocation4 + $0x60] sm:$0xff]
  %v5520 = vld [vmem:[#allocation4 + $0x68] sm:$0xff]
  %v5521 = vld [vmem:[#allocation4 + $0x70] sm:$0xff]
  %v5522 = vld [vmem:[#allocation4 + $0x78] sm:$0xff]
  %v5523 = vld [vmem:[%s11] sm:$0x7f]
  %v5524 = vld [vmem:[%s12] sm:$0xff]
  %v5525 = vld [vmem:[%s12 + $0x8] sm:$0xff]
  %v5526 = vld [vmem:[%s12 + $0x10] sm:$0xff]
  %v5527 = vld [vmem:[%s12 + $0x18] sm:$0xff]
  %v5529 = vsel %vm4424, %v5507, 0
  %v5532 = vsel %vm4424, %v5508, 0
  %v5535 = vsel %vm4424, %v5509, 0
  %v5538 = vsel %vm4424, %v5510, 0
  %v5541 = vsel %vm4424, %v5511, 0
  %v5544 = vsel %vm4424, %v5512, 0
  %v5547 = vsel %vm4424, %v5513, 0
  %v5550 = vsel %vm4424, %v5514, 0
  %v5553 = vsel %vm4424, %v5515, 0
  %v5556 = vsel %vm4424, %v5516, 0
  %v5559 = vsel %vm4424, %v5517, 0
  %v5562 = vsel %vm4424, %v5518, 0
  %v5565 = vsel %vm4424, %v5519, 0
  %v5568 = vsel %vm4424, %v5520, 0
  %v5571 = vsel %vm4424, %v5521, 0
  %v5574 = vsel %vm4424, %v5522, 0
  %5576 = vmatprep.subr.mxu0 0.0
  %5577 = vmatpush1.msra.mxu0 0.0
  %5578 = vmatprep.subr.mxu0 0.0
  %5579 = vmatpush1.msra.mxu0 0.0
  %5580 = vmatprep.subr.mxu0 0.0
  %5581 = vmatpush1.msra.mxu0 0.0
  %5582 = vmatprep.subr.mxu0 0.0
  %5583 = vmatpush1.msra.mxu0 0.0
  %5584 = vmatprep.subr.mxu0 0.0
  %5585 = vmatpush1.msra.mxu0 0.0
  %5586 = vmatprep.subr.mxu0 0.0
  %5587 = vmatpush1.msra.mxu0 0.0
  %5588 = vmatprep.subr.mxu0 0.0
  %5589 = vmatpush1.msra.mxu0 0.0
  %5590 = vmatprep.subr.mxu0 0.0
  %5591 = vmatpush1.msra.mxu0 0.0
  %5592 = vmatprep.subr.mxu0 0.0
  %5593 = vmatpush1.msra.mxu0 0.0
  %5594 = vmatprep.subr.mxu0 0.0
  %5595 = vmatpush1.msra.mxu0 0.0
  %5596 = vmatprep.subr.mxu0 0.0
  %5597 = vmatpush1.msra.mxu0 0.0
  %5598 = vmatprep.subr.mxu0 0.0
  %5599 = vmatpush1.msra.mxu0 0.0
  %5600 = vmatprep.subr.mxu0 0.0
  %5601 = vmatpush1.msra.mxu0 %v5527
  %5602 = vmatprep.subr.mxu0 0.0
  %5603 = vmatpush1.msra.mxu0 %v5526
  %5604 = vmatprep.subr.mxu0 0.0
  %5605 = vmatpush1.msra.mxu0 %v5525
  %5606 = vmatprep.subr.mxu0 0.0
  %5607 = vmatpush1.msra.mxu0 %v5524
  %5608 = vmatprep.subr.mxu0 0.0
  %5609 = vmatpush2.msra.mxu0 0.0
  %5610 = vmatprep.subr.mxu0 0.0
  %5611 = vmatpush2.msra.mxu0 0.0
  %5612 = vmatprep.subr.mxu0 0.0
  %5613 = vmatpush2.msra.mxu0 0.0
  %5614 = vmatprep.subr.mxu0 0.0
  %5615 = vmatpush2.msra.mxu0 0.0
  %5616 = vmatprep.subr.mxu0 0.0
  %5617 = vmatpush2.msra.mxu0 0.0
  %5618 = vmatprep.subr.mxu0 0.0
  %5619 = vmatpush2.msra.mxu0 0.0
  %5620 = vmatprep.subr.mxu0 0.0
  %5621 = vmatpush2.msra.mxu0 0.0
  %5622 = vmatprep.subr.mxu0 0.0
  %5623 = vmatpush2.msra.mxu0 0.0
  %5624 = vmatprep.subr.mxu0 0.0
  %5625 = vmatpush2.msra.mxu0 0.0
  %5626 = vmatprep.subr.mxu0 0.0
  %5627 = vmatpush2.msra.mxu0 0.0
  %5628 = vmatprep.subr.mxu0 0.0
  %5629 = vmatpush2.msra.mxu0 0.0
  %5630 = vmatprep.subr.mxu0 0.0
  %5631 = vmatpush2.msra.mxu0 0.0
  %5632 = vmatprep.subr.mxu0 0.0
  %5633 = vmatpush2.msra.mxu0 0.0
  %5634 = vmatprep.subr.mxu0 0.0
  %5635 = vmatpush2.msra.mxu0 0.0
  %5636 = vmatprep.subr.mxu0 0.0
  %5637 = vmatpush2.msra.mxu0 0.0
  %5638 = vmatprep.subr.mxu0 0.0
  %5639 = vmatpush2.msra.mxu0 0.0
  %5640 = vmatprep.mubr.f32.mxu0 0.0
  %5641 = vmatmul.mubr.f32.gmra.mxu0 %v5529
  %v5642 = vpop.f32.mrf.mxu0
  %v5643 = vadd.f32 0.0, %v5642
  %v5644 = vpop.f32.mrf.mxu0
  %5645 = vmatprep.mubr.f32.mxu0 0.0
  %5646 = vmatmul.mubr.f32.gmra.mxu0 %v5532
  %v5647 = vpop.f32.mrf.mxu0
  %v5648 = vadd.f32 0.0, %v5647
  %v5649 = vpop.f32.mrf.mxu0
  %5650 = vmatprep.mubr.f32.mxu0 0.0
  %5651 = vmatmul.mubr.f32.gmra.mxu0 %v5535
  %v5652 = vpop.f32.mrf.mxu0
  %v5653 = vadd.f32 0.0, %v5652
  %v5654 = vpop.f32.mrf.mxu0
  %5655 = vmatprep.mubr.f32.mxu0 0.0
  %5656 = vmatmul.mubr.f32.gmra.mxu0 %v5538
  %v5657 = vpop.f32.mrf.mxu0
  %v5658 = vadd.f32 0.0, %v5657
  %v5659 = vpop.f32.mrf.mxu0
  %5660 = vmatprep.mubr.f32.mxu0 0.0
  %5661 = vmatmul.mubr.f32.gmra.mxu0 %v5541
  %v5662 = vpop.f32.mrf.mxu0
  %v5663 = vadd.f32 0.0, %v5662
  %v5664 = vpop.f32.mrf.mxu0
  %5665 = vmatprep.mubr.f32.mxu0 0.0
  %5666 = vmatmul.mubr.f32.gmra.mxu0 %v5544
  %v5667 = vpop.f32.mrf.mxu0
  %v5668 = vadd.f32 0.0, %v5667
  %v5669 = vpop.f32.mrf.mxu0
  %5670 = vmatprep.mubr.f32.mxu0 0.0
  %5671 = vmatmul.mubr.f32.gmra.mxu0 %v5547
  %v5672 = vpop.f32.mrf.mxu0
  %v5673 = vadd.f32 0.0, %v5672
  %v5674 = vpop.f32.mrf.mxu0
  %5675 = vmatprep.mubr.f32.mxu0 0.0
  %5676 = vmatmul.mubr.f32.gmra.mxu0 %v5550
  %v5677 = vpop.f32.mrf.mxu0
  %v5678 = vadd.f32 0.0, %v5677
  %v5679 = vpop.f32.mrf.mxu0
  %5680 = vmatprep.mubr.f32.mxu0 0.0
  %5681 = vmatmul.mubr.f32.gmra.mxu0 %v5553
  %v5682 = vpop.f32.mrf.mxu0
  %v5683 = vadd.f32 0.0, %v5682
  %v5684 = vpop.f32.mrf.mxu0
  %5685 = vmatprep.mubr.f32.mxu0 0.0
  %5686 = vmatmul.mubr.f32.gmra.mxu0 %v5556
  %v5687 = vpop.f32.mrf.mxu0
  %v5688 = vadd.f32 0.0, %v5687
  %v5689 = vpop.f32.mrf.mxu0
  %5690 = vmatprep.mubr.f32.mxu0 0.0
  %5691 = vmatmul.mubr.f32.gmra.mxu0 %v5559
  %v5692 = vpop.f32.mrf.mxu0
  %v5693 = vadd.f32 0.0, %v5692
  %v5694 = vpop.f32.mrf.mxu0
  %5695 = vmatprep.mubr.f32.mxu0 0.0
  %5696 = vmatmul.mubr.f32.gmra.mxu0 %v5562
  %v5697 = vpop.f32.mrf.mxu0
  %v5698 = vadd.f32 0.0, %v5697
  %v5699 = vpop.f32.mrf.mxu0
  %5700 = vmatprep.mubr.f32.mxu0 0.0
  %5701 = vmatmul.mubr.f32.gmra.mxu0 %v5565
  %v5702 = vpop.f32.mrf.mxu0
  %v5703 = vadd.f32 0.0, %v5702
  %v5704 = vpop.f32.mrf.mxu0
  %5705 = vmatprep.mubr.f32.mxu0 0.0
  %5706 = vmatmul.mubr.f32.gmra.mxu0 %v5568
  %v5707 = vpop.f32.mrf.mxu0
  %v5708 = vadd.f32 0.0, %v5707
  %v5709 = vpop.f32.mrf.mxu0
  %5710 = vmatprep.mubr.f32.mxu0 0.0
  %5711 = vmatmul.mubr.f32.gmra.mxu0 %v5571
  %v5712 = vpop.f32.mrf.mxu0
  %v5713 = vadd.f32 0.0, %v5712
  %v5714 = vpop.f32.mrf.mxu0
  %5715 = vmatprep.mubr.f32.mxu0 0.0
  %5716 = vmatmul.mubr.f32.gmra.mxu0 %v5574
  %v5717 = vpop.f32.mrf.mxu0
  %v5718 = vadd.f32 0.0, %v5717
  %v5719 = vpop.f32.mrf.mxu0
  %5720 = vdwg.mxu0
  %v5722 = vsel %vm183, %v5491, 0
  %v5725 = vsel %vm183, %v5492, 0
  %v5728 = vsel %vm183, %v5493, 0
  %v5731 = vsel %vm183, %v5494, 0
  %v5734 = vsel %vm183, %v5495, 0
  %v5737 = vsel %vm183, %v5496, 0
  %v5740 = vsel %vm183, %v5497, 0
  %v5743 = vsel %vm183, %v5498, 0
  %v5746 = vsel %vm183, %v5499, 0
  %v5749 = vsel %vm183, %v5500, 0
  %v5752 = vsel %vm183, %v5501, 0
  %v5755 = vsel %vm183, %v5502, 0
  %v5758 = vsel %vm183, %v5503, 0
  %v5761 = vsel %vm183, %v5504, 0
  %v5764 = vsel %vm183, %v5505, 0
  %v5767 = vsel %vm183, %v5506, 0
  %v5770 = vsel %vm1962, %v5523, 0
  %5772 = vmatprep.subr.mxu0 0.0
  %5773 = vmatpush1.msra.mxu0 0.0
  %5774 = vmatprep.subr.mxu0 0.0
  %5775 = vmatpush1.msra.mxu0 0.0
  %5776 = vmatprep.subr.mxu0 0.0
  %5777 = vmatpush1.msra.mxu0 0.0
  %5778 = vmatprep.subr.mxu0 0.0
  %5779 = vmatpush1.msra.mxu0 0.0
  %5780 = vmatprep.subr.mxu0 0.0
  %5781 = vmatpush1.msra.mxu0 0.0
  %5782 = vmatprep.subr.mxu0 0.0
  %5783 = vmatpush1.msra.mxu0 0.0
  %5784 = vmatprep.subr.mxu0 0.0
  %5785 = vmatpush1.msra.mxu0 0.0
  %5786 = vmatprep.subr.mxu0 0.0
  %5787 = vmatpush1.msra.mxu0 0.0
  %5788 = vmatprep.subr.mxu0 0.0
  %5789 = vmatpush1.msra.mxu0 0.0
  %5790 = vmatprep.subr.mxu0 0.0
  %5791 = vmatpush1.msra.mxu0 0.0
  %5792 = vmatprep.subr.mxu0 0.0
  %5793 = vmatpush1.msra.mxu0 0.0
  %5794 = vmatprep.subr.mxu0 0.0
  %5795 = vmatpush1.msra.mxu0 0.0
  %5796 = vmatprep.subr.mxu0 0.0
  %5797 = vmatpush1.msra.mxu0 0.0
  %5798 = vmatprep.subr.mxu0 0.0
  %5799 = vmatpush1.msra.mxu0 0.0
  %5800 = vmatprep.subr.mxu0 0.0
  %5801 = vmatpush1.msra.mxu0 0.0
  %5802 = vmatprep.subr.mxu0 0.0
  %5803 = vmatpush1.msra.mxu0 %v5770
  %5804 = vmatprep.subr.mxu0 0.0
  %5805 = vmatpush2.msra.mxu0 0.0
  %5806 = vmatprep.subr.mxu0 0.0
  %5807 = vmatpush2.msra.mxu0 0.0
  %5808 = vmatprep.subr.mxu0 0.0
  %5809 = vmatpush2.msra.mxu0 0.0
  %5810 = vmatprep.subr.mxu0 0.0
  %5811 = vmatpush2.msra.mxu0 0.0
  %5812 = vmatprep.subr.mxu0 0.0
  %5813 = vmatpush2.msra.mxu0 0.0
  %5814 = vmatprep.subr.mxu0 0.0
  %5815 = vmatpush2.msra.mxu0 0.0
  %5816 = vmatprep.subr.mxu0 0.0
  %5817 = vmatpush2.msra.mxu0 0.0
  %5818 = vmatprep.subr.mxu0 0.0
  %5819 = vmatpush2.msra.mxu0 0.0
  %5820 = vmatprep.subr.mxu0 0.0
  %5821 = vmatpush2.msra.mxu0 0.0
  %5822 = vmatprep.subr.mxu0 0.0
  %5823 = vmatpush2.msra.mxu0 0.0
  %5824 = vmatprep.subr.mxu0 0.0
  %5825 = vmatpush2.msra.mxu0 0.0
  %5826 = vmatprep.subr.mxu0 0.0
  %5827 = vmatpush2.msra.mxu0 0.0
  %5828 = vmatprep.subr.mxu0 0.0
  %5829 = vmatpush2.msra.mxu0 0.0
  %5830 = vmatprep.subr.mxu0 0.0
  %5831 = vmatpush2.msra.mxu0 0.0
  %5832 = vmatprep.subr.mxu0 0.0
  %5833 = vmatpush2.msra.mxu0 0.0
  %5834 = vmatprep.subr.mxu0 0.0
  %5835 = vmatpush2.msra.mxu0 0.0
  %5836 = vmatprep.mubr.f32.mxu0 0.0
  %5837 = vmatmul.mubr.f32.gmra.mxu0 %v5722
  %v5838 = vpop.f32.mrf.mxu0
  %v5839 = vadd.f32 %v5643, %v5838
  %v5840 = vpop.f32.mrf.mxu0
  %5841 = vmatprep.mubr.f32.mxu0 0.0
  %5842 = vmatmul.mubr.f32.gmra.mxu0 %v5725
  %v5843 = vpop.f32.mrf.mxu0
  %v5844 = vadd.f32 %v5648, %v5843
  %v5845 = vpop.f32.mrf.mxu0
  %5846 = vmatprep.mubr.f32.mxu0 0.0
  %5847 = vmatmul.mubr.f32.gmra.mxu0 %v5728
  %v5848 = vpop.f32.mrf.mxu0
  %v5849 = vadd.f32 %v5653, %v5848
  %v5850 = vpop.f32.mrf.mxu0
  %5851 = vmatprep.mubr.f32.mxu0 0.0
  %5852 = vmatmul.mubr.f32.gmra.mxu0 %v5731
  %v5853 = vpop.f32.mrf.mxu0
  %v5854 = vadd.f32 %v5658, %v5853
  %v5855 = vpop.f32.mrf.mxu0
  %5856 = vmatprep.mubr.f32.mxu0 0.0
  %5857 = vmatmul.mubr.f32.gmra.mxu0 %v5734
  %v5858 = vpop.f32.mrf.mxu0
  %v5859 = vadd.f32 %v5663, %v5858
  %v5860 = vpop.f32.mrf.mxu0
  %5861 = vmatprep.mubr.f32.mxu0 0.0
  %5862 = vmatmul.mubr.f32.gmra.mxu0 %v5737
  %v5863 = vpop.f32.mrf.mxu0
  %v5864 = vadd.f32 %v5668, %v5863
  %v5865 = vpop.f32.mrf.mxu0
  %5866 = vmatprep.mubr.f32.mxu0 0.0
  %5867 = vmatmul.mubr.f32.gmra.mxu0 %v5740
  %v5868 = vpop.f32.mrf.mxu0
  %v5869 = vadd.f32 %v5673, %v5868
  %v5870 = vpop.f32.mrf.mxu0
  %5871 = vmatprep.mubr.f32.mxu0 0.0
  %5872 = vmatmul.mubr.f32.gmra.mxu0 %v5743
  %v5873 = vpop.f32.mrf.mxu0
  %v5874 = vadd.f32 %v5678, %v5873
  %v5875 = vpop.f32.mrf.mxu0
  %5876 = vmatprep.mubr.f32.mxu0 0.0
  %5877 = vmatmul.mubr.f32.gmra.mxu0 %v5746
  %v5878 = vpop.f32.mrf.mxu0
  %v5879 = vadd.f32 %v5683, %v5878
  %v5880 = vpop.f32.mrf.mxu0
  %5881 = vmatprep.mubr.f32.mxu0 0.0
  %5882 = vmatmul.mubr.f32.gmra.mxu0 %v5749
  %v5883 = vpop.f32.mrf.mxu0
  %v5884 = vadd.f32 %v5688, %v5883
  %v5885 = vpop.f32.mrf.mxu0
  %5886 = vmatprep.mubr.f32.mxu0 0.0
  %5887 = vmatmul.mubr.f32.gmra.mxu0 %v5752
  %v5888 = vpop.f32.mrf.mxu0
  %v5889 = vadd.f32 %v5693, %v5888
  %v5890 = vpop.f32.mrf.mxu0
  %5891 = vmatprep.mubr.f32.mxu0 0.0
  %5892 = vmatmul.mubr.f32.gmra.mxu0 %v5755
  %v5893 = vpop.f32.mrf.mxu0
  %v5894 = vadd.f32 %v5698, %v5893
  %v5895 = vpop.f32.mrf.mxu0
  %5896 = vmatprep.mubr.f32.mxu0 0.0
  %5897 = vmatmul.mubr.f32.gmra.mxu0 %v5758
  %v5898 = vpop.f32.mrf.mxu0
  %v5899 = vadd.f32 %v5703, %v5898
  %v5900 = vpop.f32.mrf.mxu0
  %5901 = vmatprep.mubr.f32.mxu0 0.0
  %5902 = vmatmul.mubr.f32.gmra.mxu0 %v5761
  %v5903 = vpop.f32.mrf.mxu0
  %v5904 = vadd.f32 %v5708, %v5903
  %v5905 = vpop.f32.mrf.mxu0
  %5906 = vmatprep.mubr.f32.mxu0 0.0
  %5907 = vmatmul.mubr.f32.gmra.mxu0 %v5764
  %v5908 = vpop.f32.mrf.mxu0
  %v5909 = vadd.f32 %v5713, %v5908
  %v5910 = vpop.f32.mrf.mxu0
  %5911 = vmatprep.mubr.f32.mxu0 0.0
  %5912 = vmatmul.mubr.f32.gmra.mxu0 %v5767
  %v5913 = vpop.f32.mrf.mxu0
  %v5914 = vadd.f32 %v5718, %v5913
  %v5915 = vpop.f32.mrf.mxu0
  %5916 = vdwg.mxu0
  %v5917 = vmax.f32 %v5839, 0.0
  %v5918 = vmax.f32 %v5844, 0.0
  %v5919 = vmax.f32 %v5849, 0.0
  %v5920 = vmax.f32 %v5854, 0.0
  %v5921 = vmax.f32 %v5859, 0.0
  %v5922 = vmax.f32 %v5864, 0.0
  %v5923 = vmax.f32 %v5869, 0.0
  %v5924 = vmax.f32 %v5874, 0.0
  %v5925 = vmax.f32 %v5879, 0.0
  %v5926 = vmax.f32 %v5884, 0.0
  %v5927 = vmax.f32 %v5889, 0.0
  %v5928 = vmax.f32 %v5894, 0.0
  %v5929 = vmax.f32 %v5899, 0.0
  %v5930 = vmax.f32 %v5904, 0.0
  %v5931 = vmax.f32 %v5909, 0.0
  %v5932 = vmax.f32 %v5914, 0.0
  %v5933 = vld [vmem:[%s13] sm:$0xff]
  %v5934 = vld [vmem:[%s13 + $0x8] sm:$0xff]
  %v5935 = vld [vmem:[%s13 + $0x10] sm:$0xff]
  %v5936 = vld [vmem:[%s13 + $0x18] sm:$0xff]
  %v5937 = vld [vmem:[%s14] sm:$0x1]
  %v5939 = vlaneseq
  %v5940 = vshrl.u32 %v5939, 7
  %v5941 = vsub.s32 0, %v5940
  %v5942 = vrot.slane %v5937, %v5941
  %v5945 = vsel %vm4424, %v5917, 0
  %v5948 = vsel %vm4424, %v5918, 0
  %v5951 = vsel %vm4424, %v5919, 0
  %v5954 = vsel %vm4424, %v5920, 0
  %v5957 = vsel %vm4424, %v5921, 0
  %v5960 = vsel %vm4424, %v5922, 0
  %v5963 = vsel %vm4424, %v5923, 0
  %v5966 = vsel %vm4424, %v5924, 0
  %v5969 = vsel %vm4424, %v5925, 0
  %v5972 = vsel %vm4424, %v5926, 0
  %v5975 = vsel %vm4424, %v5927, 0
  %v5978 = vsel %vm4424, %v5928, 0
  %v5981 = vsel %vm4424, %v5929, 0
  %v5984 = vsel %vm4424, %v5930, 0
  %v5987 = vsel %vm4424, %v5931, 0
  %v5990 = vsel %vm4424, %v5932, 0
  %5992 = vmatprep.subr.mxu0 0.0
  %5993 = vmatpush1.msra.mxu0 0.0
  %5994 = vmatprep.subr.mxu0 0.0
  %5995 = vmatpush1.msra.mxu0 0.0
  %5996 = vmatprep.subr.mxu0 0.0
  %5997 = vmatpush1.msra.mxu0 0.0
  %5998 = vmatprep.subr.mxu0 0.0
  %5999 = vmatpush1.msra.mxu0 0.0
  %6000 = vmatprep.subr.mxu0 0.0
  %6001 = vmatpush1.msra.mxu0 0.0
  %6002 = vmatprep.subr.mxu0 0.0
  %6003 = vmatpush1.msra.mxu0 0.0
  %6004 = vmatprep.subr.mxu0 0.0
  %6005 = vmatpush1.msra.mxu0 0.0
  %6006 = vmatprep.subr.mxu0 0.0
  %6007 = vmatpush1.msra.mxu0 0.0
  %6008 = vmatprep.subr.mxu0 0.0
  %6009 = vmatpush1.msra.mxu0 0.0
  %6010 = vmatprep.subr.mxu0 0.0
  %6011 = vmatpush1.msra.mxu0 0.0
  %6012 = vmatprep.subr.mxu0 0.0
  %6013 = vmatpush1.msra.mxu0 0.0
  %6014 = vmatprep.subr.mxu0 0.0
  %6015 = vmatpush1.msra.mxu0 0.0
  %6016 = vmatprep.subr.mxu0 0.0
  %6017 = vmatpush1.msra.mxu0 %v5936
  %6018 = vmatprep.subr.mxu0 0.0
  %6019 = vmatpush1.msra.mxu0 %v5935
  %6020 = vmatprep.subr.mxu0 0.0
  %6021 = vmatpush1.msra.mxu0 %v5934
  %6022 = vmatprep.subr.mxu0 0.0
  %6023 = vmatpush1.msra.mxu0 %v5933
  %6024 = vmatprep.subr.mxu0 0.0
  %6025 = vmatpush2.msra.mxu0 0.0
  %6026 = vmatprep.subr.mxu0 0.0
  %6027 = vmatpush2.msra.mxu0 0.0
  %6028 = vmatprep.subr.mxu0 0.0
  %6029 = vmatpush2.msra.mxu0 0.0
  %6030 = vmatprep.subr.mxu0 0.0
  %6031 = vmatpush2.msra.mxu0 0.0
  %6032 = vmatprep.subr.mxu0 0.0
  %6033 = vmatpush2.msra.mxu0 0.0
  %6034 = vmatprep.subr.mxu0 0.0
  %6035 = vmatpush2.msra.mxu0 0.0
  %6036 = vmatprep.subr.mxu0 0.0
  %6037 = vmatpush2.msra.mxu0 0.0
  %6038 = vmatprep.subr.mxu0 0.0
  %6039 = vmatpush2.msra.mxu0 0.0
  %6040 = vmatprep.subr.mxu0 0.0
  %6041 = vmatpush2.msra.mxu0 0.0
  %6042 = vmatprep.subr.mxu0 0.0
  %6043 = vmatpush2.msra.mxu0 0.0
  %6044 = vmatprep.subr.mxu0 0.0
  %6045 = vmatpush2.msra.mxu0 0.0
  %6046 = vmatprep.subr.mxu0 0.0
  %6047 = vmatpush2.msra.mxu0 0.0
  %6048 = vmatprep.subr.mxu0 0.0
  %6049 = vmatpush2.msra.mxu0 0.0
  %6050 = vmatprep.subr.mxu0 0.0
  %6051 = vmatpush2.msra.mxu0 0.0
  %6052 = vmatprep.subr.mxu0 0.0
  %6053 = vmatpush2.msra.mxu0 0.0
  %6054 = vmatprep.subr.mxu0 0.0
  %6055 = vmatpush2.msra.mxu0 0.0
  %6056 = vmatprep.mubr.f32.mxu0 0.0
  %6057 = vmatmul.mubr.f32.gmra.mxu0 %v5945
  %v6058 = vpop.f32.mrf.mxu0
  %v6059 = vadd.f32 %v5942, %v6058
  %v6060 = vpop.f32.mrf.mxu0
  %6061 = vmatprep.mubr.f32.mxu0 0.0
  %6062 = vmatmul.mubr.f32.gmra.mxu0 %v5948
  %v6063 = vpop.f32.mrf.mxu0
  %v6064 = vadd.f32 %v5942, %v6063
  %v6065 = vpop.f32.mrf.mxu0
  %6066 = vmatprep.mubr.f32.mxu0 0.0
  %6067 = vmatmul.mubr.f32.gmra.mxu0 %v5951
  %v6068 = vpop.f32.mrf.mxu0
  %v6069 = vadd.f32 %v5942, %v6068
  %v6070 = vpop.f32.mrf.mxu0
  %6071 = vmatprep.mubr.f32.mxu0 0.0
  %6072 = vmatmul.mubr.f32.gmra.mxu0 %v5954
  %v6073 = vpop.f32.mrf.mxu0
  %v6074 = vadd.f32 %v5942, %v6073
  %v6075 = vpop.f32.mrf.mxu0
  %6076 = vmatprep.mubr.f32.mxu0 0.0
  %6077 = vmatmul.mubr.f32.gmra.mxu0 %v5957
  %v6078 = vpop.f32.mrf.mxu0
  %v6079 = vadd.f32 %v5942, %v6078
  %v6080 = vpop.f32.mrf.mxu0
  %6081 = vmatprep.mubr.f32.mxu0 0.0
  %6082 = vmatmul.mubr.f32.gmra.mxu0 %v5960
  %v6083 = vpop.f32.mrf.mxu0
  %v6084 = vadd.f32 %v5942, %v6083
  %v6085 = vpop.f32.mrf.mxu0
  %6086 = vmatprep.mubr.f32.mxu0 0.0
  %6087 = vmatmul.mubr.f32.gmra.mxu0 %v5963
  %v6088 = vpop.f32.mrf.mxu0
  %v6089 = vadd.f32 %v5942, %v6088
  %v6090 = vpop.f32.mrf.mxu0
  %6091 = vmatprep.mubr.f32.mxu0 0.0
  %6092 = vmatmul.mubr.f32.gmra.mxu0 %v5966
  %v6093 = vpop.f32.mrf.mxu0
  %v6094 = vadd.f32 %v5942, %v6093
  %v6095 = vpop.f32.mrf.mxu0
  %6096 = vmatprep.mubr.f32.mxu0 0.0
  %6097 = vmatmul.mubr.f32.gmra.mxu0 %v5969
  %v6098 = vpop.f32.mrf.mxu0
  %v6099 = vadd.f32 %v5942, %v6098
  %v6100 = vpop.f32.mrf.mxu0
  %6101 = vmatprep.mubr.f32.mxu0 0.0
  %6102 = vmatmul.mubr.f32.gmra.mxu0 %v5972
  %v6103 = vpop.f32.mrf.mxu0
  %v6104 = vadd.f32 %v5942, %v6103
  %v6105 = vpop.f32.mrf.mxu0
  %6106 = vmatprep.mubr.f32.mxu0 0.0
  %6107 = vmatmul.mubr.f32.gmra.mxu0 %v5975
  %v6108 = vpop.f32.mrf.mxu0
  %v6109 = vadd.f32 %v5942, %v6108
  %v6110 = vpop.f32.mrf.mxu0
  %6111 = vmatprep.mubr.f32.mxu0 0.0
  %6112 = vmatmul.mubr.f32.gmra.mxu0 %v5978
  %v6113 = vpop.f32.mrf.mxu0
  %v6114 = vadd.f32 %v5942, %v6113
  %v6115 = vpop.f32.mrf.mxu0
  %6116 = vmatprep.mubr.f32.mxu0 0.0
  %6117 = vmatmul.mubr.f32.gmra.mxu0 %v5981
  %v6118 = vpop.f32.mrf.mxu0
  %v6119 = vadd.f32 %v5942, %v6118
  %v6120 = vpop.f32.mrf.mxu0
  %6121 = vmatprep.mubr.f32.mxu0 0.0
  %6122 = vmatmul.mubr.f32.gmra.mxu0 %v5984
  %v6123 = vpop.f32.mrf.mxu0
  %v6124 = vadd.f32 %v5942, %v6123
  %v6125 = vpop.f32.mrf.mxu0
  %6126 = vmatprep.mubr.f32.mxu0 0.0
  %6127 = vmatmul.mubr.f32.gmra.mxu0 %v5987
  %v6128 = vpop.f32.mrf.mxu0
  %v6129 = vadd.f32 %v5942, %v6128
  %v6130 = vpop.f32.mrf.mxu0
  %6131 = vmatprep.mubr.f32.mxu0 0.0
  %6132 = vmatmul.mubr.f32.gmra.mxu0 %v5990
  %v6133 = vpop.f32.mrf.mxu0
  %v6134 = vadd.f32 %v5942, %v6133
  %v6135 = vpop.f32.mrf.mxu0
  %6136 = vdwg.mxu0
  %v6137 = vmax.f32 %v6059, 0.0
  %v6138 = vmax.f32 %v6064, 0.0
  %v6139 = vmax.f32 %v6069, 0.0
  %v6140 = vmax.f32 %v6074, 0.0
  %v6141 = vmax.f32 %v6079, 0.0
  %v6142 = vmax.f32 %v6084, 0.0
  %v6143 = vmax.f32 %v6089, 0.0
  %v6144 = vmax.f32 %v6094, 0.0
  %v6145 = vmax.f32 %v6099, 0.0
  %v6146 = vmax.f32 %v6104, 0.0
  %v6147 = vmax.f32 %v6109, 0.0
  %v6148 = vmax.f32 %v6114, 0.0
  %v6149 = vmax.f32 %v6119, 0.0
  %v6150 = vmax.f32 %v6124, 0.0
  %v6151 = vmax.f32 %v6129, 0.0
  %v6152 = vmax.f32 %v6134, 0.0
  %v6153 = vld [vmem:[%s15] sm:$0xff]
  %v6154 = vld [vmem:[%s15 + $0x8] sm:$0xff]
  %v6155 = vld [vmem:[%s15 + $0x10] sm:$0xff]
  %v6156 = vld [vmem:[%s15 + $0x18] sm:$0xff]
  %v6157 = vld [vmem:[%s16] sm:$0x1]
  %v6159 = vlaneseq
  %v6160 = vshrl.u32 %v6159, 7
  %v6161 = vsub.s32 0, %v6160
  %v6162 = vrot.slane %v6157, %v6161
  %v6165 = vsel %vm4424, %v6137, 0
  %v6168 = vsel %vm4424, %v6138, 0
  %v6171 = vsel %vm4424, %v6139, 0
  %v6174 = vsel %vm4424, %v6140, 0
  %v6177 = vsel %vm4424, %v6141, 0
  %v6180 = vsel %vm4424, %v6142, 0
  %v6183 = vsel %vm4424, %v6143, 0
  %v6186 = vsel %vm4424, %v6144, 0
  %v6189 = vsel %vm4424, %v6145, 0
  %v6192 = vsel %vm4424, %v6146, 0
  %v6195 = vsel %vm4424, %v6147, 0
  %v6198 = vsel %vm4424, %v6148, 0
  %v6201 = vsel %vm4424, %v6149, 0
  %v6204 = vsel %vm4424, %v6150, 0
  %v6207 = vsel %vm4424, %v6151, 0
  %v6210 = vsel %vm4424, %v6152, 0
  %6212 = vmatprep.subr.mxu0 0.0
  %6213 = vmatpush1.msra.mxu0 0.0
  %6214 = vmatprep.subr.mxu0 0.0
  %6215 = vmatpush1.msra.mxu0 0.0
  %6216 = vmatprep.subr.mxu0 0.0
  %6217 = vmatpush1.msra.mxu0 0.0
  %6218 = vmatprep.subr.mxu0 0.0
  %6219 = vmatpush1.msra.mxu0 0.0
  %6220 = vmatprep.subr.mxu0 0.0
  %6221 = vmatpush1.msra.mxu0 0.0
  %6222 = vmatprep.subr.mxu0 0.0
  %6223 = vmatpush1.msra.mxu0 0.0
  %6224 = vmatprep.subr.mxu0 0.0
  %6225 = vmatpush1.msra.mxu0 0.0
  %6226 = vmatprep.subr.mxu0 0.0
  %6227 = vmatpush1.msra.mxu0 0.0
  %6228 = vmatprep.subr.mxu0 0.0
  %6229 = vmatpush1.msra.mxu0 0.0
  %6230 = vmatprep.subr.mxu0 0.0
  %6231 = vmatpush1.msra.mxu0 0.0
  %6232 = vmatprep.subr.mxu0 0.0
  %6233 = vmatpush1.msra.mxu0 0.0
  %6234 = vmatprep.subr.mxu0 0.0
  %6235 = vmatpush1.msra.mxu0 0.0
  %6236 = vmatprep.subr.mxu0 0.0
  %6237 = vmatpush1.msra.mxu0 %v6156
  %6238 = vmatprep.subr.mxu0 0.0
  %6239 = vmatpush1.msra.mxu0 %v6155
  %6240 = vmatprep.subr.mxu0 0.0
  %6241 = vmatpush1.msra.mxu0 %v6154
  %6242 = vmatprep.subr.mxu0 0.0
  %6243 = vmatpush1.msra.mxu0 %v6153
  %6244 = vmatprep.subr.mxu0 0.0
  %6245 = vmatpush2.msra.mxu0 0.0
  %6246 = vmatprep.subr.mxu0 0.0
  %6247 = vmatpush2.msra.mxu0 0.0
  %6248 = vmatprep.subr.mxu0 0.0
  %6249 = vmatpush2.msra.mxu0 0.0
  %6250 = vmatprep.subr.mxu0 0.0
  %6251 = vmatpush2.msra.mxu0 0.0
  %6252 = vmatprep.subr.mxu0 0.0
  %6253 = vmatpush2.msra.mxu0 0.0
  %6254 = vmatprep.subr.mxu0 0.0
  %6255 = vmatpush2.msra.mxu0 0.0
  %6256 = vmatprep.subr.mxu0 0.0
  %6257 = vmatpush2.msra.mxu0 0.0
  %6258 = vmatprep.subr.mxu0 0.0
  %6259 = vmatpush2.msra.mxu0 0.0
  %6260 = vmatprep.subr.mxu0 0.0
  %6261 = vmatpush2.msra.mxu0 0.0
  %6262 = vmatprep.subr.mxu0 0.0
  %6263 = vmatpush2.msra.mxu0 0.0
  %6264 = vmatprep.subr.mxu0 0.0
  %6265 = vmatpush2.msra.mxu0 0.0
  %6266 = vmatprep.subr.mxu0 0.0
  %6267 = vmatpush2.msra.mxu0 0.0
  %6268 = vmatprep.subr.mxu0 0.0
  %6269 = vmatpush2.msra.mxu0 0.0
  %6270 = vmatprep.subr.mxu0 0.0
  %6271 = vmatpush2.msra.mxu0 0.0
  %6272 = vmatprep.subr.mxu0 0.0
  %6273 = vmatpush2.msra.mxu0 0.0
  %6274 = vmatprep.subr.mxu0 0.0
  %6275 = vmatpush2.msra.mxu0 0.0
  %6276 = vmatprep.mubr.f32.mxu0 0.0
  %6277 = vmatmul.mubr.f32.gmra.mxu0 %v6165
  %v6278 = vpop.f32.mrf.mxu0
  %v6279 = vadd.f32 %v6162, %v6278
  %v6280 = vpop.f32.mrf.mxu0
  %6281 = vmatprep.mubr.f32.mxu0 0.0
  %6282 = vmatmul.mubr.f32.gmra.mxu0 %v6168
  %v6283 = vpop.f32.mrf.mxu0
  %v6284 = vadd.f32 %v6162, %v6283
  %v6285 = vpop.f32.mrf.mxu0
  %6286 = vmatprep.mubr.f32.mxu0 0.0
  %6287 = vmatmul.mubr.f32.gmra.mxu0 %v6171
  %v6288 = vpop.f32.mrf.mxu0
  %v6289 = vadd.f32 %v6162, %v6288
  %v6290 = vpop.f32.mrf.mxu0
  %6291 = vmatprep.mubr.f32.mxu0 0.0
  %6292 = vmatmul.mubr.f32.gmra.mxu0 %v6174
  %v6293 = vpop.f32.mrf.mxu0
  %v6294 = vadd.f32 %v6162, %v6293
  %v6295 = vpop.f32.mrf.mxu0
  %6296 = vmatprep.mubr.f32.mxu0 0.0
  %6297 = vmatmul.mubr.f32.gmra.mxu0 %v6177
  %v6298 = vpop.f32.mrf.mxu0
  %v6299 = vadd.f32 %v6162, %v6298
  %v6300 = vpop.f32.mrf.mxu0
  %6301 = vmatprep.mubr.f32.mxu0 0.0
  %6302 = vmatmul.mubr.f32.gmra.mxu0 %v6180
  %v6303 = vpop.f32.mrf.mxu0
  %v6304 = vadd.f32 %v6162, %v6303
  %v6305 = vpop.f32.mrf.mxu0
  %6306 = vmatprep.mubr.f32.mxu0 0.0
  %6307 = vmatmul.mubr.f32.gmra.mxu0 %v6183
  %v6308 = vpop.f32.mrf.mxu0
  %v6309 = vadd.f32 %v6162, %v6308
  %v6310 = vpop.f32.mrf.mxu0
  %6311 = vmatprep.mubr.f32.mxu0 0.0
  %6312 = vmatmul.mubr.f32.gmra.mxu0 %v6186
  %v6313 = vpop.f32.mrf.mxu0
  %v6314 = vadd.f32 %v6162, %v6313
  %v6315 = vpop.f32.mrf.mxu0
  %6316 = vmatprep.mubr.f32.mxu0 0.0
  %6317 = vmatmul.mubr.f32.gmra.mxu0 %v6189
  %v6318 = vpop.f32.mrf.mxu0
  %v6319 = vadd.f32 %v6162, %v6318
  %v6320 = vpop.f32.mrf.mxu0
  %6321 = vmatprep.mubr.f32.mxu0 0.0
  %6322 = vmatmul.mubr.f32.gmra.mxu0 %v6192
  %v6323 = vpop.f32.mrf.mxu0
  %v6324 = vadd.f32 %v6162, %v6323
  %v6325 = vpop.f32.mrf.mxu0
  %6326 = vmatprep.mubr.f32.mxu0 0.0
  %6327 = vmatmul.mubr.f32.gmra.mxu0 %v6195
  %v6328 = vpop.f32.mrf.mxu0
  %v6329 = vadd.f32 %v6162, %v6328
  %v6330 = vpop.f32.mrf.mxu0
  %6331 = vmatprep.mubr.f32.mxu0 0.0
  %6332 = vmatmul.mubr.f32.gmra.mxu0 %v6198
  %v6333 = vpop.f32.mrf.mxu0
  %v6334 = vadd.f32 %v6162, %v6333
  %v6335 = vpop.f32.mrf.mxu0
  %6336 = vmatprep.mubr.f32.mxu0 0.0
  %6337 = vmatmul.mubr.f32.gmra.mxu0 %v6201
  %v6338 = vpop.f32.mrf.mxu0
  %v6339 = vadd.f32 %v6162, %v6338
  %v6340 = vpop.f32.mrf.mxu0
  %6341 = vmatprep.mubr.f32.mxu0 0.0
  %6342 = vmatmul.mubr.f32.gmra.mxu0 %v6204
  %v6343 = vpop.f32.mrf.mxu0
  %v6344 = vadd.f32 %v6162, %v6343
  %v6345 = vpop.f32.mrf.mxu0
  %6346 = vmatprep.mubr.f32.mxu0 0.0
  %6347 = vmatmul.mubr.f32.gmra.mxu0 %v6207
  %v6348 = vpop.f32.mrf.mxu0
  %v6349 = vadd.f32 %v6162, %v6348
  %v6350 = vpop.f32.mrf.mxu0
  %6351 = vmatprep.mubr.f32.mxu0 0.0
  %6352 = vmatmul.mubr.f32.gmra.mxu0 %v6210
  %v6353 = vpop.f32.mrf.mxu0
  %v6354 = vadd.f32 %v6162, %v6353
  %v6355 = vpop.f32.mrf.mxu0
  %6356 = vdwg.mxu0
  %v6357 = vmax.f32 %v6279, 0.0
  %v6358 = vmax.f32 %v6284, 0.0
  %v6359 = vmax.f32 %v6289, 0.0
  %v6360 = vmax.f32 %v6294, 0.0
  %v6361 = vmax.f32 %v6299, 0.0
  %v6362 = vmax.f32 %v6304, 0.0
  %v6363 = vmax.f32 %v6309, 0.0
  %v6364 = vmax.f32 %v6314, 0.0
  %v6365 = vmax.f32 %v6319, 0.0
  %v6366 = vmax.f32 %v6324, 0.0
  %v6367 = vmax.f32 %v6329, 0.0
  %v6368 = vmax.f32 %v6334, 0.0
  %v6369 = vmax.f32 %v6339, 0.0
  %v6370 = vmax.f32 %v6344, 0.0
  %v6371 = vmax.f32 %v6349, 0.0
  %v6372 = vmax.f32 %v6354, 0.0
  %v6373 = vld [vmem:[%s17] sm:$0xff]
  %v6374 = vld [vmem:[%s17 + $0x8] sm:$0xff]
  %v6375 = vld [vmem:[%s17 + $0x10] sm:$0xff]
  %v6376 = vld [vmem:[%s17 + $0x18] sm:$0xff]
  %v6377 = vld [vmem:[%s18] sm:$0x1]
  %v6379 = vlaneseq
  %v6380 = vshrl.u32 %v6379, 7
  %v6381 = vsub.s32 0, %v6380
  %v6382 = vrot.slane %v6377, %v6381
  %v6385 = vsel %vm4424, %v6357, 0
  %v6388 = vsel %vm4424, %v6358, 0
  %v6391 = vsel %vm4424, %v6359, 0
  %v6394 = vsel %vm4424, %v6360, 0
  %v6397 = vsel %vm4424, %v6361, 0
  %v6400 = vsel %vm4424, %v6362, 0
  %v6403 = vsel %vm4424, %v6363, 0
  %v6406 = vsel %vm4424, %v6364, 0
  %v6409 = vsel %vm4424, %v6365, 0
  %v6412 = vsel %vm4424, %v6366, 0
  %v6415 = vsel %vm4424, %v6367, 0
  %v6418 = vsel %vm4424, %v6368, 0
  %v6421 = vsel %vm4424, %v6369, 0
  %v6424 = vsel %vm4424, %v6370, 0
  %v6427 = vsel %vm4424, %v6371, 0
  %v6430 = vsel %vm4424, %v6372, 0
  %6432 = vmatprep.subr.mxu0 0.0
  %6433 = vmatpush1.msra.mxu0 0.0
  %6434 = vmatprep.subr.mxu0 0.0
  %6435 = vmatpush1.msra.mxu0 0.0
  %6436 = vmatprep.subr.mxu0 0.0
  %6437 = vmatpush1.msra.mxu0 0.0
  %6438 = vmatprep.subr.mxu0 0.0
  %6439 = vmatpush1.msra.mxu0 0.0
  %6440 = vmatprep.subr.mxu0 0.0
  %6441 = vmatpush1.msra.mxu0 0.0
  %6442 = vmatprep.subr.mxu0 0.0
  %6443 = vmatpush1.msra.mxu0 0.0
  %6444 = vmatprep.subr.mxu0 0.0
  %6445 = vmatpush1.msra.mxu0 0.0
  %6446 = vmatprep.subr.mxu0 0.0
  %6447 = vmatpush1.msra.mxu0 0.0
  %6448 = vmatprep.subr.mxu0 0.0
  %6449 = vmatpush1.msra.mxu0 0.0
  %6450 = vmatprep.subr.mxu0 0.0
  %6451 = vmatpush1.msra.mxu0 0.0
  %6452 = vmatprep.subr.mxu0 0.0
  %6453 = vmatpush1.msra.mxu0 0.0
  %6454 = vmatprep.subr.mxu0 0.0
  %6455 = vmatpush1.msra.mxu0 0.0
  %6456 = vmatprep.subr.mxu0 0.0
  %6457 = vmatpush1.msra.mxu0 %v6376
  %6458 = vmatprep.subr.mxu0 0.0
  %6459 = vmatpush1.msra.mxu0 %v6375
  %6460 = vmatprep.subr.mxu0 0.0
  %6461 = vmatpush1.msra.mxu0 %v6374
  %6462 = vmatprep.subr.mxu0 0.0
  %6463 = vmatpush1.msra.mxu0 %v6373
  %6464 = vmatprep.subr.mxu0 0.0
  %6465 = vmatpush2.msra.mxu0 0.0
  %6466 = vmatprep.subr.mxu0 0.0
  %6467 = vmatpush2.msra.mxu0 0.0
  %6468 = vmatprep.subr.mxu0 0.0
  %6469 = vmatpush2.msra.mxu0 0.0
  %6470 = vmatprep.subr.mxu0 0.0
  %6471 = vmatpush2.msra.mxu0 0.0
  %6472 = vmatprep.subr.mxu0 0.0
  %6473 = vmatpush2.msra.mxu0 0.0
  %6474 = vmatprep.subr.mxu0 0.0
  %6475 = vmatpush2.msra.mxu0 0.0
  %6476 = vmatprep.subr.mxu0 0.0
  %6477 = vmatpush2.msra.mxu0 0.0
  %6478 = vmatprep.subr.mxu0 0.0
  %6479 = vmatpush2.msra.mxu0 0.0
  %6480 = vmatprep.subr.mxu0 0.0
  %6481 = vmatpush2.msra.mxu0 0.0
  %6482 = vmatprep.subr.mxu0 0.0
  %6483 = vmatpush2.msra.mxu0 0.0
  %6484 = vmatprep.subr.mxu0 0.0
  %6485 = vmatpush2.msra.mxu0 0.0
  %6486 = vmatprep.subr.mxu0 0.0
  %6487 = vmatpush2.msra.mxu0 0.0
  %6488 = vmatprep.subr.mxu0 0.0
  %6489 = vmatpush2.msra.mxu0 0.0
  %6490 = vmatprep.subr.mxu0 0.0
  %6491 = vmatpush2.msra.mxu0 0.0
  %6492 = vmatprep.subr.mxu0 0.0
  %6493 = vmatpush2.msra.mxu0 0.0
  %6494 = vmatprep.subr.mxu0 0.0
  %6495 = vmatpush2.msra.mxu0 0.0
  %6496 = vmatprep.mubr.f32.mxu0 0.0
  %6497 = vmatmul.mubr.f32.gmra.mxu0 %v6385
  %v6498 = vpop.f32.mrf.mxu0
  %v6499 = vadd.f32 %v6382, %v6498
  %v6500 = vpop.f32.mrf.mxu0
  %6501 = vmatprep.mubr.f32.mxu0 0.0
  %6502 = vmatmul.mubr.f32.gmra.mxu0 %v6388
  %v6503 = vpop.f32.mrf.mxu0
  %v6504 = vadd.f32 %v6382, %v6503
  %v6505 = vpop.f32.mrf.mxu0
  %6506 = vmatprep.mubr.f32.mxu0 0.0
  %6507 = vmatmul.mubr.f32.gmra.mxu0 %v6391
  %v6508 = vpop.f32.mrf.mxu0
  %v6509 = vadd.f32 %v6382, %v6508
  %v6510 = vpop.f32.mrf.mxu0
  %6511 = vmatprep.mubr.f32.mxu0 0.0
  %6512 = vmatmul.mubr.f32.gmra.mxu0 %v6394
  %v6513 = vpop.f32.mrf.mxu0
  %v6514 = vadd.f32 %v6382, %v6513
  %v6515 = vpop.f32.mrf.mxu0
  %6516 = vmatprep.mubr.f32.mxu0 0.0
  %6517 = vmatmul.mubr.f32.gmra.mxu0 %v6397
  %v6518 = vpop.f32.mrf.mxu0
  %v6519 = vadd.f32 %v6382, %v6518
  %v6520 = vpop.f32.mrf.mxu0
  %6521 = vmatprep.mubr.f32.mxu0 0.0
  %6522 = vmatmul.mubr.f32.gmra.mxu0 %v6400
  %v6523 = vpop.f32.mrf.mxu0
  %v6524 = vadd.f32 %v6382, %v6523
  %v6525 = vpop.f32.mrf.mxu0
  %6526 = vmatprep.mubr.f32.mxu0 0.0
  %6527 = vmatmul.mubr.f32.gmra.mxu0 %v6403
  %v6528 = vpop.f32.mrf.mxu0
  %v6529 = vadd.f32 %v6382, %v6528
  %v6530 = vpop.f32.mrf.mxu0
  %6531 = vmatprep.mubr.f32.mxu0 0.0
  %6532 = vmatmul.mubr.f32.gmra.mxu0 %v6406
  %v6533 = vpop.f32.mrf.mxu0
  %v6534 = vadd.f32 %v6382, %v6533
  %v6535 = vpop.f32.mrf.mxu0
  %6536 = vmatprep.mubr.f32.mxu0 0.0
  %6537 = vmatmul.mubr.f32.gmra.mxu0 %v6409
  %v6538 = vpop.f32.mrf.mxu0
  %v6539 = vadd.f32 %v6382, %v6538
  %v6540 = vpop.f32.mrf.mxu0
  %6541 = vmatprep.mubr.f32.mxu0 0.0
  %6542 = vmatmul.mubr.f32.gmra.mxu0 %v6412
  %v6543 = vpop.f32.mrf.mxu0
  %v6544 = vadd.f32 %v6382, %v6543
  %v6545 = vpop.f32.mrf.mxu0
  %6546 = vmatprep.mubr.f32.mxu0 0.0
  %6547 = vmatmul.mubr.f32.gmra.mxu0 %v6415
  %v6548 = vpop.f32.mrf.mxu0
  %v6549 = vadd.f32 %v6382, %v6548
  %v6550 = vpop.f32.mrf.mxu0
  %6551 = vmatprep.mubr.f32.mxu0 0.0
  %6552 = vmatmul.mubr.f32.gmra.mxu0 %v6418
  %v6553 = vpop.f32.mrf.mxu0
  %v6554 = vadd.f32 %v6382, %v6553
  %v6555 = vpop.f32.mrf.mxu0
  %6556 = vmatprep.mubr.f32.mxu0 0.0
  %6557 = vmatmul.mubr.f32.gmra.mxu0 %v6421
  %v6558 = vpop.f32.mrf.mxu0
  %v6559 = vadd.f32 %v6382, %v6558
  %v6560 = vpop.f32.mrf.mxu0
  %6561 = vmatprep.mubr.f32.mxu0 0.0
  %6562 = vmatmul.mubr.f32.gmra.mxu0 %v6424
  %v6563 = vpop.f32.mrf.mxu0
  %v6564 = vadd.f32 %v6382, %v6563
  %v6565 = vpop.f32.mrf.mxu0
  %6566 = vmatprep.mubr.f32.mxu0 0.0
  %6567 = vmatmul.mubr.f32.gmra.mxu0 %v6427
  %v6568 = vpop.f32.mrf.mxu0
  %v6569 = vadd.f32 %v6382, %v6568
  %v6570 = vpop.f32.mrf.mxu0
  %6571 = vmatprep.mubr.f32.mxu0 0.0
  %6572 = vmatmul.mubr.f32.gmra.mxu0 %v6430
  %v6573 = vpop.f32.mrf.mxu0
  %v6574 = vadd.f32 %v6382, %v6573
  %v6575 = vpop.f32.mrf.mxu0
  %6576 = vdwg.mxu0
  %v6577 = vadd.f32 %v5491, %v6499
  %v6578 = vadd.f32 %v5492, %v6504
  %v6579 = vadd.f32 %v5493, %v6509
  %v6580 = vadd.f32 %v5494, %v6514
  %v6581 = vadd.f32 %v5495, %v6519
  %v6582 = vadd.f32 %v5496, %v6524
  %v6583 = vadd.f32 %v5497, %v6529
  %v6584 = vadd.f32 %v5498, %v6534
  %v6585 = vadd.f32 %v5499, %v6539
  %v6586 = vadd.f32 %v5500, %v6544
  %v6587 = vadd.f32 %v5501, %v6549
  %v6588 = vadd.f32 %v5502, %v6554
  %v6589 = vadd.f32 %v5503, %v6559
  %v6590 = vadd.f32 %v5504, %v6564
  %v6591 = vadd.f32 %v5505, %v6569
  %v6592 = vadd.f32 %v5506, %v6574
  %vm6593 = vcmask 48128
  %6594 = vst.msk [vmem:[%s19] sm:$0xff] %vm6593, %v6577
  %6595 = vst.msk [vmem:[%s19 + $0x8] sm:$0xff] %vm6593, %v6578
  %6596 = vst.msk [vmem:[%s19 + $0x10] sm:$0xff] %vm6593, %v6579
  %6597 = vst.msk [vmem:[%s19 + $0x18] sm:$0xff] %vm6593, %v6580
  %6598 = vst.msk [vmem:[%s19 + $0x20] sm:$0xff] %vm6593, %v6581
  %6599 = vst.msk [vmem:[%s19 + $0x28] sm:$0xff] %vm6593, %v6582
  %6600 = vst.msk [vmem:[%s19 + $0x30] sm:$0xff] %vm6593, %v6583
  %6601 = vst.msk [vmem:[%s19 + $0x38] sm:$0xff] %vm6593, %v6584
  %6602 = vst.msk [vmem:[%s19 + $0x40] sm:$0xff] %vm6593, %v6585
  %6603 = vst.msk [vmem:[%s19 + $0x48] sm:$0xff] %vm6593, %v6586
  %6604 = vst.msk [vmem:[%s19 + $0x50] sm:$0xff] %vm6593, %v6587
  %6605 = vst.msk [vmem:[%s19 + $0x58] sm:$0xff] %vm6593, %v6588
  %6606 = vst.msk [vmem:[%s19 + $0x60] sm:$0xff] %vm6593, %v6589
  %6607 = vst.msk [vmem:[%s19 + $0x68] sm:$0xff] %vm6593, %v6590
  %6608 = vst.msk [vmem:[%s19 + $0x70] sm:$0xff] %vm6593, %v6591
  %6609 = vst.msk [vmem:[%s19 + $0x78] sm:$0xff] %vm6593, %v6592
  // Predicated region
  $region78: #{run_forward.1} parent=0 // pred_check
    _
  $region79: #{run_forward.1} parent=0 // pred_check_branch
    %6611 = sbr.rel (0) target = $region81
  $region80: #{run_forward.1} parent=0 // pred_region
    _
  $region81: #{run_forward.1} parent=0 // pred_fallthru
    _
  // Predicated region
  $region82: #{run_forward.1} parent=0 // pred_check
    _
  $region83: #{run_forward.1} parent=0 // pred_check_branch
    %6613 = sbr.rel (0) target = $region85
  $region84: #{run_forward.1} parent=0 // pred_region
    _
  $region85: #{run_forward.1} parent=0 // pred_fallthru
    _

</llo_original>
